<compile_context>
chip_gen: v7x
topology: tpu7x:2x2x1
jax: 0.10.0
libtpu: 0.0.40
codegen_flags: <defaults>
</compile_context>

<pallas_src>
import functools

import numpy as np
import jax
import jax.numpy as jnp
from jax.experimental import pallas as pl
from jax.experimental.pallas import tpu as pltpu

NZ, NGF, NC = 100, 32, 3          # nz, ngf, nc from the PyTorch script
BN_EPS = 1e-5
LANE = 128

# Sub-pixel (4-phase) decomposition of ConvTranspose2d(k=4, s=2, p=1):
#   out[n, 2i+a, 2j+b, :] = sum_{(dh,kh) in TAPS[a]} sum_{(dw,kw) in TAPS[b]}
#                             x[n, i+dh, j+dw, :] @ W[:, :, kh, kw]
# (zero outside the input).  Phase index p = 2*a + b everywhere below.
_TAPS = {0: ((-1, 3), (0, 1)), 1: ((0, 2), (1, 0))}


def _round_up(x, m):
    return -(-x // m) * m


# ----------------------------- Pallas kernels -----------------------------

def _dense_bn_relu_kernel(z_ref, w_ref, g_ref, beta_ref, o_ref, *, n_spatial, count, eps):
    """Layer 1: z(N,K) @ W(K, n_spatial*C) + batch-norm + ReLU, bf16 out.

    Output columns are ordered (spatial, channel); per-channel stats are obtained
    by folding the n_spatial lane-aligned 128-wide column blocks.
    """
    c = g_ref.shape[-1]
    acc = jnp.dot(z_ref[...], w_ref[...], preferred_element_type=jnp.float32)
    s = jnp.zeros((1, c), jnp.float32)
    ss = jnp.zeros((1, c), jnp.float32)
    for i in range(n_spatial):                              # lane-aligned block fold
        blk = acc[:, i * c:(i + 1) * c]
        s = s + jnp.sum(blk, axis=0, keepdims=True)
        ss = ss + jnp.sum(blk * blk, axis=0, keepdims=True)
    inv_cnt = 1.0 / count
    mean = s * inv_cnt
    var = jnp.maximum(ss * inv_cnt - mean * mean, 0.0)      # guard cancellation -> NaN
    scale = g_ref[...] * jax.lax.rsqrt(var + eps)           # BN affine pre-combined
    shift = beta_ref[...] - mean * scale
    for i in range(n_spatial):
        blk = acc[:, i * c:(i + 1) * c]
        o_ref[:, i * c:(i + 1) * c] = jnp.maximum(blk * scale + shift, 0.0).astype(o_ref.dtype)


def _phase_matmul_bn_relu_kernel(a_ref, b_ref, g_ref, beta_ref, o_ref, acc_ref, *, count, eps):
    """Stride-2 layer: per-phase MXU matmul + batch-norm over all phases + ReLU, bf16 out."""
    nph = a_ref.shape[0]
    c = g_ref.shape[-1]
    s = jnp.zeros((1, c), jnp.float32)
    ss = jnp.zeros((1, c), jnp.float32)
    for p in range(nph):                   # chunked stats: one phase accumulator live at a time
        acc = jnp.dot(a_ref[p], b_ref[p], preferred_element_type=jnp.float32)
        acc_ref[p] = acc
        s = s + jnp.sum(acc, axis=0, keepdims=True)
        ss = ss + jnp.sum(acc * acc, axis=0, keepdims=True)
    inv_cnt = 1.0 / count
    mean = s * inv_cnt
    var = jnp.maximum(ss * inv_cnt - mean * mean, 0.0)
    scale = g_ref[...] * jax.lax.rsqrt(var + eps)           # y = max(acc*scale + shift, 0)
    shift = beta_ref[...] - mean * scale
    for p in range(nph):
        o_ref[p] = jnp.maximum(acc_ref[p] * scale + shift, 0.0).astype(o_ref.dtype)


def _phase_matmul_tanh_kernel(wt_ref, pt_ref, o_ref):
    """Final layer, transposed: W^T(Cout_pad,K) @ patches^T(K,M) then tanh.

    Channels sit on sublanes and spatial on lanes, so the tanh (single EUP slot)
    runs on ~16 vregs instead of a 125/128-padded-lane block, and stores are
    lane-dense in spatial.
    """
    for p in range(wt_ref.shape[0]):
        acc = jnp.dot(wt_ref[p], pt_ref[p], preferred_element_type=jnp.float32)
        o_ref[p] = jnp.tanh(acc)


# ----------------------------- kernel wrappers -----------------------------

def dense_bn_relu(z_mat, w_mat, gamma_row, beta_row, n_spatial):
    n, k = z_mat.shape
    k2, cols = w_mat.shape
    c = gamma_row.shape[-1]
    assert k == k2 and cols == n_spatial * c and c % LANE == 0
    kern = functools.partial(_dense_bn_relu_kernel, n_spatial=n_spatial,
                             count=float(n * n_spatial), eps=BN_EPS)
    return pl.pallas_call(
        kern,
        out_shape=jax.ShapeDtypeStruct((n, cols), jnp.bfloat16),
    )(z_mat, w_mat, gamma_row, beta_row)


def phase_matmul_bn_relu(a, b, gamma_row, beta_row):
    nph, m, k = a.shape
    nph2, k2, cpad = b.shape
    assert nph == nph2 and k == k2 and cpad % LANE == 0 and m % 8 == 0
    kern = functools.partial(_phase_matmul_bn_relu_kernel,
                             count=float(nph * m), eps=BN_EPS)
    return pl.pallas_call(
        kern,
        out_shape=jax.ShapeDtypeStruct((nph, m, cpad), jnp.bfloat16),
        scratch_shapes=[pltpu.VMEM((nph, m, cpad), jnp.float32)],
    )(a, b, gamma_row, beta_row)


def phase_matmul_tanh(w_t, p_t):
    nph, cpad, k = w_t.shape
    nph2, k2, m = p_t.shape
    assert nph == nph2 and k == k2 and m % LANE == 0
    return pl.pallas_call(
        _phase_matmul_tanh_kernel,
        out_shape=jax.ShapeDtypeStruct((nph, cpad, m), jnp.float32),
    )(w_t, p_t)


# --------------------------- weight / param prep ---------------------------

def _dense_w1_matrix(w_ct):
    """(nz, Cout, 4, 4) -> bf16 (K=128, 16*Cout) matrix, columns ordered (h, w, cout)."""
    ci, co, kh, kw = w_ct.shape
    m = jnp.transpose(w_ct, (0, 2, 3, 1)).reshape(ci, kh * kw * co)
    m = jnp.pad(m, ((0, _round_up(ci, LANE) - ci), (0, 0)))   # zero rows: padded z lanes
    return m.astype(jnp.bfloat16)


def _phase_weights(w_ct, cout_pad):
    """(Cin, Cout, 4, 4) -> bf16 (4, 4*Cin, cout_pad); K ordered (tap, cin)."""
    co = w_ct.shape[1]
    mats = []
    for a in (0, 1):
        for b in (0, 1):
            blocks = [w_ct[:, :, kh, kw] for _, kh in _TAPS[a] for _, kw in _TAPS[b]]
            m = jnp.concatenate(blocks, axis=0)               # (4*Cin, Cout)
            mats.append(jnp.pad(m, ((0, 0), (0, cout_pad - co))))
    return jnp.stack(mats, axis=0).astype(jnp.bfloat16)


def _phase_weights_t(w_ct, cout_pad):
    """(Cin, Cout, 4, 4) -> bf16 (4, cout_pad, 4*Cin) for the transposed final layer."""
    co = w_ct.shape[1]
    mats = []
    for a in (0, 1):
        for b in (0, 1):
            blocks = [w_ct[:, :, kh, kw].T for _, kh in _TAPS[a] for _, kw in _TAPS[b]]
            m = jnp.concatenate(blocks, axis=1)               # (Cout, 4*Cin)
            mats.append(jnp.pad(m, ((0, cout_pad - co), (0, 0))))
    return jnp.stack(mats, axis=0).astype(jnp.bfloat16)


def _bn_rows(gamma, beta, cpad=LANE):
    c = gamma.shape[0]
    g = jnp.pad(gamma.astype(jnp.float32), (0, cpad - c), constant_values=1.0)
    b = jnp.pad(beta.astype(jnp.float32), (0, cpad - c))
    return g.reshape(1, cpad), b.reshape(1, cpad)


def prepare_generator_params(params):
    """Hoisted, once-per-parameter-set weight prep (tap extraction / pad / bf16)."""
    w1, g1, b1, w2, g2, b2, w3, g3, b3, w4 = params
    return (_dense_w1_matrix(w1), *_bn_rows(g1, b1),
            _phase_weights(w2, LANE), *_bn_rows(g2, b2),
            _phase_weights(w3, LANE), *_bn_rows(g3, b3),
            _phase_weights_t(w4, 8))


# --------------------------- XLA glue (patching) ---------------------------

def _phase_patches(x):
    """NHWC activation -> (4, N*H*W, 4*C) phase patch matrices (bf16 passthrough)."""
    n, h, w, c = x.shape
    xp = jnp.pad(x, ((0, 0), (1, 1), (1, 1), (0, 0)))
    phases = []
    for a in (0, 1):
        for b in (0, 1):
            cols = [xp[:, 1 + dh:1 + dh + h, 1 + dw:1 + dw + w, :]
                    for dh, _ in _TAPS[a] for dw, _ in _TAPS[b]]
            phases.append(jnp.concatenate(cols, axis=-1).reshape(n * h * w, 4 * c))
    return jnp.stack(phases, axis=0)


def _phase_patches_t(x):
    """NHWC activation -> (4, 4*C, N*H*W) transposed phase patches for the tanh layer."""
    n, h, w, c = x.shape
    xp = jnp.pad(x, ((0, 0), (1, 1), (1, 1), (0, 0)))
    phases = []
    for a in (0, 1):
        for b in (0, 1):
            cols = [jnp.transpose(xp[:, 1 + dh:1 + dh + h, 1 + dw:1 + dw + w, :],
                                  (3, 0, 1, 2))
                    for dh, _ in _TAPS[a] for dw, _ in _TAPS[b]]
            phases.append(jnp.concatenate(cols, axis=0).reshape(4 * c, n * h * w))
    return jnp.stack(phases, axis=0)


def _interleave_phases_nhwc(y, n, h, w, c_real):
    """(4, N*H*W, Cpad) phase outputs -> (N, 2H, 2W, c_real)."""
    y = y.reshape(2, 2, n, h, w, y.shape[-1])                 # (a, b, n, i, j, c)
    y = y.transpose(2, 3, 0, 4, 1, 5)                         # (n, i, a, j, b, c)
    return y.reshape(n, 2 * h, 2 * w, y.shape[-1])[..., :c_real]


def _interleave_phases_nchw(y, n, h, w, c_real):
    """(4, Cpad, N*H*W) phase outputs -> (N, c_real, 2H, 2W)."""
    y = y.reshape(2, 2, y.shape[1], n, h, w)[:, :, :c_real]   # (a, b, c, n, i, j)
    y = y.transpose(3, 2, 4, 0, 5, 1)                         # (n, c, i, a, j, b)
    return y.reshape(n, c_real, 2 * h, 2 * w)


# ------------------------------ forward pass -------------------------------

@jax.jit
def generator_forward(z, prepared):
    w1m, g1, b1, w2p, g2, b2, w3p, g3, b3, w4p = prepared
    n = z.shape[0]

    # layer 1: ConvTranspose2d(nz, 4*ngf, 4, 1, 0) + BN + ReLU as one dense matmul -> 4x4
    zm = jnp.pad(z.reshape(n, NZ).astype(jnp.bfloat16), ((0, 0), (0, w1m.shape[0] - NZ)))
    y = dense_bn_relu(zm, w1m, g1, b1, n_spatial=16)          # (n, 16*128) bf16
    x = y.reshape(n, 4, 4, 4 * NGF)                           # 4*ngf == 128: no pad/slice

    # layer 2: ConvTranspose2d(4*ngf, 2*ngf, 4, 2, 1) + BN + ReLU, 4-phase -> 8x8
    y = phase_matmul_bn_relu(_phase_patches(x), w2p, g2, b2)  # (4, n*16, 128) bf16
    x = _interleave_phases_nhwc(y, n, 4, 4, 2 * NGF)          # (n, 8, 8, 64)

    # layer 3: ConvTranspose2d(2*ngf, ngf, 4, 2, 1) + BN + ReLU, 4-phase -> 16x16
    y = phase_matmul_bn_relu(_phase_patches(x), w3p, g3, b3)  # (4, n*64, 128) bf16
    x = _interleave_phases_nhwc(y, n, 8, 8, NGF)              # (n, 16, 16, 32)

    # layer 4: ConvTranspose2d(ngf, nc, 4, 2, 1) + Tanh, transposed 4-phase -> 32x32
    y = phase_matmul_tanh(w4p, _phase_patches_t(x))           # (4, 8, n*256) f32
    return _interleave_phases_nchw(y, n, 16, 16, NC)          # (n, 3, 32, 32) NCHW


# --------------------------- pure-JAX reference ----------------------------

def _ref_convt(x, w_ct, stride, pad):
    rhs = jnp.flip(w_ct, (2, 3)).transpose(1, 0, 2, 3)        # OIHW
    k = w_ct.shape[2]
    p = k - 1 - pad
    return jax.lax.conv_general_dilated(
        x, rhs, window_strides=(1, 1), padding=((p, p), (p, p)),
        lhs_dilation=(stride, stride),
        dimension_numbers=('NCHW', 'OIHW', 'NCHW'),
        precision=jax.lax.Precision.HIGHEST)


def _ref_bn_relu(x, g, b):
    mean = x.mean(axis=(0, 2, 3), keepdims=True)
    var = ((x - mean) ** 2).mean(axis=(0, 2, 3), keepdims=True)
    y = (x - mean) * jax.lax.rsqrt(var + BN_EPS)
    y = y * g.reshape(1, -1, 1, 1) + b.reshape(1, -1, 1, 1)
    return jnp.maximum(y, 0.0)


def generator_ref(z, params):
    w1, g1, b1, w2, g2, b2, w3, g3, b3, w4 = params
    x = _ref_bn_relu(_ref_convt(z, w1, 1, 0), g1, b1)
    x = _ref_bn_relu(_ref_convt(x, w2, 2, 1), g2, b2)
    x = _ref_bn_relu(_ref_convt(x, w3, 2, 1), g3, b3)
    return jnp.tanh(_ref_convt(x, w4, 2, 1))


# --------------------------------- main ------------------------------------

if __name__ == "__main__":
    key = jax.random.PRNGKey(0)
    keys = jax.random.split(key, 5)
    batch = 2

    z = jax.random.normal(keys[0], (batch, NZ, 1, 1), jnp.float32)
    # DCGAN-style deterministic init: conv weights ~ N(0, 0.02), BN gamma=1, beta=0.
    w1 = 0.02 * jax.random.normal(keys[1], (NZ, 4 * NGF, 4, 4), jnp.float32)
    w2 = 0.02 * jax.random.normal(keys[2], (4 * NGF, 2 * NGF, 4, 4), jnp.float32)
    w3 = 0.02 * jax.random.normal(keys[3], (2 * NGF, NGF, 4, 4), jnp.float32)
    w4 = 0.02 * jax.random.normal(keys[4], (NGF, NC, 4, 4), jnp.float32)
    g1, b1 = jnp.ones((4 * NGF,), jnp.float32), jnp.zeros((4 * NGF,), jnp.float32)
    g2, b2 = jnp.ones((2 * NGF,), jnp.float32), jnp.zeros((2 * NGF,), jnp.float32)
    g3, b3 = jnp.ones((NGF,), jnp.float32), jnp.zeros((NGF,), jnp.float32)
    params = (w1, g1, b1, w2, g2, b2, w3, g3, b3, w4)

    prepared = prepare_generator_params(params)    # hoisted weight prep (once)

    out = jax.block_until_ready(generator_forward(z, prepared))
    assert out.shape == (batch, NC, 32, 32), out.shape
    assert bool(jnp.all(jnp.isfinite(out)))

    ref = jax.block_until_ready(generator_ref(z, params))
    err = float(np.max(np.abs(np.asarray(out) - np.asarray(ref))))
    # bf16 MXU inputs (f32 accumulate / f32 BN math); tolerance covers bf16 quantization.
    assert err < 3e-2, f"max abs error vs f32 reference: {err}"

    print("KERNEL_OK")
</pallas_src>

<mosaic_0001>
module attributes {stable_mosaic.version = 11 : i64} {
  func.func @_dense_bn_relu_kernel(%arg0: memref<2x128xbf16, #tpu.memory_space<vmem>>, %arg1: memref<128x2048xbf16, #tpu.memory_space<vmem>>, %arg2: memref<1x128xf32, #tpu.memory_space<vmem>>, %arg3: memref<1x128xf32, #tpu.memory_space<vmem>>, %arg4: memref<2x2048xbf16, #tpu.memory_space<vmem>>) attributes {dimension_semantics = [], scalar_prefetch = 0 : i64, scratch_operands = 0 : i64, tpu.core_type = #tpu.core_type<tc>} {
    %c0 = arith.constant 0 : index
    %c0_0 = arith.constant 0 : index
    %0 = vector.load %arg0[%c0, %c0_0] : memref<2x128xbf16, #tpu.memory_space<vmem>>, vector<2x128xbf16>
    %c0_1 = arith.constant 0 : index
    %c0_2 = arith.constant 0 : index
    %1 = vector.load %arg1[%c0_1, %c0_2] : memref<128x2048xbf16, #tpu.memory_space<vmem>>, vector<128x2048xbf16>
    %cst = arith.constant dense<0.000000e+00> : vector<2x2048xf32>
    %2 = tpu.matmul %0, %1, %cst {dimension_numbers = #tpu.dot_dimension_numbers<[1], [0], [0], [1], [0, 0, 1, 1], [], []>} : vector<2x128xbf16>, vector<128x2048xbf16>, vector<2x2048xf32> -> vector<2x2048xf32>
    %cst_3 = arith.constant 0.000000e+00 : f32
    %3 = vector.broadcast %cst_3 : f32 to vector<1x128xf32>
    %cst_4 = arith.constant 0.000000e+00 : f32
    %4 = vector.broadcast %cst_4 : f32 to vector<1x128xf32>
    %5 = vector.extract_strided_slice %2 {offsets = [0, 0], sizes = [2, 128], strides = [1, 1]} : vector<2x2048xf32> to vector<2x128xf32>
    %cst_5 = arith.constant dense<0.000000e+00> : vector<128xf32>
    %6 = vector.multi_reduction <add>, %5, %cst_5 [0] : vector<2x128xf32> to vector<128xf32>
    %7 = vector.shape_cast %6 : vector<128xf32> to vector<1x128xf32>
    %8 = arith.addf %3, %7 : vector<1x128xf32>
    %9 = arith.mulf %5, %5 : vector<2x128xf32>
    %cst_6 = arith.constant dense<0.000000e+00> : vector<128xf32>
    %10 = vector.multi_reduction <add>, %9, %cst_6 [0] : vector<2x128xf32> to vector<128xf32>
    %11 = vector.shape_cast %10 : vector<128xf32> to vector<1x128xf32>
    %12 = arith.addf %4, %11 : vector<1x128xf32>
    %13 = vector.extract_strided_slice %2 {offsets = [0, 128], sizes = [2, 128], strides = [1, 1]} : vector<2x2048xf32> to vector<2x128xf32>
    %cst_7 = arith.constant dense<0.000000e+00> : vector<128xf32>
    %14 = vector.multi_reduction <add>, %13, %cst_7 [0] : vector<2x128xf32> to vector<128xf32>
    %15 = vector.shape_cast %14 : vector<128xf32> to vector<1x128xf32>
    %16 = arith.addf %8, %15 : vector<1x128xf32>
    %17 = arith.mulf %13, %13 : vector<2x128xf32>
    %cst_8 = arith.constant dense<0.000000e+00> : vector<128xf32>
    %18 = vector.multi_reduction <add>, %17, %cst_8 [0] : vector<2x128xf32> to vector<128xf32>
    %19 = vector.shape_cast %18 : vector<128xf32> to vector<1x128xf32>
    %20 = arith.addf %12, %19 : vector<1x128xf32>
    %21 = vector.extract_strided_slice %2 {offsets = [0, 256], sizes = [2, 128], strides = [1, 1]} : vector<2x2048xf32> to vector<2x128xf32>
    %cst_9 = arith.constant dense<0.000000e+00> : vector<128xf32>
    %22 = vector.multi_reduction <add>, %21, %cst_9 [0] : vector<2x128xf32> to vector<128xf32>
    %23 = vector.shape_cast %22 : vector<128xf32> to vector<1x128xf32>
    %24 = arith.addf %16, %23 : vector<1x128xf32>
    %25 = arith.mulf %21, %21 : vector<2x128xf32>
    %cst_10 = arith.constant dense<0.000000e+00> : vector<128xf32>
    %26 = vector.multi_reduction <add>, %25, %cst_10 [0] : vector<2x128xf32> to vector<128xf32>
    %27 = vector.shape_cast %26 : vector<128xf32> to vector<1x128xf32>
    %28 = arith.addf %20, %27 : vector<1x128xf32>
    %29 = vector.extract_strided_slice %2 {offsets = [0, 384], sizes = [2, 128], strides = [1, 1]} : vector<2x2048xf32> to vector<2x128xf32>
    %cst_11 = arith.constant dense<0.000000e+00> : vector<128xf32>
    %30 = vector.multi_reduction <add>, %29, %cst_11 [0] : vector<2x128xf32> to vector<128xf32>
    %31 = vector.shape_cast %30 : vector<128xf32> to vector<1x128xf32>
    %32 = arith.addf %24, %31 : vector<1x128xf32>
    %33 = arith.mulf %29, %29 : vector<2x128xf32>
    %cst_12 = arith.constant dense<0.000000e+00> : vector<128xf32>
    %34 = vector.multi_reduction <add>, %33, %cst_12 [0] : vector<2x128xf32> to vector<128xf32>
    %35 = vector.shape_cast %34 : vector<128xf32> to vector<1x128xf32>
    %36 = arith.addf %28, %35 : vector<1x128xf32>
    %37 = vector.extract_strided_slice %2 {offsets = [0, 512], sizes = [2, 128], strides = [1, 1]} : vector<2x2048xf32> to vector<2x128xf32>
    %cst_13 = arith.constant dense<0.000000e+00> : vector<128xf32>
    %38 = vector.multi_reduction <add>, %37, %cst_13 [0] : vector<2x128xf32> to vector<128xf32>
    %39 = vector.shape_cast %38 : vector<128xf32> to vector<1x128xf32>
    %40 = arith.addf %32, %39 : vector<1x128xf32>
    %41 = arith.mulf %37, %37 : vector<2x128xf32>
    %cst_14 = arith.constant dense<0.000000e+00> : vector<128xf32>
    %42 = vector.multi_reduction <add>, %41, %cst_14 [0] : vector<2x128xf32> to vector<128xf32>
    %43 = vector.shape_cast %42 : vector<128xf32> to vector<1x128xf32>
    %44 = arith.addf %36, %43 : vector<1x128xf32>
    %45 = vector.extract_strided_slice %2 {offsets = [0, 640], sizes = [2, 128], strides = [1, 1]} : vector<2x2048xf32> to vector<2x128xf32>
    %cst_15 = arith.constant dense<0.000000e+00> : vector<128xf32>
    %46 = vector.multi_reduction <add>, %45, %cst_15 [0] : vector<2x128xf32> to vector<128xf32>
    %47 = vector.shape_cast %46 : vector<128xf32> to vector<1x128xf32>
    %48 = arith.addf %40, %47 : vector<1x128xf32>
    %49 = arith.mulf %45, %45 : vector<2x128xf32>
    %cst_16 = arith.constant dense<0.000000e+00> : vector<128xf32>
    %50 = vector.multi_reduction <add>, %49, %cst_16 [0] : vector<2x128xf32> to vector<128xf32>
    %51 = vector.shape_cast %50 : vector<128xf32> to vector<1x128xf32>
    %52 = arith.addf %44, %51 : vector<1x128xf32>
    %53 = vector.extract_strided_slice %2 {offsets = [0, 768], sizes = [2, 128], strides = [1, 1]} : vector<2x2048xf32> to vector<2x128xf32>
    %cst_17 = arith.constant dense<0.000000e+00> : vector<128xf32>
    %54 = vector.multi_reduction <add>, %53, %cst_17 [0] : vector<2x128xf32> to vector<128xf32>
    %55 = vector.shape_cast %54 : vector<128xf32> to vector<1x128xf32>
    %56 = arith.addf %48, %55 : vector<1x128xf32>
    %57 = arith.mulf %53, %53 : vector<2x128xf32>
    %cst_18 = arith.constant dense<0.000000e+00> : vector<128xf32>
    %58 = vector.multi_reduction <add>, %57, %cst_18 [0] : vector<2x128xf32> to vector<128xf32>
    %59 = vector.shape_cast %58 : vector<128xf32> to vector<1x128xf32>
    %60 = arith.addf %52, %59 : vector<1x128xf32>
    %61 = vector.extract_strided_slice %2 {offsets = [0, 896], sizes = [2, 128], strides = [1, 1]} : vector<2x2048xf32> to vector<2x128xf32>
    %cst_19 = arith.constant dense<0.000000e+00> : vector<128xf32>
    %62 = vector.multi_reduction <add>, %61, %cst_19 [0] : vector<2x128xf32> to vector<128xf32>
    %63 = vector.shape_cast %62 : vector<128xf32> to vector<1x128xf32>
    %64 = arith.addf %56, %63 : vector<1x128xf32>
    %65 = arith.mulf %61, %61 : vector<2x128xf32>
    %cst_20 = arith.constant dense<0.000000e+00> : vector<128xf32>
    %66 = vector.multi_reduction <add>, %65, %cst_20 [0] : vector<2x128xf32> to vector<128xf32>
    %67 = vector.shape_cast %66 : vector<128xf32> to vector<1x128xf32>
    %68 = arith.addf %60, %67 : vector<1x128xf32>
    %69 = vector.extract_strided_slice %2 {offsets = [0, 1024], sizes = [2, 128], strides = [1, 1]} : vector<2x2048xf32> to vector<2x128xf32>
    %cst_21 = arith.constant dense<0.000000e+00> : vector<128xf32>
    %70 = vector.multi_reduction <add>, %69, %cst_21 [0] : vector<2x128xf32> to vector<128xf32>
    %71 = vector.shape_cast %70 : vector<128xf32> to vector<1x128xf32>
    %72 = arith.addf %64, %71 : vector<1x128xf32>
    %73 = arith.mulf %69, %69 : vector<2x128xf32>
    %cst_22 = arith.constant dense<0.000000e+00> : vector<128xf32>
    %74 = vector.multi_reduction <add>, %73, %cst_22 [0] : vector<2x128xf32> to vector<128xf32>
    %75 = vector.shape_cast %74 : vector<128xf32> to vector<1x128xf32>
    %76 = arith.addf %68, %75 : vector<1x128xf32>
    %77 = vector.extract_strided_slice %2 {offsets = [0, 1152], sizes = [2, 128], strides = [1, 1]} : vector<2x2048xf32> to vector<2x128xf32>
    %cst_23 = arith.constant dense<0.000000e+00> : vector<128xf32>
    %78 = vector.multi_reduction <add>, %77, %cst_23 [0] : vector<2x128xf32> to vector<128xf32>
    %79 = vector.shape_cast %78 : vector<128xf32> to vector<1x128xf32>
    %80 = arith.addf %72, %79 : vector<1x128xf32>
    %81 = arith.mulf %77, %77 : vector<2x128xf32>
    %cst_24 = arith.constant dense<0.000000e+00> : vector<128xf32>
    %82 = vector.multi_reduction <add>, %81, %cst_24 [0] : vector<2x128xf32> to vector<128xf32>
    %83 = vector.shape_cast %82 : vector<128xf32> to vector<1x128xf32>
    %84 = arith.addf %76, %83 : vector<1x128xf32>
    %85 = vector.extract_strided_slice %2 {offsets = [0, 1280], sizes = [2, 128], strides = [1, 1]} : vector<2x2048xf32> to vector<2x128xf32>
    %cst_25 = arith.constant dense<0.000000e+00> : vector<128xf32>
    %86 = vector.multi_reduction <add>, %85, %cst_25 [0] : vector<2x128xf32> to vector<128xf32>
    %87 = vector.shape_cast %86 : vector<128xf32> to vector<1x128xf32>
    %88 = arith.addf %80, %87 : vector<1x128xf32>
    %89 = arith.mulf %85, %85 : vector<2x128xf32>
    %cst_26 = arith.constant dense<0.000000e+00> : vector<128xf32>
    %90 = vector.multi_reduction <add>, %89, %cst_26 [0] : vector<2x128xf32> to vector<128xf32>
    %91 = vector.shape_cast %90 : vector<128xf32> to vector<1x128xf32>
    %92 = arith.addf %84, %91 : vector<1x128xf32>
    %93 = vector.extract_strided_slice %2 {offsets = [0, 1408], sizes = [2, 128], strides = [1, 1]} : vector<2x2048xf32> to vector<2x128xf32>
    %cst_27 = arith.constant dense<0.000000e+00> : vector<128xf32>
    %94 = vector.multi_reduction <add>, %93, %cst_27 [0] : vector<2x128xf32> to vector<128xf32>
    %95 = vector.shape_cast %94 : vector<128xf32> to vector<1x128xf32>
    %96 = arith.addf %88, %95 : vector<1x128xf32>
    %97 = arith.mulf %93, %93 : vector<2x128xf32>
    %cst_28 = arith.constant dense<0.000000e+00> : vector<128xf32>
    %98 = vector.multi_reduction <add>, %97, %cst_28 [0] : vector<2x128xf32> to vector<128xf32>
    %99 = vector.shape_cast %98 : vector<128xf32> to vector<1x128xf32>
    %100 = arith.addf %92, %99 : vector<1x128xf32>
    %101 = vector.extract_strided_slice %2 {offsets = [0, 1536], sizes = [2, 128], strides = [1, 1]} : vector<2x2048xf32> to vector<2x128xf32>
    %cst_29 = arith.constant dense<0.000000e+00> : vector<128xf32>
    %102 = vector.multi_reduction <add>, %101, %cst_29 [0] : vector<2x128xf32> to vector<128xf32>
    %103 = vector.shape_cast %102 : vector<128xf32> to vector<1x128xf32>
    %104 = arith.addf %96, %103 : vector<1x128xf32>
    %105 = arith.mulf %101, %101 : vector<2x128xf32>
    %cst_30 = arith.constant dense<0.000000e+00> : vector<128xf32>
    %106 = vector.multi_reduction <add>, %105, %cst_30 [0] : vector<2x128xf32> to vector<128xf32>
    %107 = vector.shape_cast %106 : vector<128xf32> to vector<1x128xf32>
    %108 = arith.addf %100, %107 : vector<1x128xf32>
    %109 = vector.extract_strided_slice %2 {offsets = [0, 1664], sizes = [2, 128], strides = [1, 1]} : vector<2x2048xf32> to vector<2x128xf32>
    %cst_31 = arith.constant dense<0.000000e+00> : vector<128xf32>
    %110 = vector.multi_reduction <add>, %109, %cst_31 [0] : vector<2x128xf32> to vector<128xf32>
    %111 = vector.shape_cast %110 : vector<128xf32> to vector<1x128xf32>
    %112 = arith.addf %104, %111 : vector<1x128xf32>
    %113 = arith.mulf %109, %109 : vector<2x128xf32>
    %cst_32 = arith.constant dense<0.000000e+00> : vector<128xf32>
    %114 = vector.multi_reduction <add>, %113, %cst_32 [0] : vector<2x128xf32> to vector<128xf32>
    %115 = vector.shape_cast %114 : vector<128xf32> to vector<1x128xf32>
    %116 = arith.addf %108, %115 : vector<1x128xf32>
    %117 = vector.extract_strided_slice %2 {offsets = [0, 1792], sizes = [2, 128], strides = [1, 1]} : vector<2x2048xf32> to vector<2x128xf32>
    %cst_33 = arith.constant dense<0.000000e+00> : vector<128xf32>
    %118 = vector.multi_reduction <add>, %117, %cst_33 [0] : vector<2x128xf32> to vector<128xf32>
    %119 = vector.shape_cast %118 : vector<128xf32> to vector<1x128xf32>
    %120 = arith.addf %112, %119 : vector<1x128xf32>
    %121 = arith.mulf %117, %117 : vector<2x128xf32>
    %cst_34 = arith.constant dense<0.000000e+00> : vector<128xf32>
    %122 = vector.multi_reduction <add>, %121, %cst_34 [0] : vector<2x128xf32> to vector<128xf32>
    %123 = vector.shape_cast %122 : vector<128xf32> to vector<1x128xf32>
    %124 = arith.addf %116, %123 : vector<1x128xf32>
    %125 = vector.extract_strided_slice %2 {offsets = [0, 1920], sizes = [2, 128], strides = [1, 1]} : vector<2x2048xf32> to vector<2x128xf32>
    %cst_35 = arith.constant dense<0.000000e+00> : vector<128xf32>
    %126 = vector.multi_reduction <add>, %125, %cst_35 [0] : vector<2x128xf32> to vector<128xf32>
    %127 = vector.shape_cast %126 : vector<128xf32> to vector<1x128xf32>
    %128 = arith.addf %120, %127 : vector<1x128xf32>
    %129 = arith.mulf %125, %125 : vector<2x128xf32>
    %cst_36 = arith.constant dense<0.000000e+00> : vector<128xf32>
    %130 = vector.multi_reduction <add>, %129, %cst_36 [0] : vector<2x128xf32> to vector<128xf32>
    %131 = vector.shape_cast %130 : vector<128xf32> to vector<1x128xf32>
    %132 = arith.addf %124, %131 : vector<1x128xf32>
    %cst_37 = arith.constant 3.125000e-02 : f32
    %133 = vector.broadcast %cst_37 : f32 to vector<1x128xf32>
    %134 = arith.mulf %128, %133 : vector<1x128xf32>
    %cst_38 = arith.constant 3.125000e-02 : f32
    %135 = vector.broadcast %cst_38 : f32 to vector<1x128xf32>
    %136 = arith.mulf %132, %135 : vector<1x128xf32>
    %137 = arith.mulf %134, %134 : vector<1x128xf32>
    %138 = arith.subf %136, %137 : vector<1x128xf32>
    %cst_39 = arith.constant 0.000000e+00 : f32
    %139 = vector.broadcast %cst_39 : f32 to vector<1x128xf32>
    %140 = arith.maximumf %138, %139 : vector<1x128xf32>
    %c0_40 = arith.constant 0 : index
    %c0_41 = arith.constant 0 : index
    %141 = vector.load %arg2[%c0_40, %c0_41] : memref<1x128xf32, #tpu.memory_space<vmem>>, vector<1x128xf32>
    %cst_42 = arith.constant 9.99999974E-6 : f32
    %142 = vector.broadcast %cst_42 : f32 to vector<1x128xf32>
    %143 = arith.addf %140, %142 : vector<1x128xf32>
    %144 = math.rsqrt %143 : vector<1x128xf32>
    %145 = arith.mulf %141, %144 : vector<1x128xf32>
    %c0_43 = arith.constant 0 : index
    %c0_44 = arith.constant 0 : index
    %146 = vector.load %arg3[%c0_43, %c0_44] : memref<1x128xf32, #tpu.memory_space<vmem>>, vector<1x128xf32>
    %147 = arith.mulf %134, %145 : vector<1x128xf32>
    %148 = arith.subf %146, %147 : vector<1x128xf32>
    %149 = vector.extract_strided_slice %2 {offsets = [0, 0], sizes = [2, 128], strides = [1, 1]} : vector<2x2048xf32> to vector<2x128xf32>
    %150 = vector.broadcast %145 : vector<1x128xf32> to vector<2x128xf32>
    %151 = arith.mulf %149, %150 : vector<2x128xf32>
    %152 = vector.broadcast %148 : vector<1x128xf32> to vector<2x128xf32>
    %153 = arith.addf %151, %152 : vector<2x128xf32>
    %cst_45 = arith.constant 0.000000e+00 : f32
    %154 = vector.broadcast %cst_45 : f32 to vector<2x128xf32>
    %155 = arith.maximumf %153, %154 : vector<2x128xf32>
    %156 = arith.truncf %155 : vector<2x128xf32> to vector<2x128xbf16>
    %c0_46 = arith.constant 0 : index
    %c0_47 = arith.constant 0 : index
    %157 = vector.load %arg4[%c0_46, %c0_47] : memref<2x2048xbf16, #tpu.memory_space<vmem>>, vector<2x128xbf16>
    tpu.vector_store %arg4[%c0_46, %c0_47], %156 {strides = array<i32>} : memref<2x2048xbf16, #tpu.memory_space<vmem>>, vector<2x128xbf16>,
    %158 = vector.extract_strided_slice %2 {offsets = [0, 128], sizes = [2, 128], strides = [1, 1]} : vector<2x2048xf32> to vector<2x128xf32>
    %159 = vector.broadcast %145 : vector<1x128xf32> to vector<2x128xf32>
    %160 = arith.mulf %158, %159 : vector<2x128xf32>
    %161 = vector.broadcast %148 : vector<1x128xf32> to vector<2x128xf32>
    %162 = arith.addf %160, %161 : vector<2x128xf32>
    %cst_48 = arith.constant 0.000000e+00 : f32
    %163 = vector.broadcast %cst_48 : f32 to vector<2x128xf32>
    %164 = arith.maximumf %162, %163 : vector<2x128xf32>
    %165 = arith.truncf %164 : vector<2x128xf32> to vector<2x128xbf16>
    %c0_49 = arith.constant 0 : index
    %c128 = arith.constant 128 : index
    %166 = vector.load %arg4[%c0_49, %c128] : memref<2x2048xbf16, #tpu.memory_space<vmem>>, vector<2x128xbf16>
    tpu.vector_store %arg4[%c0_49, %c128], %165 {strides = array<i32>} : memref<2x2048xbf16, #tpu.memory_space<vmem>>, vector<2x128xbf16>,
    %167 = vector.extract_strided_slice %2 {offsets = [0, 256], sizes = [2, 128], strides = [1, 1]} : vector<2x2048xf32> to vector<2x128xf32>
    %168 = vector.broadcast %145 : vector<1x128xf32> to vector<2x128xf32>
    %169 = arith.mulf %167, %168 : vector<2x128xf32>
    %170 = vector.broadcast %148 : vector<1x128xf32> to vector<2x128xf32>
    %171 = arith.addf %169, %170 : vector<2x128xf32>
    %cst_50 = arith.constant 0.000000e+00 : f32
    %172 = vector.broadcast %cst_50 : f32 to vector<2x128xf32>
    %173 = arith.maximumf %171, %172 : vector<2x128xf32>
    %174 = arith.truncf %173 : vector<2x128xf32> to vector<2x128xbf16>
    %c0_51 = arith.constant 0 : index
    %c256 = arith.constant 256 : index
    %175 = vector.load %arg4[%c0_51, %c256] : memref<2x2048xbf16, #tpu.memory_space<vmem>>, vector<2x128xbf16>
    tpu.vector_store %arg4[%c0_51, %c256], %174 {strides = array<i32>} : memref<2x2048xbf16, #tpu.memory_space<vmem>>, vector<2x128xbf16>,
    %176 = vector.extract_strided_slice %2 {offsets = [0, 384], sizes = [2, 128], strides = [1, 1]} : vector<2x2048xf32> to vector<2x128xf32>
    %177 = vector.broadcast %145 : vector<1x128xf32> to vector<2x128xf32>
    %178 = arith.mulf %176, %177 : vector<2x128xf32>
    %179 = vector.broadcast %148 : vector<1x128xf32> to vector<2x128xf32>
    %180 = arith.addf %178, %179 : vector<2x128xf32>
    %cst_52 = arith.constant 0.000000e+00 : f32
    %181 = vector.broadcast %cst_52 : f32 to vector<2x128xf32>
    %182 = arith.maximumf %180, %181 : vector<2x128xf32>
    %183 = arith.truncf %182 : vector<2x128xf32> to vector<2x128xbf16>
    %c0_53 = arith.constant 0 : index
    %c384 = arith.constant 384 : index
    %184 = vector.load %arg4[%c0_53, %c384] : memref<2x2048xbf16, #tpu.memory_space<vmem>>, vector<2x128xbf16>
    tpu.vector_store %arg4[%c0_53, %c384], %183 {strides = array<i32>} : memref<2x2048xbf16, #tpu.memory_space<vmem>>, vector<2x128xbf16>,
    %185 = vector.extract_strided_slice %2 {offsets = [0, 512], sizes = [2, 128], strides = [1, 1]} : vector<2x2048xf32> to vector<2x128xf32>
    %186 = vector.broadcast %145 : vector<1x128xf32> to vector<2x128xf32>
    %187 = arith.mulf %185, %186 : vector<2x128xf32>
    %188 = vector.broadcast %148 : vector<1x128xf32> to vector<2x128xf32>
    %189 = arith.addf %187, %188 : vector<2x128xf32>
    %cst_54 = arith.constant 0.000000e+00 : f32
    %190 = vector.broadcast %cst_54 : f32 to vector<2x128xf32>
    %191 = arith.maximumf %189, %190 : vector<2x128xf32>
    %192 = arith.truncf %191 : vector<2x128xf32> to vector<2x128xbf16>
    %c0_55 = arith.constant 0 : index
    %c512 = arith.constant 512 : index
    %193 = vector.load %arg4[%c0_55, %c512] : memref<2x2048xbf16, #tpu.memory_space<vmem>>, vector<2x128xbf16>
    tpu.vector_store %arg4[%c0_55, %c512], %192 {strides = array<i32>} : memref<2x2048xbf16, #tpu.memory_space<vmem>>, vector<2x128xbf16>,
    %194 = vector.extract_strided_slice %2 {offsets = [0, 640], sizes = [2, 128], strides = [1, 1]} : vector<2x2048xf32> to vector<2x128xf32>
    %195 = vector.broadcast %145 : vector<1x128xf32> to vector<2x128xf32>
    %196 = arith.mulf %194, %195 : vector<2x128xf32>
    %197 = vector.broadcast %148 : vector<1x128xf32> to vector<2x128xf32>
    %198 = arith.addf %196, %197 : vector<2x128xf32>
    %cst_56 = arith.constant 0.000000e+00 : f32
    %199 = vector.broadcast %cst_56 : f32 to vector<2x128xf32>
    %200 = arith.maximumf %198, %199 : vector<2x128xf32>
    %201 = arith.truncf %200 : vector<2x128xf32> to vector<2x128xbf16>
    %c0_57 = arith.constant 0 : index
    %c640 = arith.constant 640 : index
    %202 = vector.load %arg4[%c0_57, %c640] : memref<2x2048xbf16, #tpu.memory_space<vmem>>, vector<2x128xbf16>
    tpu.vector_store %arg4[%c0_57, %c640], %201 {strides = array<i32>} : memref<2x2048xbf16, #tpu.memory_space<vmem>>, vector<2x128xbf16>,
    %203 = vector.extract_strided_slice %2 {offsets = [0, 768], sizes = [2, 128], strides = [1, 1]} : vector<2x2048xf32> to vector<2x128xf32>
    %204 = vector.broadcast %145 : vector<1x128xf32> to vector<2x128xf32>
    %205 = arith.mulf %203, %204 : vector<2x128xf32>
    %206 = vector.broadcast %148 : vector<1x128xf32> to vector<2x128xf32>
    %207 = arith.addf %205, %206 : vector<2x128xf32>
    %cst_58 = arith.constant 0.000000e+00 : f32
    %208 = vector.broadcast %cst_58 : f32 to vector<2x128xf32>
    %209 = arith.maximumf %207, %208 : vector<2x128xf32>
    %210 = arith.truncf %209 : vector<2x128xf32> to vector<2x128xbf16>
    %c0_59 = arith.constant 0 : index
    %c768 = arith.constant 768 : index
    %211 = vector.load %arg4[%c0_59, %c768] : memref<2x2048xbf16, #tpu.memory_space<vmem>>, vector<2x128xbf16>
    tpu.vector_store %arg4[%c0_59, %c768], %210 {strides = array<i32>} : memref<2x2048xbf16, #tpu.memory_space<vmem>>, vector<2x128xbf16>,
    %212 = vector.extract_strided_slice %2 {offsets = [0, 896], sizes = [2, 128], strides = [1, 1]} : vector<2x2048xf32> to vector<2x128xf32>
    %213 = vector.broadcast %145 : vector<1x128xf32> to vector<2x128xf32>
    %214 = arith.mulf %212, %213 : vector<2x128xf32>
    %215 = vector.broadcast %148 : vector<1x128xf32> to vector<2x128xf32>
    %216 = arith.addf %214, %215 : vector<2x128xf32>
    %cst_60 = arith.constant 0.000000e+00 : f32
    %217 = vector.broadcast %cst_60 : f32 to vector<2x128xf32>
    %218 = arith.maximumf %216, %217 : vector<2x128xf32>
    %219 = arith.truncf %218 : vector<2x128xf32> to vector<2x128xbf16>
    %c0_61 = arith.constant 0 : index
    %c896 = arith.constant 896 : index
    %220 = vector.load %arg4[%c0_61, %c896] : memref<2x2048xbf16, #tpu.memory_space<vmem>>, vector<2x128xbf16>
    tpu.vector_store %arg4[%c0_61, %c896], %219 {strides = array<i32>} : memref<2x2048xbf16, #tpu.memory_space<vmem>>, vector<2x128xbf16>,
    %221 = vector.extract_strided_slice %2 {offsets = [0, 1024], sizes = [2, 128], strides = [1, 1]} : vector<2x2048xf32> to vector<2x128xf32>
    %222 = vector.broadcast %145 : vector<1x128xf32> to vector<2x128xf32>
    %223 = arith.mulf %221, %222 : vector<2x128xf32>
    %224 = vector.broadcast %148 : vector<1x128xf32> to vector<2x128xf32>
    %225 = arith.addf %223, %224 : vector<2x128xf32>
    %cst_62 = arith.constant 0.000000e+00 : f32
    %226 = vector.broadcast %cst_62 : f32 to vector<2x128xf32>
    %227 = arith.maximumf %225, %226 : vector<2x128xf32>
    %228 = arith.truncf %227 : vector<2x128xf32> to vector<2x128xbf16>
    %c0_63 = arith.constant 0 : index
    %c1024 = arith.constant 1024 : index
    %229 = vector.load %arg4[%c0_63, %c1024] : memref<2x2048xbf16, #tpu.memory_space<vmem>>, vector<2x128xbf16>
    tpu.vector_store %arg4[%c0_63, %c1024], %228 {strides = array<i32>} : memref<2x2048xbf16, #tpu.memory_space<vmem>>, vector<2x128xbf16>,
    %230 = vector.extract_strided_slice %2 {offsets = [0, 1152], sizes = [2, 128], strides = [1, 1]} : vector<2x2048xf32> to vector<2x128xf32>
    %231 = vector.broadcast %145 : vector<1x128xf32> to vector<2x128xf32>
    %232 = arith.mulf %230, %231 : vector<2x128xf32>
    %233 = vector.broadcast %148 : vector<1x128xf32> to vector<2x128xf32>
    %234 = arith.addf %232, %233 : vector<2x128xf32>
    %cst_64 = arith.constant 0.000000e+00 : f32
    %235 = vector.broadcast %cst_64 : f32 to vector<2x128xf32>
    %236 = arith.maximumf %234, %235 : vector<2x128xf32>
    %237 = arith.truncf %236 : vector<2x128xf32> to vector<2x128xbf16>
    %c0_65 = arith.constant 0 : index
    %c1152 = arith.constant 1152 : index
    %238 = vector.load %arg4[%c0_65, %c1152] : memref<2x2048xbf16, #tpu.memory_space<vmem>>, vector<2x128xbf16>
    tpu.vector_store %arg4[%c0_65, %c1152], %237 {strides = array<i32>} : memref<2x2048xbf16, #tpu.memory_space<vmem>>, vector<2x128xbf16>,
    %239 = vector.extract_strided_slice %2 {offsets = [0, 1280], sizes = [2, 128], strides = [1, 1]} : vector<2x2048xf32> to vector<2x128xf32>
    %240 = vector.broadcast %145 : vector<1x128xf32> to vector<2x128xf32>
    %241 = arith.mulf %239, %240 : vector<2x128xf32>
    %242 = vector.broadcast %148 : vector<1x128xf32> to vector<2x128xf32>
    %243 = arith.addf %241, %242 : vector<2x128xf32>
    %cst_66 = arith.constant 0.000000e+00 : f32
    %244 = vector.broadcast %cst_66 : f32 to vector<2x128xf32>
    %245 = arith.maximumf %243, %244 : vector<2x128xf32>
    %246 = arith.truncf %245 : vector<2x128xf32> to vector<2x128xbf16>
    %c0_67 = arith.constant 0 : index
    %c1280 = arith.constant 1280 : index
    %247 = vector.load %arg4[%c0_67, %c1280] : memref<2x2048xbf16, #tpu.memory_space<vmem>>, vector<2x128xbf16>
    tpu.vector_store %arg4[%c0_67, %c1280], %246 {strides = array<i32>} : memref<2x2048xbf16, #tpu.memory_space<vmem>>, vector<2x128xbf16>,
    %248 = vector.extract_strided_slice %2 {offsets = [0, 1408], sizes = [2, 128], strides = [1, 1]} : vector<2x2048xf32> to vector<2x128xf32>
    %249 = vector.broadcast %145 : vector<1x128xf32> to vector<2x128xf32>
    %250 = arith.mulf %248, %249 : vector<2x128xf32>
    %251 = vector.broadcast %148 : vector<1x128xf32> to vector<2x128xf32>
    %252 = arith.addf %250, %251 : vector<2x128xf32>
    %cst_68 = arith.constant 0.000000e+00 : f32
    %253 = vector.broadcast %cst_68 : f32 to vector<2x128xf32>
    %254 = arith.maximumf %252, %253 : vector<2x128xf32>
    %255 = arith.truncf %254 : vector<2x128xf32> to vector<2x128xbf16>
    %c0_69 = arith.constant 0 : index
    %c1408 = arith.constant 1408 : index
    %256 = vector.load %arg4[%c0_69, %c1408] : memref<2x2048xbf16, #tpu.memory_space<vmem>>, vector<2x128xbf16>
    tpu.vector_store %arg4[%c0_69, %c1408], %255 {strides = array<i32>} : memref<2x2048xbf16, #tpu.memory_space<vmem>>, vector<2x128xbf16>,
    %257 = vector.extract_strided_slice %2 {offsets = [0, 1536], sizes = [2, 128], strides = [1, 1]} : vector<2x2048xf32> to vector<2x128xf32>
    %258 = vector.broadcast %145 : vector<1x128xf32> to vector<2x128xf32>
    %259 = arith.mulf %257, %258 : vector<2x128xf32>
    %260 = vector.broadcast %148 : vector<1x128xf32> to vector<2x128xf32>
    %261 = arith.addf %259, %260 : vector<2x128xf32>
    %cst_70 = arith.constant 0.000000e+00 : f32
    %262 = vector.broadcast %cst_70 : f32 to vector<2x128xf32>
    %263 = arith.maximumf %261, %262 : vector<2x128xf32>
    %264 = arith.truncf %263 : vector<2x128xf32> to vector<2x128xbf16>
    %c0_71 = arith.constant 0 : index
    %c1536 = arith.constant 1536 : index
    %265 = vector.load %arg4[%c0_71, %c1536] : memref<2x2048xbf16, #tpu.memory_space<vmem>>, vector<2x128xbf16>
    tpu.vector_store %arg4[%c0_71, %c1536], %264 {strides = array<i32>} : memref<2x2048xbf16, #tpu.memory_space<vmem>>, vector<2x128xbf16>,
    %266 = vector.extract_strided_slice %2 {offsets = [0, 1664], sizes = [2, 128], strides = [1, 1]} : vector<2x2048xf32> to vector<2x128xf32>
    %267 = vector.broadcast %145 : vector<1x128xf32> to vector<2x128xf32>
    %268 = arith.mulf %266, %267 : vector<2x128xf32>
    %269 = vector.broadcast %148 : vector<1x128xf32> to vector<2x128xf32>
    %270 = arith.addf %268, %269 : vector<2x128xf32>
    %cst_72 = arith.constant 0.000000e+00 : f32
    %271 = vector.broadcast %cst_72 : f32 to vector<2x128xf32>
    %272 = arith.maximumf %270, %271 : vector<2x128xf32>
    %273 = arith.truncf %272 : vector<2x128xf32> to vector<2x128xbf16>
    %c0_73 = arith.constant 0 : index
    %c1664 = arith.constant 1664 : index
    %274 = vector.load %arg4[%c0_73, %c1664] : memref<2x2048xbf16, #tpu.memory_space<vmem>>, vector<2x128xbf16>
    tpu.vector_store %arg4[%c0_73, %c1664], %273 {strides = array<i32>} : memref<2x2048xbf16, #tpu.memory_space<vmem>>, vector<2x128xbf16>,
    %275 = vector.extract_strided_slice %2 {offsets = [0, 1792], sizes = [2, 128], strides = [1, 1]} : vector<2x2048xf32> to vector<2x128xf32>
    %276 = vector.broadcast %145 : vector<1x128xf32> to vector<2x128xf32>
    %277 = arith.mulf %275, %276 : vector<2x128xf32>
    %278 = vector.broadcast %148 : vector<1x128xf32> to vector<2x128xf32>
    %279 = arith.addf %277, %278 : vector<2x128xf32>
    %cst_74 = arith.constant 0.000000e+00 : f32
    %280 = vector.broadcast %cst_74 : f32 to vector<2x128xf32>
    %281 = arith.maximumf %279, %280 : vector<2x128xf32>
    %282 = arith.truncf %281 : vector<2x128xf32> to vector<2x128xbf16>
    %c0_75 = arith.constant 0 : index
    %c1792 = arith.constant 1792 : index
    %283 = vector.load %arg4[%c0_75, %c1792] : memref<2x2048xbf16, #tpu.memory_space<vmem>>, vector<2x128xbf16>
    tpu.vector_store %arg4[%c0_75, %c1792], %282 {strides = array<i32>} : memref<2x2048xbf16, #tpu.memory_space<vmem>>, vector<2x128xbf16>,
    %284 = vector.extract_strided_slice %2 {offsets = [0, 1920], sizes = [2, 128], strides = [1, 1]} : vector<2x2048xf32> to vector<2x128xf32>
    %285 = vector.broadcast %145 : vector<1x128xf32> to vector<2x128xf32>
    %286 = arith.mulf %284, %285 : vector<2x128xf32>
    %287 = vector.broadcast %148 : vector<1x128xf32> to vector<2x128xf32>
    %288 = arith.addf %286, %287 : vector<2x128xf32>
    %cst_76 = arith.constant 0.000000e+00 : f32
    %289 = vector.broadcast %cst_76 : f32 to vector<2x128xf32>
    %290 = arith.maximumf %288, %289 : vector<2x128xf32>
    %291 = arith.truncf %290 : vector<2x128xf32> to vector<2x128xbf16>
    %c0_77 = arith.constant 0 : index
    %c1920 = arith.constant 1920 : index
    %292 = vector.load %arg4[%c0_77, %c1920] : memref<2x2048xbf16, #tpu.memory_space<vmem>>, vector<2x128xbf16>
    tpu.vector_store %arg4[%c0_77, %c1920], %291 {strides = array<i32>} : memref<2x2048xbf16, #tpu.memory_space<vmem>>, vector<2x128xbf16>,
    return
  }
}

module attributes {stable_mosaic.version = 11 : i64} {
  func.func @_phase_matmul_bn_relu_kernel(%arg0: memref<4x32x512xbf16, #tpu.memory_space<vmem>>, %arg1: memref<4x512x128xbf16, #tpu.memory_space<vmem>>, %arg2: memref<1x128xf32, #tpu.memory_space<vmem>>, %arg3: memref<1x128xf32, #tpu.memory_space<vmem>>, %arg4: memref<4x32x128xbf16, #tpu.memory_space<vmem>>, %arg5: memref<4x32x128xf32, #tpu.memory_space<vmem>>) attributes {dimension_semantics = [], scalar_prefetch = 0 : i64, scratch_operands = 1 : i64, tpu.core_type = #tpu.core_type<tc>} {
    %cst = arith.constant 0.000000e+00 : f32
    %0 = vector.broadcast %cst : f32 to vector<1x128xf32>
    %cst_0 = arith.constant 0.000000e+00 : f32
    %1 = vector.broadcast %cst_0 : f32 to vector<1x128xf32>
    %c0 = arith.constant 0 : index
    %c0_1 = arith.constant 0 : index
    %c0_2 = arith.constant 0 : index
    %2 = vector.load %arg0[%c0, %c0_1, %c0_2] : memref<4x32x512xbf16, #tpu.memory_space<vmem>>, vector<1x32x512xbf16>
    %3 = vector.shape_cast %2 : vector<1x32x512xbf16> to vector<32x512xbf16>
    %c0_3 = arith.constant 0 : index
    %c0_4 = arith.constant 0 : index
    %c0_5 = arith.constant 0 : index
    %4 = vector.load %arg1[%c0_3, %c0_4, %c0_5] : memref<4x512x128xbf16, #tpu.memory_space<vmem>>, vector<1x512x128xbf16>
    %5 = vector.shape_cast %4 : vector<1x512x128xbf16> to vector<512x128xbf16>
    %cst_6 = arith.constant dense<0.000000e+00> : vector<32x128xf32>
    %6 = tpu.matmul %3, %5, %cst_6 {dimension_numbers = #tpu.dot_dimension_numbers<[1], [0], [0], [1], [0, 0, 1, 1], [], []>} : vector<32x512xbf16>, vector<512x128xbf16>, vector<32x128xf32> -> vector<32x128xf32>
    %c0_7 = arith.constant 0 : index
    %c0_8 = arith.constant 0 : index
    %c0_9 = arith.constant 0 : index
    %7 = vector.load %arg5[%c0_7, %c0_8, %c0_9] : memref<4x32x128xf32, #tpu.memory_space<vmem>>, vector<1x32x128xf32>
    %8 = vector.shape_cast %7 : vector<1x32x128xf32> to vector<32x128xf32>
    %9 = vector.shape_cast %6 : vector<32x128xf32> to vector<1x32x128xf32>
    tpu.vector_store %arg5[%c0_7, %c0_8, %c0_9], %9 {strides = array<i32>} : memref<4x32x128xf32, #tpu.memory_space<vmem>>, vector<1x32x128xf32>,
    %cst_10 = arith.constant dense<0.000000e+00> : vector<128xf32>
    %10 = vector.multi_reduction <add>, %6, %cst_10 [0] : vector<32x128xf32> to vector<128xf32>
    %11 = vector.shape_cast %10 : vector<128xf32> to vector<1x128xf32>
    %12 = arith.addf %0, %11 : vector<1x128xf32>
    %13 = arith.mulf %6, %6 : vector<32x128xf32>
    %cst_11 = arith.constant dense<0.000000e+00> : vector<128xf32>
    %14 = vector.multi_reduction <add>, %13, %cst_11 [0] : vector<32x128xf32> to vector<128xf32>
    %15 = vector.shape_cast %14 : vector<128xf32> to vector<1x128xf32>
    %16 = arith.addf %1, %15 : vector<1x128xf32>
    %c1 = arith.constant 1 : index
    %c0_12 = arith.constant 0 : index
    %c0_13 = arith.constant 0 : index
    %17 = vector.load %arg0[%c1, %c0_12, %c0_13] : memref<4x32x512xbf16, #tpu.memory_space<vmem>>, vector<1x32x512xbf16>
    %18 = vector.shape_cast %17 : vector<1x32x512xbf16> to vector<32x512xbf16>
    %c1_14 = arith.constant 1 : index
    %c0_15 = arith.constant 0 : index
    %c0_16 = arith.constant 0 : index
    %19 = vector.load %arg1[%c1_14, %c0_15, %c0_16] : memref<4x512x128xbf16, #tpu.memory_space<vmem>>, vector<1x512x128xbf16>
    %20 = vector.shape_cast %19 : vector<1x512x128xbf16> to vector<512x128xbf16>
    %cst_17 = arith.constant dense<0.000000e+00> : vector<32x128xf32>
    %21 = tpu.matmul %18, %20, %cst_17 {dimension_numbers = #tpu.dot_dimension_numbers<[1], [0], [0], [1], [0, 0, 1, 1], [], []>} : vector<32x512xbf16>, vector<512x128xbf16>, vector<32x128xf32> -> vector<32x128xf32>
    %c1_18 = arith.constant 1 : index
    %c0_19 = arith.constant 0 : index
    %c0_20 = arith.constant 0 : index
    %22 = vector.load %arg5[%c1_18, %c0_19, %c0_20] : memref<4x32x128xf32, #tpu.memory_space<vmem>>, vector<1x32x128xf32>
    %23 = vector.shape_cast %22 : vector<1x32x128xf32> to vector<32x128xf32>
    %24 = vector.shape_cast %21 : vector<32x128xf32> to vector<1x32x128xf32>
    tpu.vector_store %arg5[%c1_18, %c0_19, %c0_20], %24 {strides = array<i32>} : memref<4x32x128xf32, #tpu.memory_space<vmem>>, vector<1x32x128xf32>,
    %cst_21 = arith.constant dense<0.000000e+00> : vector<128xf32>
    %25 = vector.multi_reduction <add>, %21, %cst_21 [0] : vector<32x128xf32> to vector<128xf32>
    %26 = vector.shape_cast %25 : vector<128xf32> to vector<1x128xf32>
    %27 = arith.addf %12, %26 : vector<1x128xf32>
    %28 = arith.mulf %21, %21 : vector<32x128xf32>
    %cst_22 = arith.constant dense<0.000000e+00> : vector<128xf32>
    %29 = vector.multi_reduction <add>, %28, %cst_22 [0] : vector<32x128xf32> to vector<128xf32>
    %30 = vector.shape_cast %29 : vector<128xf32> to vector<1x128xf32>
    %31 = arith.addf %16, %30 : vector<1x128xf32>
    %c2 = arith.constant 2 : index
    %c0_23 = arith.constant 0 : index
    %c0_24 = arith.constant 0 : index
    %32 = vector.load %arg0[%c2, %c0_23, %c0_24] : memref<4x32x512xbf16, #tpu.memory_space<vmem>>, vector<1x32x512xbf16>
    %33 = vector.shape_cast %32 : vector<1x32x512xbf16> to vector<32x512xbf16>
    %c2_25 = arith.constant 2 : index
    %c0_26 = arith.constant 0 : index
    %c0_27 = arith.constant 0 : index
    %34 = vector.load %arg1[%c2_25, %c0_26, %c0_27] : memref<4x512x128xbf16, #tpu.memory_space<vmem>>, vector<1x512x128xbf16>
    %35 = vector.shape_cast %34 : vector<1x512x128xbf16> to vector<512x128xbf16>
    %cst_28 = arith.constant dense<0.000000e+00> : vector<32x128xf32>
    %36 = tpu.matmul %33, %35, %cst_28 {dimension_numbers = #tpu.dot_dimension_numbers<[1], [0], [0], [1], [0, 0, 1, 1], [], []>} : vector<32x512xbf16>, vector<512x128xbf16>, vector<32x128xf32> -> vector<32x128xf32>
    %c2_29 = arith.constant 2 : index
    %c0_30 = arith.constant 0 : index
    %c0_31 = arith.constant 0 : index
    %37 = vector.load %arg5[%c2_29, %c0_30, %c0_31] : memref<4x32x128xf32, #tpu.memory_space<vmem>>, vector<1x32x128xf32>
    %38 = vector.shape_cast %37 : vector<1x32x128xf32> to vector<32x128xf32>
    %39 = vector.shape_cast %36 : vector<32x128xf32> to vector<1x32x128xf32>
    tpu.vector_store %arg5[%c2_29, %c0_30, %c0_31], %39 {strides = array<i32>} : memref<4x32x128xf32, #tpu.memory_space<vmem>>, vector<1x32x128xf32>,
    %cst_32 = arith.constant dense<0.000000e+00> : vector<128xf32>
    %40 = vector.multi_reduction <add>, %36, %cst_32 [0] : vector<32x128xf32> to vector<128xf32>
    %41 = vector.shape_cast %40 : vector<128xf32> to vector<1x128xf32>
    %42 = arith.addf %27, %41 : vector<1x128xf32>
    %43 = arith.mulf %36, %36 : vector<32x128xf32>
    %cst_33 = arith.constant dense<0.000000e+00> : vector<128xf32>
    %44 = vector.multi_reduction <add>, %43, %cst_33 [0] : vector<32x128xf32> to vector<128xf32>
    %45 = vector.shape_cast %44 : vector<128xf32> to vector<1x128xf32>
    %46 = arith.addf %31, %45 : vector<1x128xf32>
    %c3 = arith.constant 3 : index
    %c0_34 = arith.constant 0 : index
    %c0_35 = arith.constant 0 : index
    %47 = vector.load %arg0[%c3, %c0_34, %c0_35] : memref<4x32x512xbf16, #tpu.memory_space<vmem>>, vector<1x32x512xbf16>
    %48 = vector.shape_cast %47 : vector<1x32x512xbf16> to vector<32x512xbf16>
    %c3_36 = arith.constant 3 : index
    %c0_37 = arith.constant 0 : index
    %c0_38 = arith.constant 0 : index
    %49 = vector.load %arg1[%c3_36, %c0_37, %c0_38] : memref<4x512x128xbf16, #tpu.memory_space<vmem>>, vector<1x512x128xbf16>
    %50 = vector.shape_cast %49 : vector<1x512x128xbf16> to vector<512x128xbf16>
    %cst_39 = arith.constant dense<0.000000e+00> : vector<32x128xf32>
    %51 = tpu.matmul %48, %50, %cst_39 {dimension_numbers = #tpu.dot_dimension_numbers<[1], [0], [0], [1], [0, 0, 1, 1], [], []>} : vector<32x512xbf16>, vector<512x128xbf16>, vector<32x128xf32> -> vector<32x128xf32>
    %c3_40 = arith.constant 3 : index
    %c0_41 = arith.constant 0 : index
    %c0_42 = arith.constant 0 : index
    %52 = vector.load %arg5[%c3_40, %c0_41, %c0_42] : memref<4x32x128xf32, #tpu.memory_space<vmem>>, vector<1x32x128xf32>
    %53 = vector.shape_cast %52 : vector<1x32x128xf32> to vector<32x128xf32>
    %54 = vector.shape_cast %51 : vector<32x128xf32> to vector<1x32x128xf32>
    tpu.vector_store %arg5[%c3_40, %c0_41, %c0_42], %54 {strides = array<i32>} : memref<4x32x128xf32, #tpu.memory_space<vmem>>, vector<1x32x128xf32>,
    %cst_43 = arith.constant dense<0.000000e+00> : vector<128xf32>
    %55 = vector.multi_reduction <add>, %51, %cst_43 [0] : vector<32x128xf32> to vector<128xf32>
    %56 = vector.shape_cast %55 : vector<128xf32> to vector<1x128xf32>
    %57 = arith.addf %42, %56 : vector<1x128xf32>
    %58 = arith.mulf %51, %51 : vector<32x128xf32>
    %cst_44 = arith.constant dense<0.000000e+00> : vector<128xf32>
    %59 = vector.multi_reduction <add>, %58, %cst_44 [0] : vector<32x128xf32> to vector<128xf32>
    %60 = vector.shape_cast %59 : vector<128xf32> to vector<1x128xf32>
    %61 = arith.addf %46, %60 : vector<1x128xf32>
    %cst_45 = arith.constant 7.812500e-03 : f32
    %62 = vector.broadcast %cst_45 : f32 to vector<1x128xf32>
    %63 = arith.mulf %57, %62 : vector<1x128xf32>
    %cst_46 = arith.constant 7.812500e-03 : f32
    %64 = vector.broadcast %cst_46 : f32 to vector<1x128xf32>
    %65 = arith.mulf %61, %64 : vector<1x128xf32>
    %66 = arith.mulf %63, %63 : vector<1x128xf32>
    %67 = arith.subf %65, %66 : vector<1x128xf32>
    %cst_47 = arith.constant 0.000000e+00 : f32
    %68 = vector.broadcast %cst_47 : f32 to vector<1x128xf32>
    %69 = arith.maximumf %67, %68 : vector<1x128xf32>
    %c0_48 = arith.constant 0 : index
    %c0_49 = arith.constant 0 : index
    %70 = vector.load %arg2[%c0_48, %c0_49] : memref<1x128xf32, #tpu.memory_space<vmem>>, vector<1x128xf32>
    %cst_50 = arith.constant 9.99999974E-6 : f32
    %71 = vector.broadcast %cst_50 : f32 to vector<1x128xf32>
    %72 = arith.addf %69, %71 : vector<1x128xf32>
    %73 = math.rsqrt %72 : vector<1x128xf32>
    %74 = arith.mulf %70, %73 : vector<1x128xf32>
    %c0_51 = arith.constant 0 : index
    %c0_52 = arith.constant 0 : index
    %75 = vector.load %arg3[%c0_51, %c0_52] : memref<1x128xf32, #tpu.memory_space<vmem>>, vector<1x128xf32>
    %76 = arith.mulf %63, %74 : vector<1x128xf32>
    %77 = arith.subf %75, %76 : vector<1x128xf32>
    %c0_53 = arith.constant 0 : index
    %c0_54 = arith.constant 0 : index
    %c0_55 = arith.constant 0 : index
    %78 = vector.load %arg5[%c0_53, %c0_54, %c0_55] : memref<4x32x128xf32, #tpu.memory_space<vmem>>, vector<1x32x128xf32>
    %79 = vector.shape_cast %78 : vector<1x32x128xf32> to vector<32x128xf32>
    %80 = vector.broadcast %74 : vector<1x128xf32> to vector<32x128xf32>
    %81 = arith.mulf %79, %80 : vector<32x128xf32>
    %82 = vector.broadcast %77 : vector<1x128xf32> to vector<32x128xf32>
    %83 = arith.addf %81, %82 : vector<32x128xf32>
    %cst_56 = arith.constant 0.000000e+00 : f32
    %84 = vector.broadcast %cst_56 : f32 to vector<32x128xf32>
    %85 = arith.maximumf %83, %84 : vector<32x128xf32>
    %86 = arith.truncf %85 : vector<32x128xf32> to vector<32x128xbf16>
    %c0_57 = arith.constant 0 : index
    %c0_58 = arith.constant 0 : index
    %c0_59 = arith.constant 0 : index
    %87 = vector.load %arg4[%c0_57, %c0_58, %c0_59] : memref<4x32x128xbf16, #tpu.memory_space<vmem>>, vector<1x32x128xbf16>
    %88 = vector.shape_cast %87 : vector<1x32x128xbf16> to vector<32x128xbf16>
    %89 = vector.shape_cast %86 : vector<32x128xbf16> to vector<1x32x128xbf16>
    tpu.vector_store %arg4[%c0_57, %c0_58, %c0_59], %89 {strides = array<i32>} : memref<4x32x128xbf16, #tpu.memory_space<vmem>>, vector<1x32x128xbf16>,
    %c1_60 = arith.constant 1 : index
    %c0_61 = arith.constant 0 : index
    %c0_62 = arith.constant 0 : index
    %90 = vector.load %arg5[%c1_60, %c0_61, %c0_62] : memref<4x32x128xf32, #tpu.memory_space<vmem>>, vector<1x32x128xf32>
    %91 = vector.shape_cast %90 : vector<1x32x128xf32> to vector<32x128xf32>
    %92 = vector.broadcast %74 : vector<1x128xf32> to vector<32x128xf32>
    %93 = arith.mulf %91, %92 : vector<32x128xf32>
    %94 = vector.broadcast %77 : vector<1x128xf32> to vector<32x128xf32>
    %95 = arith.addf %93, %94 : vector<32x128xf32>
    %cst_63 = arith.constant 0.000000e+00 : f32
    %96 = vector.broadcast %cst_63 : f32 to vector<32x128xf32>
    %97 = arith.maximumf %95, %96 : vector<32x128xf32>
    %98 = arith.truncf %97 : vector<32x128xf32> to vector<32x128xbf16>
    %c1_64 = arith.constant 1 : index
    %c0_65 = arith.constant 0 : index
    %c0_66 = arith.constant 0 : index
    %99 = vector.load %arg4[%c1_64, %c0_65, %c0_66] : memref<4x32x128xbf16, #tpu.memory_space<vmem>>, vector<1x32x128xbf16>
    %100 = vector.shape_cast %99 : vector<1x32x128xbf16> to vector<32x128xbf16>
    %101 = vector.shape_cast %98 : vector<32x128xbf16> to vector<1x32x128xbf16>
    tpu.vector_store %arg4[%c1_64, %c0_65, %c0_66], %101 {strides = array<i32>} : memref<4x32x128xbf16, #tpu.memory_space<vmem>>, vector<1x32x128xbf16>,
    %c2_67 = arith.constant 2 : index
    %c0_68 = arith.constant 0 : index
    %c0_69 = arith.constant 0 : index
    %102 = vector.load %arg5[%c2_67, %c0_68, %c0_69] : memref<4x32x128xf32, #tpu.memory_space<vmem>>, vector<1x32x128xf32>
    %103 = vector.shape_cast %102 : vector<1x32x128xf32> to vector<32x128xf32>
    %104 = vector.broadcast %74 : vector<1x128xf32> to vector<32x128xf32>
    %105 = arith.mulf %103, %104 : vector<32x128xf32>
    %106 = vector.broadcast %77 : vector<1x128xf32> to vector<32x128xf32>
    %107 = arith.addf %105, %106 : vector<32x128xf32>
    %cst_70 = arith.constant 0.000000e+00 : f32
    %108 = vector.broadcast %cst_70 : f32 to vector<32x128xf32>
    %109 = arith.maximumf %107, %108 : vector<32x128xf32>
    %110 = arith.truncf %109 : vector<32x128xf32> to vector<32x128xbf16>
    %c2_71 = arith.constant 2 : index
    %c0_72 = arith.constant 0 : index
    %c0_73 = arith.constant 0 : index
    %111 = vector.load %arg4[%c2_71, %c0_72, %c0_73] : memref<4x32x128xbf16, #tpu.memory_space<vmem>>, vector<1x32x128xbf16>
    %112 = vector.shape_cast %111 : vector<1x32x128xbf16> to vector<32x128xbf16>
    %113 = vector.shape_cast %110 : vector<32x128xbf16> to vector<1x32x128xbf16>
    tpu.vector_store %arg4[%c2_71, %c0_72, %c0_73], %113 {strides = array<i32>} : memref<4x32x128xbf16, #tpu.memory_space<vmem>>, vector<1x32x128xbf16>,
    %c3_74 = arith.constant 3 : index
    %c0_75 = arith.constant 0 : index
    %c0_76 = arith.constant 0 : index
    %114 = vector.load %arg5[%c3_74, %c0_75, %c0_76] : memref<4x32x128xf32, #tpu.memory_space<vmem>>, vector<1x32x128xf32>
    %115 = vector.shape_cast %114 : vector<1x32x128xf32> to vector<32x128xf32>
    %116 = vector.broadcast %74 : vector<1x128xf32> to vector<32x128xf32>
    %117 = arith.mulf %115, %116 : vector<32x128xf32>
    %118 = vector.broadcast %77 : vector<1x128xf32> to vector<32x128xf32>
    %119 = arith.addf %117, %118 : vector<32x128xf32>
    %cst_77 = arith.constant 0.000000e+00 : f32
    %120 = vector.broadcast %cst_77 : f32 to vector<32x128xf32>
    %121 = arith.maximumf %119, %120 : vector<32x128xf32>
    %122 = arith.truncf %121 : vector<32x128xf32> to vector<32x128xbf16>
    %c3_78 = arith.constant 3 : index
    %c0_79 = arith.constant 0 : index
    %c0_80 = arith.constant 0 : index
    %123 = vector.load %arg4[%c3_78, %c0_79, %c0_80] : memref<4x32x128xbf16, #tpu.memory_space<vmem>>, vector<1x32x128xbf16>
    %124 = vector.shape_cast %123 : vector<1x32x128xbf16> to vector<32x128xbf16>
    %125 = vector.shape_cast %122 : vector<32x128xbf16> to vector<1x32x128xbf16>
    tpu.vector_store %arg4[%c3_78, %c0_79, %c0_80], %125 {strides = array<i32>} : memref<4x32x128xbf16, #tpu.memory_space<vmem>>, vector<1x32x128xbf16>,
    return
  }
}

module attributes {stable_mosaic.version = 11 : i64} {
  func.func @_phase_matmul_bn_relu_kernel(%arg0: memref<4x128x256xbf16, #tpu.memory_space<vmem>>, %arg1: memref<4x256x128xbf16, #tpu.memory_space<vmem>>, %arg2: memref<1x128xf32, #tpu.memory_space<vmem>>, %arg3: memref<1x128xf32, #tpu.memory_space<vmem>>, %arg4: memref<4x128x128xbf16, #tpu.memory_space<vmem>>, %arg5: memref<4x128x128xf32, #tpu.memory_space<vmem>>) attributes {dimension_semantics = [], scalar_prefetch = 0 : i64, scratch_operands = 1 : i64, tpu.core_type = #tpu.core_type<tc>} {
    %cst = arith.constant 0.000000e+00 : f32
    %0 = vector.broadcast %cst : f32 to vector<1x128xf32>
    %cst_0 = arith.constant 0.000000e+00 : f32
    %1 = vector.broadcast %cst_0 : f32 to vector<1x128xf32>
    %c0 = arith.constant 0 : index
    %c0_1 = arith.constant 0 : index
    %c0_2 = arith.constant 0 : index
    %2 = vector.load %arg0[%c0, %c0_1, %c0_2] : memref<4x128x256xbf16, #tpu.memory_space<vmem>>, vector<1x128x256xbf16>
    %3 = vector.shape_cast %2 : vector<1x128x256xbf16> to vector<128x256xbf16>
    %c0_3 = arith.constant 0 : index
    %c0_4 = arith.constant 0 : index
    %c0_5 = arith.constant 0 : index
    %4 = vector.load %arg1[%c0_3, %c0_4, %c0_5] : memref<4x256x128xbf16, #tpu.memory_space<vmem>>, vector<1x256x128xbf16>
    %5 = vector.shape_cast %4 : vector<1x256x128xbf16> to vector<256x128xbf16>
    %cst_6 = arith.constant dense<0.000000e+00> : vector<128x128xf32>
    %6 = tpu.matmul %3, %5, %cst_6 {dimension_numbers = #tpu.dot_dimension_numbers<[1], [0], [0], [1], [0, 0, 1, 1], [], []>} : vector<128x256xbf16>, vector<256x128xbf16>, vector<128x128xf32> -> vector<128x128xf32>
    %c0_7 = arith.constant 0 : index
    %c0_8 = arith.constant 0 : index
    %c0_9 = arith.constant 0 : index
    %7 = vector.load %arg5[%c0_7, %c0_8, %c0_9] : memref<4x128x128xf32, #tpu.memory_space<vmem>>, vector<1x128x128xf32>
    %8 = vector.shape_cast %7 : vector<1x128x128xf32> to vector<128x128xf32>
    %9 = vector.shape_cast %6 : vector<128x128xf32> to vector<1x128x128xf32>
    tpu.vector_store %arg5[%c0_7, %c0_8, %c0_9], %9 {strides = array<i32>} : memref<4x128x128xf32, #tpu.memory_space<vmem>>, vector<1x128x128xf32>,
    %cst_10 = arith.constant dense<0.000000e+00> : vector<128xf32>
    %10 = vector.multi_reduction <add>, %6, %cst_10 [0] : vector<128x128xf32> to vector<128xf32>
    %11 = vector.shape_cast %10 : vector<128xf32> to vector<1x128xf32>
    %12 = arith.addf %0, %11 : vector<1x128xf32>
    %13 = arith.mulf %6, %6 : vector<128x128xf32>
    %cst_11 = arith.constant dense<0.000000e+00> : vector<128xf32>
    %14 = vector.multi_reduction <add>, %13, %cst_11 [0] : vector<128x128xf32> to vector<128xf32>
    %15 = vector.shape_cast %14 : vector<128xf32> to vector<1x128xf32>
    %16 = arith.addf %1, %15 : vector<1x128xf32>
    %c1 = arith.constant 1 : index
    %c0_12 = arith.constant 0 : index
    %c0_13 = arith.constant 0 : index
    %17 = vector.load %arg0[%c1, %c0_12, %c0_13] : memref<4x128x256xbf16, #tpu.memory_space<vmem>>, vector<1x128x256xbf16>
    %18 = vector.shape_cast %17 : vector<1x128x256xbf16> to vector<128x256xbf16>
    %c1_14 = arith.constant 1 : index
    %c0_15 = arith.constant 0 : index
    %c0_16 = arith.constant 0 : index
    %19 = vector.load %arg1[%c1_14, %c0_15, %c0_16] : memref<4x256x128xbf16, #tpu.memory_space<vmem>>, vector<1x256x128xbf16>
    %20 = vector.shape_cast %19 : vector<1x256x128xbf16> to vector<256x128xbf16>
    %cst_17 = arith.constant dense<0.000000e+00> : vector<128x128xf32>
    %21 = tpu.matmul %18, %20, %cst_17 {dimension_numbers = #tpu.dot_dimension_numbers<[1], [0], [0], [1], [0, 0, 1, 1], [], []>} : vector<128x256xbf16>, vector<256x128xbf16>, vector<128x128xf32> -> vector<128x128xf32>
    %c1_18 = arith.constant 1 : index
    %c0_19 = arith.constant 0 : index
    %c0_20 = arith.constant 0 : index
    %22 = vector.load %arg5[%c1_18, %c0_19, %c0_20] : memref<4x128x128xf32, #tpu.memory_space<vmem>>, vector<1x128x128xf32>
    %23 = vector.shape_cast %22 : vector<1x128x128xf32> to vector<128x128xf32>
    %24 = vector.shape_cast %21 : vector<128x128xf32> to vector<1x128x128xf32>
    tpu.vector_store %arg5[%c1_18, %c0_19, %c0_20], %24 {strides = array<i32>} : memref<4x128x128xf32, #tpu.memory_space<vmem>>, vector<1x128x128xf32>,
    %cst_21 = arith.constant dense<0.000000e+00> : vector<128xf32>
    %25 = vector.multi_reduction <add>, %21, %cst_21 [0] : vector<128x128xf32> to vector<128xf32>
    %26 = vector.shape_cast %25 : vector<128xf32> to vector<1x128xf32>
    %27 = arith.addf %12, %26 : vector<1x128xf32>
    %28 = arith.mulf %21, %21 : vector<128x128xf32>
    %cst_22 = arith.constant dense<0.000000e+00> : vector<128xf32>
    %29 = vector.multi_reduction <add>, %28, %cst_22 [0] : vector<128x128xf32> to vector<128xf32>
    %30 = vector.shape_cast %29 : vector<128xf32> to vector<1x128xf32>
    %31 = arith.addf %16, %30 : vector<1x128xf32>
    %c2 = arith.constant 2 : index
    %c0_23 = arith.constant 0 : index
    %c0_24 = arith.constant 0 : index
    %32 = vector.load %arg0[%c2, %c0_23, %c0_24] : memref<4x128x256xbf16, #tpu.memory_space<vmem>>, vector<1x128x256xbf16>
    %33 = vector.shape_cast %32 : vector<1x128x256xbf16> to vector<128x256xbf16>
    %c2_25 = arith.constant 2 : index
    %c0_26 = arith.constant 0 : index
    %c0_27 = arith.constant 0 : index
    %34 = vector.load %arg1[%c2_25, %c0_26, %c0_27] : memref<4x256x128xbf16, #tpu.memory_space<vmem>>, vector<1x256x128xbf16>
    %35 = vector.shape_cast %34 : vector<1x256x128xbf16> to vector<256x128xbf16>
    %cst_28 = arith.constant dense<0.000000e+00> : vector<128x128xf32>
    %36 = tpu.matmul %33, %35, %cst_28 {dimension_numbers = #tpu.dot_dimension_numbers<[1], [0], [0], [1], [0, 0, 1, 1], [], []>} : vector<128x256xbf16>, vector<256x128xbf16>, vector<128x128xf32> -> vector<128x128xf32>
    %c2_29 = arith.constant 2 : index
    %c0_30 = arith.constant 0 : index
    %c0_31 = arith.constant 0 : index
    %37 = vector.load %arg5[%c2_29, %c0_30, %c0_31] : memref<4x128x128xf32, #tpu.memory_space<vmem>>, vector<1x128x128xf32>
    %38 = vector.shape_cast %37 : vector<1x128x128xf32> to vector<128x128xf32>
    %39 = vector.shape_cast %36 : vector<128x128xf32> to vector<1x128x128xf32>
    tpu.vector_store %arg5[%c2_29, %c0_30, %c0_31], %39 {strides = array<i32>} : memref<4x128x128xf32, #tpu.memory_space<vmem>>, vector<1x128x128xf32>,
    %cst_32 = arith.constant dense<0.000000e+00> : vector<128xf32>
    %40 = vector.multi_reduction <add>, %36, %cst_32 [0] : vector<128x128xf32> to vector<128xf32>
    %41 = vector.shape_cast %40 : vector<128xf32> to vector<1x128xf32>
    %42 = arith.addf %27, %41 : vector<1x128xf32>
    %43 = arith.mulf %36, %36 : vector<128x128xf32>
    %cst_33 = arith.constant dense<0.000000e+00> : vector<128xf32>
    %44 = vector.multi_reduction <add>, %43, %cst_33 [0] : vector<128x128xf32> to vector<128xf32>
    %45 = vector.shape_cast %44 : vector<128xf32> to vector<1x128xf32>
    %46 = arith.addf %31, %45 : vector<1x128xf32>
    %c3 = arith.constant 3 : index
    %c0_34 = arith.constant 0 : index
    %c0_35 = arith.constant 0 : index
    %47 = vector.load %arg0[%c3, %c0_34, %c0_35] : memref<4x128x256xbf16, #tpu.memory_space<vmem>>, vector<1x128x256xbf16>
    %48 = vector.shape_cast %47 : vector<1x128x256xbf16> to vector<128x256xbf16>
    %c3_36 = arith.constant 3 : index
    %c0_37 = arith.constant 0 : index
    %c0_38 = arith.constant 0 : index
    %49 = vector.load %arg1[%c3_36, %c0_37, %c0_38] : memref<4x256x128xbf16, #tpu.memory_space<vmem>>, vector<1x256x128xbf16>
    %50 = vector.shape_cast %49 : vector<1x256x128xbf16> to vector<256x128xbf16>
    %cst_39 = arith.constant dense<0.000000e+00> : vector<128x128xf32>
    %51 = tpu.matmul %48, %50, %cst_39 {dimension_numbers = #tpu.dot_dimension_numbers<[1], [0], [0], [1], [0, 0, 1, 1], [], []>} : vector<128x256xbf16>, vector<256x128xbf16>, vector<128x128xf32> -> vector<128x128xf32>
    %c3_40 = arith.constant 3 : index
    %c0_41 = arith.constant 0 : index
    %c0_42 = arith.constant 0 : index
    %52 = vector.load %arg5[%c3_40, %c0_41, %c0_42] : memref<4x128x128xf32, #tpu.memory_space<vmem>>, vector<1x128x128xf32>
    %53 = vector.shape_cast %52 : vector<1x128x128xf32> to vector<128x128xf32>
    %54 = vector.shape_cast %51 : vector<128x128xf32> to vector<1x128x128xf32>
    tpu.vector_store %arg5[%c3_40, %c0_41, %c0_42], %54 {strides = array<i32>} : memref<4x128x128xf32, #tpu.memory_space<vmem>>, vector<1x128x128xf32>,
    %cst_43 = arith.constant dense<0.000000e+00> : vector<128xf32>
    %55 = vector.multi_reduction <add>, %51, %cst_43 [0] : vector<128x128xf32> to vector<128xf32>
    %56 = vector.shape_cast %55 : vector<128xf32> to vector<1x128xf32>
    %57 = arith.addf %42, %56 : vector<1x128xf32>
    %58 = arith.mulf %51, %51 : vector<128x128xf32>
    %cst_44 = arith.constant dense<0.000000e+00> : vector<128xf32>
    %59 = vector.multi_reduction <add>, %58, %cst_44 [0] : vector<128x128xf32> to vector<128xf32>
    %60 = vector.shape_cast %59 : vector<128xf32> to vector<1x128xf32>
    %61 = arith.addf %46, %60 : vector<1x128xf32>
    %cst_45 = arith.constant 0.001953125 : f32
    %62 = vector.broadcast %cst_45 : f32 to vector<1x128xf32>
    %63 = arith.mulf %57, %62 : vector<1x128xf32>
    %cst_46 = arith.constant 0.001953125 : f32
    %64 = vector.broadcast %cst_46 : f32 to vector<1x128xf32>
    %65 = arith.mulf %61, %64 : vector<1x128xf32>
    %66 = arith.mulf %63, %63 : vector<1x128xf32>
    %67 = arith.subf %65, %66 : vector<1x128xf32>
    %cst_47 = arith.constant 0.000000e+00 : f32
    %68 = vector.broadcast %cst_47 : f32 to vector<1x128xf32>
    %69 = arith.maximumf %67, %68 : vector<1x128xf32>
    %c0_48 = arith.constant 0 : index
    %c0_49 = arith.constant 0 : index
    %70 = vector.load %arg2[%c0_48, %c0_49] : memref<1x128xf32, #tpu.memory_space<vmem>>, vector<1x128xf32>
    %cst_50 = arith.constant 9.99999974E-6 : f32
    %71 = vector.broadcast %cst_50 : f32 to vector<1x128xf32>
    %72 = arith.addf %69, %71 : vector<1x128xf32>
    %73 = math.rsqrt %72 : vector<1x128xf32>
    %74 = arith.mulf %70, %73 : vector<1x128xf32>
    %c0_51 = arith.constant 0 : index
    %c0_52 = arith.constant 0 : index
    %75 = vector.load %arg3[%c0_51, %c0_52] : memref<1x128xf32, #tpu.memory_space<vmem>>, vector<1x128xf32>
    %76 = arith.mulf %63, %74 : vector<1x128xf32>
    %77 = arith.subf %75, %76 : vector<1x128xf32>
    %c0_53 = arith.constant 0 : index
    %c0_54 = arith.constant 0 : index
    %c0_55 = arith.constant 0 : index
    %78 = vector.load %arg5[%c0_53, %c0_54, %c0_55] : memref<4x128x128xf32, #tpu.memory_space<vmem>>, vector<1x128x128xf32>
    %79 = vector.shape_cast %78 : vector<1x128x128xf32> to vector<128x128xf32>
    %80 = vector.broadcast %74 : vector<1x128xf32> to vector<128x128xf32>
    %81 = arith.mulf %79, %80 : vector<128x128xf32>
    %82 = vector.broadcast %77 : vector<1x128xf32> to vector<128x128xf32>
    %83 = arith.addf %81, %82 : vector<128x128xf32>
    %cst_56 = arith.constant 0.000000e+00 : f32
    %84 = vector.broadcast %cst_56 : f32 to vector<128x128xf32>
    %85 = arith.maximumf %83, %84 : vector<128x128xf32>
    %86 = arith.truncf %85 : vector<128x128xf32> to vector<128x128xbf16>
    %c0_57 = arith.constant 0 : index
    %c0_58 = arith.constant 0 : index
    %c0_59 = arith.constant 0 : index
    %87 = vector.load %arg4[%c0_57, %c0_58, %c0_59] : memref<4x128x128xbf16, #tpu.memory_space<vmem>>, vector<1x128x128xbf16>
    %88 = vector.shape_cast %87 : vector<1x128x128xbf16> to vector<128x128xbf16>
    %89 = vector.shape_cast %86 : vector<128x128xbf16> to vector<1x128x128xbf16>
    tpu.vector_store %arg4[%c0_57, %c0_58, %c0_59], %89 {strides = array<i32>} : memref<4x128x128xbf16, #tpu.memory_space<vmem>>, vector<1x128x128xbf16>,
    %c1_60 = arith.constant 1 : index
    %c0_61 = arith.constant 0 : index
    %c0_62 = arith.constant 0 : index
    %90 = vector.load %arg5[%c1_60, %c0_61, %c0_62] : memref<4x128x128xf32, #tpu.memory_space<vmem>>, vector<1x128x128xf32>
    %91 = vector.shape_cast %90 : vector<1x128x128xf32> to vector<128x128xf32>
    %92 = vector.broadcast %74 : vector<1x128xf32> to vector<128x128xf32>
    %93 = arith.mulf %91, %92 : vector<128x128xf32>
    %94 = vector.broadcast %77 : vector<1x128xf32> to vector<128x128xf32>
    %95 = arith.addf %93, %94 : vector<128x128xf32>
    %cst_63 = arith.constant 0.000000e+00 : f32
    %96 = vector.broadcast %cst_63 : f32 to vector<128x128xf32>
    %97 = arith.maximumf %95, %96 : vector<128x128xf32>
    %98 = arith.truncf %97 : vector<128x128xf32> to vector<128x128xbf16>
    %c1_64 = arith.constant 1 : index
    %c0_65 = arith.constant 0 : index
    %c0_66 = arith.constant 0 : index
    %99 = vector.load %arg4[%c1_64, %c0_65, %c0_66] : memref<4x128x128xbf16, #tpu.memory_space<vmem>>, vector<1x128x128xbf16>
    %100 = vector.shape_cast %99 : vector<1x128x128xbf16> to vector<128x128xbf16>
    %101 = vector.shape_cast %98 : vector<128x128xbf16> to vector<1x128x128xbf16>
    tpu.vector_store %arg4[%c1_64, %c0_65, %c0_66], %101 {strides = array<i32>} : memref<4x128x128xbf16, #tpu.memory_space<vmem>>, vector<1x128x128xbf16>,
    %c2_67 = arith.constant 2 : index
    %c0_68 = arith.constant 0 : index
    %c0_69 = arith.constant 0 : index
    %102 = vector.load %arg5[%c2_67, %c0_68, %c0_69] : memref<4x128x128xf32, #tpu.memory_space<vmem>>, vector<1x128x128xf32>
    %103 = vector.shape_cast %102 : vector<1x128x128xf32> to vector<128x128xf32>
    %104 = vector.broadcast %74 : vector<1x128xf32> to vector<128x128xf32>
    %105 = arith.mulf %103, %104 : vector<128x128xf32>
    %106 = vector.broadcast %77 : vector<1x128xf32> to vector<128x128xf32>
    %107 = arith.addf %105, %106 : vector<128x128xf32>
    %cst_70 = arith.constant 0.000000e+00 : f32
    %108 = vector.broadcast %cst_70 : f32 to vector<128x128xf32>
    %109 = arith.maximumf %107, %108 : vector<128x128xf32>
    %110 = arith.truncf %109 : vector<128x128xf32> to vector<128x128xbf16>
    %c2_71 = arith.constant 2 : index
    %c0_72 = arith.constant 0 : index
    %c0_73 = arith.constant 0 : index
    %111 = vector.load %arg4[%c2_71, %c0_72, %c0_73] : memref<4x128x128xbf16, #tpu.memory_space<vmem>>, vector<1x128x128xbf16>
    %112 = vector.shape_cast %111 : vector<1x128x128xbf16> to vector<128x128xbf16>
    %113 = vector.shape_cast %110 : vector<128x128xbf16> to vector<1x128x128xbf16>
    tpu.vector_store %arg4[%c2_71, %c0_72, %c0_73], %113 {strides = array<i32>} : memref<4x128x128xbf16, #tpu.memory_space<vmem>>, vector<1x128x128xbf16>,
    %c3_74 = arith.constant 3 : index
    %c0_75 = arith.constant 0 : index
    %c0_76 = arith.constant 0 : index
    %114 = vector.load %arg5[%c3_74, %c0_75, %c0_76] : memref<4x128x128xf32, #tpu.memory_space<vmem>>, vector<1x128x128xf32>
    %115 = vector.shape_cast %114 : vector<1x128x128xf32> to vector<128x128xf32>
    %116 = vector.broadcast %74 : vector<1x128xf32> to vector<128x128xf32>
    %117 = arith.mulf %115, %116 : vector<128x128xf32>
    %118 = vector.broadcast %77 : vector<1x128xf32> to vector<128x128xf32>
    %119 = arith.addf %117, %118 : vector<128x128xf32>
    %cst_77 = arith.constant 0.000000e+00 : f32
    %120 = vector.broadcast %cst_77 : f32 to vector<128x128xf32>
    %121 = arith.maximumf %119, %120 : vector<128x128xf32>
    %122 = arith.truncf %121 : vector<128x128xf32> to vector<128x128xbf16>
    %c3_78 = arith.constant 3 : index
    %c0_79 = arith.constant 0 : index
    %c0_80 = arith.constant 0 : index
    %123 = vector.load %arg4[%c3_78, %c0_79, %c0_80] : memref<4x128x128xbf16, #tpu.memory_space<vmem>>, vector<1x128x128xbf16>
    %124 = vector.shape_cast %123 : vector<1x128x128xbf16> to vector<128x128xbf16>
    %125 = vector.shape_cast %122 : vector<128x128xbf16> to vector<1x128x128xbf16>
    tpu.vector_store %arg4[%c3_78, %c0_79, %c0_80], %125 {strides = array<i32>} : memref<4x128x128xbf16, #tpu.memory_space<vmem>>, vector<1x128x128xbf16>,
    return
  }
}

module attributes {stable_mosaic.version = 11 : i64} {
  func.func @_phase_matmul_tanh_kernel(%arg0: memref<4x8x128xbf16, #tpu.memory_space<vmem>>, %arg1: memref<4x128x512xbf16, #tpu.memory_space<vmem>>, %arg2: memref<4x8x512xf32, #tpu.memory_space<vmem>>) attributes {dimension_semantics = [], scalar_prefetch = 0 : i64, scratch_operands = 0 : i64, tpu.core_type = #tpu.core_type<tc>} {
    %c0 = arith.constant 0 : index
    %c0_0 = arith.constant 0 : index
    %c0_1 = arith.constant 0 : index
    %0 = vector.load %arg0[%c0, %c0_0, %c0_1] : memref<4x8x128xbf16, #tpu.memory_space<vmem>>, vector<1x8x128xbf16>
    %1 = vector.shape_cast %0 : vector<1x8x128xbf16> to vector<8x128xbf16>
    %c0_2 = arith.constant 0 : index
    %c0_3 = arith.constant 0 : index
    %c0_4 = arith.constant 0 : index
    %2 = vector.load %arg1[%c0_2, %c0_3, %c0_4] : memref<4x128x512xbf16, #tpu.memory_space<vmem>>, vector<1x128x512xbf16>
    %3 = vector.shape_cast %2 : vector<1x128x512xbf16> to vector<128x512xbf16>
    %cst = arith.constant dense<0.000000e+00> : vector<8x512xf32>
    %4 = tpu.matmul %1, %3, %cst {dimension_numbers = #tpu.dot_dimension_numbers<[1], [0], [0], [1], [0, 0, 1, 1], [], []>} : vector<8x128xbf16>, vector<128x512xbf16>, vector<8x512xf32> -> vector<8x512xf32>
    %5 = math.tanh %4 : vector<8x512xf32>
    %c0_5 = arith.constant 0 : index
    %c0_6 = arith.constant 0 : index
    %c0_7 = arith.constant 0 : index
    %6 = vector.load %arg2[%c0_5, %c0_6, %c0_7] : memref<4x8x512xf32, #tpu.memory_space<vmem>>, vector<1x8x512xf32>
    %7 = vector.shape_cast %6 : vector<1x8x512xf32> to vector<8x512xf32>
    %8 = vector.shape_cast %5 : vector<8x512xf32> to vector<1x8x512xf32>
    tpu.vector_store %arg2[%c0_5, %c0_6, %c0_7], %8 {strides = array<i32>} : memref<4x8x512xf32, #tpu.memory_space<vmem>>, vector<1x8x512xf32>,
    %c1 = arith.constant 1 : index
    %c0_8 = arith.constant 0 : index
    %c0_9 = arith.constant 0 : index
    %9 = vector.load %arg0[%c1, %c0_8, %c0_9] : memref<4x8x128xbf16, #tpu.memory_space<vmem>>, vector<1x8x128xbf16>
    %10 = vector.shape_cast %9 : vector<1x8x128xbf16> to vector<8x128xbf16>
    %c1_10 = arith.constant 1 : index
    %c0_11 = arith.constant 0 : index
    %c0_12 = arith.constant 0 : index
    %11 = vector.load %arg1[%c1_10, %c0_11, %c0_12] : memref<4x128x512xbf16, #tpu.memory_space<vmem>>, vector<1x128x512xbf16>
    %12 = vector.shape_cast %11 : vector<1x128x512xbf16> to vector<128x512xbf16>
    %cst_13 = arith.constant dense<0.000000e+00> : vector<8x512xf32>
    %13 = tpu.matmul %10, %12, %cst_13 {dimension_numbers = #tpu.dot_dimension_numbers<[1], [0], [0], [1], [0, 0, 1, 1], [], []>} : vector<8x128xbf16>, vector<128x512xbf16>, vector<8x512xf32> -> vector<8x512xf32>
    %14 = math.tanh %13 : vector<8x512xf32>
    %c1_14 = arith.constant 1 : index
    %c0_15 = arith.constant 0 : index
    %c0_16 = arith.constant 0 : index
    %15 = vector.load %arg2[%c1_14, %c0_15, %c0_16] : memref<4x8x512xf32, #tpu.memory_space<vmem>>, vector<1x8x512xf32>
    %16 = vector.shape_cast %15 : vector<1x8x512xf32> to vector<8x512xf32>
    %17 = vector.shape_cast %14 : vector<8x512xf32> to vector<1x8x512xf32>
    tpu.vector_store %arg2[%c1_14, %c0_15, %c0_16], %17 {strides = array<i32>} : memref<4x8x512xf32, #tpu.memory_space<vmem>>, vector<1x8x512xf32>,
    %c2 = arith.constant 2 : index
    %c0_17 = arith.constant 0 : index
    %c0_18 = arith.constant 0 : index
    %18 = vector.load %arg0[%c2, %c0_17, %c0_18] : memref<4x8x128xbf16, #tpu.memory_space<vmem>>, vector<1x8x128xbf16>
    %19 = vector.shape_cast %18 : vector<1x8x128xbf16> to vector<8x128xbf16>
    %c2_19 = arith.constant 2 : index
    %c0_20 = arith.constant 0 : index
    %c0_21 = arith.constant 0 : index
    %20 = vector.load %arg1[%c2_19, %c0_20, %c0_21] : memref<4x128x512xbf16, #tpu.memory_space<vmem>>, vector<1x128x512xbf16>
    %21 = vector.shape_cast %20 : vector<1x128x512xbf16> to vector<128x512xbf16>
    %cst_22 = arith.constant dense<0.000000e+00> : vector<8x512xf32>
    %22 = tpu.matmul %19, %21, %cst_22 {dimension_numbers = #tpu.dot_dimension_numbers<[1], [0], [0], [1], [0, 0, 1, 1], [], []>} : vector<8x128xbf16>, vector<128x512xbf16>, vector<8x512xf32> -> vector<8x512xf32>
    %23 = math.tanh %22 : vector<8x512xf32>
    %c2_23 = arith.constant 2 : index
    %c0_24 = arith.constant 0 : index
    %c0_25 = arith.constant 0 : index
    %24 = vector.load %arg2[%c2_23, %c0_24, %c0_25] : memref<4x8x512xf32, #tpu.memory_space<vmem>>, vector<1x8x512xf32>
    %25 = vector.shape_cast %24 : vector<1x8x512xf32> to vector<8x512xf32>
    %26 = vector.shape_cast %23 : vector<8x512xf32> to vector<1x8x512xf32>
    tpu.vector_store %arg2[%c2_23, %c0_24, %c0_25], %26 {strides = array<i32>} : memref<4x8x512xf32, #tpu.memory_space<vmem>>, vector<1x8x512xf32>,
    %c3 = arith.constant 3 : index
    %c0_26 = arith.constant 0 : index
    %c0_27 = arith.constant 0 : index
    %27 = vector.load %arg0[%c3, %c0_26, %c0_27] : memref<4x8x128xbf16, #tpu.memory_space<vmem>>, vector<1x8x128xbf16>
    %28 = vector.shape_cast %27 : vector<1x8x128xbf16> to vector<8x128xbf16>
    %c3_28 = arith.constant 3 : index
    %c0_29 = arith.constant 0 : index
    %c0_30 = arith.constant 0 : index
    %29 = vector.load %arg1[%c3_28, %c0_29, %c0_30] : memref<4x128x512xbf16, #tpu.memory_space<vmem>>, vector<1x128x512xbf16>
    %30 = vector.shape_cast %29 : vector<1x128x512xbf16> to vector<128x512xbf16>
    %cst_31 = arith.constant dense<0.000000e+00> : vector<8x512xf32>
    %31 = tpu.matmul %28, %30, %cst_31 {dimension_numbers = #tpu.dot_dimension_numbers<[1], [0], [0], [1], [0, 0, 1, 1], [], []>} : vector<8x128xbf16>, vector<128x512xbf16>, vector<8x512xf32> -> vector<8x512xf32>
    %32 = math.tanh %31 : vector<8x512xf32>
    %c3_32 = arith.constant 3 : index
    %c0_33 = arith.constant 0 : index
    %c0_34 = arith.constant 0 : index
    %33 = vector.load %arg2[%c3_32, %c0_33, %c0_34] : memref<4x8x512xf32, #tpu.memory_space<vmem>>, vector<1x8x512xf32>
    %34 = vector.shape_cast %33 : vector<1x8x512xf32> to vector<8x512xf32>
    %35 = vector.shape_cast %32 : vector<8x512xf32> to vector<1x8x512xf32>
    tpu.vector_store %arg2[%c3_32, %c0_33, %c0_34], %35 {strides = array<i32>} : memref<4x8x512xf32, #tpu.memory_space<vmem>>, vector<1x8x512xf32>,
    return
  }
}

</mosaic_0001>

<llo_original>
// kernel: generator_forward.4
$region0: #{generator_forward.4}
  #allocation0 [shape = 'u32[]', space=smem, size = 0x4, offset = 0x4, fixed_abs, tag = 'smem constant byte address 0x4 - core index']
  #allocation1 [shape = 'u32[144,128]{1,0:T(1,128)}', space=vmem, size = 0x12000, scoped, tag = 'internal scratch']
  %s0 = inlined_call_operand.vmem [shape: bf16[2,128], index: 0, kind: input, shape index: {}]
  %s1 = inlined_call_operand.hbm [shape: bf16[128,2048], index: 1, kind: input, shape index: {}]
  %s2 = inlined_call_operand.hbm [shape: f32[1,128], index: 2, kind: input, shape index: {}]
  %s3 = inlined_call_operand.hbm [shape: f32[1,128], index: 3, kind: input, shape index: {}]
  %s4 = inlined_call_operand.vmem [shape: bf16[2,2048], index: 4, kind: output, shape index: {}]
  %s5 = sld [smem:[#allocation0]]
  $region38: #{generator_forward.4} parent=0
    _
  %s7 = ssub.s32 1, %s5
  %s8 = scalar_select 0, %s7, %s5
  $region1: #{generator_forward.4} parent=0
    #allocation2 [shape = 'u8[524288]{0}', space=vmem, size = 0x80000, scoped, tag = 'input window, operand 1, single buffered']
    #allocation3 [shape = 's32[1]{0}', space=sflag, size = 0x4, scoped, tag = 'scoped memory for generator_forward.4']
    #allocation4 [shape = 'u8[512]{0}', space=vmem, size = 0x400, scoped, tag = 'input window, operand 2, single buffered']
    #allocation5 [shape = 's32[1]{0}', space=sflag, size = 0x4, scoped, tag = 'scoped memory for generator_forward.4']
    #allocation6 [shape = 'u8[512]{0}', space=vmem, size = 0x400, scoped, tag = 'input window, operand 3, single buffered']
    %9 = vsyncpa [#allocation3], 0
    %10 = vsyncpa [#allocation5], 0
    // Predicated region
    $region2: #{generator_forward.4} parent=1 // pred_check
      _
    $region3: #{generator_forward.4} parent=1 // pred_check_branch
      %12 = sbr.rel (0) target = $region5
    $region4: #{generator_forward.4} parent=1 // pred_region
      _
    $region5: #{generator_forward.4} parent=1 // pred_fallthru
      _
    // Predicated region
    $region6: #{generator_forward.4} parent=1 // pred_check
      _
    $region7: #{generator_forward.4} parent=1 // pred_check_branch
      %14 = sbr.rel (0) target = $region9
    $region8: #{generator_forward.4} parent=1 // pred_region
      %s16 = ssub.s32 16384, 16384
      %17 = vsyncadd [#allocation3], %s16
      %s18 = sshll.u32 [#allocation2], 4
      %s19 = int_to_ptr.vmem [resolvable:$true] %s18
      %24 = dma.hbm_to_vmem [thread:$0]  %s1, 16384, %s19, [#allocation3], 1024, 1024, 64
    $region9: #{generator_forward.4} parent=1 // pred_fallthru
      _
    // Predicated region
    $region10: #{generator_forward.4} parent=1 // pred_check
      _
    $region11: #{generator_forward.4} parent=1 // pred_check_branch
      %26 = sbr.rel (0) target = $region13
    $region12: #{generator_forward.4} parent=1 // pred_region
      %s28 = ssub.s32 16, 16
      %29 = vsyncadd [#allocation5], %s28
      %s31 = sshll.u32 [#allocation4], 4
      %s32 = int_to_ptr.vmem [resolvable:$true] %s31
      %34 = dma.hbm_to_vmem [thread:$0]  %s2, 16, %s32, [#allocation5]
    $region13: #{generator_forward.4} parent=1 // pred_fallthru
      _
    // Predicated region
    $region14: #{generator_forward.4} parent=1 // pred_check
      _
    $region15: #{generator_forward.4} parent=1 // pred_check_branch
      %36 = sbr.rel (0) target = $region17
    $region16: #{generator_forward.4} parent=1 // pred_region
      %s38 = ssub.s32 16, 16
      %39 = vsyncadd [#allocation5], %s38
      %s41 = sshll.u32 [#allocation6], 4
      %s42 = int_to_ptr.vmem [resolvable:$true] %s41
      %44 = dma.hbm_to_vmem [thread:$0]  %s3, 16, %s42, [#allocation5]
    $region17: #{generator_forward.4} parent=1 // pred_fallthru
      _
    // Predicated region
    $region18: #{generator_forward.4} parent=1 // pred_check
      _
    $region19: #{generator_forward.4} parent=1 // pred_check_branch
      %46 = sbr.rel (0) target = $region21
    $region20: #{generator_forward.4} parent=1 // pred_region
      %47 = dma.done [#allocation3], 16384
    $region21: #{generator_forward.4} parent=1 // pred_fallthru
      _
    // Predicated region
    $region22: #{generator_forward.4} parent=1 // pred_check
      _
    $region23: #{generator_forward.4} parent=1 // pred_check_branch
      %49 = sbr.rel (0) target = $region25
    $region24: #{generator_forward.4} parent=1 // pred_region
      %50 = dma.done [#allocation5], 16
    $region25: #{generator_forward.4} parent=1 // pred_fallthru
      _
    // Predicated region
    $region26: #{generator_forward.4} parent=1 // pred_check
      _
    $region27: #{generator_forward.4} parent=1 // pred_check_branch
      %52 = sbr.rel (0) target = $region29
    $region28: #{generator_forward.4} parent=1 // pred_region
      %53 = dma.done [#allocation5], 16
    $region29: #{generator_forward.4} parent=1 // pred_fallthru
      _
    %v55 = vld [vmem:[%s0] sm:$0x1]
    %v56 = vld [vmem:[#allocation2] sm:$0xff]
    %v57 = vld [vmem:[#allocation2 + $0x8] sm:$0xff]
    %v58 = vld [vmem:[#allocation2 + $0x10] sm:$0xff]
    %v59 = vld [vmem:[#allocation2 + $0x18] sm:$0xff]
    %v60 = vld [vmem:[#allocation2 + $0x20] sm:$0xff]
    %v61 = vld [vmem:[#allocation2 + $0x28] sm:$0xff]
    %v62 = vld [vmem:[#allocation2 + $0x30] sm:$0xff]
    %v63 = vld [vmem:[#allocation2 + $0x38] sm:$0xff]
    %v64 = vld [vmem:[#allocation2 + $0x40] sm:$0xff]
    %v65 = vld [vmem:[#allocation2 + $0x48] sm:$0xff]
    %v66 = vld [vmem:[#allocation2 + $0x50] sm:$0xff]
    %v67 = vld [vmem:[#allocation2 + $0x58] sm:$0xff]
    %v68 = vld [vmem:[#allocation2 + $0x60] sm:$0xff]
    %v69 = vld [vmem:[#allocation2 + $0x68] sm:$0xff]
    %v70 = vld [vmem:[#allocation2 + $0x70] sm:$0xff]
    %v71 = vld [vmem:[#allocation2 + $0x78] sm:$0xff]
    %v72 = vld [vmem:[#allocation2 + $0x80] sm:$0xff]
    %v73 = vld [vmem:[#allocation2 + $0x88] sm:$0xff]
    %v74 = vld [vmem:[#allocation2 + $0x90] sm:$0xff]
    %v75 = vld [vmem:[#allocation2 + $0x98] sm:$0xff]
    %v76 = vld [vmem:[#allocation2 + $0xa0] sm:$0xff]
    %v77 = vld [vmem:[#allocation2 + $0xa8] sm:$0xff]
    %v78 = vld [vmem:[#allocation2 + $0xb0] sm:$0xff]
    %v79 = vld [vmem:[#allocation2 + $0xb8] sm:$0xff]
    %v80 = vld [vmem:[#allocation2 + $0xc0] sm:$0xff]
    %v81 = vld [vmem:[#allocation2 + $0xc8] sm:$0xff]
    %v82 = vld [vmem:[#allocation2 + $0xd0] sm:$0xff]
    %v83 = vld [vmem:[#allocation2 + $0xd8] sm:$0xff]
    %v84 = vld [vmem:[#allocation2 + $0xe0] sm:$0xff]
    %v85 = vld [vmem:[#allocation2 + $0xe8] sm:$0xff]
    %v86 = vld [vmem:[#allocation2 + $0xf0] sm:$0xff]
    %v87 = vld [vmem:[#allocation2 + $0xf8] sm:$0xff]
    %v88 = vld [vmem:[#allocation2 + $0x100] sm:$0xff]
    %v89 = vld [vmem:[#allocation2 + $0x108] sm:$0xff]
    %v90 = vld [vmem:[#allocation2 + $0x110] sm:$0xff]
    %v91 = vld [vmem:[#allocation2 + $0x118] sm:$0xff]
    %v92 = vld [vmem:[#allocation2 + $0x120] sm:$0xff]
    %v93 = vld [vmem:[#allocation2 + $0x128] sm:$0xff]
    %v94 = vld [vmem:[#allocation2 + $0x130] sm:$0xff]
    %v95 = vld [vmem:[#allocation2 + $0x138] sm:$0xff]
    %v96 = vld [vmem:[#allocation2 + $0x140] sm:$0xff]
    %v97 = vld [vmem:[#allocation2 + $0x148] sm:$0xff]
    %v98 = vld [vmem:[#allocation2 + $0x150] sm:$0xff]
    %v99 = vld [vmem:[#allocation2 + $0x158] sm:$0xff]
    %v100 = vld [vmem:[#allocation2 + $0x160] sm:$0xff]
    %v101 = vld [vmem:[#allocation2 + $0x168] sm:$0xff]
    %v102 = vld [vmem:[#allocation2 + $0x170] sm:$0xff]
    %v103 = vld [vmem:[#allocation2 + $0x178] sm:$0xff]
    %v104 = vld [vmem:[#allocation2 + $0x180] sm:$0xff]
    %v105 = vld [vmem:[#allocation2 + $0x188] sm:$0xff]
    %v106 = vld [vmem:[#allocation2 + $0x190] sm:$0xff]
    %v107 = vld [vmem:[#allocation2 + $0x198] sm:$0xff]
    %v108 = vld [vmem:[#allocation2 + $0x1a0] sm:$0xff]
    %v109 = vld [vmem:[#allocation2 + $0x1a8] sm:$0xff]
    %v110 = vld [vmem:[#allocation2 + $0x1b0] sm:$0xff]
    %v111 = vld [vmem:[#allocation2 + $0x1b8] sm:$0xff]
    %v112 = vld [vmem:[#allocation2 + $0x1c0] sm:$0xff]
    %v113 = vld [vmem:[#allocation2 + $0x1c8] sm:$0xff]
    %v114 = vld [vmem:[#allocation2 + $0x1d0] sm:$0xff]
    %v115 = vld [vmem:[#allocation2 + $0x1d8] sm:$0xff]
    %v116 = vld [vmem:[#allocation2 + $0x1e0] sm:$0xff]
    %v117 = vld [vmem:[#allocation2 + $0x1e8] sm:$0xff]
    %v118 = vld [vmem:[#allocation2 + $0x1f0] sm:$0xff]
    %v119 = vld [vmem:[#allocation2 + $0x1f8] sm:$0xff]
    %v120 = vld [vmem:[#allocation2 + $0x200] sm:$0xff]
    %v121 = vld [vmem:[#allocation2 + $0x208] sm:$0xff]
    %v122 = vld [vmem:[#allocation2 + $0x210] sm:$0xff]
    %v123 = vld [vmem:[#allocation2 + $0x218] sm:$0xff]
    %v124 = vld [vmem:[#allocation2 + $0x220] sm:$0xff]
    %v125 = vld [vmem:[#allocation2 + $0x228] sm:$0xff]
    %v126 = vld [vmem:[#allocation2 + $0x230] sm:$0xff]
    %v127 = vld [vmem:[#allocation2 + $0x238] sm:$0xff]
    %v128 = vld [vmem:[#allocation2 + $0x240] sm:$0xff]
    %v129 = vld [vmem:[#allocation2 + $0x248] sm:$0xff]
    %v130 = vld [vmem:[#allocation2 + $0x250] sm:$0xff]
    %v131 = vld [vmem:[#allocation2 + $0x258] sm:$0xff]
    %v132 = vld [vmem:[#allocation2 + $0x260] sm:$0xff]
    %v133 = vld [vmem:[#allocation2 + $0x268] sm:$0xff]
    %v134 = vld [vmem:[#allocation2 + $0x270] sm:$0xff]
    %v135 = vld [vmem:[#allocation2 + $0x278] sm:$0xff]
    %v136 = vld [vmem:[#allocation2 + $0x280] sm:$0xff]
    %v137 = vld [vmem:[#allocation2 + $0x288] sm:$0xff]
    %v138 = vld [vmem:[#allocation2 + $0x290] sm:$0xff]
    %v139 = vld [vmem:[#allocation2 + $0x298] sm:$0xff]
    %v140 = vld [vmem:[#allocation2 + $0x2a0] sm:$0xff]
    %v141 = vld [vmem:[#allocation2 + $0x2a8] sm:$0xff]
    %v142 = vld [vmem:[#allocation2 + $0x2b0] sm:$0xff]
    %v143 = vld [vmem:[#allocation2 + $0x2b8] sm:$0xff]
    %v144 = vld [vmem:[#allocation2 + $0x2c0] sm:$0xff]
    %v145 = vld [vmem:[#allocation2 + $0x2c8] sm:$0xff]
    %v146 = vld [vmem:[#allocation2 + $0x2d0] sm:$0xff]
    %v147 = vld [vmem:[#allocation2 + $0x2d8] sm:$0xff]
    %v148 = vld [vmem:[#allocation2 + $0x2e0] sm:$0xff]
    %v149 = vld [vmem:[#allocation2 + $0x2e8] sm:$0xff]
    %v150 = vld [vmem:[#allocation2 + $0x2f0] sm:$0xff]
    %v151 = vld [vmem:[#allocation2 + $0x2f8] sm:$0xff]
    %v152 = vld [vmem:[#allocation2 + $0x300] sm:$0xff]
    %v153 = vld [vmem:[#allocation2 + $0x308] sm:$0xff]
    %v154 = vld [vmem:[#allocation2 + $0x310] sm:$0xff]
    %v155 = vld [vmem:[#allocation2 + $0x318] sm:$0xff]
    %v156 = vld [vmem:[#allocation2 + $0x320] sm:$0xff]
    %v157 = vld [vmem:[#allocation2 + $0x328] sm:$0xff]
    %v158 = vld [vmem:[#allocation2 + $0x330] sm:$0xff]
    %v159 = vld [vmem:[#allocation2 + $0x338] sm:$0xff]
    %v160 = vld [vmem:[#allocation2 + $0x340] sm:$0xff]
    %v161 = vld [vmem:[#allocation2 + $0x348] sm:$0xff]
    %v162 = vld [vmem:[#allocation2 + $0x350] sm:$0xff]
    %v163 = vld [vmem:[#allocation2 + $0x358] sm:$0xff]
    %v164 = vld [vmem:[#allocation2 + $0x360] sm:$0xff]
    %v165 = vld [vmem:[#allocation2 + $0x368] sm:$0xff]
    %v166 = vld [vmem:[#allocation2 + $0x370] sm:$0xff]
    %v167 = vld [vmem:[#allocation2 + $0x378] sm:$0xff]
    %v168 = vld [vmem:[#allocation2 + $0x380] sm:$0xff]
    %v169 = vld [vmem:[#allocation2 + $0x388] sm:$0xff]
    %v170 = vld [vmem:[#allocation2 + $0x390] sm:$0xff]
    %v171 = vld [vmem:[#allocation2 + $0x398] sm:$0xff]
    %v172 = vld [vmem:[#allocation2 + $0x3a0] sm:$0xff]
    %v173 = vld [vmem:[#allocation2 + $0x3a8] sm:$0xff]
    %v174 = vld [vmem:[#allocation2 + $0x3b0] sm:$0xff]
    %v175 = vld [vmem:[#allocation2 + $0x3b8] sm:$0xff]
    %v176 = vld [vmem:[#allocation2 + $0x3c0] sm:$0xff]
    %v177 = vld [vmem:[#allocation2 + $0x3c8] sm:$0xff]
    %v178 = vld [vmem:[#allocation2 + $0x3d0] sm:$0xff]
    %v179 = vld [vmem:[#allocation2 + $0x3d8] sm:$0xff]
    %v180 = vld [vmem:[#allocation2 + $0x3e0] sm:$0xff]
    %v181 = vld [vmem:[#allocation2 + $0x3e8] sm:$0xff]
    %v182 = vld [vmem:[#allocation2 + $0x3f0] sm:$0xff]
    %v183 = vld [vmem:[#allocation2 + $0x3f8] sm:$0xff]
    %v312 = vunpack.c.l.b16 %v56
    %v313 = vunpack.c.h.b16 %v56
    %v314 = vunpack.c.l.b16 %v57
    %v315 = vunpack.c.h.b16 %v57
    %v316 = vunpack.c.l.b16 %v58
    %v317 = vunpack.c.h.b16 %v58
    %v318 = vunpack.c.l.b16 %v59
    %v319 = vunpack.c.h.b16 %v59
    %v320 = vunpack.c.l.b16 %v60
    %v321 = vunpack.c.h.b16 %v60
    %v322 = vunpack.c.l.b16 %v61
    %v323 = vunpack.c.h.b16 %v61
    %v324 = vunpack.c.l.b16 %v62
    %v325 = vunpack.c.h.b16 %v62
    %v326 = vunpack.c.l.b16 %v63
    %v327 = vunpack.c.h.b16 %v63
    %v328 = vunpack.c.l.b16 %v64
    %v329 = vunpack.c.h.b16 %v64
    %v330 = vunpack.c.l.b16 %v65
    %v331 = vunpack.c.h.b16 %v65
    %v332 = vunpack.c.l.b16 %v66
    %v333 = vunpack.c.h.b16 %v66
    %v334 = vunpack.c.l.b16 %v67
    %v335 = vunpack.c.h.b16 %v67
    %v336 = vunpack.c.l.b16 %v68
    %v337 = vunpack.c.h.b16 %v68
    %v338 = vunpack.c.l.b16 %v69
    %v339 = vunpack.c.h.b16 %v69
    %v340 = vunpack.c.l.b16 %v70
    %v341 = vunpack.c.h.b16 %v70
    %v342 = vunpack.c.l.b16 %v71
    %v343 = vunpack.c.h.b16 %v71
    %v344 = vunpack.c.l.b16 %v72
    %v345 = vunpack.c.h.b16 %v72
    %v346 = vunpack.c.l.b16 %v73
    %v347 = vunpack.c.h.b16 %v73
    %v348 = vunpack.c.l.b16 %v74
    %v349 = vunpack.c.h.b16 %v74
    %v350 = vunpack.c.l.b16 %v75
    %v351 = vunpack.c.h.b16 %v75
    %v352 = vunpack.c.l.b16 %v76
    %v353 = vunpack.c.h.b16 %v76
    %v354 = vunpack.c.l.b16 %v77
    %v355 = vunpack.c.h.b16 %v77
    %v356 = vunpack.c.l.b16 %v78
    %v357 = vunpack.c.h.b16 %v78
    %v358 = vunpack.c.l.b16 %v79
    %v359 = vunpack.c.h.b16 %v79
    %v360 = vunpack.c.l.b16 %v80
    %v361 = vunpack.c.h.b16 %v80
    %v362 = vunpack.c.l.b16 %v81
    %v363 = vunpack.c.h.b16 %v81
    %v364 = vunpack.c.l.b16 %v82
    %v365 = vunpack.c.h.b16 %v82
    %v366 = vunpack.c.l.b16 %v83
    %v367 = vunpack.c.h.b16 %v83
    %v368 = vunpack.c.l.b16 %v84
    %v369 = vunpack.c.h.b16 %v84
    %v370 = vunpack.c.l.b16 %v85
    %v371 = vunpack.c.h.b16 %v85
    %v372 = vunpack.c.l.b16 %v86
    %v373 = vunpack.c.h.b16 %v86
    %v374 = vunpack.c.l.b16 %v87
    %v375 = vunpack.c.h.b16 %v87
    %v376 = vunpack.c.l.b16 %v88
    %v377 = vunpack.c.h.b16 %v88
    %v378 = vunpack.c.l.b16 %v89
    %v379 = vunpack.c.h.b16 %v89
    %v380 = vunpack.c.l.b16 %v90
    %v381 = vunpack.c.h.b16 %v90
    %v382 = vunpack.c.l.b16 %v91
    %v383 = vunpack.c.h.b16 %v91
    %v384 = vunpack.c.l.b16 %v92
    %v385 = vunpack.c.h.b16 %v92
    %v386 = vunpack.c.l.b16 %v93
    %v387 = vunpack.c.h.b16 %v93
    %v388 = vunpack.c.l.b16 %v94
    %v389 = vunpack.c.h.b16 %v94
    %v390 = vunpack.c.l.b16 %v95
    %v391 = vunpack.c.h.b16 %v95
    %v392 = vunpack.c.l.b16 %v96
    %v393 = vunpack.c.h.b16 %v96
    %v394 = vunpack.c.l.b16 %v97
    %v395 = vunpack.c.h.b16 %v97
    %v396 = vunpack.c.l.b16 %v98
    %v397 = vunpack.c.h.b16 %v98
    %v398 = vunpack.c.l.b16 %v99
    %v399 = vunpack.c.h.b16 %v99
    %v400 = vunpack.c.l.b16 %v100
    %v401 = vunpack.c.h.b16 %v100
    %v402 = vunpack.c.l.b16 %v101
    %v403 = vunpack.c.h.b16 %v101
    %v404 = vunpack.c.l.b16 %v102
    %v405 = vunpack.c.h.b16 %v102
    %v406 = vunpack.c.l.b16 %v103
    %v407 = vunpack.c.h.b16 %v103
    %v408 = vunpack.c.l.b16 %v104
    %v409 = vunpack.c.h.b16 %v104
    %v410 = vunpack.c.l.b16 %v105
    %v411 = vunpack.c.h.b16 %v105
    %v412 = vunpack.c.l.b16 %v106
    %v413 = vunpack.c.h.b16 %v106
    %v414 = vunpack.c.l.b16 %v107
    %v415 = vunpack.c.h.b16 %v107
    %v416 = vunpack.c.l.b16 %v108
    %v417 = vunpack.c.h.b16 %v108
    %v418 = vunpack.c.l.b16 %v109
    %v419 = vunpack.c.h.b16 %v109
    %v420 = vunpack.c.l.b16 %v110
    %v421 = vunpack.c.h.b16 %v110
    %v422 = vunpack.c.l.b16 %v111
    %v423 = vunpack.c.h.b16 %v111
    %v424 = vunpack.c.l.b16 %v112
    %v425 = vunpack.c.h.b16 %v112
    %v426 = vunpack.c.l.b16 %v113
    %v427 = vunpack.c.h.b16 %v113
    %v428 = vunpack.c.l.b16 %v114
    %v429 = vunpack.c.h.b16 %v114
    %v430 = vunpack.c.l.b16 %v115
    %v431 = vunpack.c.h.b16 %v115
    %v432 = vunpack.c.l.b16 %v116
    %v433 = vunpack.c.h.b16 %v116
    %v434 = vunpack.c.l.b16 %v117
    %v435 = vunpack.c.h.b16 %v117
    %v436 = vunpack.c.l.b16 %v118
    %v437 = vunpack.c.h.b16 %v118
    %v438 = vunpack.c.l.b16 %v119
    %v439 = vunpack.c.h.b16 %v119
    %v440 = vunpack.c.l.b16 %v120
    %v441 = vunpack.c.h.b16 %v120
    %v442 = vunpack.c.l.b16 %v121
    %v443 = vunpack.c.h.b16 %v121
    %v444 = vunpack.c.l.b16 %v122
    %v445 = vunpack.c.h.b16 %v122
    %v446 = vunpack.c.l.b16 %v123
    %v447 = vunpack.c.h.b16 %v123
    %v448 = vunpack.c.l.b16 %v124
    %v449 = vunpack.c.h.b16 %v124
    %v450 = vunpack.c.l.b16 %v125
    %v451 = vunpack.c.h.b16 %v125
    %v452 = vunpack.c.l.b16 %v126
    %v453 = vunpack.c.h.b16 %v126
    %v454 = vunpack.c.l.b16 %v127
    %v455 = vunpack.c.h.b16 %v127
    %v456 = vunpack.c.l.b16 %v128
    %v457 = vunpack.c.h.b16 %v128
    %v458 = vunpack.c.l.b16 %v129
    %v459 = vunpack.c.h.b16 %v129
    %v460 = vunpack.c.l.b16 %v130
    %v461 = vunpack.c.h.b16 %v130
    %v462 = vunpack.c.l.b16 %v131
    %v463 = vunpack.c.h.b16 %v131
    %v464 = vunpack.c.l.b16 %v132
    %v465 = vunpack.c.h.b16 %v132
    %v466 = vunpack.c.l.b16 %v133
    %v467 = vunpack.c.h.b16 %v133
    %v468 = vunpack.c.l.b16 %v134
    %v469 = vunpack.c.h.b16 %v134
    %v470 = vunpack.c.l.b16 %v135
    %v471 = vunpack.c.h.b16 %v135
    %v472 = vunpack.c.l.b16 %v136
    %v473 = vunpack.c.h.b16 %v136
    %v474 = vunpack.c.l.b16 %v137
    %v475 = vunpack.c.h.b16 %v137
    %v476 = vunpack.c.l.b16 %v138
    %v477 = vunpack.c.h.b16 %v138
    %v478 = vunpack.c.l.b16 %v139
    %v479 = vunpack.c.h.b16 %v139
    %v480 = vunpack.c.l.b16 %v140
    %v481 = vunpack.c.h.b16 %v140
    %v482 = vunpack.c.l.b16 %v141
    %v483 = vunpack.c.h.b16 %v141
    %v484 = vunpack.c.l.b16 %v142
    %v485 = vunpack.c.h.b16 %v142
    %v486 = vunpack.c.l.b16 %v143
    %v487 = vunpack.c.h.b16 %v143
    %v488 = vunpack.c.l.b16 %v144
    %v489 = vunpack.c.h.b16 %v144
    %v490 = vunpack.c.l.b16 %v145
    %v491 = vunpack.c.h.b16 %v145
    %v492 = vunpack.c.l.b16 %v146
    %v493 = vunpack.c.h.b16 %v146
    %v494 = vunpack.c.l.b16 %v147
    %v495 = vunpack.c.h.b16 %v147
    %v496 = vunpack.c.l.b16 %v148
    %v497 = vunpack.c.h.b16 %v148
    %v498 = vunpack.c.l.b16 %v149
    %v499 = vunpack.c.h.b16 %v149
    %v500 = vunpack.c.l.b16 %v150
    %v501 = vunpack.c.h.b16 %v150
    %v502 = vunpack.c.l.b16 %v151
    %v503 = vunpack.c.h.b16 %v151
    %v504 = vunpack.c.l.b16 %v152
    %v505 = vunpack.c.h.b16 %v152
    %v506 = vunpack.c.l.b16 %v153
    %v507 = vunpack.c.h.b16 %v153
    %v508 = vunpack.c.l.b16 %v154
    %v509 = vunpack.c.h.b16 %v154
    %v510 = vunpack.c.l.b16 %v155
    %v511 = vunpack.c.h.b16 %v155
    %v512 = vunpack.c.l.b16 %v156
    %v513 = vunpack.c.h.b16 %v156
    %v514 = vunpack.c.l.b16 %v157
    %v515 = vunpack.c.h.b16 %v157
    %v516 = vunpack.c.l.b16 %v158
    %v517 = vunpack.c.h.b16 %v158
    %v518 = vunpack.c.l.b16 %v159
    %v519 = vunpack.c.h.b16 %v159
    %v520 = vunpack.c.l.b16 %v160
    %v521 = vunpack.c.h.b16 %v160
    %v522 = vunpack.c.l.b16 %v161
    %v523 = vunpack.c.h.b16 %v161
    %v524 = vunpack.c.l.b16 %v162
    %v525 = vunpack.c.h.b16 %v162
    %v526 = vunpack.c.l.b16 %v163
    %v527 = vunpack.c.h.b16 %v163
    %v528 = vunpack.c.l.b16 %v164
    %v529 = vunpack.c.h.b16 %v164
    %v530 = vunpack.c.l.b16 %v165
    %v531 = vunpack.c.h.b16 %v165
    %v532 = vunpack.c.l.b16 %v166
    %v533 = vunpack.c.h.b16 %v166
    %v534 = vunpack.c.l.b16 %v167
    %v535 = vunpack.c.h.b16 %v167
    %v536 = vunpack.c.l.b16 %v168
    %v537 = vunpack.c.h.b16 %v168
    %v538 = vunpack.c.l.b16 %v169
    %v539 = vunpack.c.h.b16 %v169
    %v540 = vunpack.c.l.b16 %v170
    %v541 = vunpack.c.h.b16 %v170
    %v542 = vunpack.c.l.b16 %v171
    %v543 = vunpack.c.h.b16 %v171
    %v544 = vunpack.c.l.b16 %v172
    %v545 = vunpack.c.h.b16 %v172
    %v546 = vunpack.c.l.b16 %v173
    %v547 = vunpack.c.h.b16 %v173
    %v548 = vunpack.c.l.b16 %v174
    %v549 = vunpack.c.h.b16 %v174
    %v550 = vunpack.c.l.b16 %v175
    %v551 = vunpack.c.h.b16 %v175
    %v552 = vunpack.c.l.b16 %v176
    %v553 = vunpack.c.h.b16 %v176
    %v554 = vunpack.c.l.b16 %v177
    %v555 = vunpack.c.h.b16 %v177
    %v556 = vunpack.c.l.b16 %v178
    %v557 = vunpack.c.h.b16 %v178
    %v558 = vunpack.c.l.b16 %v179
    %v559 = vunpack.c.h.b16 %v179
    %v560 = vunpack.c.l.b16 %v180
    %v561 = vunpack.c.h.b16 %v180
    %v562 = vunpack.c.l.b16 %v181
    %v563 = vunpack.c.h.b16 %v181
    %v564 = vunpack.c.l.b16 %v182
    %v565 = vunpack.c.h.b16 %v182
    %v566 = vunpack.c.l.b16 %v183
    %v567 = vunpack.c.h.b16 %v183
    %v568 = vpack.c.b16 %v328, %v312
    %v569 = vpack.c.b16 %v329, %v313
    %v570 = vpack.c.b16 %v330, %v314
    %v571 = vpack.c.b16 %v331, %v315
    %v572 = vpack.c.b16 %v332, %v316
    %v573 = vpack.c.b16 %v333, %v317
    %v574 = vpack.c.b16 %v334, %v318
    %v575 = vpack.c.b16 %v335, %v319
    %v576 = vpack.c.b16 %v336, %v320
    %v577 = vpack.c.b16 %v337, %v321
    %v578 = vpack.c.b16 %v338, %v322
    %v579 = vpack.c.b16 %v339, %v323
    %v580 = vpack.c.b16 %v340, %v324
    %v581 = vpack.c.b16 %v341, %v325
    %v582 = vpack.c.b16 %v342, %v326
    %v583 = vpack.c.b16 %v343, %v327
    %v584 = vpack.c.b16 %v360, %v344
    %v585 = vpack.c.b16 %v361, %v345
    %v586 = vpack.c.b16 %v362, %v346
    %v587 = vpack.c.b16 %v363, %v347
    %v588 = vpack.c.b16 %v364, %v348
    %v589 = vpack.c.b16 %v365, %v349
    %v590 = vpack.c.b16 %v366, %v350
    %v591 = vpack.c.b16 %v367, %v351
    %v592 = vpack.c.b16 %v368, %v352
    %v593 = vpack.c.b16 %v369, %v353
    %v594 = vpack.c.b16 %v370, %v354
    %v595 = vpack.c.b16 %v371, %v355
    %v596 = vpack.c.b16 %v372, %v356
    %v597 = vpack.c.b16 %v373, %v357
    %v598 = vpack.c.b16 %v374, %v358
    %v599 = vpack.c.b16 %v375, %v359
    %v600 = vpack.c.b16 %v392, %v376
    %v601 = vpack.c.b16 %v393, %v377
    %v602 = vpack.c.b16 %v394, %v378
    %v603 = vpack.c.b16 %v395, %v379
    %v604 = vpack.c.b16 %v396, %v380
    %v605 = vpack.c.b16 %v397, %v381
    %v606 = vpack.c.b16 %v398, %v382
    %v607 = vpack.c.b16 %v399, %v383
    %v608 = vpack.c.b16 %v400, %v384
    %v609 = vpack.c.b16 %v401, %v385
    %v610 = vpack.c.b16 %v402, %v386
    %v611 = vpack.c.b16 %v403, %v387
    %v612 = vpack.c.b16 %v404, %v388
    %v613 = vpack.c.b16 %v405, %v389
    %v614 = vpack.c.b16 %v406, %v390
    %v615 = vpack.c.b16 %v407, %v391
    %v616 = vpack.c.b16 %v424, %v408
    %v617 = vpack.c.b16 %v425, %v409
    %v618 = vpack.c.b16 %v426, %v410
    %v619 = vpack.c.b16 %v427, %v411
    %v620 = vpack.c.b16 %v428, %v412
    %v621 = vpack.c.b16 %v429, %v413
    %v622 = vpack.c.b16 %v430, %v414
    %v623 = vpack.c.b16 %v431, %v415
    %v624 = vpack.c.b16 %v432, %v416
    %v625 = vpack.c.b16 %v433, %v417
    %v626 = vpack.c.b16 %v434, %v418
    %v627 = vpack.c.b16 %v435, %v419
    %v628 = vpack.c.b16 %v436, %v420
    %v629 = vpack.c.b16 %v437, %v421
    %v630 = vpack.c.b16 %v438, %v422
    %v631 = vpack.c.b16 %v439, %v423
    %v632 = vpack.c.b16 %v456, %v440
    %v633 = vpack.c.b16 %v457, %v441
    %v634 = vpack.c.b16 %v458, %v442
    %v635 = vpack.c.b16 %v459, %v443
    %v636 = vpack.c.b16 %v460, %v444
    %v637 = vpack.c.b16 %v461, %v445
    %v638 = vpack.c.b16 %v462, %v446
    %v639 = vpack.c.b16 %v463, %v447
    %v640 = vpack.c.b16 %v464, %v448
    %v641 = vpack.c.b16 %v465, %v449
    %v642 = vpack.c.b16 %v466, %v450
    %v643 = vpack.c.b16 %v467, %v451
    %v644 = vpack.c.b16 %v468, %v452
    %v645 = vpack.c.b16 %v469, %v453
    %v646 = vpack.c.b16 %v470, %v454
    %v647 = vpack.c.b16 %v471, %v455
    %v648 = vpack.c.b16 %v488, %v472
    %v649 = vpack.c.b16 %v489, %v473
    %v650 = vpack.c.b16 %v490, %v474
    %v651 = vpack.c.b16 %v491, %v475
    %v652 = vpack.c.b16 %v492, %v476
    %v653 = vpack.c.b16 %v493, %v477
    %v654 = vpack.c.b16 %v494, %v478
    %v655 = vpack.c.b16 %v495, %v479
    %v656 = vpack.c.b16 %v496, %v480
    %v657 = vpack.c.b16 %v497, %v481
    %v658 = vpack.c.b16 %v498, %v482
    %v659 = vpack.c.b16 %v499, %v483
    %v660 = vpack.c.b16 %v500, %v484
    %v661 = vpack.c.b16 %v501, %v485
    %v662 = vpack.c.b16 %v502, %v486
    %v663 = vpack.c.b16 %v503, %v487
    %v664 = vpack.c.b16 %v520, %v504
    %v665 = vpack.c.b16 %v521, %v505
    %v666 = vpack.c.b16 %v522, %v506
    %v667 = vpack.c.b16 %v523, %v507
    %v668 = vpack.c.b16 %v524, %v508
    %v669 = vpack.c.b16 %v525, %v509
    %v670 = vpack.c.b16 %v526, %v510
    %v671 = vpack.c.b16 %v527, %v511
    %v672 = vpack.c.b16 %v528, %v512
    %v673 = vpack.c.b16 %v529, %v513
    %v674 = vpack.c.b16 %v530, %v514
    %v675 = vpack.c.b16 %v531, %v515
    %v676 = vpack.c.b16 %v532, %v516
    %v677 = vpack.c.b16 %v533, %v517
    %v678 = vpack.c.b16 %v534, %v518
    %v679 = vpack.c.b16 %v535, %v519
    %v680 = vpack.c.b16 %v552, %v536
    %v681 = vpack.c.b16 %v553, %v537
    %v682 = vpack.c.b16 %v554, %v538
    %v683 = vpack.c.b16 %v555, %v539
    %v684 = vpack.c.b16 %v556, %v540
    %v685 = vpack.c.b16 %v557, %v541
    %v686 = vpack.c.b16 %v558, %v542
    %v687 = vpack.c.b16 %v559, %v543
    %v688 = vpack.c.b16 %v560, %v544
    %v689 = vpack.c.b16 %v561, %v545
    %v690 = vpack.c.b16 %v562, %v546
    %v691 = vpack.c.b16 %v563, %v547
    %v692 = vpack.c.b16 %v564, %v548
    %v693 = vpack.c.b16 %v565, %v549
    %v694 = vpack.c.b16 %v566, %v550
    %v695 = vpack.c.b16 %v567, %v551
    %824 = vmatprep.subr.bf16.mxu0 %v569
    %825 = vmatpush1.bf16.msra.mxu0 %v568
    %826 = vmatprep.subr.bf16.mxu0 %v585
    %827 = vmatpush1.bf16.msra.mxu0 %v584
    %828 = vmatprep.subr.bf16.mxu0 %v601
    %829 = vmatpush1.bf16.msra.mxu0 %v600
    %830 = vmatprep.subr.bf16.mxu0 %v617
    %831 = vmatpush1.bf16.msra.mxu0 %v616
    %832 = vmatprep.subr.bf16.mxu0 %v633
    %833 = vmatpush1.bf16.msra.mxu0 %v632
    %834 = vmatprep.subr.bf16.mxu0 %v649
    %835 = vmatpush1.bf16.msra.mxu0 %v648
    %836 = vmatprep.subr.bf16.mxu0 %v665
    %837 = vmatpush1.bf16.msra.mxu0 %v664
    %838 = vmatprep.subr.bf16.mxu0 %v681
    %839 = vmatpush1.bf16.msra.mxu0 %v680
    %840 = vmatprep.subr.bf16.mxu0 0
    %841 = vmatpush1.bf16.msra.mxu0 0
    %842 = vmatprep.subr.bf16.mxu0 0
    %843 = vmatpush1.bf16.msra.mxu0 0
    %844 = vmatprep.subr.bf16.mxu0 0
    %845 = vmatpush1.bf16.msra.mxu0 0
    %846 = vmatprep.subr.bf16.mxu0 0
    %847 = vmatpush1.bf16.msra.mxu0 0
    %848 = vmatprep.subr.bf16.mxu0 0
    %849 = vmatpush1.bf16.msra.mxu0 0
    %850 = vmatprep.subr.bf16.mxu0 0
    %851 = vmatpush1.bf16.msra.mxu0 0
    %852 = vmatprep.subr.bf16.mxu0 0
    %853 = vmatpush1.bf16.msra.mxu0 0
    %854 = vmatprep.subr.bf16.mxu0 0
    %855 = vmatpush1.bf16.msra.mxu0 0
    %856 = vmatprep.mubr.bf16.mxu0 0
    %857 = vmatmul.mubr.bf16.gmra.mrb[0].mxu0 %v55
    %v858 = vpop.f32.mrb[0].mxu0
    %v859 = vadd.f32 0.0, %v858
    %v860 = vpop.f32.mrb[0].mxu0
    %v861 = vadd.f32 0.0, %v860
    %v862 = vpop.f32.mrb[0].mxu0
    %v863 = vpop.f32.mrb[0].mxu0
    %864 = vdwg.mxu0
    %865 = vmatprep.subr.bf16.mxu0 %v571
    %866 = vmatpush1.bf16.msra.mxu0 %v570
    %867 = vmatprep.subr.bf16.mxu0 %v587
    %868 = vmatpush1.bf16.msra.mxu0 %v586
    %869 = vmatprep.subr.bf16.mxu0 %v603
    %870 = vmatpush1.bf16.msra.mxu0 %v602
    %871 = vmatprep.subr.bf16.mxu0 %v619
    %872 = vmatpush1.bf16.msra.mxu0 %v618
    %873 = vmatprep.subr.bf16.mxu0 %v635
    %874 = vmatpush1.bf16.msra.mxu0 %v634
    %875 = vmatprep.subr.bf16.mxu0 %v651
    %876 = vmatpush1.bf16.msra.mxu0 %v650
    %877 = vmatprep.subr.bf16.mxu0 %v667
    %878 = vmatpush1.bf16.msra.mxu0 %v666
    %879 = vmatprep.subr.bf16.mxu0 %v683
    %880 = vmatpush1.bf16.msra.mxu0 %v682
    %881 = vmatprep.subr.bf16.mxu0 0
    %882 = vmatpush1.bf16.msra.mxu0 0
    %883 = vmatprep.subr.bf16.mxu0 0
    %884 = vmatpush1.bf16.msra.mxu0 0
    %885 = vmatprep.subr.bf16.mxu0 0
    %886 = vmatpush1.bf16.msra.mxu0 0
    %887 = vmatprep.subr.bf16.mxu0 0
    %888 = vmatpush1.bf16.msra.mxu0 0
    %889 = vmatprep.subr.bf16.mxu0 0
    %890 = vmatpush1.bf16.msra.mxu0 0
    %891 = vmatprep.subr.bf16.mxu0 0
    %892 = vmatpush1.bf16.msra.mxu0 0
    %893 = vmatprep.subr.bf16.mxu0 0
    %894 = vmatpush1.bf16.msra.mxu0 0
    %895 = vmatprep.subr.bf16.mxu0 0
    %896 = vmatpush1.bf16.msra.mxu0 0
    %897 = vmatprep.mubr.bf16.mxu0 0
    %898 = vmatmul.mubr.bf16.gmra.mrb[0].mxu0 %v55
    %v899 = vpop.f32.mrb[0].mxu0
    %v900 = vadd.f32 0.0, %v899
    %v901 = vpop.f32.mrb[0].mxu0
    %v902 = vadd.f32 0.0, %v901
    %v903 = vpop.f32.mrb[0].mxu0
    %v904 = vpop.f32.mrb[0].mxu0
    %905 = vdwg.mxu0
    %906 = vmatprep.subr.bf16.mxu0 %v573
    %907 = vmatpush1.bf16.msra.mxu0 %v572
    %908 = vmatprep.subr.bf16.mxu0 %v589
    %909 = vmatpush1.bf16.msra.mxu0 %v588
    %910 = vmatprep.subr.bf16.mxu0 %v605
    %911 = vmatpush1.bf16.msra.mxu0 %v604
    %912 = vmatprep.subr.bf16.mxu0 %v621
    %913 = vmatpush1.bf16.msra.mxu0 %v620
    %914 = vmatprep.subr.bf16.mxu0 %v637
    %915 = vmatpush1.bf16.msra.mxu0 %v636
    %916 = vmatprep.subr.bf16.mxu0 %v653
    %917 = vmatpush1.bf16.msra.mxu0 %v652
    %918 = vmatprep.subr.bf16.mxu0 %v669
    %919 = vmatpush1.bf16.msra.mxu0 %v668
    %920 = vmatprep.subr.bf16.mxu0 %v685
    %921 = vmatpush1.bf16.msra.mxu0 %v684
    %922 = vmatprep.subr.bf16.mxu0 0
    %923 = vmatpush1.bf16.msra.mxu0 0
    %924 = vmatprep.subr.bf16.mxu0 0
    %925 = vmatpush1.bf16.msra.mxu0 0
    %926 = vmatprep.subr.bf16.mxu0 0
    %927 = vmatpush1.bf16.msra.mxu0 0
    %928 = vmatprep.subr.bf16.mxu0 0
    %929 = vmatpush1.bf16.msra.mxu0 0
    %930 = vmatprep.subr.bf16.mxu0 0
    %931 = vmatpush1.bf16.msra.mxu0 0
    %932 = vmatprep.subr.bf16.mxu0 0
    %933 = vmatpush1.bf16.msra.mxu0 0
    %934 = vmatprep.subr.bf16.mxu0 0
    %935 = vmatpush1.bf16.msra.mxu0 0
    %936 = vmatprep.subr.bf16.mxu0 0
    %937 = vmatpush1.bf16.msra.mxu0 0
    %938 = vmatprep.mubr.bf16.mxu0 0
    %939 = vmatmul.mubr.bf16.gmra.mrb[0].mxu0 %v55
    %v940 = vpop.f32.mrb[0].mxu0
    %v941 = vadd.f32 0.0, %v940
    %v942 = vpop.f32.mrb[0].mxu0
    %v943 = vadd.f32 0.0, %v942
    %v944 = vpop.f32.mrb[0].mxu0
    %v945 = vpop.f32.mrb[0].mxu0
    %946 = vdwg.mxu0
    %947 = vmatprep.subr.bf16.mxu0 %v575
    %948 = vmatpush1.bf16.msra.mxu0 %v574
    %949 = vmatprep.subr.bf16.mxu0 %v591
    %950 = vmatpush1.bf16.msra.mxu0 %v590
    %951 = vmatprep.subr.bf16.mxu0 %v607
    %952 = vmatpush1.bf16.msra.mxu0 %v606
    %953 = vmatprep.subr.bf16.mxu0 %v623
    %954 = vmatpush1.bf16.msra.mxu0 %v622
    %955 = vmatprep.subr.bf16.mxu0 %v639
    %956 = vmatpush1.bf16.msra.mxu0 %v638
    %957 = vmatprep.subr.bf16.mxu0 %v655
    %958 = vmatpush1.bf16.msra.mxu0 %v654
    %959 = vmatprep.subr.bf16.mxu0 %v671
    %960 = vmatpush1.bf16.msra.mxu0 %v670
    %961 = vmatprep.subr.bf16.mxu0 %v687
    %962 = vmatpush1.bf16.msra.mxu0 %v686
    %963 = vmatprep.subr.bf16.mxu0 0
    %964 = vmatpush1.bf16.msra.mxu0 0
    %965 = vmatprep.subr.bf16.mxu0 0
    %966 = vmatpush1.bf16.msra.mxu0 0
    %967 = vmatprep.subr.bf16.mxu0 0
    %968 = vmatpush1.bf16.msra.mxu0 0
    %969 = vmatprep.subr.bf16.mxu0 0
    %970 = vmatpush1.bf16.msra.mxu0 0
    %971 = vmatprep.subr.bf16.mxu0 0
    %972 = vmatpush1.bf16.msra.mxu0 0
    %973 = vmatprep.subr.bf16.mxu0 0
    %974 = vmatpush1.bf16.msra.mxu0 0
    %975 = vmatprep.subr.bf16.mxu0 0
    %976 = vmatpush1.bf16.msra.mxu0 0
    %977 = vmatprep.subr.bf16.mxu0 0
    %978 = vmatpush1.bf16.msra.mxu0 0
    %979 = vmatprep.mubr.bf16.mxu0 0
    %980 = vmatmul.mubr.bf16.gmra.mrb[0].mxu0 %v55
    %v981 = vpop.f32.mrb[0].mxu0
    %v982 = vadd.f32 0.0, %v981
    %v983 = vpop.f32.mrb[0].mxu0
    %v984 = vadd.f32 0.0, %v983
    %v985 = vpop.f32.mrb[0].mxu0
    %v986 = vpop.f32.mrb[0].mxu0
    %987 = vdwg.mxu0
    %988 = vmatprep.subr.bf16.mxu0 %v577
    %989 = vmatpush1.bf16.msra.mxu0 %v576
    %990 = vmatprep.subr.bf16.mxu0 %v593
    %991 = vmatpush1.bf16.msra.mxu0 %v592
    %992 = vmatprep.subr.bf16.mxu0 %v609
    %993 = vmatpush1.bf16.msra.mxu0 %v608
    %994 = vmatprep.subr.bf16.mxu0 %v625
    %995 = vmatpush1.bf16.msra.mxu0 %v624
    %996 = vmatprep.subr.bf16.mxu0 %v641
    %997 = vmatpush1.bf16.msra.mxu0 %v640
    %998 = vmatprep.subr.bf16.mxu0 %v657
    %999 = vmatpush1.bf16.msra.mxu0 %v656
    %1000 = vmatprep.subr.bf16.mxu0 %v673
    %1001 = vmatpush1.bf16.msra.mxu0 %v672
    %1002 = vmatprep.subr.bf16.mxu0 %v689
    %1003 = vmatpush1.bf16.msra.mxu0 %v688
    %1004 = vmatprep.subr.bf16.mxu0 0
    %1005 = vmatpush1.bf16.msra.mxu0 0
    %1006 = vmatprep.subr.bf16.mxu0 0
    %1007 = vmatpush1.bf16.msra.mxu0 0
    %1008 = vmatprep.subr.bf16.mxu0 0
    %1009 = vmatpush1.bf16.msra.mxu0 0
    %1010 = vmatprep.subr.bf16.mxu0 0
    %1011 = vmatpush1.bf16.msra.mxu0 0
    %1012 = vmatprep.subr.bf16.mxu0 0
    %1013 = vmatpush1.bf16.msra.mxu0 0
    %1014 = vmatprep.subr.bf16.mxu0 0
    %1015 = vmatpush1.bf16.msra.mxu0 0
    %1016 = vmatprep.subr.bf16.mxu0 0
    %1017 = vmatpush1.bf16.msra.mxu0 0
    %1018 = vmatprep.subr.bf16.mxu0 0
    %1019 = vmatpush1.bf16.msra.mxu0 0
    %1020 = vmatprep.mubr.bf16.mxu0 0
    %1021 = vmatmul.mubr.bf16.gmra.mrb[0].mxu0 %v55
    %v1022 = vpop.f32.mrb[0].mxu0
    %v1023 = vadd.f32 0.0, %v1022
    %v1024 = vpop.f32.mrb[0].mxu0
    %v1025 = vadd.f32 0.0, %v1024
    %v1026 = vpop.f32.mrb[0].mxu0
    %v1027 = vpop.f32.mrb[0].mxu0
    %1028 = vdwg.mxu0
    %1029 = vmatprep.subr.bf16.mxu0 %v579
    %1030 = vmatpush1.bf16.msra.mxu0 %v578
    %1031 = vmatprep.subr.bf16.mxu0 %v595
    %1032 = vmatpush1.bf16.msra.mxu0 %v594
    %1033 = vmatprep.subr.bf16.mxu0 %v611
    %1034 = vmatpush1.bf16.msra.mxu0 %v610
    %1035 = vmatprep.subr.bf16.mxu0 %v627
    %1036 = vmatpush1.bf16.msra.mxu0 %v626
    %1037 = vmatprep.subr.bf16.mxu0 %v643
    %1038 = vmatpush1.bf16.msra.mxu0 %v642
    %1039 = vmatprep.subr.bf16.mxu0 %v659
    %1040 = vmatpush1.bf16.msra.mxu0 %v658
    %1041 = vmatprep.subr.bf16.mxu0 %v675
    %1042 = vmatpush1.bf16.msra.mxu0 %v674
    %1043 = vmatprep.subr.bf16.mxu0 %v691
    %1044 = vmatpush1.bf16.msra.mxu0 %v690
    %1045 = vmatprep.subr.bf16.mxu0 0
    %1046 = vmatpush1.bf16.msra.mxu0 0
    %1047 = vmatprep.subr.bf16.mxu0 0
    %1048 = vmatpush1.bf16.msra.mxu0 0
    %1049 = vmatprep.subr.bf16.mxu0 0
    %1050 = vmatpush1.bf16.msra.mxu0 0
    %1051 = vmatprep.subr.bf16.mxu0 0
    %1052 = vmatpush1.bf16.msra.mxu0 0
    %1053 = vmatprep.subr.bf16.mxu0 0
    %1054 = vmatpush1.bf16.msra.mxu0 0
    %1055 = vmatprep.subr.bf16.mxu0 0
    %1056 = vmatpush1.bf16.msra.mxu0 0
    %1057 = vmatprep.subr.bf16.mxu0 0
    %1058 = vmatpush1.bf16.msra.mxu0 0
    %1059 = vmatprep.subr.bf16.mxu0 0
    %1060 = vmatpush1.bf16.msra.mxu0 0
    %1061 = vmatprep.mubr.bf16.mxu0 0
    %1062 = vmatmul.mubr.bf16.gmra.mrb[0].mxu0 %v55
    %v1063 = vpop.f32.mrb[0].mxu0
    %v1064 = vadd.f32 0.0, %v1063
    %v1065 = vpop.f32.mrb[0].mxu0
    %v1066 = vadd.f32 0.0, %v1065
    %v1067 = vpop.f32.mrb[0].mxu0
    %v1068 = vpop.f32.mrb[0].mxu0
    %1069 = vdwg.mxu0
    %1070 = vmatprep.subr.bf16.mxu0 %v581
    %1071 = vmatpush1.bf16.msra.mxu0 %v580
    %1072 = vmatprep.subr.bf16.mxu0 %v597
    %1073 = vmatpush1.bf16.msra.mxu0 %v596
    %1074 = vmatprep.subr.bf16.mxu0 %v613
    %1075 = vmatpush1.bf16.msra.mxu0 %v612
    %1076 = vmatprep.subr.bf16.mxu0 %v629
    %1077 = vmatpush1.bf16.msra.mxu0 %v628
    %1078 = vmatprep.subr.bf16.mxu0 %v645
    %1079 = vmatpush1.bf16.msra.mxu0 %v644
    %1080 = vmatprep.subr.bf16.mxu0 %v661
    %1081 = vmatpush1.bf16.msra.mxu0 %v660
    %1082 = vmatprep.subr.bf16.mxu0 %v677
    %1083 = vmatpush1.bf16.msra.mxu0 %v676
    %1084 = vmatprep.subr.bf16.mxu0 %v693
    %1085 = vmatpush1.bf16.msra.mxu0 %v692
    %1086 = vmatprep.subr.bf16.mxu0 0
    %1087 = vmatpush1.bf16.msra.mxu0 0
    %1088 = vmatprep.subr.bf16.mxu0 0
    %1089 = vmatpush1.bf16.msra.mxu0 0
    %1090 = vmatprep.subr.bf16.mxu0 0
    %1091 = vmatpush1.bf16.msra.mxu0 0
    %1092 = vmatprep.subr.bf16.mxu0 0
    %1093 = vmatpush1.bf16.msra.mxu0 0
    %1094 = vmatprep.subr.bf16.mxu0 0
    %1095 = vmatpush1.bf16.msra.mxu0 0
    %1096 = vmatprep.subr.bf16.mxu0 0
    %1097 = vmatpush1.bf16.msra.mxu0 0
    %1098 = vmatprep.subr.bf16.mxu0 0
    %1099 = vmatpush1.bf16.msra.mxu0 0
    %1100 = vmatprep.subr.bf16.mxu0 0
    %1101 = vmatpush1.bf16.msra.mxu0 0
    %1102 = vmatprep.mubr.bf16.mxu0 0
    %1103 = vmatmul.mubr.bf16.gmra.mrb[0].mxu0 %v55
    %v1104 = vpop.f32.mrb[0].mxu0
    %v1105 = vadd.f32 0.0, %v1104
    %v1106 = vpop.f32.mrb[0].mxu0
    %v1107 = vadd.f32 0.0, %v1106
    %v1108 = vpop.f32.mrb[0].mxu0
    %v1109 = vpop.f32.mrb[0].mxu0
    %1110 = vdwg.mxu0
    %1111 = vmatprep.subr.bf16.mxu0 %v583
    %1112 = vmatpush1.bf16.msra.mxu0 %v582
    %1113 = vmatprep.subr.bf16.mxu0 %v599
    %1114 = vmatpush1.bf16.msra.mxu0 %v598
    %1115 = vmatprep.subr.bf16.mxu0 %v615
    %1116 = vmatpush1.bf16.msra.mxu0 %v614
    %1117 = vmatprep.subr.bf16.mxu0 %v631
    %1118 = vmatpush1.bf16.msra.mxu0 %v630
    %1119 = vmatprep.subr.bf16.mxu0 %v647
    %1120 = vmatpush1.bf16.msra.mxu0 %v646
    %1121 = vmatprep.subr.bf16.mxu0 %v663
    %1122 = vmatpush1.bf16.msra.mxu0 %v662
    %1123 = vmatprep.subr.bf16.mxu0 %v679
    %1124 = vmatpush1.bf16.msra.mxu0 %v678
    %1125 = vmatprep.subr.bf16.mxu0 %v695
    %1126 = vmatpush1.bf16.msra.mxu0 %v694
    %1127 = vmatprep.subr.bf16.mxu0 0
    %1128 = vmatpush1.bf16.msra.mxu0 0
    %1129 = vmatprep.subr.bf16.mxu0 0
    %1130 = vmatpush1.bf16.msra.mxu0 0
    %1131 = vmatprep.subr.bf16.mxu0 0
    %1132 = vmatpush1.bf16.msra.mxu0 0
    %1133 = vmatprep.subr.bf16.mxu0 0
    %1134 = vmatpush1.bf16.msra.mxu0 0
    %1135 = vmatprep.subr.bf16.mxu0 0
    %1136 = vmatpush1.bf16.msra.mxu0 0
    %1137 = vmatprep.subr.bf16.mxu0 0
    %1138 = vmatpush1.bf16.msra.mxu0 0
    %1139 = vmatprep.subr.bf16.mxu0 0
    %1140 = vmatpush1.bf16.msra.mxu0 0
    %1141 = vmatprep.subr.bf16.mxu0 0
    %1142 = vmatpush1.bf16.msra.mxu0 0
    %1143 = vmatprep.mubr.bf16.mxu0 0
    %1144 = vmatmul.mubr.bf16.gmra.mrb[0].mxu0 %v55
    %v1145 = vpop.f32.mrb[0].mxu0
    %v1146 = vadd.f32 0.0, %v1145
    %v1147 = vpop.f32.mrb[0].mxu0
    %v1148 = vadd.f32 0.0, %v1147
    %v1149 = vpop.f32.mrb[0].mxu0
    %v1150 = vpop.f32.mrb[0].mxu0
    %1151 = vdwg.mxu0
    %vm1152 = vcmask 1041408
    %v1153 = vsel %vm1152, %v859, 0.0
    %v1154 = vrot.slane %v1153, 4
    %v1155 = vadd.f32 %v1153, %v1154
    %v1156 = vrot.slane %v1155, 2
    %v1157 = vadd.f32 %v1155, %v1156
    %v1158 = vrot.slane %v1157, 1
    %v1159 = vadd.f32 %v1157, %v1158
    %v1160 = vadd.f32 %v1159, 0.0
    %v1161 = vmul.f32 %v859, %v859
    %v1162 = vsel %vm1152, %v1161, 0.0
    %v1163 = vrot.slane %v1162, 4
    %v1164 = vadd.f32 %v1162, %v1163
    %v1165 = vrot.slane %v1164, 2
    %v1166 = vadd.f32 %v1164, %v1165
    %v1167 = vrot.slane %v1166, 1
    %v1168 = vadd.f32 %v1166, %v1167
    %v1169 = vadd.f32 %v1168, 0.0
    %v1170 = vsel %vm1152, %v861, 0.0
    %v1171 = vrot.slane %v1170, 4
    %v1172 = vadd.f32 %v1170, %v1171
    %v1173 = vrot.slane %v1172, 2
    %v1174 = vadd.f32 %v1172, %v1173
    %v1175 = vrot.slane %v1174, 1
    %v1176 = vadd.f32 %v1174, %v1175
    %v1177 = vadd.f32 %v1160, %v1176
    %v1178 = vmul.f32 %v861, %v861
    %v1179 = vsel %vm1152, %v1178, 0.0
    %v1180 = vrot.slane %v1179, 4
    %v1181 = vadd.f32 %v1179, %v1180
    %v1182 = vrot.slane %v1181, 2
    %v1183 = vadd.f32 %v1181, %v1182
    %v1184 = vrot.slane %v1183, 1
    %v1185 = vadd.f32 %v1183, %v1184
    %v1186 = vadd.f32 %v1169, %v1185
    %v1187 = vsel %vm1152, %v900, 0.0
    %v1188 = vrot.slane %v1187, 4
    %v1189 = vadd.f32 %v1187, %v1188
    %v1190 = vrot.slane %v1189, 2
    %v1191 = vadd.f32 %v1189, %v1190
    %v1192 = vrot.slane %v1191, 1
    %v1193 = vadd.f32 %v1191, %v1192
    %v1194 = vadd.f32 %v1177, %v1193
    %v1195 = vmul.f32 %v900, %v900
    %v1196 = vsel %vm1152, %v1195, 0.0
    %v1197 = vrot.slane %v1196, 4
    %v1198 = vadd.f32 %v1196, %v1197
    %v1199 = vrot.slane %v1198, 2
    %v1200 = vadd.f32 %v1198, %v1199
    %v1201 = vrot.slane %v1200, 1
    %v1202 = vadd.f32 %v1200, %v1201
    %v1203 = vadd.f32 %v1186, %v1202
    %v1204 = vsel %vm1152, %v902, 0.0
    %v1205 = vrot.slane %v1204, 4
    %v1206 = vadd.f32 %v1204, %v1205
    %v1207 = vrot.slane %v1206, 2
    %v1208 = vadd.f32 %v1206, %v1207
    %v1209 = vrot.slane %v1208, 1
    %v1210 = vadd.f32 %v1208, %v1209
    %v1211 = vadd.f32 %v1194, %v1210
    %v1212 = vmul.f32 %v902, %v902
    %v1213 = vsel %vm1152, %v1212, 0.0
    %v1214 = vrot.slane %v1213, 4
    %v1215 = vadd.f32 %v1213, %v1214
    %v1216 = vrot.slane %v1215, 2
    %v1217 = vadd.f32 %v1215, %v1216
    %v1218 = vrot.slane %v1217, 1
    %v1219 = vadd.f32 %v1217, %v1218
    %v1220 = vadd.f32 %v1203, %v1219
    %v1221 = vsel %vm1152, %v941, 0.0
    %v1222 = vrot.slane %v1221, 4
    %v1223 = vadd.f32 %v1221, %v1222
    %v1224 = vrot.slane %v1223, 2
    %v1225 = vadd.f32 %v1223, %v1224
    %v1226 = vrot.slane %v1225, 1
    %v1227 = vadd.f32 %v1225, %v1226
    %v1228 = vadd.f32 %v1211, %v1227
    %v1229 = vmul.f32 %v941, %v941
    %v1230 = vsel %vm1152, %v1229, 0.0
    %v1231 = vrot.slane %v1230, 4
    %v1232 = vadd.f32 %v1230, %v1231
    %v1233 = vrot.slane %v1232, 2
    %v1234 = vadd.f32 %v1232, %v1233
    %v1235 = vrot.slane %v1234, 1
    %v1236 = vadd.f32 %v1234, %v1235
    %v1237 = vadd.f32 %v1220, %v1236
    %v1238 = vsel %vm1152, %v943, 0.0
    %v1239 = vrot.slane %v1238, 4
    %v1240 = vadd.f32 %v1238, %v1239
    %v1241 = vrot.slane %v1240, 2
    %v1242 = vadd.f32 %v1240, %v1241
    %v1243 = vrot.slane %v1242, 1
    %v1244 = vadd.f32 %v1242, %v1243
    %v1245 = vadd.f32 %v1228, %v1244
    %v1246 = vmul.f32 %v943, %v943
    %v1247 = vsel %vm1152, %v1246, 0.0
    %v1248 = vrot.slane %v1247, 4
    %v1249 = vadd.f32 %v1247, %v1248
    %v1250 = vrot.slane %v1249, 2
    %v1251 = vadd.f32 %v1249, %v1250
    %v1252 = vrot.slane %v1251, 1
    %v1253 = vadd.f32 %v1251, %v1252
    %v1254 = vadd.f32 %v1237, %v1253
    %v1255 = vsel %vm1152, %v982, 0.0
    %v1256 = vrot.slane %v1255, 4
    %v1257 = vadd.f32 %v1255, %v1256
    %v1258 = vrot.slane %v1257, 2
    %v1259 = vadd.f32 %v1257, %v1258
    %v1260 = vrot.slane %v1259, 1
    %v1261 = vadd.f32 %v1259, %v1260
    %v1262 = vadd.f32 %v1245, %v1261
    %v1263 = vmul.f32 %v982, %v982
    %v1264 = vsel %vm1152, %v1263, 0.0
    %v1265 = vrot.slane %v1264, 4
    %v1266 = vadd.f32 %v1264, %v1265
    %v1267 = vrot.slane %v1266, 2
    %v1268 = vadd.f32 %v1266, %v1267
    %v1269 = vrot.slane %v1268, 1
    %v1270 = vadd.f32 %v1268, %v1269
    %v1271 = vadd.f32 %v1254, %v1270
    %v1272 = vsel %vm1152, %v984, 0.0
    %v1273 = vrot.slane %v1272, 4
    %v1274 = vadd.f32 %v1272, %v1273
    %v1275 = vrot.slane %v1274, 2
    %v1276 = vadd.f32 %v1274, %v1275
    %v1277 = vrot.slane %v1276, 1
    %v1278 = vadd.f32 %v1276, %v1277
    %v1279 = vadd.f32 %v1262, %v1278
    %v1280 = vmul.f32 %v984, %v984
    %v1281 = vsel %vm1152, %v1280, 0.0
    %v1282 = vrot.slane %v1281, 4
    %v1283 = vadd.f32 %v1281, %v1282
    %v1284 = vrot.slane %v1283, 2
    %v1285 = vadd.f32 %v1283, %v1284
    %v1286 = vrot.slane %v1285, 1
    %v1287 = vadd.f32 %v1285, %v1286
    %v1288 = vadd.f32 %v1271, %v1287
    %v1289 = vsel %vm1152, %v1023, 0.0
    %v1290 = vrot.slane %v1289, 4
    %v1291 = vadd.f32 %v1289, %v1290
    %v1292 = vrot.slane %v1291, 2
    %v1293 = vadd.f32 %v1291, %v1292
    %v1294 = vrot.slane %v1293, 1
    %v1295 = vadd.f32 %v1293, %v1294
    %v1296 = vadd.f32 %v1279, %v1295
    %v1297 = vmul.f32 %v1023, %v1023
    %v1298 = vsel %vm1152, %v1297, 0.0
    %v1299 = vrot.slane %v1298, 4
    %v1300 = vadd.f32 %v1298, %v1299
    %v1301 = vrot.slane %v1300, 2
    %v1302 = vadd.f32 %v1300, %v1301
    %v1303 = vrot.slane %v1302, 1
    %v1304 = vadd.f32 %v1302, %v1303
    %v1305 = vadd.f32 %v1288, %v1304
    %v1306 = vsel %vm1152, %v1025, 0.0
    %v1307 = vrot.slane %v1306, 4
    %v1308 = vadd.f32 %v1306, %v1307
    %v1309 = vrot.slane %v1308, 2
    %v1310 = vadd.f32 %v1308, %v1309
    %v1311 = vrot.slane %v1310, 1
    %v1312 = vadd.f32 %v1310, %v1311
    %v1313 = vadd.f32 %v1296, %v1312
    %v1314 = vmul.f32 %v1025, %v1025
    %v1315 = vsel %vm1152, %v1314, 0.0
    %v1316 = vrot.slane %v1315, 4
    %v1317 = vadd.f32 %v1315, %v1316
    %v1318 = vrot.slane %v1317, 2
    %v1319 = vadd.f32 %v1317, %v1318
    %v1320 = vrot.slane %v1319, 1
    %v1321 = vadd.f32 %v1319, %v1320
    %v1322 = vadd.f32 %v1305, %v1321
    %v1323 = vsel %vm1152, %v1064, 0.0
    %v1324 = vrot.slane %v1323, 4
    %v1325 = vadd.f32 %v1323, %v1324
    %v1326 = vrot.slane %v1325, 2
    %v1327 = vadd.f32 %v1325, %v1326
    %v1328 = vrot.slane %v1327, 1
    %v1329 = vadd.f32 %v1327, %v1328
    %v1330 = vadd.f32 %v1313, %v1329
    %v1331 = vmul.f32 %v1064, %v1064
    %v1332 = vsel %vm1152, %v1331, 0.0
    %v1333 = vrot.slane %v1332, 4
    %v1334 = vadd.f32 %v1332, %v1333
    %v1335 = vrot.slane %v1334, 2
    %v1336 = vadd.f32 %v1334, %v1335
    %v1337 = vrot.slane %v1336, 1
    %v1338 = vadd.f32 %v1336, %v1337
    %v1339 = vadd.f32 %v1322, %v1338
    %v1340 = vsel %vm1152, %v1066, 0.0
    %v1341 = vrot.slane %v1340, 4
    %v1342 = vadd.f32 %v1340, %v1341
    %v1343 = vrot.slane %v1342, 2
    %v1344 = vadd.f32 %v1342, %v1343
    %v1345 = vrot.slane %v1344, 1
    %v1346 = vadd.f32 %v1344, %v1345
    %v1347 = vadd.f32 %v1330, %v1346
    %v1348 = vmul.f32 %v1066, %v1066
    %v1349 = vsel %vm1152, %v1348, 0.0
    %v1350 = vrot.slane %v1349, 4
    %v1351 = vadd.f32 %v1349, %v1350
    %v1352 = vrot.slane %v1351, 2
    %v1353 = vadd.f32 %v1351, %v1352
    %v1354 = vrot.slane %v1353, 1
    %v1355 = vadd.f32 %v1353, %v1354
    %v1356 = vadd.f32 %v1339, %v1355
    %v1357 = vsel %vm1152, %v1105, 0.0
    %v1358 = vrot.slane %v1357, 4
    %v1359 = vadd.f32 %v1357, %v1358
    %v1360 = vrot.slane %v1359, 2
    %v1361 = vadd.f32 %v1359, %v1360
    %v1362 = vrot.slane %v1361, 1
    %v1363 = vadd.f32 %v1361, %v1362
    %v1364 = vadd.f32 %v1347, %v1363
    %v1365 = vmul.f32 %v1105, %v1105
    %v1366 = vsel %vm1152, %v1365, 0.0
    %v1367 = vrot.slane %v1366, 4
    %v1368 = vadd.f32 %v1366, %v1367
    %v1369 = vrot.slane %v1368, 2
    %v1370 = vadd.f32 %v1368, %v1369
    %v1371 = vrot.slane %v1370, 1
    %v1372 = vadd.f32 %v1370, %v1371
    %v1373 = vadd.f32 %v1356, %v1372
    %v1374 = vsel %vm1152, %v1107, 0.0
    %v1375 = vrot.slane %v1374, 4
    %v1376 = vadd.f32 %v1374, %v1375
    %v1377 = vrot.slane %v1376, 2
    %v1378 = vadd.f32 %v1376, %v1377
    %v1379 = vrot.slane %v1378, 1
    %v1380 = vadd.f32 %v1378, %v1379
    %v1381 = vadd.f32 %v1364, %v1380
    %v1382 = vmul.f32 %v1107, %v1107
    %v1383 = vsel %vm1152, %v1382, 0.0
    %v1384 = vrot.slane %v1383, 4
    %v1385 = vadd.f32 %v1383, %v1384
    %v1386 = vrot.slane %v1385, 2
    %v1387 = vadd.f32 %v1385, %v1386
    %v1388 = vrot.slane %v1387, 1
    %v1389 = vadd.f32 %v1387, %v1388
    %v1390 = vadd.f32 %v1373, %v1389
    %v1391 = vsel %vm1152, %v1146, 0.0
    %v1392 = vrot.slane %v1391, 4
    %v1393 = vadd.f32 %v1391, %v1392
    %v1394 = vrot.slane %v1393, 2
    %v1395 = vadd.f32 %v1393, %v1394
    %v1396 = vrot.slane %v1395, 1
    %v1397 = vadd.f32 %v1395, %v1396
    %v1398 = vadd.f32 %v1381, %v1397
    %v1399 = vmul.f32 %v1146, %v1146
    %v1400 = vsel %vm1152, %v1399, 0.0
    %v1401 = vrot.slane %v1400, 4
    %v1402 = vadd.f32 %v1400, %v1401
    %v1403 = vrot.slane %v1402, 2
    %v1404 = vadd.f32 %v1402, %v1403
    %v1405 = vrot.slane %v1404, 1
    %v1406 = vadd.f32 %v1404, %v1405
    %v1407 = vadd.f32 %v1390, %v1406
    %v1408 = vsel %vm1152, %v1148, 0.0
    %v1409 = vrot.slane %v1408, 4
    %v1410 = vadd.f32 %v1408, %v1409
    %v1411 = vrot.slane %v1410, 2
    %v1412 = vadd.f32 %v1410, %v1411
    %v1413 = vrot.slane %v1412, 1
    %v1414 = vadd.f32 %v1412, %v1413
    %v1415 = vadd.f32 %v1398, %v1414
    %v1416 = vmul.f32 %v1148, %v1148
    %v1417 = vsel %vm1152, %v1416, 0.0
    %v1418 = vrot.slane %v1417, 4
    %v1419 = vadd.f32 %v1417, %v1418
    %v1420 = vrot.slane %v1419, 2
    %v1421 = vadd.f32 %v1419, %v1420
    %v1422 = vrot.slane %v1421, 1
    %v1423 = vadd.f32 %v1421, %v1422
    %v1424 = vadd.f32 %v1407, %v1423
    %v1425 = vmul.f32 %v1415, 0.03125
    %v1426 = vmul.f32 %v1424, 0.03125
    %v1427 = vmul.f32 %v1425, %v1425
    %v1428 = vsub.f32 %v1426, %v1427
    %v1429 = vmax.f32 %v1428, 0.0
    %v1430 = vld [vmem:[#allocation4] sm:$0x1]
    %v1431 = vadd.f32 %v1429, 1e-05
    %v1432 = vrsqrt.pop %v1431
    %v1433 = vmul.f32 %v1430, %v1432
    %v1434 = vld [vmem:[#allocation6] sm:$0x1]
    %v1435 = vmul.f32 %v1425, %v1433
    %v1436 = vsub.f32 %v1434, %v1435
    %v1438 = vlaneseq
    %v1439 = vshrl.u32 %v1438, 7
    %v1440 = vsub.s32 0, %v1439
    %v1441 = vrot.slane %v1433, %v1440
    %v1443 = vmul.f32 %v859, %v1441
    %v1445 = vlaneseq
    %v1446 = vshrl.u32 %v1445, 7
    %v1447 = vsub.s32 0, %v1446
    %v1448 = vrot.slane %v1436, %v1447
    %v1450 = vadd.f32 %v1443, %v1448
    %v1451 = vmax.f32 %v1450, 0.0
    %v1452 = vpack.c.bf16 %v1451, %v1451
    %1453 = vst [vmem:[%s4] sm:$0x1] %v1452
    %v1454 = vmul.f32 %v861, %v1441
    %v1455 = vadd.f32 %v1454, %v1448
    %v1456 = vmax.f32 %v1455, 0.0
    %v1457 = vpack.c.bf16 %v1456, %v1456
    %1458 = vst [vmem:[%s4 + $0x1] sm:$0x1] %v1457
    %v1459 = vmul.f32 %v900, %v1441
    %v1460 = vadd.f32 %v1459, %v1448
    %v1461 = vmax.f32 %v1460, 0.0
    %v1462 = vpack.c.bf16 %v1461, %v1461
    %1463 = vst [vmem:[%s4 + $0x2] sm:$0x1] %v1462
    %v1464 = vmul.f32 %v902, %v1441
    %v1465 = vadd.f32 %v1464, %v1448
    %v1466 = vmax.f32 %v1465, 0.0
    %v1467 = vpack.c.bf16 %v1466, %v1466
    %1468 = vst [vmem:[%s4 + $0x3] sm:$0x1] %v1467
    %v1469 = vmul.f32 %v941, %v1441
    %v1470 = vadd.f32 %v1469, %v1448
    %v1471 = vmax.f32 %v1470, 0.0
    %v1472 = vpack.c.bf16 %v1471, %v1471
    %1473 = vst [vmem:[%s4 + $0x4] sm:$0x1] %v1472
    %v1474 = vmul.f32 %v943, %v1441
    %v1475 = vadd.f32 %v1474, %v1448
    %v1476 = vmax.f32 %v1475, 0.0
    %v1477 = vpack.c.bf16 %v1476, %v1476
    %1478 = vst [vmem:[%s4 + $0x5] sm:$0x1] %v1477
    %v1479 = vmul.f32 %v982, %v1441
    %v1480 = vadd.f32 %v1479, %v1448
    %v1481 = vmax.f32 %v1480, 0.0
    %v1482 = vpack.c.bf16 %v1481, %v1481
    %1483 = vst [vmem:[%s4 + $0x6] sm:$0x1] %v1482
    %v1484 = vmul.f32 %v984, %v1441
    %v1485 = vadd.f32 %v1484, %v1448
    %v1486 = vmax.f32 %v1485, 0.0
    %v1487 = vpack.c.bf16 %v1486, %v1486
    %1488 = vst [vmem:[%s4 + $0x7] sm:$0x1] %v1487
    %v1489 = vmul.f32 %v1023, %v1441
    %v1490 = vadd.f32 %v1489, %v1448
    %v1491 = vmax.f32 %v1490, 0.0
    %v1492 = vpack.c.bf16 %v1491, %v1491
    %1493 = vst [vmem:[%s4 + $0x8] sm:$0x1] %v1492
    %v1494 = vmul.f32 %v1025, %v1441
    %v1495 = vadd.f32 %v1494, %v1448
    %v1496 = vmax.f32 %v1495, 0.0
    %v1497 = vpack.c.bf16 %v1496, %v1496
    %1498 = vst [vmem:[%s4 + $0x9] sm:$0x1] %v1497
    %v1499 = vmul.f32 %v1064, %v1441
    %v1500 = vadd.f32 %v1499, %v1448
    %v1501 = vmax.f32 %v1500, 0.0
    %v1502 = vpack.c.bf16 %v1501, %v1501
    %1503 = vst [vmem:[%s4 + $0xa] sm:$0x1] %v1502
    %v1504 = vmul.f32 %v1066, %v1441
    %v1505 = vadd.f32 %v1504, %v1448
    %v1506 = vmax.f32 %v1505, 0.0
    %v1507 = vpack.c.bf16 %v1506, %v1506
    %1508 = vst [vmem:[%s4 + $0xb] sm:$0x1] %v1507
    %v1509 = vmul.f32 %v1105, %v1441
    %v1510 = vadd.f32 %v1509, %v1448
    %v1511 = vmax.f32 %v1510, 0.0
    %v1512 = vpack.c.bf16 %v1511, %v1511
    %1513 = vst [vmem:[%s4 + $0xc] sm:$0x1] %v1512
    %v1514 = vmul.f32 %v1107, %v1441
    %v1515 = vadd.f32 %v1514, %v1448
    %v1516 = vmax.f32 %v1515, 0.0
    %v1517 = vpack.c.bf16 %v1516, %v1516
    %1518 = vst [vmem:[%s4 + $0xd] sm:$0x1] %v1517
    %v1519 = vmul.f32 %v1146, %v1441
    %v1520 = vadd.f32 %v1519, %v1448
    %v1521 = vmax.f32 %v1520, 0.0
    %v1522 = vpack.c.bf16 %v1521, %v1521
    %1523 = vst [vmem:[%s4 + $0xe] sm:$0x1] %v1522
    %v1524 = vmul.f32 %v1148, %v1441
    %v1525 = vadd.f32 %v1524, %v1448
    %v1526 = vmax.f32 %v1525, 0.0
    %v1527 = vpack.c.bf16 %v1526, %v1526
    %1528 = vst [vmem:[%s4 + $0xf] sm:$0x1] %v1527
    // Predicated region
    $region30: #{generator_forward.4} parent=1 // pred_check
      _
    $region31: #{generator_forward.4} parent=1 // pred_check_branch
      %1530 = sbr.rel (0) target = $region33
    $region32: #{generator_forward.4} parent=1 // pred_region
      _
    $region33: #{generator_forward.4} parent=1 // pred_fallthru
      _
    // Predicated region
    $region34: #{generator_forward.4} parent=1 // pred_check
      _
    $region35: #{generator_forward.4} parent=1 // pred_check_branch
      %1532 = sbr.rel (0) target = $region37
    $region36: #{generator_forward.4} parent=1 // pred_region
      _
    $region37: #{generator_forward.4} parent=1 // pred_fallthru
      _
    %1533 = vsyncpa [#allocation3], 1
    %1534 = vsyncpa [#allocation5], 1

// kernel: generator_forward.5
$region0: #{generator_forward.5}
  #allocation0 [shape = 'u32[]', space=smem, size = 0x4, offset = 0x4, fixed_abs, tag = 'smem constant byte address 0x4 - core index']
  #allocation1 [shape = 'u32[144,128]{1,0:T(1,128)}', space=vmem, size = 0x12000, scoped, tag = 'internal scratch']
  #allocation2 [shape = 'f32[4,32,128]{2,1,0:T(8,128)}', space=vmem, size = 0x10000, scoped, tag = 'scratch operand']
  %s0 = inlined_call_operand.vmem [shape: bf16[4,32,512], index: 0, kind: input, shape index: {}]
  %s1 = inlined_call_operand.hbm [shape: bf16[4,512,128], index: 1, kind: input, shape index: {}]
  %s2 = inlined_call_operand.hbm [shape: f32[1,128], index: 2, kind: input, shape index: {}]
  %s3 = inlined_call_operand.hbm [shape: f32[1,128], index: 3, kind: input, shape index: {}]
  %s4 = inlined_call_operand.vmem [shape: bf16[4,32,128], index: 4, kind: output, shape index: {}]
  %s5 = sld [smem:[#allocation0]]
  $region38: #{generator_forward.5} parent=0
    _
  %s7 = ssub.s32 1, %s5
  %s8 = scalar_select 0, %s7, %s5
  $region1: #{generator_forward.5} parent=0
    #allocation3 [shape = 'u8[524288]{0}', space=vmem, size = 0x80000, scoped, tag = 'input window, operand 1, single buffered']
    #allocation4 [shape = 's32[1]{0}', space=sflag, size = 0x4, scoped, tag = 'scoped memory for generator_forward.5']
    #allocation5 [shape = 'u8[512]{0}', space=vmem, size = 0x400, scoped, tag = 'input window, operand 2, single buffered']
    #allocation6 [shape = 's32[1]{0}', space=sflag, size = 0x4, scoped, tag = 'scoped memory for generator_forward.5']
    #allocation7 [shape = 'u8[512]{0}', space=vmem, size = 0x400, scoped, tag = 'input window, operand 3, single buffered']
    %9 = vsyncpa [#allocation4], 0
    %10 = vsyncpa [#allocation6], 0
    // Predicated region
    $region2: #{generator_forward.5} parent=1 // pred_check
      _
    $region3: #{generator_forward.5} parent=1 // pred_check_branch
      %12 = sbr.rel (0) target = $region5
    $region4: #{generator_forward.5} parent=1 // pred_region
      _
    $region5: #{generator_forward.5} parent=1 // pred_fallthru
      _
    // Predicated region
    $region6: #{generator_forward.5} parent=1 // pred_check
      _
    $region7: #{generator_forward.5} parent=1 // pred_check_branch
      %14 = sbr.rel (0) target = $region9
    $region8: #{generator_forward.5} parent=1 // pred_region
      %s16 = ssub.s32 16384, 16384
      %17 = vsyncadd [#allocation4], %s16
      %s18 = sshll.u32 [#allocation3], 4
      %s19 = int_to_ptr.vmem [resolvable:$true] %s18
      %24 = dma.hbm_to_vmem [thread:$0]  %s1, 16384, %s19, [#allocation4], 64, 64, 4
    $region9: #{generator_forward.5} parent=1 // pred_fallthru
      _
    // Predicated region
    $region10: #{generator_forward.5} parent=1 // pred_check
      _
    $region11: #{generator_forward.5} parent=1 // pred_check_branch
      %26 = sbr.rel (0) target = $region13
    $region12: #{generator_forward.5} parent=1 // pred_region
      %s28 = ssub.s32 16, 16
      %29 = vsyncadd [#allocation6], %s28
      %s31 = sshll.u32 [#allocation5], 4
      %s32 = int_to_ptr.vmem [resolvable:$true] %s31
      %34 = dma.hbm_to_vmem [thread:$0]  %s2, 16, %s32, [#allocation6]
    $region13: #{generator_forward.5} parent=1 // pred_fallthru
      _
    // Predicated region
    $region14: #{generator_forward.5} parent=1 // pred_check
      _
    $region15: #{generator_forward.5} parent=1 // pred_check_branch
      %36 = sbr.rel (0) target = $region17
    $region16: #{generator_forward.5} parent=1 // pred_region
      %s38 = ssub.s32 16, 16
      %39 = vsyncadd [#allocation6], %s38
      %s41 = sshll.u32 [#allocation7], 4
      %s42 = int_to_ptr.vmem [resolvable:$true] %s41
      %44 = dma.hbm_to_vmem [thread:$0]  %s3, 16, %s42, [#allocation6]
    $region17: #{generator_forward.5} parent=1 // pred_fallthru
      _
    // Predicated region
    $region18: #{generator_forward.5} parent=1 // pred_check
      _
    $region19: #{generator_forward.5} parent=1 // pred_check_branch
      %46 = sbr.rel (0) target = $region21
    $region20: #{generator_forward.5} parent=1 // pred_region
      %47 = dma.done [#allocation4], 16384
    $region21: #{generator_forward.5} parent=1 // pred_fallthru
      _
    // Predicated region
    $region22: #{generator_forward.5} parent=1 // pred_check
      _
    $region23: #{generator_forward.5} parent=1 // pred_check_branch
      %49 = sbr.rel (0) target = $region25
    $region24: #{generator_forward.5} parent=1 // pred_region
      %50 = dma.done [#allocation6], 16
    $region25: #{generator_forward.5} parent=1 // pred_fallthru
      _
    // Predicated region
    $region26: #{generator_forward.5} parent=1 // pred_check
      _
    $region27: #{generator_forward.5} parent=1 // pred_check_branch
      %52 = sbr.rel (0) target = $region29
    $region28: #{generator_forward.5} parent=1 // pred_region
      %53 = dma.done [#allocation6], 16
    $region29: #{generator_forward.5} parent=1 // pred_fallthru
      _
    %v55 = vld [vmem:[%s0] sm:$0xff]
    %v56 = vld [vmem:[%s0 + $0x8] sm:$0xff]
    %v57 = vld [vmem:[%s0 + $0x10] sm:$0xff]
    %v58 = vld [vmem:[%s0 + $0x18] sm:$0xff]
    %v59 = vld [vmem:[%s0 + $0x20] sm:$0xff]
    %v60 = vld [vmem:[%s0 + $0x28] sm:$0xff]
    %v61 = vld [vmem:[%s0 + $0x30] sm:$0xff]
    %v62 = vld [vmem:[%s0 + $0x38] sm:$0xff]
    %v63 = vld [vmem:[#allocation3] sm:$0xf]
    %v64 = vld [vmem:[#allocation3 + $0x4] sm:$0xf]
    %v65 = vld [vmem:[#allocation3 + $0x8] sm:$0xf]
    %v66 = vld [vmem:[#allocation3 + $0xc] sm:$0xf]
    %v67 = vld [vmem:[#allocation3 + $0x10] sm:$0xf]
    %v68 = vld [vmem:[#allocation3 + $0x14] sm:$0xf]
    %v69 = vld [vmem:[#allocation3 + $0x18] sm:$0xf]
    %v70 = vld [vmem:[#allocation3 + $0x1c] sm:$0xf]
    %v71 = vld [vmem:[#allocation3 + $0x20] sm:$0xf]
    %v72 = vld [vmem:[#allocation3 + $0x24] sm:$0xf]
    %v73 = vld [vmem:[#allocation3 + $0x28] sm:$0xf]
    %v74 = vld [vmem:[#allocation3 + $0x2c] sm:$0xf]
    %v75 = vld [vmem:[#allocation3 + $0x30] sm:$0xf]
    %v76 = vld [vmem:[#allocation3 + $0x34] sm:$0xf]
    %v77 = vld [vmem:[#allocation3 + $0x38] sm:$0xf]
    %v78 = vld [vmem:[#allocation3 + $0x3c] sm:$0xf]
    %v79 = vld [vmem:[#allocation3 + $0x40] sm:$0xf]
    %v80 = vld [vmem:[#allocation3 + $0x44] sm:$0xf]
    %v81 = vld [vmem:[#allocation3 + $0x48] sm:$0xf]
    %v82 = vld [vmem:[#allocation3 + $0x4c] sm:$0xf]
    %v83 = vld [vmem:[#allocation3 + $0x50] sm:$0xf]
    %v84 = vld [vmem:[#allocation3 + $0x54] sm:$0xf]
    %v85 = vld [vmem:[#allocation3 + $0x58] sm:$0xf]
    %v86 = vld [vmem:[#allocation3 + $0x5c] sm:$0xf]
    %v87 = vld [vmem:[#allocation3 + $0x60] sm:$0xf]
    %v88 = vld [vmem:[#allocation3 + $0x64] sm:$0xf]
    %v89 = vld [vmem:[#allocation3 + $0x68] sm:$0xf]
    %v90 = vld [vmem:[#allocation3 + $0x6c] sm:$0xf]
    %v91 = vld [vmem:[#allocation3 + $0x70] sm:$0xf]
    %v92 = vld [vmem:[#allocation3 + $0x74] sm:$0xf]
    %v93 = vld [vmem:[#allocation3 + $0x78] sm:$0xf]
    %v94 = vld [vmem:[#allocation3 + $0x7c] sm:$0xf]
    %v95 = vld [vmem:[#allocation3 + $0x80] sm:$0xf]
    %v96 = vld [vmem:[#allocation3 + $0x84] sm:$0xf]
    %v97 = vld [vmem:[#allocation3 + $0x88] sm:$0xf]
    %v98 = vld [vmem:[#allocation3 + $0x8c] sm:$0xf]
    %v99 = vld [vmem:[#allocation3 + $0x90] sm:$0xf]
    %v100 = vld [vmem:[#allocation3 + $0x94] sm:$0xf]
    %v101 = vld [vmem:[#allocation3 + $0x98] sm:$0xf]
    %v102 = vld [vmem:[#allocation3 + $0x9c] sm:$0xf]
    %v103 = vld [vmem:[#allocation3 + $0xa0] sm:$0xf]
    %v104 = vld [vmem:[#allocation3 + $0xa4] sm:$0xf]
    %v105 = vld [vmem:[#allocation3 + $0xa8] sm:$0xf]
    %v106 = vld [vmem:[#allocation3 + $0xac] sm:$0xf]
    %v107 = vld [vmem:[#allocation3 + $0xb0] sm:$0xf]
    %v108 = vld [vmem:[#allocation3 + $0xb4] sm:$0xf]
    %v109 = vld [vmem:[#allocation3 + $0xb8] sm:$0xf]
    %v110 = vld [vmem:[#allocation3 + $0xbc] sm:$0xf]
    %v111 = vld [vmem:[#allocation3 + $0xc0] sm:$0xf]
    %v112 = vld [vmem:[#allocation3 + $0xc4] sm:$0xf]
    %v113 = vld [vmem:[#allocation3 + $0xc8] sm:$0xf]
    %v114 = vld [vmem:[#allocation3 + $0xcc] sm:$0xf]
    %v115 = vld [vmem:[#allocation3 + $0xd0] sm:$0xf]
    %v116 = vld [vmem:[#allocation3 + $0xd4] sm:$0xf]
    %v117 = vld [vmem:[#allocation3 + $0xd8] sm:$0xf]
    %v118 = vld [vmem:[#allocation3 + $0xdc] sm:$0xf]
    %v119 = vld [vmem:[#allocation3 + $0xe0] sm:$0xf]
    %v120 = vld [vmem:[#allocation3 + $0xe4] sm:$0xf]
    %v121 = vld [vmem:[#allocation3 + $0xe8] sm:$0xf]
    %v122 = vld [vmem:[#allocation3 + $0xec] sm:$0xf]
    %v123 = vld [vmem:[#allocation3 + $0xf0] sm:$0xf]
    %v124 = vld [vmem:[#allocation3 + $0xf4] sm:$0xf]
    %v125 = vld [vmem:[#allocation3 + $0xf8] sm:$0xf]
    %v126 = vld [vmem:[#allocation3 + $0xfc] sm:$0xf]
    %v135 = vunpack.c.l.b16 %v55
    %v136 = vunpack.c.h.b16 %v55
    %v137 = vunpack.c.l.b16 %v56
    %v138 = vunpack.c.h.b16 %v56
    %v139 = vunpack.c.l.b16 %v57
    %v140 = vunpack.c.h.b16 %v57
    %v141 = vunpack.c.l.b16 %v58
    %v142 = vunpack.c.h.b16 %v58
    %v143 = vunpack.c.l.b16 %v59
    %v144 = vunpack.c.h.b16 %v59
    %v145 = vunpack.c.l.b16 %v60
    %v146 = vunpack.c.h.b16 %v60
    %v147 = vunpack.c.l.b16 %v61
    %v148 = vunpack.c.h.b16 %v61
    %v149 = vunpack.c.l.b16 %v62
    %v150 = vunpack.c.h.b16 %v62
    %v151 = vpack.c.b16 %v139, %v135
    %v152 = vpack.c.b16 %v140, %v136
    %v153 = vpack.c.b16 %v141, %v137
    %v154 = vpack.c.b16 %v142, %v138
    %v155 = vpack.c.b16 %v147, %v143
    %v156 = vpack.c.b16 %v148, %v144
    %v157 = vpack.c.b16 %v149, %v145
    %v158 = vpack.c.b16 %v150, %v146
    %v231 = vunpack.c.l.b16 %v63
    %v232 = vunpack.c.l.b16 %v64
    %v233 = vunpack.c.l.b16 %v65
    %v234 = vunpack.c.l.b16 %v66
    %v235 = vunpack.c.l.b16 %v67
    %v236 = vunpack.c.l.b16 %v68
    %v237 = vunpack.c.l.b16 %v69
    %v238 = vunpack.c.l.b16 %v70
    %v239 = vunpack.c.l.b16 %v71
    %v240 = vunpack.c.l.b16 %v72
    %v241 = vunpack.c.l.b16 %v73
    %v242 = vunpack.c.l.b16 %v74
    %v243 = vunpack.c.l.b16 %v75
    %v244 = vunpack.c.l.b16 %v76
    %v245 = vunpack.c.l.b16 %v77
    %v246 = vunpack.c.l.b16 %v78
    %v247 = vunpack.c.l.b16 %v79
    %v248 = vunpack.c.l.b16 %v80
    %v249 = vunpack.c.l.b16 %v81
    %v250 = vunpack.c.l.b16 %v82
    %v251 = vunpack.c.l.b16 %v83
    %v252 = vunpack.c.l.b16 %v84
    %v253 = vunpack.c.l.b16 %v85
    %v254 = vunpack.c.l.b16 %v86
    %v255 = vunpack.c.l.b16 %v87
    %v256 = vunpack.c.l.b16 %v88
    %v257 = vunpack.c.l.b16 %v89
    %v258 = vunpack.c.l.b16 %v90
    %v259 = vunpack.c.l.b16 %v91
    %v260 = vunpack.c.l.b16 %v92
    %v261 = vunpack.c.l.b16 %v93
    %v262 = vunpack.c.l.b16 %v94
    %v263 = vunpack.c.l.b16 %v95
    %v264 = vunpack.c.l.b16 %v96
    %v265 = vunpack.c.l.b16 %v97
    %v266 = vunpack.c.l.b16 %v98
    %v267 = vunpack.c.l.b16 %v99
    %v268 = vunpack.c.l.b16 %v100
    %v269 = vunpack.c.l.b16 %v101
    %v270 = vunpack.c.l.b16 %v102
    %v271 = vunpack.c.l.b16 %v103
    %v272 = vunpack.c.l.b16 %v104
    %v273 = vunpack.c.l.b16 %v105
    %v274 = vunpack.c.l.b16 %v106
    %v275 = vunpack.c.l.b16 %v107
    %v276 = vunpack.c.l.b16 %v108
    %v277 = vunpack.c.l.b16 %v109
    %v278 = vunpack.c.l.b16 %v110
    %v279 = vunpack.c.l.b16 %v111
    %v280 = vunpack.c.l.b16 %v112
    %v281 = vunpack.c.l.b16 %v113
    %v282 = vunpack.c.l.b16 %v114
    %v283 = vunpack.c.l.b16 %v115
    %v284 = vunpack.c.l.b16 %v116
    %v285 = vunpack.c.l.b16 %v117
    %v286 = vunpack.c.l.b16 %v118
    %v287 = vunpack.c.l.b16 %v119
    %v288 = vunpack.c.l.b16 %v120
    %v289 = vunpack.c.l.b16 %v121
    %v290 = vunpack.c.l.b16 %v122
    %v291 = vunpack.c.l.b16 %v123
    %v292 = vunpack.c.l.b16 %v124
    %v293 = vunpack.c.l.b16 %v125
    %v294 = vunpack.c.l.b16 %v126
    %v295 = vpack.c.b16 %v232, %v231
    %v296 = vpack.c.b16 %v234, %v233
    %v297 = vpack.c.b16 %v236, %v235
    %v298 = vpack.c.b16 %v238, %v237
    %v299 = vpack.c.b16 %v240, %v239
    %v300 = vpack.c.b16 %v242, %v241
    %v301 = vpack.c.b16 %v244, %v243
    %v302 = vpack.c.b16 %v246, %v245
    %v303 = vpack.c.b16 %v248, %v247
    %v304 = vpack.c.b16 %v250, %v249
    %v305 = vpack.c.b16 %v252, %v251
    %v306 = vpack.c.b16 %v254, %v253
    %v307 = vpack.c.b16 %v256, %v255
    %v308 = vpack.c.b16 %v258, %v257
    %v309 = vpack.c.b16 %v260, %v259
    %v310 = vpack.c.b16 %v262, %v261
    %v311 = vpack.c.b16 %v264, %v263
    %v312 = vpack.c.b16 %v266, %v265
    %v313 = vpack.c.b16 %v268, %v267
    %v314 = vpack.c.b16 %v270, %v269
    %v315 = vpack.c.b16 %v272, %v271
    %v316 = vpack.c.b16 %v274, %v273
    %v317 = vpack.c.b16 %v276, %v275
    %v318 = vpack.c.b16 %v278, %v277
    %v319 = vpack.c.b16 %v280, %v279
    %v320 = vpack.c.b16 %v282, %v281
    %v321 = vpack.c.b16 %v284, %v283
    %v322 = vpack.c.b16 %v286, %v285
    %v323 = vpack.c.b16 %v288, %v287
    %v324 = vpack.c.b16 %v290, %v289
    %v325 = vpack.c.b16 %v292, %v291
    %v326 = vpack.c.b16 %v294, %v293
    %359 = vmatprep.subr.bf16.mxu0 0
    %360 = vmatpush1.bf16.msra.mxu0 %v295
    %361 = vmatprep.subr.bf16.mxu0 0
    %362 = vmatpush1.bf16.msra.mxu0 %v296
    %363 = vmatprep.subr.bf16.mxu0 0
    %364 = vmatpush1.bf16.msra.mxu0 %v297
    %365 = vmatprep.subr.bf16.mxu0 0
    %366 = vmatpush1.bf16.msra.mxu0 %v298
    %367 = vmatprep.subr.bf16.mxu0 0
    %368 = vmatpush1.bf16.msra.mxu0 %v299
    %369 = vmatprep.subr.bf16.mxu0 0
    %370 = vmatpush1.bf16.msra.mxu0 %v300
    %371 = vmatprep.subr.bf16.mxu0 0
    %372 = vmatpush1.bf16.msra.mxu0 %v301
    %373 = vmatprep.subr.bf16.mxu0 0
    %374 = vmatpush1.bf16.msra.mxu0 %v302
    %375 = vmatprep.subr.bf16.mxu0 0
    %376 = vmatpush1.bf16.msra.mxu0 %v303
    %377 = vmatprep.subr.bf16.mxu0 0
    %378 = vmatpush1.bf16.msra.mxu0 %v304
    %379 = vmatprep.subr.bf16.mxu0 0
    %380 = vmatpush1.bf16.msra.mxu0 %v305
    %381 = vmatprep.subr.bf16.mxu0 0
    %382 = vmatpush1.bf16.msra.mxu0 %v306
    %383 = vmatprep.subr.bf16.mxu0 0
    %384 = vmatpush1.bf16.msra.mxu0 %v307
    %385 = vmatprep.subr.bf16.mxu0 0
    %386 = vmatpush1.bf16.msra.mxu0 %v308
    %387 = vmatprep.subr.bf16.mxu0 0
    %388 = vmatpush1.bf16.msra.mxu0 %v309
    %389 = vmatprep.subr.bf16.mxu0 0
    %390 = vmatpush1.bf16.msra.mxu0 %v310
    %391 = vmatprep.mubr.bf16.mxu0 %v152
    %392 = vmatmul.mubr.bf16.gmra.mrb[0].mxu0 %v151
    %v393 = vpop.f32.mrb[0].mxu0
    %v394 = vadd.f32 0.0, %v393
    %v395 = vpop.f32.mrb[0].mxu0
    %v396 = vpop.f32.mrb[0].mxu0
    %v397 = vadd.f32 0.0, %v396
    %v398 = vpop.f32.mrb[0].mxu0
    %399 = vmatprep.mubr.bf16.mxu0 %v156
    %400 = vmatmul.mubr.bf16.gmra.mrb[0].mxu0 %v155
    %v401 = vpop.f32.mrb[0].mxu0
    %v402 = vadd.f32 0.0, %v401
    %v403 = vpop.f32.mrb[0].mxu0
    %v404 = vpop.f32.mrb[0].mxu0
    %v405 = vadd.f32 0.0, %v404
    %v406 = vpop.f32.mrb[0].mxu0
    %407 = vdwg.mxu0
    %408 = vmatprep.subr.bf16.mxu0 0
    %409 = vmatpush1.bf16.msra.mxu0 %v311
    %410 = vmatprep.subr.bf16.mxu0 0
    %411 = vmatpush1.bf16.msra.mxu0 %v312
    %412 = vmatprep.subr.bf16.mxu0 0
    %413 = vmatpush1.bf16.msra.mxu0 %v313
    %414 = vmatprep.subr.bf16.mxu0 0
    %415 = vmatpush1.bf16.msra.mxu0 %v314
    %416 = vmatprep.subr.bf16.mxu0 0
    %417 = vmatpush1.bf16.msra.mxu0 %v315
    %418 = vmatprep.subr.bf16.mxu0 0
    %419 = vmatpush1.bf16.msra.mxu0 %v316
    %420 = vmatprep.subr.bf16.mxu0 0
    %421 = vmatpush1.bf16.msra.mxu0 %v317
    %422 = vmatprep.subr.bf16.mxu0 0
    %423 = vmatpush1.bf16.msra.mxu0 %v318
    %424 = vmatprep.subr.bf16.mxu0 0
    %425 = vmatpush1.bf16.msra.mxu0 %v319
    %426 = vmatprep.subr.bf16.mxu0 0
    %427 = vmatpush1.bf16.msra.mxu0 %v320
    %428 = vmatprep.subr.bf16.mxu0 0
    %429 = vmatpush1.bf16.msra.mxu0 %v321
    %430 = vmatprep.subr.bf16.mxu0 0
    %431 = vmatpush1.bf16.msra.mxu0 %v322
    %432 = vmatprep.subr.bf16.mxu0 0
    %433 = vmatpush1.bf16.msra.mxu0 %v323
    %434 = vmatprep.subr.bf16.mxu0 0
    %435 = vmatpush1.bf16.msra.mxu0 %v324
    %436 = vmatprep.subr.bf16.mxu0 0
    %437 = vmatpush1.bf16.msra.mxu0 %v325
    %438 = vmatprep.subr.bf16.mxu0 0
    %439 = vmatpush1.bf16.msra.mxu0 %v326
    %440 = vmatprep.mubr.bf16.mxu0 %v154
    %441 = vmatmul.mubr.bf16.gmra.mrb[0].mxu0 %v153
    %v442 = vpop.f32.mrb[0].mxu0
    %v443 = vadd.f32 %v394, %v442
    %v444 = vpop.f32.mrb[0].mxu0
    %v445 = vpop.f32.mrb[0].mxu0
    %v446 = vadd.f32 %v397, %v445
    %v447 = vpop.f32.mrb[0].mxu0
    %448 = vmatprep.mubr.bf16.mxu0 %v158
    %449 = vmatmul.mubr.bf16.gmra.mrb[0].mxu0 %v157
    %v450 = vpop.f32.mrb[0].mxu0
    %v451 = vadd.f32 %v402, %v450
    %v452 = vpop.f32.mrb[0].mxu0
    %v453 = vpop.f32.mrb[0].mxu0
    %v454 = vadd.f32 %v405, %v453
    %v455 = vpop.f32.mrb[0].mxu0
    %456 = vdwg.mxu0
    %457 = vst [vmem:[#allocation2] sm:$0xff] %v443
    %458 = vst [vmem:[#allocation2 + $0x8] sm:$0xff] %v446
    %459 = vst [vmem:[#allocation2 + $0x10] sm:$0xff] %v451
    %460 = vst [vmem:[#allocation2 + $0x18] sm:$0xff] %v454
    %v461 = vadd.f32 %v443, %v446
    %v462 = vadd.f32 %v461, %v451
    %v463 = vadd.f32 %v462, %v454
    %v464 = vrot.slane %v463, 4
    %v465 = vadd.f32 %v463, %v464
    %v466 = vrot.slane %v465, 2
    %v467 = vadd.f32 %v465, %v466
    %v468 = vrot.slane %v467, 1
    %v469 = vadd.f32 %v467, %v468
    %v470 = vadd.f32 %v469, 0.0
    %v471 = vmul.f32 %v443, %v443
    %v472 = vmul.f32 %v446, %v446
    %v473 = vmul.f32 %v451, %v451
    %v474 = vmul.f32 %v454, %v454
    %v475 = vadd.f32 %v471, %v472
    %v476 = vadd.f32 %v475, %v473
    %v477 = vadd.f32 %v476, %v474
    %v478 = vrot.slane %v477, 4
    %v479 = vadd.f32 %v477, %v478
    %v480 = vrot.slane %v479, 2
    %v481 = vadd.f32 %v479, %v480
    %v482 = vrot.slane %v481, 1
    %v483 = vadd.f32 %v481, %v482
    %v484 = vadd.f32 %v483, 0.0
    %s485 = scalar_lea.vmem %s0, 64
    %v486 = vld [vmem:[%s485] sm:$0xff]
    %v487 = vld [vmem:[%s485 + $0x8] sm:$0xff]
    %v488 = vld [vmem:[%s485 + $0x10] sm:$0xff]
    %v489 = vld [vmem:[%s485 + $0x18] sm:$0xff]
    %v490 = vld [vmem:[%s485 + $0x20] sm:$0xff]
    %v491 = vld [vmem:[%s485 + $0x28] sm:$0xff]
    %v492 = vld [vmem:[%s485 + $0x30] sm:$0xff]
    %v493 = vld [vmem:[%s485 + $0x38] sm:$0xff]
    %s494 = scalar_lea.vmem [#allocation3], 256
    %v495 = vld [vmem:[%s494] sm:$0xf]
    %v496 = vld [vmem:[%s494 + $0x4] sm:$0xf]
    %v497 = vld [vmem:[%s494 + $0x8] sm:$0xf]
    %v498 = vld [vmem:[%s494 + $0xc] sm:$0xf]
    %v499 = vld [vmem:[%s494 + $0x10] sm:$0xf]
    %v500 = vld [vmem:[%s494 + $0x14] sm:$0xf]
    %v501 = vld [vmem:[%s494 + $0x18] sm:$0xf]
    %v502 = vld [vmem:[%s494 + $0x1c] sm:$0xf]
    %v503 = vld [vmem:[%s494 + $0x20] sm:$0xf]
    %v504 = vld [vmem:[%s494 + $0x24] sm:$0xf]
    %v505 = vld [vmem:[%s494 + $0x28] sm:$0xf]
    %v506 = vld [vmem:[%s494 + $0x2c] sm:$0xf]
    %v507 = vld [vmem:[%s494 + $0x30] sm:$0xf]
    %v508 = vld [vmem:[%s494 + $0x34] sm:$0xf]
    %v509 = vld [vmem:[%s494 + $0x38] sm:$0xf]
    %v510 = vld [vmem:[%s494 + $0x3c] sm:$0xf]
    %v511 = vld [vmem:[%s494 + $0x40] sm:$0xf]
    %v512 = vld [vmem:[%s494 + $0x44] sm:$0xf]
    %v513 = vld [vmem:[%s494 + $0x48] sm:$0xf]
    %v514 = vld [vmem:[%s494 + $0x4c] sm:$0xf]
    %v515 = vld [vmem:[%s494 + $0x50] sm:$0xf]
    %v516 = vld [vmem:[%s494 + $0x54] sm:$0xf]
    %v517 = vld [vmem:[%s494 + $0x58] sm:$0xf]
    %v518 = vld [vmem:[%s494 + $0x5c] sm:$0xf]
    %v519 = vld [vmem:[%s494 + $0x60] sm:$0xf]
    %v520 = vld [vmem:[%s494 + $0x64] sm:$0xf]
    %v521 = vld [vmem:[%s494 + $0x68] sm:$0xf]
    %v522 = vld [vmem:[%s494 + $0x6c] sm:$0xf]
    %v523 = vld [vmem:[%s494 + $0x70] sm:$0xf]
    %v524 = vld [vmem:[%s494 + $0x74] sm:$0xf]
    %v525 = vld [vmem:[%s494 + $0x78] sm:$0xf]
    %v526 = vld [vmem:[%s494 + $0x7c] sm:$0xf]
    %v527 = vld [vmem:[%s494 + $0x80] sm:$0xf]
    %v528 = vld [vmem:[%s494 + $0x84] sm:$0xf]
    %v529 = vld [vmem:[%s494 + $0x88] sm:$0xf]
    %v530 = vld [vmem:[%s494 + $0x8c] sm:$0xf]
    %v531 = vld [vmem:[%s494 + $0x90] sm:$0xf]
    %v532 = vld [vmem:[%s494 + $0x94] sm:$0xf]
    %v533 = vld [vmem:[%s494 + $0x98] sm:$0xf]
    %v534 = vld [vmem:[%s494 + $0x9c] sm:$0xf]
    %v535 = vld [vmem:[%s494 + $0xa0] sm:$0xf]
    %v536 = vld [vmem:[%s494 + $0xa4] sm:$0xf]
    %v537 = vld [vmem:[%s494 + $0xa8] sm:$0xf]
    %v538 = vld [vmem:[%s494 + $0xac] sm:$0xf]
    %v539 = vld [vmem:[%s494 + $0xb0] sm:$0xf]
    %v540 = vld [vmem:[%s494 + $0xb4] sm:$0xf]
    %v541 = vld [vmem:[%s494 + $0xb8] sm:$0xf]
    %v542 = vld [vmem:[%s494 + $0xbc] sm:$0xf]
    %v543 = vld [vmem:[%s494 + $0xc0] sm:$0xf]
    %v544 = vld [vmem:[%s494 + $0xc4] sm:$0xf]
    %v545 = vld [vmem:[%s494 + $0xc8] sm:$0xf]
    %v546 = vld [vmem:[%s494 + $0xcc] sm:$0xf]
    %v547 = vld [vmem:[%s494 + $0xd0] sm:$0xf]
    %v548 = vld [vmem:[%s494 + $0xd4] sm:$0xf]
    %v549 = vld [vmem:[%s494 + $0xd8] sm:$0xf]
    %v550 = vld [vmem:[%s494 + $0xdc] sm:$0xf]
    %v551 = vld [vmem:[%s494 + $0xe0] sm:$0xf]
    %v552 = vld [vmem:[%s494 + $0xe4] sm:$0xf]
    %v553 = vld [vmem:[%s494 + $0xe8] sm:$0xf]
    %v554 = vld [vmem:[%s494 + $0xec] sm:$0xf]
    %v555 = vld [vmem:[%s494 + $0xf0] sm:$0xf]
    %v556 = vld [vmem:[%s494 + $0xf4] sm:$0xf]
    %v557 = vld [vmem:[%s494 + $0xf8] sm:$0xf]
    %v558 = vld [vmem:[%s494 + $0xfc] sm:$0xf]
    %v567 = vunpack.c.l.b16 %v486
    %v568 = vunpack.c.h.b16 %v486
    %v569 = vunpack.c.l.b16 %v487
    %v570 = vunpack.c.h.b16 %v487
    %v571 = vunpack.c.l.b16 %v488
    %v572 = vunpack.c.h.b16 %v488
    %v573 = vunpack.c.l.b16 %v489
    %v574 = vunpack.c.h.b16 %v489
    %v575 = vunpack.c.l.b16 %v490
    %v576 = vunpack.c.h.b16 %v490
    %v577 = vunpack.c.l.b16 %v491
    %v578 = vunpack.c.h.b16 %v491
    %v579 = vunpack.c.l.b16 %v492
    %v580 = vunpack.c.h.b16 %v492
    %v581 = vunpack.c.l.b16 %v493
    %v582 = vunpack.c.h.b16 %v493
    %v583 = vpack.c.b16 %v571, %v567
    %v584 = vpack.c.b16 %v572, %v568
    %v585 = vpack.c.b16 %v573, %v569
    %v586 = vpack.c.b16 %v574, %v570
    %v587 = vpack.c.b16 %v579, %v575
    %v588 = vpack.c.b16 %v580, %v576
    %v589 = vpack.c.b16 %v581, %v577
    %v590 = vpack.c.b16 %v582, %v578
    %v663 = vunpack.c.l.b16 %v495
    %v664 = vunpack.c.l.b16 %v496
    %v665 = vunpack.c.l.b16 %v497
    %v666 = vunpack.c.l.b16 %v498
    %v667 = vunpack.c.l.b16 %v499
    %v668 = vunpack.c.l.b16 %v500
    %v669 = vunpack.c.l.b16 %v501
    %v670 = vunpack.c.l.b16 %v502
    %v671 = vunpack.c.l.b16 %v503
    %v672 = vunpack.c.l.b16 %v504
    %v673 = vunpack.c.l.b16 %v505
    %v674 = vunpack.c.l.b16 %v506
    %v675 = vunpack.c.l.b16 %v507
    %v676 = vunpack.c.l.b16 %v508
    %v677 = vunpack.c.l.b16 %v509
    %v678 = vunpack.c.l.b16 %v510
    %v679 = vunpack.c.l.b16 %v511
    %v680 = vunpack.c.l.b16 %v512
    %v681 = vunpack.c.l.b16 %v513
    %v682 = vunpack.c.l.b16 %v514
    %v683 = vunpack.c.l.b16 %v515
    %v684 = vunpack.c.l.b16 %v516
    %v685 = vunpack.c.l.b16 %v517
    %v686 = vunpack.c.l.b16 %v518
    %v687 = vunpack.c.l.b16 %v519
    %v688 = vunpack.c.l.b16 %v520
    %v689 = vunpack.c.l.b16 %v521
    %v690 = vunpack.c.l.b16 %v522
    %v691 = vunpack.c.l.b16 %v523
    %v692 = vunpack.c.l.b16 %v524
    %v693 = vunpack.c.l.b16 %v525
    %v694 = vunpack.c.l.b16 %v526
    %v695 = vunpack.c.l.b16 %v527
    %v696 = vunpack.c.l.b16 %v528
    %v697 = vunpack.c.l.b16 %v529
    %v698 = vunpack.c.l.b16 %v530
    %v699 = vunpack.c.l.b16 %v531
    %v700 = vunpack.c.l.b16 %v532
    %v701 = vunpack.c.l.b16 %v533
    %v702 = vunpack.c.l.b16 %v534
    %v703 = vunpack.c.l.b16 %v535
    %v704 = vunpack.c.l.b16 %v536
    %v705 = vunpack.c.l.b16 %v537
    %v706 = vunpack.c.l.b16 %v538
    %v707 = vunpack.c.l.b16 %v539
    %v708 = vunpack.c.l.b16 %v540
    %v709 = vunpack.c.l.b16 %v541
    %v710 = vunpack.c.l.b16 %v542
    %v711 = vunpack.c.l.b16 %v543
    %v712 = vunpack.c.l.b16 %v544
    %v713 = vunpack.c.l.b16 %v545
    %v714 = vunpack.c.l.b16 %v546
    %v715 = vunpack.c.l.b16 %v547
    %v716 = vunpack.c.l.b16 %v548
    %v717 = vunpack.c.l.b16 %v549
    %v718 = vunpack.c.l.b16 %v550
    %v719 = vunpack.c.l.b16 %v551
    %v720 = vunpack.c.l.b16 %v552
    %v721 = vunpack.c.l.b16 %v553
    %v722 = vunpack.c.l.b16 %v554
    %v723 = vunpack.c.l.b16 %v555
    %v724 = vunpack.c.l.b16 %v556
    %v725 = vunpack.c.l.b16 %v557
    %v726 = vunpack.c.l.b16 %v558
    %v727 = vpack.c.b16 %v664, %v663
    %v728 = vpack.c.b16 %v666, %v665
    %v729 = vpack.c.b16 %v668, %v667
    %v730 = vpack.c.b16 %v670, %v669
    %v731 = vpack.c.b16 %v672, %v671
    %v732 = vpack.c.b16 %v674, %v673
    %v733 = vpack.c.b16 %v676, %v675
    %v734 = vpack.c.b16 %v678, %v677
    %v735 = vpack.c.b16 %v680, %v679
    %v736 = vpack.c.b16 %v682, %v681
    %v737 = vpack.c.b16 %v684, %v683
    %v738 = vpack.c.b16 %v686, %v685
    %v739 = vpack.c.b16 %v688, %v687
    %v740 = vpack.c.b16 %v690, %v689
    %v741 = vpack.c.b16 %v692, %v691
    %v742 = vpack.c.b16 %v694, %v693
    %v743 = vpack.c.b16 %v696, %v695
    %v744 = vpack.c.b16 %v698, %v697
    %v745 = vpack.c.b16 %v700, %v699
    %v746 = vpack.c.b16 %v702, %v701
    %v747 = vpack.c.b16 %v704, %v703
    %v748 = vpack.c.b16 %v706, %v705
    %v749 = vpack.c.b16 %v708, %v707
    %v750 = vpack.c.b16 %v710, %v709
    %v751 = vpack.c.b16 %v712, %v711
    %v752 = vpack.c.b16 %v714, %v713
    %v753 = vpack.c.b16 %v716, %v715
    %v754 = vpack.c.b16 %v718, %v717
    %v755 = vpack.c.b16 %v720, %v719
    %v756 = vpack.c.b16 %v722, %v721
    %v757 = vpack.c.b16 %v724, %v723
    %v758 = vpack.c.b16 %v726, %v725
    %791 = vmatprep.subr.bf16.mxu0 0
    %792 = vmatpush1.bf16.msra.mxu0 %v727
    %793 = vmatprep.subr.bf16.mxu0 0
    %794 = vmatpush1.bf16.msra.mxu0 %v728
    %795 = vmatprep.subr.bf16.mxu0 0
    %796 = vmatpush1.bf16.msra.mxu0 %v729
    %797 = vmatprep.subr.bf16.mxu0 0
    %798 = vmatpush1.bf16.msra.mxu0 %v730
    %799 = vmatprep.subr.bf16.mxu0 0
    %800 = vmatpush1.bf16.msra.mxu0 %v731
    %801 = vmatprep.subr.bf16.mxu0 0
    %802 = vmatpush1.bf16.msra.mxu0 %v732
    %803 = vmatprep.subr.bf16.mxu0 0
    %804 = vmatpush1.bf16.msra.mxu0 %v733
    %805 = vmatprep.subr.bf16.mxu0 0
    %806 = vmatpush1.bf16.msra.mxu0 %v734
    %807 = vmatprep.subr.bf16.mxu0 0
    %808 = vmatpush1.bf16.msra.mxu0 %v735
    %809 = vmatprep.subr.bf16.mxu0 0
    %810 = vmatpush1.bf16.msra.mxu0 %v736
    %811 = vmatprep.subr.bf16.mxu0 0
    %812 = vmatpush1.bf16.msra.mxu0 %v737
    %813 = vmatprep.subr.bf16.mxu0 0
    %814 = vmatpush1.bf16.msra.mxu0 %v738
    %815 = vmatprep.subr.bf16.mxu0 0
    %816 = vmatpush1.bf16.msra.mxu0 %v739
    %817 = vmatprep.subr.bf16.mxu0 0
    %818 = vmatpush1.bf16.msra.mxu0 %v740
    %819 = vmatprep.subr.bf16.mxu0 0
    %820 = vmatpush1.bf16.msra.mxu0 %v741
    %821 = vmatprep.subr.bf16.mxu0 0
    %822 = vmatpush1.bf16.msra.mxu0 %v742
    %823 = vmatprep.mubr.bf16.mxu0 %v584
    %824 = vmatmul.mubr.bf16.gmra.mrb[0].mxu0 %v583
    %v825 = vpop.f32.mrb[0].mxu0
    %v826 = vadd.f32 0.0, %v825
    %v827 = vpop.f32.mrb[0].mxu0
    %v828 = vpop.f32.mrb[0].mxu0
    %v829 = vadd.f32 0.0, %v828
    %v830 = vpop.f32.mrb[0].mxu0
    %831 = vmatprep.mubr.bf16.mxu0 %v588
    %832 = vmatmul.mubr.bf16.gmra.mrb[0].mxu0 %v587
    %v833 = vpop.f32.mrb[0].mxu0
    %v834 = vadd.f32 0.0, %v833
    %v835 = vpop.f32.mrb[0].mxu0
    %v836 = vpop.f32.mrb[0].mxu0
    %v837 = vadd.f32 0.0, %v836
    %v838 = vpop.f32.mrb[0].mxu0
    %839 = vdwg.mxu0
    %840 = vmatprep.subr.bf16.mxu0 0
    %841 = vmatpush1.bf16.msra.mxu0 %v743
    %842 = vmatprep.subr.bf16.mxu0 0
    %843 = vmatpush1.bf16.msra.mxu0 %v744
    %844 = vmatprep.subr.bf16.mxu0 0
    %845 = vmatpush1.bf16.msra.mxu0 %v745
    %846 = vmatprep.subr.bf16.mxu0 0
    %847 = vmatpush1.bf16.msra.mxu0 %v746
    %848 = vmatprep.subr.bf16.mxu0 0
    %849 = vmatpush1.bf16.msra.mxu0 %v747
    %850 = vmatprep.subr.bf16.mxu0 0
    %851 = vmatpush1.bf16.msra.mxu0 %v748
    %852 = vmatprep.subr.bf16.mxu0 0
    %853 = vmatpush1.bf16.msra.mxu0 %v749
    %854 = vmatprep.subr.bf16.mxu0 0
    %855 = vmatpush1.bf16.msra.mxu0 %v750
    %856 = vmatprep.subr.bf16.mxu0 0
    %857 = vmatpush1.bf16.msra.mxu0 %v751
    %858 = vmatprep.subr.bf16.mxu0 0
    %859 = vmatpush1.bf16.msra.mxu0 %v752
    %860 = vmatprep.subr.bf16.mxu0 0
    %861 = vmatpush1.bf16.msra.mxu0 %v753
    %862 = vmatprep.subr.bf16.mxu0 0
    %863 = vmatpush1.bf16.msra.mxu0 %v754
    %864 = vmatprep.subr.bf16.mxu0 0
    %865 = vmatpush1.bf16.msra.mxu0 %v755
    %866 = vmatprep.subr.bf16.mxu0 0
    %867 = vmatpush1.bf16.msra.mxu0 %v756
    %868 = vmatprep.subr.bf16.mxu0 0
    %869 = vmatpush1.bf16.msra.mxu0 %v757
    %870 = vmatprep.subr.bf16.mxu0 0
    %871 = vmatpush1.bf16.msra.mxu0 %v758
    %872 = vmatprep.mubr.bf16.mxu0 %v586
    %873 = vmatmul.mubr.bf16.gmra.mrb[0].mxu0 %v585
    %v874 = vpop.f32.mrb[0].mxu0
    %v875 = vadd.f32 %v826, %v874
    %v876 = vpop.f32.mrb[0].mxu0
    %v877 = vpop.f32.mrb[0].mxu0
    %v878 = vadd.f32 %v829, %v877
    %v879 = vpop.f32.mrb[0].mxu0
    %880 = vmatprep.mubr.bf16.mxu0 %v590
    %881 = vmatmul.mubr.bf16.gmra.mrb[0].mxu0 %v589
    %v882 = vpop.f32.mrb[0].mxu0
    %v883 = vadd.f32 %v834, %v882
    %v884 = vpop.f32.mrb[0].mxu0
    %v885 = vpop.f32.mrb[0].mxu0
    %v886 = vadd.f32 %v837, %v885
    %v887 = vpop.f32.mrb[0].mxu0
    %888 = vdwg.mxu0
    %s889 = scalar_lea.vmem [#allocation2], 32
    %890 = vst [vmem:[%s889] sm:$0xff] %v875
    %891 = vst [vmem:[%s889 + $0x8] sm:$0xff] %v878
    %892 = vst [vmem:[%s889 + $0x10] sm:$0xff] %v883
    %893 = vst [vmem:[%s889 + $0x18] sm:$0xff] %v886
    %v894 = vadd.f32 %v875, %v878
    %v895 = vadd.f32 %v894, %v883
    %v896 = vadd.f32 %v895, %v886
    %v897 = vrot.slane %v896, 4
    %v898 = vadd.f32 %v896, %v897
    %v899 = vrot.slane %v898, 2
    %v900 = vadd.f32 %v898, %v899
    %v901 = vrot.slane %v900, 1
    %v902 = vadd.f32 %v900, %v901
    %v903 = vadd.f32 %v470, %v902
    %v904 = vmul.f32 %v875, %v875
    %v905 = vmul.f32 %v878, %v878
    %v906 = vmul.f32 %v883, %v883
    %v907 = vmul.f32 %v886, %v886
    %v908 = vadd.f32 %v904, %v905
    %v909 = vadd.f32 %v908, %v906
    %v910 = vadd.f32 %v909, %v907
    %v911 = vrot.slane %v910, 4
    %v912 = vadd.f32 %v910, %v911
    %v913 = vrot.slane %v912, 2
    %v914 = vadd.f32 %v912, %v913
    %v915 = vrot.slane %v914, 1
    %v916 = vadd.f32 %v914, %v915
    %v917 = vadd.f32 %v484, %v916
    %s918 = scalar_lea.vmem %s0, 128
    %v919 = vld [vmem:[%s918] sm:$0xff]
    %v920 = vld [vmem:[%s918 + $0x8] sm:$0xff]
    %v921 = vld [vmem:[%s918 + $0x10] sm:$0xff]
    %v922 = vld [vmem:[%s918 + $0x18] sm:$0xff]
    %v923 = vld [vmem:[%s918 + $0x20] sm:$0xff]
    %v924 = vld [vmem:[%s918 + $0x28] sm:$0xff]
    %v925 = vld [vmem:[%s918 + $0x30] sm:$0xff]
    %v926 = vld [vmem:[%s918 + $0x38] sm:$0xff]
    %s927 = scalar_lea.vmem [#allocation3], 512
    %v928 = vld [vmem:[%s927] sm:$0xf]
    %v929 = vld [vmem:[%s927 + $0x4] sm:$0xf]
    %v930 = vld [vmem:[%s927 + $0x8] sm:$0xf]
    %v931 = vld [vmem:[%s927 + $0xc] sm:$0xf]
    %v932 = vld [vmem:[%s927 + $0x10] sm:$0xf]
    %v933 = vld [vmem:[%s927 + $0x14] sm:$0xf]
    %v934 = vld [vmem:[%s927 + $0x18] sm:$0xf]
    %v935 = vld [vmem:[%s927 + $0x1c] sm:$0xf]
    %v936 = vld [vmem:[%s927 + $0x20] sm:$0xf]
    %v937 = vld [vmem:[%s927 + $0x24] sm:$0xf]
    %v938 = vld [vmem:[%s927 + $0x28] sm:$0xf]
    %v939 = vld [vmem:[%s927 + $0x2c] sm:$0xf]
    %v940 = vld [vmem:[%s927 + $0x30] sm:$0xf]
    %v941 = vld [vmem:[%s927 + $0x34] sm:$0xf]
    %v942 = vld [vmem:[%s927 + $0x38] sm:$0xf]
    %v943 = vld [vmem:[%s927 + $0x3c] sm:$0xf]
    %v944 = vld [vmem:[%s927 + $0x40] sm:$0xf]
    %v945 = vld [vmem:[%s927 + $0x44] sm:$0xf]
    %v946 = vld [vmem:[%s927 + $0x48] sm:$0xf]
    %v947 = vld [vmem:[%s927 + $0x4c] sm:$0xf]
    %v948 = vld [vmem:[%s927 + $0x50] sm:$0xf]
    %v949 = vld [vmem:[%s927 + $0x54] sm:$0xf]
    %v950 = vld [vmem:[%s927 + $0x58] sm:$0xf]
    %v951 = vld [vmem:[%s927 + $0x5c] sm:$0xf]
    %v952 = vld [vmem:[%s927 + $0x60] sm:$0xf]
    %v953 = vld [vmem:[%s927 + $0x64] sm:$0xf]
    %v954 = vld [vmem:[%s927 + $0x68] sm:$0xf]
    %v955 = vld [vmem:[%s927 + $0x6c] sm:$0xf]
    %v956 = vld [vmem:[%s927 + $0x70] sm:$0xf]
    %v957 = vld [vmem:[%s927 + $0x74] sm:$0xf]
    %v958 = vld [vmem:[%s927 + $0x78] sm:$0xf]
    %v959 = vld [vmem:[%s927 + $0x7c] sm:$0xf]
    %v960 = vld [vmem:[%s927 + $0x80] sm:$0xf]
    %v961 = vld [vmem:[%s927 + $0x84] sm:$0xf]
    %v962 = vld [vmem:[%s927 + $0x88] sm:$0xf]
    %v963 = vld [vmem:[%s927 + $0x8c] sm:$0xf]
    %v964 = vld [vmem:[%s927 + $0x90] sm:$0xf]
    %v965 = vld [vmem:[%s927 + $0x94] sm:$0xf]
    %v966 = vld [vmem:[%s927 + $0x98] sm:$0xf]
    %v967 = vld [vmem:[%s927 + $0x9c] sm:$0xf]
    %v968 = vld [vmem:[%s927 + $0xa0] sm:$0xf]
    %v969 = vld [vmem:[%s927 + $0xa4] sm:$0xf]
    %v970 = vld [vmem:[%s927 + $0xa8] sm:$0xf]
    %v971 = vld [vmem:[%s927 + $0xac] sm:$0xf]
    %v972 = vld [vmem:[%s927 + $0xb0] sm:$0xf]
    %v973 = vld [vmem:[%s927 + $0xb4] sm:$0xf]
    %v974 = vld [vmem:[%s927 + $0xb8] sm:$0xf]
    %v975 = vld [vmem:[%s927 + $0xbc] sm:$0xf]
    %v976 = vld [vmem:[%s927 + $0xc0] sm:$0xf]
    %v977 = vld [vmem:[%s927 + $0xc4] sm:$0xf]
    %v978 = vld [vmem:[%s927 + $0xc8] sm:$0xf]
    %v979 = vld [vmem:[%s927 + $0xcc] sm:$0xf]
    %v980 = vld [vmem:[%s927 + $0xd0] sm:$0xf]
    %v981 = vld [vmem:[%s927 + $0xd4] sm:$0xf]
    %v982 = vld [vmem:[%s927 + $0xd8] sm:$0xf]
    %v983 = vld [vmem:[%s927 + $0xdc] sm:$0xf]
    %v984 = vld [vmem:[%s927 + $0xe0] sm:$0xf]
    %v985 = vld [vmem:[%s927 + $0xe4] sm:$0xf]
    %v986 = vld [vmem:[%s927 + $0xe8] sm:$0xf]
    %v987 = vld [vmem:[%s927 + $0xec] sm:$0xf]
    %v988 = vld [vmem:[%s927 + $0xf0] sm:$0xf]
    %v989 = vld [vmem:[%s927 + $0xf4] sm:$0xf]
    %v990 = vld [vmem:[%s927 + $0xf8] sm:$0xf]
    %v991 = vld [vmem:[%s927 + $0xfc] sm:$0xf]
    %v1000 = vunpack.c.l.b16 %v919
    %v1001 = vunpack.c.h.b16 %v919
    %v1002 = vunpack.c.l.b16 %v920
    %v1003 = vunpack.c.h.b16 %v920
    %v1004 = vunpack.c.l.b16 %v921
    %v1005 = vunpack.c.h.b16 %v921
    %v1006 = vunpack.c.l.b16 %v922
    %v1007 = vunpack.c.h.b16 %v922
    %v1008 = vunpack.c.l.b16 %v923
    %v1009 = vunpack.c.h.b16 %v923
    %v1010 = vunpack.c.l.b16 %v924
    %v1011 = vunpack.c.h.b16 %v924
    %v1012 = vunpack.c.l.b16 %v925
    %v1013 = vunpack.c.h.b16 %v925
    %v1014 = vunpack.c.l.b16 %v926
    %v1015 = vunpack.c.h.b16 %v926
    %v1016 = vpack.c.b16 %v1004, %v1000
    %v1017 = vpack.c.b16 %v1005, %v1001
    %v1018 = vpack.c.b16 %v1006, %v1002
    %v1019 = vpack.c.b16 %v1007, %v1003
    %v1020 = vpack.c.b16 %v1012, %v1008
    %v1021 = vpack.c.b16 %v1013, %v1009
    %v1022 = vpack.c.b16 %v1014, %v1010
    %v1023 = vpack.c.b16 %v1015, %v1011
    %v1096 = vunpack.c.l.b16 %v928
    %v1097 = vunpack.c.l.b16 %v929
    %v1098 = vunpack.c.l.b16 %v930
    %v1099 = vunpack.c.l.b16 %v931
    %v1100 = vunpack.c.l.b16 %v932
    %v1101 = vunpack.c.l.b16 %v933
    %v1102 = vunpack.c.l.b16 %v934
    %v1103 = vunpack.c.l.b16 %v935
    %v1104 = vunpack.c.l.b16 %v936
    %v1105 = vunpack.c.l.b16 %v937
    %v1106 = vunpack.c.l.b16 %v938
    %v1107 = vunpack.c.l.b16 %v939
    %v1108 = vunpack.c.l.b16 %v940
    %v1109 = vunpack.c.l.b16 %v941
    %v1110 = vunpack.c.l.b16 %v942
    %v1111 = vunpack.c.l.b16 %v943
    %v1112 = vunpack.c.l.b16 %v944
    %v1113 = vunpack.c.l.b16 %v945
    %v1114 = vunpack.c.l.b16 %v946
    %v1115 = vunpack.c.l.b16 %v947
    %v1116 = vunpack.c.l.b16 %v948
    %v1117 = vunpack.c.l.b16 %v949
    %v1118 = vunpack.c.l.b16 %v950
    %v1119 = vunpack.c.l.b16 %v951
    %v1120 = vunpack.c.l.b16 %v952
    %v1121 = vunpack.c.l.b16 %v953
    %v1122 = vunpack.c.l.b16 %v954
    %v1123 = vunpack.c.l.b16 %v955
    %v1124 = vunpack.c.l.b16 %v956
    %v1125 = vunpack.c.l.b16 %v957
    %v1126 = vunpack.c.l.b16 %v958
    %v1127 = vunpack.c.l.b16 %v959
    %v1128 = vunpack.c.l.b16 %v960
    %v1129 = vunpack.c.l.b16 %v961
    %v1130 = vunpack.c.l.b16 %v962
    %v1131 = vunpack.c.l.b16 %v963
    %v1132 = vunpack.c.l.b16 %v964
    %v1133 = vunpack.c.l.b16 %v965
    %v1134 = vunpack.c.l.b16 %v966
    %v1135 = vunpack.c.l.b16 %v967
    %v1136 = vunpack.c.l.b16 %v968
    %v1137 = vunpack.c.l.b16 %v969
    %v1138 = vunpack.c.l.b16 %v970
    %v1139 = vunpack.c.l.b16 %v971
    %v1140 = vunpack.c.l.b16 %v972
    %v1141 = vunpack.c.l.b16 %v973
    %v1142 = vunpack.c.l.b16 %v974
    %v1143 = vunpack.c.l.b16 %v975
    %v1144 = vunpack.c.l.b16 %v976
    %v1145 = vunpack.c.l.b16 %v977
    %v1146 = vunpack.c.l.b16 %v978
    %v1147 = vunpack.c.l.b16 %v979
    %v1148 = vunpack.c.l.b16 %v980
    %v1149 = vunpack.c.l.b16 %v981
    %v1150 = vunpack.c.l.b16 %v982
    %v1151 = vunpack.c.l.b16 %v983
    %v1152 = vunpack.c.l.b16 %v984
    %v1153 = vunpack.c.l.b16 %v985
    %v1154 = vunpack.c.l.b16 %v986
    %v1155 = vunpack.c.l.b16 %v987
    %v1156 = vunpack.c.l.b16 %v988
    %v1157 = vunpack.c.l.b16 %v989
    %v1158 = vunpack.c.l.b16 %v990
    %v1159 = vunpack.c.l.b16 %v991
    %v1160 = vpack.c.b16 %v1097, %v1096
    %v1161 = vpack.c.b16 %v1099, %v1098
    %v1162 = vpack.c.b16 %v1101, %v1100
    %v1163 = vpack.c.b16 %v1103, %v1102
    %v1164 = vpack.c.b16 %v1105, %v1104
    %v1165 = vpack.c.b16 %v1107, %v1106
    %v1166 = vpack.c.b16 %v1109, %v1108
    %v1167 = vpack.c.b16 %v1111, %v1110
    %v1168 = vpack.c.b16 %v1113, %v1112
    %v1169 = vpack.c.b16 %v1115, %v1114
    %v1170 = vpack.c.b16 %v1117, %v1116
    %v1171 = vpack.c.b16 %v1119, %v1118
    %v1172 = vpack.c.b16 %v1121, %v1120
    %v1173 = vpack.c.b16 %v1123, %v1122
    %v1174 = vpack.c.b16 %v1125, %v1124
    %v1175 = vpack.c.b16 %v1127, %v1126
    %v1176 = vpack.c.b16 %v1129, %v1128
    %v1177 = vpack.c.b16 %v1131, %v1130
    %v1178 = vpack.c.b16 %v1133, %v1132
    %v1179 = vpack.c.b16 %v1135, %v1134
    %v1180 = vpack.c.b16 %v1137, %v1136
    %v1181 = vpack.c.b16 %v1139, %v1138
    %v1182 = vpack.c.b16 %v1141, %v1140
    %v1183 = vpack.c.b16 %v1143, %v1142
    %v1184 = vpack.c.b16 %v1145, %v1144
    %v1185 = vpack.c.b16 %v1147, %v1146
    %v1186 = vpack.c.b16 %v1149, %v1148
    %v1187 = vpack.c.b16 %v1151, %v1150
    %v1188 = vpack.c.b16 %v1153, %v1152
    %v1189 = vpack.c.b16 %v1155, %v1154
    %v1190 = vpack.c.b16 %v1157, %v1156
    %v1191 = vpack.c.b16 %v1159, %v1158
    %1224 = vmatprep.subr.bf16.mxu0 0
    %1225 = vmatpush1.bf16.msra.mxu0 %v1160
    %1226 = vmatprep.subr.bf16.mxu0 0
    %1227 = vmatpush1.bf16.msra.mxu0 %v1161
    %1228 = vmatprep.subr.bf16.mxu0 0
    %1229 = vmatpush1.bf16.msra.mxu0 %v1162
    %1230 = vmatprep.subr.bf16.mxu0 0
    %1231 = vmatpush1.bf16.msra.mxu0 %v1163
    %1232 = vmatprep.subr.bf16.mxu0 0
    %1233 = vmatpush1.bf16.msra.mxu0 %v1164
    %1234 = vmatprep.subr.bf16.mxu0 0
    %1235 = vmatpush1.bf16.msra.mxu0 %v1165
    %1236 = vmatprep.subr.bf16.mxu0 0
    %1237 = vmatpush1.bf16.msra.mxu0 %v1166
    %1238 = vmatprep.subr.bf16.mxu0 0
    %1239 = vmatpush1.bf16.msra.mxu0 %v1167
    %1240 = vmatprep.subr.bf16.mxu0 0
    %1241 = vmatpush1.bf16.msra.mxu0 %v1168
    %1242 = vmatprep.subr.bf16.mxu0 0
    %1243 = vmatpush1.bf16.msra.mxu0 %v1169
    %1244 = vmatprep.subr.bf16.mxu0 0
    %1245 = vmatpush1.bf16.msra.mxu0 %v1170
    %1246 = vmatprep.subr.bf16.mxu0 0
    %1247 = vmatpush1.bf16.msra.mxu0 %v1171
    %1248 = vmatprep.subr.bf16.mxu0 0
    %1249 = vmatpush1.bf16.msra.mxu0 %v1172
    %1250 = vmatprep.subr.bf16.mxu0 0
    %1251 = vmatpush1.bf16.msra.mxu0 %v1173
    %1252 = vmatprep.subr.bf16.mxu0 0
    %1253 = vmatpush1.bf16.msra.mxu0 %v1174
    %1254 = vmatprep.subr.bf16.mxu0 0
    %1255 = vmatpush1.bf16.msra.mxu0 %v1175
    %1256 = vmatprep.mubr.bf16.mxu0 %v1017
    %1257 = vmatmul.mubr.bf16.gmra.mrb[0].mxu0 %v1016
    %v1258 = vpop.f32.mrb[0].mxu0
    %v1259 = vadd.f32 0.0, %v1258
    %v1260 = vpop.f32.mrb[0].mxu0
    %v1261 = vpop.f32.mrb[0].mxu0
    %v1262 = vadd.f32 0.0, %v1261
    %v1263 = vpop.f32.mrb[0].mxu0
    %1264 = vmatprep.mubr.bf16.mxu0 %v1021
    %1265 = vmatmul.mubr.bf16.gmra.mrb[0].mxu0 %v1020
    %v1266 = vpop.f32.mrb[0].mxu0
    %v1267 = vadd.f32 0.0, %v1266
    %v1268 = vpop.f32.mrb[0].mxu0
    %v1269 = vpop.f32.mrb[0].mxu0
    %v1270 = vadd.f32 0.0, %v1269
    %v1271 = vpop.f32.mrb[0].mxu0
    %1272 = vdwg.mxu0
    %1273 = vmatprep.subr.bf16.mxu0 0
    %1274 = vmatpush1.bf16.msra.mxu0 %v1176
    %1275 = vmatprep.subr.bf16.mxu0 0
    %1276 = vmatpush1.bf16.msra.mxu0 %v1177
    %1277 = vmatprep.subr.bf16.mxu0 0
    %1278 = vmatpush1.bf16.msra.mxu0 %v1178
    %1279 = vmatprep.subr.bf16.mxu0 0
    %1280 = vmatpush1.bf16.msra.mxu0 %v1179
    %1281 = vmatprep.subr.bf16.mxu0 0
    %1282 = vmatpush1.bf16.msra.mxu0 %v1180
    %1283 = vmatprep.subr.bf16.mxu0 0
    %1284 = vmatpush1.bf16.msra.mxu0 %v1181
    %1285 = vmatprep.subr.bf16.mxu0 0
    %1286 = vmatpush1.bf16.msra.mxu0 %v1182
    %1287 = vmatprep.subr.bf16.mxu0 0
    %1288 = vmatpush1.bf16.msra.mxu0 %v1183
    %1289 = vmatprep.subr.bf16.mxu0 0
    %1290 = vmatpush1.bf16.msra.mxu0 %v1184
    %1291 = vmatprep.subr.bf16.mxu0 0
    %1292 = vmatpush1.bf16.msra.mxu0 %v1185
    %1293 = vmatprep.subr.bf16.mxu0 0
    %1294 = vmatpush1.bf16.msra.mxu0 %v1186
    %1295 = vmatprep.subr.bf16.mxu0 0
    %1296 = vmatpush1.bf16.msra.mxu0 %v1187
    %1297 = vmatprep.subr.bf16.mxu0 0
    %1298 = vmatpush1.bf16.msra.mxu0 %v1188
    %1299 = vmatprep.subr.bf16.mxu0 0
    %1300 = vmatpush1.bf16.msra.mxu0 %v1189
    %1301 = vmatprep.subr.bf16.mxu0 0
    %1302 = vmatpush1.bf16.msra.mxu0 %v1190
    %1303 = vmatprep.subr.bf16.mxu0 0
    %1304 = vmatpush1.bf16.msra.mxu0 %v1191
    %1305 = vmatprep.mubr.bf16.mxu0 %v1019
    %1306 = vmatmul.mubr.bf16.gmra.mrb[0].mxu0 %v1018
    %v1307 = vpop.f32.mrb[0].mxu0
    %v1308 = vadd.f32 %v1259, %v1307
    %v1309 = vpop.f32.mrb[0].mxu0
    %v1310 = vpop.f32.mrb[0].mxu0
    %v1311 = vadd.f32 %v1262, %v1310
    %v1312 = vpop.f32.mrb[0].mxu0
    %1313 = vmatprep.mubr.bf16.mxu0 %v1023
    %1314 = vmatmul.mubr.bf16.gmra.mrb[0].mxu0 %v1022
    %v1315 = vpop.f32.mrb[0].mxu0
    %v1316 = vadd.f32 %v1267, %v1315
    %v1317 = vpop.f32.mrb[0].mxu0
    %v1318 = vpop.f32.mrb[0].mxu0
    %v1319 = vadd.f32 %v1270, %v1318
    %v1320 = vpop.f32.mrb[0].mxu0
    %1321 = vdwg.mxu0
    %s1322 = scalar_lea.vmem [#allocation2], 64
    %1323 = vst [vmem:[%s1322] sm:$0xff] %v1308
    %1324 = vst [vmem:[%s1322 + $0x8] sm:$0xff] %v1311
    %1325 = vst [vmem:[%s1322 + $0x10] sm:$0xff] %v1316
    %1326 = vst [vmem:[%s1322 + $0x18] sm:$0xff] %v1319
    %v1327 = vadd.f32 %v1308, %v1311
    %v1328 = vadd.f32 %v1327, %v1316
    %v1329 = vadd.f32 %v1328, %v1319
    %v1330 = vrot.slane %v1329, 4
    %v1331 = vadd.f32 %v1329, %v1330
    %v1332 = vrot.slane %v1331, 2
    %v1333 = vadd.f32 %v1331, %v1332
    %v1334 = vrot.slane %v1333, 1
    %v1335 = vadd.f32 %v1333, %v1334
    %v1336 = vadd.f32 %v903, %v1335
    %v1337 = vmul.f32 %v1308, %v1308
    %v1338 = vmul.f32 %v1311, %v1311
    %v1339 = vmul.f32 %v1316, %v1316
    %v1340 = vmul.f32 %v1319, %v1319
    %v1341 = vadd.f32 %v1337, %v1338
    %v1342 = vadd.f32 %v1341, %v1339
    %v1343 = vadd.f32 %v1342, %v1340
    %v1344 = vrot.slane %v1343, 4
    %v1345 = vadd.f32 %v1343, %v1344
    %v1346 = vrot.slane %v1345, 2
    %v1347 = vadd.f32 %v1345, %v1346
    %v1348 = vrot.slane %v1347, 1
    %v1349 = vadd.f32 %v1347, %v1348
    %v1350 = vadd.f32 %v917, %v1349
    %s1351 = scalar_lea.vmem %s0, 192
    %v1352 = vld [vmem:[%s1351] sm:$0xff]
    %v1353 = vld [vmem:[%s1351 + $0x8] sm:$0xff]
    %v1354 = vld [vmem:[%s1351 + $0x10] sm:$0xff]
    %v1355 = vld [vmem:[%s1351 + $0x18] sm:$0xff]
    %v1356 = vld [vmem:[%s1351 + $0x20] sm:$0xff]
    %v1357 = vld [vmem:[%s1351 + $0x28] sm:$0xff]
    %v1358 = vld [vmem:[%s1351 + $0x30] sm:$0xff]
    %v1359 = vld [vmem:[%s1351 + $0x38] sm:$0xff]
    %s1360 = scalar_lea.vmem [#allocation3], 768
    %v1361 = vld [vmem:[%s1360] sm:$0xf]
    %v1362 = vld [vmem:[%s1360 + $0x4] sm:$0xf]
    %v1363 = vld [vmem:[%s1360 + $0x8] sm:$0xf]
    %v1364 = vld [vmem:[%s1360 + $0xc] sm:$0xf]
    %v1365 = vld [vmem:[%s1360 + $0x10] sm:$0xf]
    %v1366 = vld [vmem:[%s1360 + $0x14] sm:$0xf]
    %v1367 = vld [vmem:[%s1360 + $0x18] sm:$0xf]
    %v1368 = vld [vmem:[%s1360 + $0x1c] sm:$0xf]
    %v1369 = vld [vmem:[%s1360 + $0x20] sm:$0xf]
    %v1370 = vld [vmem:[%s1360 + $0x24] sm:$0xf]
    %v1371 = vld [vmem:[%s1360 + $0x28] sm:$0xf]
    %v1372 = vld [vmem:[%s1360 + $0x2c] sm:$0xf]
    %v1373 = vld [vmem:[%s1360 + $0x30] sm:$0xf]
    %v1374 = vld [vmem:[%s1360 + $0x34] sm:$0xf]
    %v1375 = vld [vmem:[%s1360 + $0x38] sm:$0xf]
    %v1376 = vld [vmem:[%s1360 + $0x3c] sm:$0xf]
    %v1377 = vld [vmem:[%s1360 + $0x40] sm:$0xf]
    %v1378 = vld [vmem:[%s1360 + $0x44] sm:$0xf]
    %v1379 = vld [vmem:[%s1360 + $0x48] sm:$0xf]
    %v1380 = vld [vmem:[%s1360 + $0x4c] sm:$0xf]
    %v1381 = vld [vmem:[%s1360 + $0x50] sm:$0xf]
    %v1382 = vld [vmem:[%s1360 + $0x54] sm:$0xf]
    %v1383 = vld [vmem:[%s1360 + $0x58] sm:$0xf]
    %v1384 = vld [vmem:[%s1360 + $0x5c] sm:$0xf]
    %v1385 = vld [vmem:[%s1360 + $0x60] sm:$0xf]
    %v1386 = vld [vmem:[%s1360 + $0x64] sm:$0xf]
    %v1387 = vld [vmem:[%s1360 + $0x68] sm:$0xf]
    %v1388 = vld [vmem:[%s1360 + $0x6c] sm:$0xf]
    %v1389 = vld [vmem:[%s1360 + $0x70] sm:$0xf]
    %v1390 = vld [vmem:[%s1360 + $0x74] sm:$0xf]
    %v1391 = vld [vmem:[%s1360 + $0x78] sm:$0xf]
    %v1392 = vld [vmem:[%s1360 + $0x7c] sm:$0xf]
    %v1393 = vld [vmem:[%s1360 + $0x80] sm:$0xf]
    %v1394 = vld [vmem:[%s1360 + $0x84] sm:$0xf]
    %v1395 = vld [vmem:[%s1360 + $0x88] sm:$0xf]
    %v1396 = vld [vmem:[%s1360 + $0x8c] sm:$0xf]
    %v1397 = vld [vmem:[%s1360 + $0x90] sm:$0xf]
    %v1398 = vld [vmem:[%s1360 + $0x94] sm:$0xf]
    %v1399 = vld [vmem:[%s1360 + $0x98] sm:$0xf]
    %v1400 = vld [vmem:[%s1360 + $0x9c] sm:$0xf]
    %v1401 = vld [vmem:[%s1360 + $0xa0] sm:$0xf]
    %v1402 = vld [vmem:[%s1360 + $0xa4] sm:$0xf]
    %v1403 = vld [vmem:[%s1360 + $0xa8] sm:$0xf]
    %v1404 = vld [vmem:[%s1360 + $0xac] sm:$0xf]
    %v1405 = vld [vmem:[%s1360 + $0xb0] sm:$0xf]
    %v1406 = vld [vmem:[%s1360 + $0xb4] sm:$0xf]
    %v1407 = vld [vmem:[%s1360 + $0xb8] sm:$0xf]
    %v1408 = vld [vmem:[%s1360 + $0xbc] sm:$0xf]
    %v1409 = vld [vmem:[%s1360 + $0xc0] sm:$0xf]
    %v1410 = vld [vmem:[%s1360 + $0xc4] sm:$0xf]
    %v1411 = vld [vmem:[%s1360 + $0xc8] sm:$0xf]
    %v1412 = vld [vmem:[%s1360 + $0xcc] sm:$0xf]
    %v1413 = vld [vmem:[%s1360 + $0xd0] sm:$0xf]
    %v1414 = vld [vmem:[%s1360 + $0xd4] sm:$0xf]
    %v1415 = vld [vmem:[%s1360 + $0xd8] sm:$0xf]
    %v1416 = vld [vmem:[%s1360 + $0xdc] sm:$0xf]
    %v1417 = vld [vmem:[%s1360 + $0xe0] sm:$0xf]
    %v1418 = vld [vmem:[%s1360 + $0xe4] sm:$0xf]
    %v1419 = vld [vmem:[%s1360 + $0xe8] sm:$0xf]
    %v1420 = vld [vmem:[%s1360 + $0xec] sm:$0xf]
    %v1421 = vld [vmem:[%s1360 + $0xf0] sm:$0xf]
    %v1422 = vld [vmem:[%s1360 + $0xf4] sm:$0xf]
    %v1423 = vld [vmem:[%s1360 + $0xf8] sm:$0xf]
    %v1424 = vld [vmem:[%s1360 + $0xfc] sm:$0xf]
    %v1433 = vunpack.c.l.b16 %v1352
    %v1434 = vunpack.c.h.b16 %v1352
    %v1435 = vunpack.c.l.b16 %v1353
    %v1436 = vunpack.c.h.b16 %v1353
    %v1437 = vunpack.c.l.b16 %v1354
    %v1438 = vunpack.c.h.b16 %v1354
    %v1439 = vunpack.c.l.b16 %v1355
    %v1440 = vunpack.c.h.b16 %v1355
    %v1441 = vunpack.c.l.b16 %v1356
    %v1442 = vunpack.c.h.b16 %v1356
    %v1443 = vunpack.c.l.b16 %v1357
    %v1444 = vunpack.c.h.b16 %v1357
    %v1445 = vunpack.c.l.b16 %v1358
    %v1446 = vunpack.c.h.b16 %v1358
    %v1447 = vunpack.c.l.b16 %v1359
    %v1448 = vunpack.c.h.b16 %v1359
    %v1449 = vpack.c.b16 %v1437, %v1433
    %v1450 = vpack.c.b16 %v1438, %v1434
    %v1451 = vpack.c.b16 %v1439, %v1435
    %v1452 = vpack.c.b16 %v1440, %v1436
    %v1453 = vpack.c.b16 %v1445, %v1441
    %v1454 = vpack.c.b16 %v1446, %v1442
    %v1455 = vpack.c.b16 %v1447, %v1443
    %v1456 = vpack.c.b16 %v1448, %v1444
    %v1529 = vunpack.c.l.b16 %v1361
    %v1530 = vunpack.c.l.b16 %v1362
    %v1531 = vunpack.c.l.b16 %v1363
    %v1532 = vunpack.c.l.b16 %v1364
    %v1533 = vunpack.c.l.b16 %v1365
    %v1534 = vunpack.c.l.b16 %v1366
    %v1535 = vunpack.c.l.b16 %v1367
    %v1536 = vunpack.c.l.b16 %v1368
    %v1537 = vunpack.c.l.b16 %v1369
    %v1538 = vunpack.c.l.b16 %v1370
    %v1539 = vunpack.c.l.b16 %v1371
    %v1540 = vunpack.c.l.b16 %v1372
    %v1541 = vunpack.c.l.b16 %v1373
    %v1542 = vunpack.c.l.b16 %v1374
    %v1543 = vunpack.c.l.b16 %v1375
    %v1544 = vunpack.c.l.b16 %v1376
    %v1545 = vunpack.c.l.b16 %v1377
    %v1546 = vunpack.c.l.b16 %v1378
    %v1547 = vunpack.c.l.b16 %v1379
    %v1548 = vunpack.c.l.b16 %v1380
    %v1549 = vunpack.c.l.b16 %v1381
    %v1550 = vunpack.c.l.b16 %v1382
    %v1551 = vunpack.c.l.b16 %v1383
    %v1552 = vunpack.c.l.b16 %v1384
    %v1553 = vunpack.c.l.b16 %v1385
    %v1554 = vunpack.c.l.b16 %v1386
    %v1555 = vunpack.c.l.b16 %v1387
    %v1556 = vunpack.c.l.b16 %v1388
    %v1557 = vunpack.c.l.b16 %v1389
    %v1558 = vunpack.c.l.b16 %v1390
    %v1559 = vunpack.c.l.b16 %v1391
    %v1560 = vunpack.c.l.b16 %v1392
    %v1561 = vunpack.c.l.b16 %v1393
    %v1562 = vunpack.c.l.b16 %v1394
    %v1563 = vunpack.c.l.b16 %v1395
    %v1564 = vunpack.c.l.b16 %v1396
    %v1565 = vunpack.c.l.b16 %v1397
    %v1566 = vunpack.c.l.b16 %v1398
    %v1567 = vunpack.c.l.b16 %v1399
    %v1568 = vunpack.c.l.b16 %v1400
    %v1569 = vunpack.c.l.b16 %v1401
    %v1570 = vunpack.c.l.b16 %v1402
    %v1571 = vunpack.c.l.b16 %v1403
    %v1572 = vunpack.c.l.b16 %v1404
    %v1573 = vunpack.c.l.b16 %v1405
    %v1574 = vunpack.c.l.b16 %v1406
    %v1575 = vunpack.c.l.b16 %v1407
    %v1576 = vunpack.c.l.b16 %v1408
    %v1577 = vunpack.c.l.b16 %v1409
    %v1578 = vunpack.c.l.b16 %v1410
    %v1579 = vunpack.c.l.b16 %v1411
    %v1580 = vunpack.c.l.b16 %v1412
    %v1581 = vunpack.c.l.b16 %v1413
    %v1582 = vunpack.c.l.b16 %v1414
    %v1583 = vunpack.c.l.b16 %v1415
    %v1584 = vunpack.c.l.b16 %v1416
    %v1585 = vunpack.c.l.b16 %v1417
    %v1586 = vunpack.c.l.b16 %v1418
    %v1587 = vunpack.c.l.b16 %v1419
    %v1588 = vunpack.c.l.b16 %v1420
    %v1589 = vunpack.c.l.b16 %v1421
    %v1590 = vunpack.c.l.b16 %v1422
    %v1591 = vunpack.c.l.b16 %v1423
    %v1592 = vunpack.c.l.b16 %v1424
    %v1593 = vpack.c.b16 %v1530, %v1529
    %v1594 = vpack.c.b16 %v1532, %v1531
    %v1595 = vpack.c.b16 %v1534, %v1533
    %v1596 = vpack.c.b16 %v1536, %v1535
    %v1597 = vpack.c.b16 %v1538, %v1537
    %v1598 = vpack.c.b16 %v1540, %v1539
    %v1599 = vpack.c.b16 %v1542, %v1541
    %v1600 = vpack.c.b16 %v1544, %v1543
    %v1601 = vpack.c.b16 %v1546, %v1545
    %v1602 = vpack.c.b16 %v1548, %v1547
    %v1603 = vpack.c.b16 %v1550, %v1549
    %v1604 = vpack.c.b16 %v1552, %v1551
    %v1605 = vpack.c.b16 %v1554, %v1553
    %v1606 = vpack.c.b16 %v1556, %v1555
    %v1607 = vpack.c.b16 %v1558, %v1557
    %v1608 = vpack.c.b16 %v1560, %v1559
    %v1609 = vpack.c.b16 %v1562, %v1561
    %v1610 = vpack.c.b16 %v1564, %v1563
    %v1611 = vpack.c.b16 %v1566, %v1565
    %v1612 = vpack.c.b16 %v1568, %v1567
    %v1613 = vpack.c.b16 %v1570, %v1569
    %v1614 = vpack.c.b16 %v1572, %v1571
    %v1615 = vpack.c.b16 %v1574, %v1573
    %v1616 = vpack.c.b16 %v1576, %v1575
    %v1617 = vpack.c.b16 %v1578, %v1577
    %v1618 = vpack.c.b16 %v1580, %v1579
    %v1619 = vpack.c.b16 %v1582, %v1581
    %v1620 = vpack.c.b16 %v1584, %v1583
    %v1621 = vpack.c.b16 %v1586, %v1585
    %v1622 = vpack.c.b16 %v1588, %v1587
    %v1623 = vpack.c.b16 %v1590, %v1589
    %v1624 = vpack.c.b16 %v1592, %v1591
    %1657 = vmatprep.subr.bf16.mxu0 0
    %1658 = vmatpush1.bf16.msra.mxu0 %v1593
    %1659 = vmatprep.subr.bf16.mxu0 0
    %1660 = vmatpush1.bf16.msra.mxu0 %v1594
    %1661 = vmatprep.subr.bf16.mxu0 0
    %1662 = vmatpush1.bf16.msra.mxu0 %v1595
    %1663 = vmatprep.subr.bf16.mxu0 0
    %1664 = vmatpush1.bf16.msra.mxu0 %v1596
    %1665 = vmatprep.subr.bf16.mxu0 0
    %1666 = vmatpush1.bf16.msra.mxu0 %v1597
    %1667 = vmatprep.subr.bf16.mxu0 0
    %1668 = vmatpush1.bf16.msra.mxu0 %v1598
    %1669 = vmatprep.subr.bf16.mxu0 0
    %1670 = vmatpush1.bf16.msra.mxu0 %v1599
    %1671 = vmatprep.subr.bf16.mxu0 0
    %1672 = vmatpush1.bf16.msra.mxu0 %v1600
    %1673 = vmatprep.subr.bf16.mxu0 0
    %1674 = vmatpush1.bf16.msra.mxu0 %v1601
    %1675 = vmatprep.subr.bf16.mxu0 0
    %1676 = vmatpush1.bf16.msra.mxu0 %v1602
    %1677 = vmatprep.subr.bf16.mxu0 0
    %1678 = vmatpush1.bf16.msra.mxu0 %v1603
    %1679 = vmatprep.subr.bf16.mxu0 0
    %1680 = vmatpush1.bf16.msra.mxu0 %v1604
    %1681 = vmatprep.subr.bf16.mxu0 0
    %1682 = vmatpush1.bf16.msra.mxu0 %v1605
    %1683 = vmatprep.subr.bf16.mxu0 0
    %1684 = vmatpush1.bf16.msra.mxu0 %v1606
    %1685 = vmatprep.subr.bf16.mxu0 0
    %1686 = vmatpush1.bf16.msra.mxu0 %v1607
    %1687 = vmatprep.subr.bf16.mxu0 0
    %1688 = vmatpush1.bf16.msra.mxu0 %v1608
    %1689 = vmatprep.mubr.bf16.mxu0 %v1450
    %1690 = vmatmul.mubr.bf16.gmra.mrb[0].mxu0 %v1449
    %v1691 = vpop.f32.mrb[0].mxu0
    %v1692 = vadd.f32 0.0, %v1691
    %v1693 = vpop.f32.mrb[0].mxu0
    %v1694 = vpop.f32.mrb[0].mxu0
    %v1695 = vadd.f32 0.0, %v1694
    %v1696 = vpop.f32.mrb[0].mxu0
    %1697 = vmatprep.mubr.bf16.mxu0 %v1454
    %1698 = vmatmul.mubr.bf16.gmra.mrb[0].mxu0 %v1453
    %v1699 = vpop.f32.mrb[0].mxu0
    %v1700 = vadd.f32 0.0, %v1699
    %v1701 = vpop.f32.mrb[0].mxu0
    %v1702 = vpop.f32.mrb[0].mxu0
    %v1703 = vadd.f32 0.0, %v1702
    %v1704 = vpop.f32.mrb[0].mxu0
    %1705 = vdwg.mxu0
    %1706 = vmatprep.subr.bf16.mxu0 0
    %1707 = vmatpush1.bf16.msra.mxu0 %v1609
    %1708 = vmatprep.subr.bf16.mxu0 0
    %1709 = vmatpush1.bf16.msra.mxu0 %v1610
    %1710 = vmatprep.subr.bf16.mxu0 0
    %1711 = vmatpush1.bf16.msra.mxu0 %v1611
    %1712 = vmatprep.subr.bf16.mxu0 0
    %1713 = vmatpush1.bf16.msra.mxu0 %v1612
    %1714 = vmatprep.subr.bf16.mxu0 0
    %1715 = vmatpush1.bf16.msra.mxu0 %v1613
    %1716 = vmatprep.subr.bf16.mxu0 0
    %1717 = vmatpush1.bf16.msra.mxu0 %v1614
    %1718 = vmatprep.subr.bf16.mxu0 0
    %1719 = vmatpush1.bf16.msra.mxu0 %v1615
    %1720 = vmatprep.subr.bf16.mxu0 0
    %1721 = vmatpush1.bf16.msra.mxu0 %v1616
    %1722 = vmatprep.subr.bf16.mxu0 0
    %1723 = vmatpush1.bf16.msra.mxu0 %v1617
    %1724 = vmatprep.subr.bf16.mxu0 0
    %1725 = vmatpush1.bf16.msra.mxu0 %v1618
    %1726 = vmatprep.subr.bf16.mxu0 0
    %1727 = vmatpush1.bf16.msra.mxu0 %v1619
    %1728 = vmatprep.subr.bf16.mxu0 0
    %1729 = vmatpush1.bf16.msra.mxu0 %v1620
    %1730 = vmatprep.subr.bf16.mxu0 0
    %1731 = vmatpush1.bf16.msra.mxu0 %v1621
    %1732 = vmatprep.subr.bf16.mxu0 0
    %1733 = vmatpush1.bf16.msra.mxu0 %v1622
    %1734 = vmatprep.subr.bf16.mxu0 0
    %1735 = vmatpush1.bf16.msra.mxu0 %v1623
    %1736 = vmatprep.subr.bf16.mxu0 0
    %1737 = vmatpush1.bf16.msra.mxu0 %v1624
    %1738 = vmatprep.mubr.bf16.mxu0 %v1452
    %1739 = vmatmul.mubr.bf16.gmra.mrb[0].mxu0 %v1451
    %v1740 = vpop.f32.mrb[0].mxu0
    %v1741 = vadd.f32 %v1692, %v1740
    %v1742 = vpop.f32.mrb[0].mxu0
    %v1743 = vpop.f32.mrb[0].mxu0
    %v1744 = vadd.f32 %v1695, %v1743
    %v1745 = vpop.f32.mrb[0].mxu0
    %1746 = vmatprep.mubr.bf16.mxu0 %v1456
    %1747 = vmatmul.mubr.bf16.gmra.mrb[0].mxu0 %v1455
    %v1748 = vpop.f32.mrb[0].mxu0
    %v1749 = vadd.f32 %v1700, %v1748
    %v1750 = vpop.f32.mrb[0].mxu0
    %v1751 = vpop.f32.mrb[0].mxu0
    %v1752 = vadd.f32 %v1703, %v1751
    %v1753 = vpop.f32.mrb[0].mxu0
    %1754 = vdwg.mxu0
    %s1755 = scalar_lea.vmem [#allocation2], 96
    %1756 = vst [vmem:[%s1755] sm:$0xff] %v1741
    %1757 = vst [vmem:[%s1755 + $0x8] sm:$0xff] %v1744
    %1758 = vst [vmem:[%s1755 + $0x10] sm:$0xff] %v1749
    %1759 = vst [vmem:[%s1755 + $0x18] sm:$0xff] %v1752
    %v1760 = vadd.f32 %v1741, %v1744
    %v1761 = vadd.f32 %v1760, %v1749
    %v1762 = vadd.f32 %v1761, %v1752
    %v1763 = vrot.slane %v1762, 4
    %v1764 = vadd.f32 %v1762, %v1763
    %v1765 = vrot.slane %v1764, 2
    %v1766 = vadd.f32 %v1764, %v1765
    %v1767 = vrot.slane %v1766, 1
    %v1768 = vadd.f32 %v1766, %v1767
    %v1769 = vadd.f32 %v1336, %v1768
    %v1770 = vmul.f32 %v1741, %v1741
    %v1771 = vmul.f32 %v1744, %v1744
    %v1772 = vmul.f32 %v1749, %v1749
    %v1773 = vmul.f32 %v1752, %v1752
    %v1774 = vadd.f32 %v1770, %v1771
    %v1775 = vadd.f32 %v1774, %v1772
    %v1776 = vadd.f32 %v1775, %v1773
    %v1777 = vrot.slane %v1776, 4
    %v1778 = vadd.f32 %v1776, %v1777
    %v1779 = vrot.slane %v1778, 2
    %v1780 = vadd.f32 %v1778, %v1779
    %v1781 = vrot.slane %v1780, 1
    %v1782 = vadd.f32 %v1780, %v1781
    %v1783 = vadd.f32 %v1350, %v1782
    %v1784 = vmul.f32 %v1769, 0.0078125
    %v1785 = vmul.f32 %v1783, 0.0078125
    %v1786 = vmul.f32 %v1784, %v1784
    %v1787 = vsub.f32 %v1785, %v1786
    %v1788 = vmax.f32 %v1787, 0.0
    %v1789 = vld [vmem:[#allocation5] sm:$0x1]
    %v1790 = vadd.f32 %v1788, 1e-05
    %v1791 = vrsqrt.pop %v1790
    %v1792 = vmul.f32 %v1789, %v1791
    %v1793 = vld [vmem:[#allocation7] sm:$0x1]
    %v1794 = vmul.f32 %v1784, %v1792
    %v1795 = vsub.f32 %v1793, %v1794
    %v1796 = vld [vmem:[#allocation2] sm:$0xff]
    %v1797 = vld [vmem:[#allocation2 + $0x8] sm:$0xff]
    %v1798 = vld [vmem:[#allocation2 + $0x10] sm:$0xff]
    %v1799 = vld [vmem:[#allocation2 + $0x18] sm:$0xff]
    %v1801 = vlaneseq
    %v1802 = vshrl.u32 %v1801, 7
    %v1803 = vsub.s32 0, %v1802
    %v1804 = vrot.slane %v1792, %v1803
    %v1806 = vmul.f32 %v1796, %v1804
    %v1807 = vmul.f32 %v1797, %v1804
    %v1808 = vmul.f32 %v1798, %v1804
    %v1809 = vmul.f32 %v1799, %v1804
    %v1811 = vlaneseq
    %v1812 = vshrl.u32 %v1811, 7
    %v1813 = vsub.s32 0, %v1812
    %v1814 = vrot.slane %v1795, %v1813
    %v1816 = vadd.f32 %v1806, %v1814
    %v1817 = vadd.f32 %v1807, %v1814
    %v1818 = vadd.f32 %v1808, %v1814
    %v1819 = vadd.f32 %v1809, %v1814
    %v1820 = vmax.f32 %v1816, 0.0
    %v1821 = vmax.f32 %v1817, 0.0
    %v1822 = vmax.f32 %v1818, 0.0
    %v1823 = vmax.f32 %v1819, 0.0
    %v1824 = vpack.c.bf16 %v1821, %v1820
    %v1825 = vpack.c.bf16 %v1823, %v1822
    %v1828 = vunpack.c.l.b16 %v1824
    %v1829 = vunpack.c.h.b16 %v1824
    %v1830 = vunpack.c.l.b16 %v1825
    %v1831 = vunpack.c.h.b16 %v1825
    %v1832 = vpack.c.b16 %v1828, %v1828
    %v1833 = vpack.c.b16 %v1829, %v1829
    %v1834 = vpack.c.b16 %v1830, %v1830
    %v1835 = vpack.c.b16 %v1831, %v1831
    %1840 = vst [vmem:[%s4] sm:$0xf] %v1832
    %1841 = vst [vmem:[%s4 + $0x4] sm:$0xf] %v1833
    %1842 = vst [vmem:[%s4 + $0x8] sm:$0xf] %v1834
    %1843 = vst [vmem:[%s4 + $0xc] sm:$0xf] %v1835
    %v1844 = vld [vmem:[%s889] sm:$0xff]
    %v1845 = vld [vmem:[%s889 + $0x8] sm:$0xff]
    %v1846 = vld [vmem:[%s889 + $0x10] sm:$0xff]
    %v1847 = vld [vmem:[%s889 + $0x18] sm:$0xff]
    %v1848 = vmul.f32 %v1844, %v1804
    %v1849 = vmul.f32 %v1845, %v1804
    %v1850 = vmul.f32 %v1846, %v1804
    %v1851 = vmul.f32 %v1847, %v1804
    %v1852 = vadd.f32 %v1848, %v1814
    %v1853 = vadd.f32 %v1849, %v1814
    %v1854 = vadd.f32 %v1850, %v1814
    %v1855 = vadd.f32 %v1851, %v1814
    %v1856 = vmax.f32 %v1852, 0.0
    %v1857 = vmax.f32 %v1853, 0.0
    %v1858 = vmax.f32 %v1854, 0.0
    %v1859 = vmax.f32 %v1855, 0.0
    %v1860 = vpack.c.bf16 %v1857, %v1856
    %v1861 = vpack.c.bf16 %v1859, %v1858
    %v1864 = vunpack.c.l.b16 %v1860
    %v1865 = vunpack.c.h.b16 %v1860
    %v1866 = vunpack.c.l.b16 %v1861
    %v1867 = vunpack.c.h.b16 %v1861
    %v1868 = vpack.c.b16 %v1864, %v1864
    %v1869 = vpack.c.b16 %v1865, %v1865
    %v1870 = vpack.c.b16 %v1866, %v1866
    %v1871 = vpack.c.b16 %v1867, %v1867
    %s1876 = scalar_lea.vmem %s4, 16
    %1877 = vst [vmem:[%s1876] sm:$0xf] %v1868
    %1878 = vst [vmem:[%s1876 + $0x4] sm:$0xf] %v1869
    %1879 = vst [vmem:[%s1876 + $0x8] sm:$0xf] %v1870
    %1880 = vst [vmem:[%s1876 + $0xc] sm:$0xf] %v1871
    %v1881 = vld [vmem:[%s1322] sm:$0xff]
    %v1882 = vld [vmem:[%s1322 + $0x8] sm:$0xff]
    %v1883 = vld [vmem:[%s1322 + $0x10] sm:$0xff]
    %v1884 = vld [vmem:[%s1322 + $0x18] sm:$0xff]
    %v1885 = vmul.f32 %v1881, %v1804
    %v1886 = vmul.f32 %v1882, %v1804
    %v1887 = vmul.f32 %v1883, %v1804
    %v1888 = vmul.f32 %v1884, %v1804
    %v1889 = vadd.f32 %v1885, %v1814
    %v1890 = vadd.f32 %v1886, %v1814
    %v1891 = vadd.f32 %v1887, %v1814
    %v1892 = vadd.f32 %v1888, %v1814
    %v1893 = vmax.f32 %v1889, 0.0
    %v1894 = vmax.f32 %v1890, 0.0
    %v1895 = vmax.f32 %v1891, 0.0
    %v1896 = vmax.f32 %v1892, 0.0
    %v1897 = vpack.c.bf16 %v1894, %v1893
    %v1898 = vpack.c.bf16 %v1896, %v1895
    %v1901 = vunpack.c.l.b16 %v1897
    %v1902 = vunpack.c.h.b16 %v1897
    %v1903 = vunpack.c.l.b16 %v1898
    %v1904 = vunpack.c.h.b16 %v1898
    %v1905 = vpack.c.b16 %v1901, %v1901
    %v1906 = vpack.c.b16 %v1902, %v1902
    %v1907 = vpack.c.b16 %v1903, %v1903
    %v1908 = vpack.c.b16 %v1904, %v1904
    %s1913 = scalar_lea.vmem %s4, 32
    %1914 = vst [vmem:[%s1913] sm:$0xf] %v1905
    %1915 = vst [vmem:[%s1913 + $0x4] sm:$0xf] %v1906
    %1916 = vst [vmem:[%s1913 + $0x8] sm:$0xf] %v1907
    %1917 = vst [vmem:[%s1913 + $0xc] sm:$0xf] %v1908
    %v1918 = vld [vmem:[%s1755] sm:$0xff]
    %v1919 = vld [vmem:[%s1755 + $0x8] sm:$0xff]
    %v1920 = vld [vmem:[%s1755 + $0x10] sm:$0xff]
    %v1921 = vld [vmem:[%s1755 + $0x18] sm:$0xff]
    %v1922 = vmul.f32 %v1918, %v1804
    %v1923 = vmul.f32 %v1919, %v1804
    %v1924 = vmul.f32 %v1920, %v1804
    %v1925 = vmul.f32 %v1921, %v1804
    %v1926 = vadd.f32 %v1922, %v1814
    %v1927 = vadd.f32 %v1923, %v1814
    %v1928 = vadd.f32 %v1924, %v1814
    %v1929 = vadd.f32 %v1925, %v1814
    %v1930 = vmax.f32 %v1926, 0.0
    %v1931 = vmax.f32 %v1927, 0.0
    %v1932 = vmax.f32 %v1928, 0.0
    %v1933 = vmax.f32 %v1929, 0.0
    %v1934 = vpack.c.bf16 %v1931, %v1930
    %v1935 = vpack.c.bf16 %v1933, %v1932
    %v1938 = vunpack.c.l.b16 %v1934
    %v1939 = vunpack.c.h.b16 %v1934
    %v1940 = vunpack.c.l.b16 %v1935
    %v1941 = vunpack.c.h.b16 %v1935
    %v1942 = vpack.c.b16 %v1938, %v1938
    %v1943 = vpack.c.b16 %v1939, %v1939
    %v1944 = vpack.c.b16 %v1940, %v1940
    %v1945 = vpack.c.b16 %v1941, %v1941
    %s1950 = scalar_lea.vmem %s4, 48
    %1951 = vst [vmem:[%s1950] sm:$0xf] %v1942
    %1952 = vst [vmem:[%s1950 + $0x4] sm:$0xf] %v1943
    %1953 = vst [vmem:[%s1950 + $0x8] sm:$0xf] %v1944
    %1954 = vst [vmem:[%s1950 + $0xc] sm:$0xf] %v1945
    // Predicated region
    $region30: #{generator_forward.5} parent=1 // pred_check
      _
    $region31: #{generator_forward.5} parent=1 // pred_check_branch
      %1956 = sbr.rel (0) target = $region33
    $region32: #{generator_forward.5} parent=1 // pred_region
      _
    $region33: #{generator_forward.5} parent=1 // pred_fallthru
      _
    // Predicated region
    $region34: #{generator_forward.5} parent=1 // pred_check
      _
    $region35: #{generator_forward.5} parent=1 // pred_check_branch
      %1958 = sbr.rel (0) target = $region37
    $region36: #{generator_forward.5} parent=1 // pred_region
      _
    $region37: #{generator_forward.5} parent=1 // pred_fallthru
      _
    %1959 = vsyncpa [#allocation4], 1
    %1960 = vsyncpa [#allocation6], 1

// kernel: generator_forward.6
$region0: #{generator_forward.6}
  #allocation0 [shape = 'u32[]', space=smem, size = 0x4, offset = 0x4, fixed_abs, tag = 'smem constant byte address 0x4 - core index']
  #allocation1 [shape = 'u32[144,128]{1,0:T(1,128)}', space=vmem, size = 0x12000, scoped, tag = 'internal scratch']
  #allocation2 [shape = 'f32[4,128,128]{2,1,0:T(8,128)}', space=vmem, size = 0x40000, scoped, tag = 'scratch operand']
  %s0 = inlined_call_operand.vmem [shape: bf16[4,128,256], index: 0, kind: input, shape index: {}]
  %s1 = inlined_call_operand.vmem [shape: bf16[4,256,128], index: 1, kind: input, shape index: {}]
  %s2 = inlined_call_operand.vmem [shape: f32[1,128], index: 2, kind: input, shape index: {}]
  %s3 = inlined_call_operand.vmem [shape: f32[1,128], index: 3, kind: input, shape index: {}]
  %s4 = inlined_call_operand.vmem [shape: bf16[4,128,128], index: 4, kind: output, shape index: {}]
  %s5 = sld [smem:[#allocation0]]
  $region26: #{generator_forward.6} parent=0
    _
  %s7 = ssub.s32 1, %s5
  %s8 = scalar_select 0, %s7, %s5
  // Predicated region
  $region2: #{generator_forward.6} parent=0 // pred_check
    _
  $region3: #{generator_forward.6} parent=0 // pred_check_branch
    %10 = sbr.rel (0) target = $region5
  $region4: #{generator_forward.6} parent=0 // pred_region
    _
  $region5: #{generator_forward.6} parent=0 // pred_fallthru
    _
  // Predicated region
  $region6: #{generator_forward.6} parent=0 // pred_check
    _
  $region7: #{generator_forward.6} parent=0 // pred_check_branch
    %12 = sbr.rel (0) target = $region9
  $region8: #{generator_forward.6} parent=0 // pred_region
    _
  $region9: #{generator_forward.6} parent=0 // pred_fallthru
    _
  // Predicated region
  $region10: #{generator_forward.6} parent=0 // pred_check
    _
  $region11: #{generator_forward.6} parent=0 // pred_check_branch
    %14 = sbr.rel (0) target = $region13
  $region12: #{generator_forward.6} parent=0 // pred_region
    _
  $region13: #{generator_forward.6} parent=0 // pred_fallthru
    _
  // Predicated region
  $region14: #{generator_forward.6} parent=0 // pred_check
    _
  $region15: #{generator_forward.6} parent=0 // pred_check_branch
    %16 = sbr.rel (0) target = $region17
  $region16: #{generator_forward.6} parent=0 // pred_region
    _
  $region17: #{generator_forward.6} parent=0 // pred_fallthru
    _
  %v18 = vld [vmem:[%s0] sm:$0xff]
  %v19 = vld [vmem:[%s0 + $0x8] sm:$0xff]
  %v20 = vld [vmem:[%s0 + $0x10] sm:$0xff]
  %v21 = vld [vmem:[%s0 + $0x18] sm:$0xff]
  %v22 = vld [vmem:[%s0 + $0x20] sm:$0xff]
  %v23 = vld [vmem:[%s0 + $0x28] sm:$0xff]
  %v24 = vld [vmem:[%s0 + $0x30] sm:$0xff]
  %v25 = vld [vmem:[%s0 + $0x38] sm:$0xff]
  %v26 = vld [vmem:[%s0 + $0x40] sm:$0xff]
  %v27 = vld [vmem:[%s0 + $0x48] sm:$0xff]
  %v28 = vld [vmem:[%s0 + $0x50] sm:$0xff]
  %v29 = vld [vmem:[%s0 + $0x58] sm:$0xff]
  %v30 = vld [vmem:[%s0 + $0x60] sm:$0xff]
  %v31 = vld [vmem:[%s0 + $0x68] sm:$0xff]
  %v32 = vld [vmem:[%s0 + $0x70] sm:$0xff]
  %v33 = vld [vmem:[%s0 + $0x78] sm:$0xff]
  %v34 = vld [vmem:[%s1] sm:$0xf]
  %v35 = vld [vmem:[%s1 + $0x4] sm:$0xf]
  %v36 = vld [vmem:[%s1 + $0x8] sm:$0xf]
  %v37 = vld [vmem:[%s1 + $0xc] sm:$0xf]
  %v38 = vld [vmem:[%s1 + $0x10] sm:$0xf]
  %v39 = vld [vmem:[%s1 + $0x14] sm:$0xf]
  %v40 = vld [vmem:[%s1 + $0x18] sm:$0xf]
  %v41 = vld [vmem:[%s1 + $0x1c] sm:$0xf]
  %v42 = vld [vmem:[%s1 + $0x20] sm:$0xf]
  %v43 = vld [vmem:[%s1 + $0x24] sm:$0xf]
  %v44 = vld [vmem:[%s1 + $0x28] sm:$0xf]
  %v45 = vld [vmem:[%s1 + $0x2c] sm:$0xf]
  %v46 = vld [vmem:[%s1 + $0x30] sm:$0xf]
  %v47 = vld [vmem:[%s1 + $0x34] sm:$0xf]
  %v48 = vld [vmem:[%s1 + $0x38] sm:$0xf]
  %v49 = vld [vmem:[%s1 + $0x3c] sm:$0xf]
  %v50 = vld [vmem:[%s1 + $0x40] sm:$0xf]
  %v51 = vld [vmem:[%s1 + $0x44] sm:$0xf]
  %v52 = vld [vmem:[%s1 + $0x48] sm:$0xf]
  %v53 = vld [vmem:[%s1 + $0x4c] sm:$0xf]
  %v54 = vld [vmem:[%s1 + $0x50] sm:$0xf]
  %v55 = vld [vmem:[%s1 + $0x54] sm:$0xf]
  %v56 = vld [vmem:[%s1 + $0x58] sm:$0xf]
  %v57 = vld [vmem:[%s1 + $0x5c] sm:$0xf]
  %v58 = vld [vmem:[%s1 + $0x60] sm:$0xf]
  %v59 = vld [vmem:[%s1 + $0x64] sm:$0xf]
  %v60 = vld [vmem:[%s1 + $0x68] sm:$0xf]
  %v61 = vld [vmem:[%s1 + $0x6c] sm:$0xf]
  %v62 = vld [vmem:[%s1 + $0x70] sm:$0xf]
  %v63 = vld [vmem:[%s1 + $0x74] sm:$0xf]
  %v64 = vld [vmem:[%s1 + $0x78] sm:$0xf]
  %v65 = vld [vmem:[%s1 + $0x7c] sm:$0xf]
  %v82 = vunpack.c.l.b16 %v18
  %v83 = vunpack.c.h.b16 %v18
  %v84 = vunpack.c.l.b16 %v19
  %v85 = vunpack.c.h.b16 %v19
  %v86 = vunpack.c.l.b16 %v20
  %v87 = vunpack.c.h.b16 %v20
  %v88 = vunpack.c.l.b16 %v21
  %v89 = vunpack.c.h.b16 %v21
  %v90 = vunpack.c.l.b16 %v22
  %v91 = vunpack.c.h.b16 %v22
  %v92 = vunpack.c.l.b16 %v23
  %v93 = vunpack.c.h.b16 %v23
  %v94 = vunpack.c.l.b16 %v24
  %v95 = vunpack.c.h.b16 %v24
  %v96 = vunpack.c.l.b16 %v25
  %v97 = vunpack.c.h.b16 %v25
  %v98 = vunpack.c.l.b16 %v26
  %v99 = vunpack.c.h.b16 %v26
  %v100 = vunpack.c.l.b16 %v27
  %v101 = vunpack.c.h.b16 %v27
  %v102 = vunpack.c.l.b16 %v28
  %v103 = vunpack.c.h.b16 %v28
  %v104 = vunpack.c.l.b16 %v29
  %v105 = vunpack.c.h.b16 %v29
  %v106 = vunpack.c.l.b16 %v30
  %v107 = vunpack.c.h.b16 %v30
  %v108 = vunpack.c.l.b16 %v31
  %v109 = vunpack.c.h.b16 %v31
  %v110 = vunpack.c.l.b16 %v32
  %v111 = vunpack.c.h.b16 %v32
  %v112 = vunpack.c.l.b16 %v33
  %v113 = vunpack.c.h.b16 %v33
  %v114 = vpack.c.b16 %v84, %v82
  %v115 = vpack.c.b16 %v85, %v83
  %v116 = vpack.c.b16 %v88, %v86
  %v117 = vpack.c.b16 %v89, %v87
  %v118 = vpack.c.b16 %v92, %v90
  %v119 = vpack.c.b16 %v93, %v91
  %v120 = vpack.c.b16 %v96, %v94
  %v121 = vpack.c.b16 %v97, %v95
  %v122 = vpack.c.b16 %v100, %v98
  %v123 = vpack.c.b16 %v101, %v99
  %v124 = vpack.c.b16 %v104, %v102
  %v125 = vpack.c.b16 %v105, %v103
  %v126 = vpack.c.b16 %v108, %v106
  %v127 = vpack.c.b16 %v109, %v107
  %v128 = vpack.c.b16 %v112, %v110
  %v129 = vpack.c.b16 %v113, %v111
  %v178 = vunpack.c.l.b16 %v34
  %v179 = vunpack.c.l.b16 %v35
  %v180 = vunpack.c.l.b16 %v36
  %v181 = vunpack.c.l.b16 %v37
  %v182 = vunpack.c.l.b16 %v38
  %v183 = vunpack.c.l.b16 %v39
  %v184 = vunpack.c.l.b16 %v40
  %v185 = vunpack.c.l.b16 %v41
  %v186 = vunpack.c.l.b16 %v42
  %v187 = vunpack.c.l.b16 %v43
  %v188 = vunpack.c.l.b16 %v44
  %v189 = vunpack.c.l.b16 %v45
  %v190 = vunpack.c.l.b16 %v46
  %v191 = vunpack.c.l.b16 %v47
  %v192 = vunpack.c.l.b16 %v48
  %v193 = vunpack.c.l.b16 %v49
  %v194 = vunpack.c.l.b16 %v50
  %v195 = vunpack.c.l.b16 %v51
  %v196 = vunpack.c.l.b16 %v52
  %v197 = vunpack.c.l.b16 %v53
  %v198 = vunpack.c.l.b16 %v54
  %v199 = vunpack.c.l.b16 %v55
  %v200 = vunpack.c.l.b16 %v56
  %v201 = vunpack.c.l.b16 %v57
  %v202 = vunpack.c.l.b16 %v58
  %v203 = vunpack.c.l.b16 %v59
  %v204 = vunpack.c.l.b16 %v60
  %v205 = vunpack.c.l.b16 %v61
  %v206 = vunpack.c.l.b16 %v62
  %v207 = vunpack.c.l.b16 %v63
  %v208 = vunpack.c.l.b16 %v64
  %v209 = vunpack.c.l.b16 %v65
  %v210 = vpack.c.b16 %v179, %v178
  %v211 = vpack.c.b16 %v181, %v180
  %v212 = vpack.c.b16 %v183, %v182
  %v213 = vpack.c.b16 %v185, %v184
  %v214 = vpack.c.b16 %v187, %v186
  %v215 = vpack.c.b16 %v189, %v188
  %v216 = vpack.c.b16 %v191, %v190
  %v217 = vpack.c.b16 %v193, %v192
  %v218 = vpack.c.b16 %v195, %v194
  %v219 = vpack.c.b16 %v197, %v196
  %v220 = vpack.c.b16 %v199, %v198
  %v221 = vpack.c.b16 %v201, %v200
  %v222 = vpack.c.b16 %v203, %v202
  %v223 = vpack.c.b16 %v205, %v204
  %v224 = vpack.c.b16 %v207, %v206
  %v225 = vpack.c.b16 %v209, %v208
  %242 = vmatprep.subr.bf16.mxu0 0
  %243 = vmatpush1.bf16.msra.mxu0 %v210
  %244 = vmatprep.subr.bf16.mxu0 0
  %245 = vmatpush1.bf16.msra.mxu0 %v211
  %246 = vmatprep.subr.bf16.mxu0 0
  %247 = vmatpush1.bf16.msra.mxu0 %v212
  %248 = vmatprep.subr.bf16.mxu0 0
  %249 = vmatpush1.bf16.msra.mxu0 %v213
  %250 = vmatprep.subr.bf16.mxu0 0
  %251 = vmatpush1.bf16.msra.mxu0 %v214
  %252 = vmatprep.subr.bf16.mxu0 0
  %253 = vmatpush1.bf16.msra.mxu0 %v215
  %254 = vmatprep.subr.bf16.mxu0 0
  %255 = vmatpush1.bf16.msra.mxu0 %v216
  %256 = vmatprep.subr.bf16.mxu0 0
  %257 = vmatpush1.bf16.msra.mxu0 %v217
  %258 = vmatprep.subr.bf16.mxu0 0
  %259 = vmatpush1.bf16.msra.mxu0 %v218
  %260 = vmatprep.subr.bf16.mxu0 0
  %261 = vmatpush1.bf16.msra.mxu0 %v219
  %262 = vmatprep.subr.bf16.mxu0 0
  %263 = vmatpush1.bf16.msra.mxu0 %v220
  %264 = vmatprep.subr.bf16.mxu0 0
  %265 = vmatpush1.bf16.msra.mxu0 %v221
  %266 = vmatprep.subr.bf16.mxu0 0
  %267 = vmatpush1.bf16.msra.mxu0 %v222
  %268 = vmatprep.subr.bf16.mxu0 0
  %269 = vmatpush1.bf16.msra.mxu0 %v223
  %270 = vmatprep.subr.bf16.mxu0 0
  %271 = vmatpush1.bf16.msra.mxu0 %v224
  %272 = vmatprep.subr.bf16.mxu0 0
  %273 = vmatpush1.bf16.msra.mxu0 %v225
  %274 = vmatprep.mubr.bf16.mxu0 %v115
  %275 = vmatmul.mubr.bf16.gmra.mrb[0].mxu0 %v114
  %v276 = vpop.f32.mrb[0].mxu0
  %v277 = vadd.f32 0.0, %v276
  %v278 = vpop.f32.mrb[0].mxu0
  %v279 = vpop.f32.mrb[0].mxu0
  %v280 = vadd.f32 0.0, %v279
  %v281 = vpop.f32.mrb[0].mxu0
  %282 = vmatprep.mubr.bf16.mxu0 %v117
  %283 = vmatmul.mubr.bf16.gmra.mrb[0].mxu0 %v116
  %v284 = vpop.f32.mrb[0].mxu0
  %v285 = vadd.f32 0.0, %v284
  %v286 = vpop.f32.mrb[0].mxu0
  %v287 = vpop.f32.mrb[0].mxu0
  %v288 = vadd.f32 0.0, %v287
  %v289 = vpop.f32.mrb[0].mxu0
  %290 = vmatprep.mubr.bf16.mxu0 %v119
  %291 = vmatmul.mubr.bf16.gmra.mrb[0].mxu0 %v118
  %v292 = vpop.f32.mrb[0].mxu0
  %v293 = vadd.f32 0.0, %v292
  %v294 = vpop.f32.mrb[0].mxu0
  %v295 = vpop.f32.mrb[0].mxu0
  %v296 = vadd.f32 0.0, %v295
  %v297 = vpop.f32.mrb[0].mxu0
  %298 = vmatprep.mubr.bf16.mxu0 %v121
  %299 = vmatmul.mubr.bf16.gmra.mrb[0].mxu0 %v120
  %v300 = vpop.f32.mrb[0].mxu0
  %v301 = vadd.f32 0.0, %v300
  %v302 = vpop.f32.mrb[0].mxu0
  %v303 = vpop.f32.mrb[0].mxu0
  %v304 = vadd.f32 0.0, %v303
  %v305 = vpop.f32.mrb[0].mxu0
  %306 = vmatprep.mubr.bf16.mxu0 %v123
  %307 = vmatmul.mubr.bf16.gmra.mrb[0].mxu0 %v122
  %v308 = vpop.f32.mrb[0].mxu0
  %v309 = vadd.f32 0.0, %v308
  %v310 = vpop.f32.mrb[0].mxu0
  %v311 = vpop.f32.mrb[0].mxu0
  %v312 = vadd.f32 0.0, %v311
  %v313 = vpop.f32.mrb[0].mxu0
  %314 = vmatprep.mubr.bf16.mxu0 %v125
  %315 = vmatmul.mubr.bf16.gmra.mrb[0].mxu0 %v124
  %v316 = vpop.f32.mrb[0].mxu0
  %v317 = vadd.f32 0.0, %v316
  %v318 = vpop.f32.mrb[0].mxu0
  %v319 = vpop.f32.mrb[0].mxu0
  %v320 = vadd.f32 0.0, %v319
  %v321 = vpop.f32.mrb[0].mxu0
  %322 = vmatprep.mubr.bf16.mxu0 %v127
  %323 = vmatmul.mubr.bf16.gmra.mrb[0].mxu0 %v126
  %v324 = vpop.f32.mrb[0].mxu0
  %v325 = vadd.f32 0.0, %v324
  %v326 = vpop.f32.mrb[0].mxu0
  %v327 = vpop.f32.mrb[0].mxu0
  %v328 = vadd.f32 0.0, %v327
  %v329 = vpop.f32.mrb[0].mxu0
  %330 = vmatprep.mubr.bf16.mxu0 %v129
  %331 = vmatmul.mubr.bf16.gmra.mrb[0].mxu0 %v128
  %v332 = vpop.f32.mrb[0].mxu0
  %v333 = vadd.f32 0.0, %v332
  %v334 = vpop.f32.mrb[0].mxu0
  %v335 = vpop.f32.mrb[0].mxu0
  %v336 = vadd.f32 0.0, %v335
  %v337 = vpop.f32.mrb[0].mxu0
  %338 = vdwg.mxu0
  %339 = vst [vmem:[#allocation2] sm:$0xff] %v277
  %340 = vst [vmem:[#allocation2 + $0x8] sm:$0xff] %v280
  %341 = vst [vmem:[#allocation2 + $0x10] sm:$0xff] %v285
  %342 = vst [vmem:[#allocation2 + $0x18] sm:$0xff] %v288
  %343 = vst [vmem:[#allocation2 + $0x20] sm:$0xff] %v293
  %344 = vst [vmem:[#allocation2 + $0x28] sm:$0xff] %v296
  %345 = vst [vmem:[#allocation2 + $0x30] sm:$0xff] %v301
  %346 = vst [vmem:[#allocation2 + $0x38] sm:$0xff] %v304
  %347 = vst [vmem:[#allocation2 + $0x40] sm:$0xff] %v309
  %348 = vst [vmem:[#allocation2 + $0x48] sm:$0xff] %v312
  %349 = vst [vmem:[#allocation2 + $0x50] sm:$0xff] %v317
  %350 = vst [vmem:[#allocation2 + $0x58] sm:$0xff] %v320
  %351 = vst [vmem:[#allocation2 + $0x60] sm:$0xff] %v325
  %352 = vst [vmem:[#allocation2 + $0x68] sm:$0xff] %v328
  %353 = vst [vmem:[#allocation2 + $0x70] sm:$0xff] %v333
  %354 = vst [vmem:[#allocation2 + $0x78] sm:$0xff] %v336
  %v355 = vadd.f32 %v277, %v280
  %v356 = vadd.f32 %v355, %v285
  %v357 = vadd.f32 %v356, %v288
  %v358 = vadd.f32 %v357, %v293
  %v359 = vadd.f32 %v358, %v296
  %v360 = vadd.f32 %v359, %v301
  %v361 = vadd.f32 %v360, %v304
  %v362 = vadd.f32 %v361, %v309
  %v363 = vadd.f32 %v362, %v312
  %v364 = vadd.f32 %v363, %v317
  %v365 = vadd.f32 %v364, %v320
  %v366 = vadd.f32 %v365, %v325
  %v367 = vadd.f32 %v366, %v328
  %v368 = vadd.f32 %v367, %v333
  %v369 = vadd.f32 %v368, %v336
  %v370 = vrot.slane %v369, 4
  %v371 = vadd.f32 %v369, %v370
  %v372 = vrot.slane %v371, 2
  %v373 = vadd.f32 %v371, %v372
  %v374 = vrot.slane %v373, 1
  %v375 = vadd.f32 %v373, %v374
  %v376 = vadd.f32 %v375, 0.0
  %v377 = vmul.f32 %v277, %v277
  %v378 = vmul.f32 %v280, %v280
  %v379 = vmul.f32 %v285, %v285
  %v380 = vmul.f32 %v288, %v288
  %v381 = vmul.f32 %v293, %v293
  %v382 = vmul.f32 %v296, %v296
  %v383 = vmul.f32 %v301, %v301
  %v384 = vmul.f32 %v304, %v304
  %v385 = vmul.f32 %v309, %v309
  %v386 = vmul.f32 %v312, %v312
  %v387 = vmul.f32 %v317, %v317
  %v388 = vmul.f32 %v320, %v320
  %v389 = vmul.f32 %v325, %v325
  %v390 = vmul.f32 %v328, %v328
  %v391 = vmul.f32 %v333, %v333
  %v392 = vmul.f32 %v336, %v336
  %v393 = vadd.f32 %v377, %v378
  %v394 = vadd.f32 %v393, %v379
  %v395 = vadd.f32 %v394, %v380
  %v396 = vadd.f32 %v395, %v381
  %v397 = vadd.f32 %v396, %v382
  %v398 = vadd.f32 %v397, %v383
  %v399 = vadd.f32 %v398, %v384
  %v400 = vadd.f32 %v399, %v385
  %v401 = vadd.f32 %v400, %v386
  %v402 = vadd.f32 %v401, %v387
  %v403 = vadd.f32 %v402, %v388
  %v404 = vadd.f32 %v403, %v389
  %v405 = vadd.f32 %v404, %v390
  %v406 = vadd.f32 %v405, %v391
  %v407 = vadd.f32 %v406, %v392
  %v408 = vrot.slane %v407, 4
  %v409 = vadd.f32 %v407, %v408
  %v410 = vrot.slane %v409, 2
  %v411 = vadd.f32 %v409, %v410
  %v412 = vrot.slane %v411, 1
  %v413 = vadd.f32 %v411, %v412
  %v414 = vadd.f32 %v413, 0.0
  %s415 = scalar_lea.vmem %s0, 128
  %v416 = vld [vmem:[%s415] sm:$0xff]
  %v417 = vld [vmem:[%s415 + $0x8] sm:$0xff]
  %v418 = vld [vmem:[%s415 + $0x10] sm:$0xff]
  %v419 = vld [vmem:[%s415 + $0x18] sm:$0xff]
  %v420 = vld [vmem:[%s415 + $0x20] sm:$0xff]
  %v421 = vld [vmem:[%s415 + $0x28] sm:$0xff]
  %v422 = vld [vmem:[%s415 + $0x30] sm:$0xff]
  %v423 = vld [vmem:[%s415 + $0x38] sm:$0xff]
  %v424 = vld [vmem:[%s415 + $0x40] sm:$0xff]
  %v425 = vld [vmem:[%s415 + $0x48] sm:$0xff]
  %v426 = vld [vmem:[%s415 + $0x50] sm:$0xff]
  %v427 = vld [vmem:[%s415 + $0x58] sm:$0xff]
  %v428 = vld [vmem:[%s415 + $0x60] sm:$0xff]
  %v429 = vld [vmem:[%s415 + $0x68] sm:$0xff]
  %v430 = vld [vmem:[%s415 + $0x70] sm:$0xff]
  %v431 = vld [vmem:[%s415 + $0x78] sm:$0xff]
  %s432 = scalar_lea.vmem %s1, 128
  %v433 = vld [vmem:[%s432] sm:$0xf]
  %v434 = vld [vmem:[%s432 + $0x4] sm:$0xf]
  %v435 = vld [vmem:[%s432 + $0x8] sm:$0xf]
  %v436 = vld [vmem:[%s432 + $0xc] sm:$0xf]
  %v437 = vld [vmem:[%s432 + $0x10] sm:$0xf]
  %v438 = vld [vmem:[%s432 + $0x14] sm:$0xf]
  %v439 = vld [vmem:[%s432 + $0x18] sm:$0xf]
  %v440 = vld [vmem:[%s432 + $0x1c] sm:$0xf]
  %v441 = vld [vmem:[%s432 + $0x20] sm:$0xf]
  %v442 = vld [vmem:[%s432 + $0x24] sm:$0xf]
  %v443 = vld [vmem:[%s432 + $0x28] sm:$0xf]
  %v444 = vld [vmem:[%s432 + $0x2c] sm:$0xf]
  %v445 = vld [vmem:[%s432 + $0x30] sm:$0xf]
  %v446 = vld [vmem:[%s432 + $0x34] sm:$0xf]
  %v447 = vld [vmem:[%s432 + $0x38] sm:$0xf]
  %v448 = vld [vmem:[%s432 + $0x3c] sm:$0xf]
  %v449 = vld [vmem:[%s432 + $0x40] sm:$0xf]
  %v450 = vld [vmem:[%s432 + $0x44] sm:$0xf]
  %v451 = vld [vmem:[%s432 + $0x48] sm:$0xf]
  %v452 = vld [vmem:[%s432 + $0x4c] sm:$0xf]
  %v453 = vld [vmem:[%s432 + $0x50] sm:$0xf]
  %v454 = vld [vmem:[%s432 + $0x54] sm:$0xf]
  %v455 = vld [vmem:[%s432 + $0x58] sm:$0xf]
  %v456 = vld [vmem:[%s432 + $0x5c] sm:$0xf]
  %v457 = vld [vmem:[%s432 + $0x60] sm:$0xf]
  %v458 = vld [vmem:[%s432 + $0x64] sm:$0xf]
  %v459 = vld [vmem:[%s432 + $0x68] sm:$0xf]
  %v460 = vld [vmem:[%s432 + $0x6c] sm:$0xf]
  %v461 = vld [vmem:[%s432 + $0x70] sm:$0xf]
  %v462 = vld [vmem:[%s432 + $0x74] sm:$0xf]
  %v463 = vld [vmem:[%s432 + $0x78] sm:$0xf]
  %v464 = vld [vmem:[%s432 + $0x7c] sm:$0xf]
  %v481 = vunpack.c.l.b16 %v416
  %v482 = vunpack.c.h.b16 %v416
  %v483 = vunpack.c.l.b16 %v417
  %v484 = vunpack.c.h.b16 %v417
  %v485 = vunpack.c.l.b16 %v418
  %v486 = vunpack.c.h.b16 %v418
  %v487 = vunpack.c.l.b16 %v419
  %v488 = vunpack.c.h.b16 %v419
  %v489 = vunpack.c.l.b16 %v420
  %v490 = vunpack.c.h.b16 %v420
  %v491 = vunpack.c.l.b16 %v421
  %v492 = vunpack.c.h.b16 %v421
  %v493 = vunpack.c.l.b16 %v422
  %v494 = vunpack.c.h.b16 %v422
  %v495 = vunpack.c.l.b16 %v423
  %v496 = vunpack.c.h.b16 %v423
  %v497 = vunpack.c.l.b16 %v424
  %v498 = vunpack.c.h.b16 %v424
  %v499 = vunpack.c.l.b16 %v425
  %v500 = vunpack.c.h.b16 %v425
  %v501 = vunpack.c.l.b16 %v426
  %v502 = vunpack.c.h.b16 %v426
  %v503 = vunpack.c.l.b16 %v427
  %v504 = vunpack.c.h.b16 %v427
  %v505 = vunpack.c.l.b16 %v428
  %v506 = vunpack.c.h.b16 %v428
  %v507 = vunpack.c.l.b16 %v429
  %v508 = vunpack.c.h.b16 %v429
  %v509 = vunpack.c.l.b16 %v430
  %v510 = vunpack.c.h.b16 %v430
  %v511 = vunpack.c.l.b16 %v431
  %v512 = vunpack.c.h.b16 %v431
  %v513 = vpack.c.b16 %v483, %v481
  %v514 = vpack.c.b16 %v484, %v482
  %v515 = vpack.c.b16 %v487, %v485
  %v516 = vpack.c.b16 %v488, %v486
  %v517 = vpack.c.b16 %v491, %v489
  %v518 = vpack.c.b16 %v492, %v490
  %v519 = vpack.c.b16 %v495, %v493
  %v520 = vpack.c.b16 %v496, %v494
  %v521 = vpack.c.b16 %v499, %v497
  %v522 = vpack.c.b16 %v500, %v498
  %v523 = vpack.c.b16 %v503, %v501
  %v524 = vpack.c.b16 %v504, %v502
  %v525 = vpack.c.b16 %v507, %v505
  %v526 = vpack.c.b16 %v508, %v506
  %v527 = vpack.c.b16 %v511, %v509
  %v528 = vpack.c.b16 %v512, %v510
  %v577 = vunpack.c.l.b16 %v433
  %v578 = vunpack.c.l.b16 %v434
  %v579 = vunpack.c.l.b16 %v435
  %v580 = vunpack.c.l.b16 %v436
  %v581 = vunpack.c.l.b16 %v437
  %v582 = vunpack.c.l.b16 %v438
  %v583 = vunpack.c.l.b16 %v439
  %v584 = vunpack.c.l.b16 %v440
  %v585 = vunpack.c.l.b16 %v441
  %v586 = vunpack.c.l.b16 %v442
  %v587 = vunpack.c.l.b16 %v443
  %v588 = vunpack.c.l.b16 %v444
  %v589 = vunpack.c.l.b16 %v445
  %v590 = vunpack.c.l.b16 %v446
  %v591 = vunpack.c.l.b16 %v447
  %v592 = vunpack.c.l.b16 %v448
  %v593 = vunpack.c.l.b16 %v449
  %v594 = vunpack.c.l.b16 %v450
  %v595 = vunpack.c.l.b16 %v451
  %v596 = vunpack.c.l.b16 %v452
  %v597 = vunpack.c.l.b16 %v453
  %v598 = vunpack.c.l.b16 %v454
  %v599 = vunpack.c.l.b16 %v455
  %v600 = vunpack.c.l.b16 %v456
  %v601 = vunpack.c.l.b16 %v457
  %v602 = vunpack.c.l.b16 %v458
  %v603 = vunpack.c.l.b16 %v459
  %v604 = vunpack.c.l.b16 %v460
  %v605 = vunpack.c.l.b16 %v461
  %v606 = vunpack.c.l.b16 %v462
  %v607 = vunpack.c.l.b16 %v463
  %v608 = vunpack.c.l.b16 %v464
  %v609 = vpack.c.b16 %v578, %v577
  %v610 = vpack.c.b16 %v580, %v579
  %v611 = vpack.c.b16 %v582, %v581
  %v612 = vpack.c.b16 %v584, %v583
  %v613 = vpack.c.b16 %v586, %v585
  %v614 = vpack.c.b16 %v588, %v587
  %v615 = vpack.c.b16 %v590, %v589
  %v616 = vpack.c.b16 %v592, %v591
  %v617 = vpack.c.b16 %v594, %v593
  %v618 = vpack.c.b16 %v596, %v595
  %v619 = vpack.c.b16 %v598, %v597
  %v620 = vpack.c.b16 %v600, %v599
  %v621 = vpack.c.b16 %v602, %v601
  %v622 = vpack.c.b16 %v604, %v603
  %v623 = vpack.c.b16 %v606, %v605
  %v624 = vpack.c.b16 %v608, %v607
  %641 = vmatprep.subr.bf16.mxu0 0
  %642 = vmatpush1.bf16.msra.mxu0 %v609
  %643 = vmatprep.subr.bf16.mxu0 0
  %644 = vmatpush1.bf16.msra.mxu0 %v610
  %645 = vmatprep.subr.bf16.mxu0 0
  %646 = vmatpush1.bf16.msra.mxu0 %v611
  %647 = vmatprep.subr.bf16.mxu0 0
  %648 = vmatpush1.bf16.msra.mxu0 %v612
  %649 = vmatprep.subr.bf16.mxu0 0
  %650 = vmatpush1.bf16.msra.mxu0 %v613
  %651 = vmatprep.subr.bf16.mxu0 0
  %652 = vmatpush1.bf16.msra.mxu0 %v614
  %653 = vmatprep.subr.bf16.mxu0 0
  %654 = vmatpush1.bf16.msra.mxu0 %v615
  %655 = vmatprep.subr.bf16.mxu0 0
  %656 = vmatpush1.bf16.msra.mxu0 %v616
  %657 = vmatprep.subr.bf16.mxu0 0
  %658 = vmatpush1.bf16.msra.mxu0 %v617
  %659 = vmatprep.subr.bf16.mxu0 0
  %660 = vmatpush1.bf16.msra.mxu0 %v618
  %661 = vmatprep.subr.bf16.mxu0 0
  %662 = vmatpush1.bf16.msra.mxu0 %v619
  %663 = vmatprep.subr.bf16.mxu0 0
  %664 = vmatpush1.bf16.msra.mxu0 %v620
  %665 = vmatprep.subr.bf16.mxu0 0
  %666 = vmatpush1.bf16.msra.mxu0 %v621
  %667 = vmatprep.subr.bf16.mxu0 0
  %668 = vmatpush1.bf16.msra.mxu0 %v622
  %669 = vmatprep.subr.bf16.mxu0 0
  %670 = vmatpush1.bf16.msra.mxu0 %v623
  %671 = vmatprep.subr.bf16.mxu0 0
  %672 = vmatpush1.bf16.msra.mxu0 %v624
  %673 = vmatprep.mubr.bf16.mxu0 %v514
  %674 = vmatmul.mubr.bf16.gmra.mrb[0].mxu0 %v513
  %v675 = vpop.f32.mrb[0].mxu0
  %v676 = vadd.f32 0.0, %v675
  %v677 = vpop.f32.mrb[0].mxu0
  %v678 = vpop.f32.mrb[0].mxu0
  %v679 = vadd.f32 0.0, %v678
  %v680 = vpop.f32.mrb[0].mxu0
  %681 = vmatprep.mubr.bf16.mxu0 %v516
  %682 = vmatmul.mubr.bf16.gmra.mrb[0].mxu0 %v515
  %v683 = vpop.f32.mrb[0].mxu0
  %v684 = vadd.f32 0.0, %v683
  %v685 = vpop.f32.mrb[0].mxu0
  %v686 = vpop.f32.mrb[0].mxu0
  %v687 = vadd.f32 0.0, %v686
  %v688 = vpop.f32.mrb[0].mxu0
  %689 = vmatprep.mubr.bf16.mxu0 %v518
  %690 = vmatmul.mubr.bf16.gmra.mrb[0].mxu0 %v517
  %v691 = vpop.f32.mrb[0].mxu0
  %v692 = vadd.f32 0.0, %v691
  %v693 = vpop.f32.mrb[0].mxu0
  %v694 = vpop.f32.mrb[0].mxu0
  %v695 = vadd.f32 0.0, %v694
  %v696 = vpop.f32.mrb[0].mxu0
  %697 = vmatprep.mubr.bf16.mxu0 %v520
  %698 = vmatmul.mubr.bf16.gmra.mrb[0].mxu0 %v519
  %v699 = vpop.f32.mrb[0].mxu0
  %v700 = vadd.f32 0.0, %v699
  %v701 = vpop.f32.mrb[0].mxu0
  %v702 = vpop.f32.mrb[0].mxu0
  %v703 = vadd.f32 0.0, %v702
  %v704 = vpop.f32.mrb[0].mxu0
  %705 = vmatprep.mubr.bf16.mxu0 %v522
  %706 = vmatmul.mubr.bf16.gmra.mrb[0].mxu0 %v521
  %v707 = vpop.f32.mrb[0].mxu0
  %v708 = vadd.f32 0.0, %v707
  %v709 = vpop.f32.mrb[0].mxu0
  %v710 = vpop.f32.mrb[0].mxu0
  %v711 = vadd.f32 0.0, %v710
  %v712 = vpop.f32.mrb[0].mxu0
  %713 = vmatprep.mubr.bf16.mxu0 %v524
  %714 = vmatmul.mubr.bf16.gmra.mrb[0].mxu0 %v523
  %v715 = vpop.f32.mrb[0].mxu0
  %v716 = vadd.f32 0.0, %v715
  %v717 = vpop.f32.mrb[0].mxu0
  %v718 = vpop.f32.mrb[0].mxu0
  %v719 = vadd.f32 0.0, %v718
  %v720 = vpop.f32.mrb[0].mxu0
  %721 = vmatprep.mubr.bf16.mxu0 %v526
  %722 = vmatmul.mubr.bf16.gmra.mrb[0].mxu0 %v525
  %v723 = vpop.f32.mrb[0].mxu0
  %v724 = vadd.f32 0.0, %v723
  %v725 = vpop.f32.mrb[0].mxu0
  %v726 = vpop.f32.mrb[0].mxu0
  %v727 = vadd.f32 0.0, %v726
  %v728 = vpop.f32.mrb[0].mxu0
  %729 = vmatprep.mubr.bf16.mxu0 %v528
  %730 = vmatmul.mubr.bf16.gmra.mrb[0].mxu0 %v527
  %v731 = vpop.f32.mrb[0].mxu0
  %v732 = vadd.f32 0.0, %v731
  %v733 = vpop.f32.mrb[0].mxu0
  %v734 = vpop.f32.mrb[0].mxu0
  %v735 = vadd.f32 0.0, %v734
  %v736 = vpop.f32.mrb[0].mxu0
  %737 = vdwg.mxu0
  %s738 = scalar_lea.vmem [#allocation2], 128
  %739 = vst [vmem:[%s738] sm:$0xff] %v676
  %740 = vst [vmem:[%s738 + $0x8] sm:$0xff] %v679
  %741 = vst [vmem:[%s738 + $0x10] sm:$0xff] %v684
  %742 = vst [vmem:[%s738 + $0x18] sm:$0xff] %v687
  %743 = vst [vmem:[%s738 + $0x20] sm:$0xff] %v692
  %744 = vst [vmem:[%s738 + $0x28] sm:$0xff] %v695
  %745 = vst [vmem:[%s738 + $0x30] sm:$0xff] %v700
  %746 = vst [vmem:[%s738 + $0x38] sm:$0xff] %v703
  %747 = vst [vmem:[%s738 + $0x40] sm:$0xff] %v708
  %748 = vst [vmem:[%s738 + $0x48] sm:$0xff] %v711
  %749 = vst [vmem:[%s738 + $0x50] sm:$0xff] %v716
  %750 = vst [vmem:[%s738 + $0x58] sm:$0xff] %v719
  %751 = vst [vmem:[%s738 + $0x60] sm:$0xff] %v724
  %752 = vst [vmem:[%s738 + $0x68] sm:$0xff] %v727
  %753 = vst [vmem:[%s738 + $0x70] sm:$0xff] %v732
  %754 = vst [vmem:[%s738 + $0x78] sm:$0xff] %v735
  %v755 = vadd.f32 %v676, %v679
  %v756 = vadd.f32 %v755, %v684
  %v757 = vadd.f32 %v756, %v687
  %v758 = vadd.f32 %v757, %v692
  %v759 = vadd.f32 %v758, %v695
  %v760 = vadd.f32 %v759, %v700
  %v761 = vadd.f32 %v760, %v703
  %v762 = vadd.f32 %v761, %v708
  %v763 = vadd.f32 %v762, %v711
  %v764 = vadd.f32 %v763, %v716
  %v765 = vadd.f32 %v764, %v719
  %v766 = vadd.f32 %v765, %v724
  %v767 = vadd.f32 %v766, %v727
  %v768 = vadd.f32 %v767, %v732
  %v769 = vadd.f32 %v768, %v735
  %v770 = vrot.slane %v769, 4
  %v771 = vadd.f32 %v769, %v770
  %v772 = vrot.slane %v771, 2
  %v773 = vadd.f32 %v771, %v772
  %v774 = vrot.slane %v773, 1
  %v775 = vadd.f32 %v773, %v774
  %v776 = vadd.f32 %v376, %v775
  %v777 = vmul.f32 %v676, %v676
  %v778 = vmul.f32 %v679, %v679
  %v779 = vmul.f32 %v684, %v684
  %v780 = vmul.f32 %v687, %v687
  %v781 = vmul.f32 %v692, %v692
  %v782 = vmul.f32 %v695, %v695
  %v783 = vmul.f32 %v700, %v700
  %v784 = vmul.f32 %v703, %v703
  %v785 = vmul.f32 %v708, %v708
  %v786 = vmul.f32 %v711, %v711
  %v787 = vmul.f32 %v716, %v716
  %v788 = vmul.f32 %v719, %v719
  %v789 = vmul.f32 %v724, %v724
  %v790 = vmul.f32 %v727, %v727
  %v791 = vmul.f32 %v732, %v732
  %v792 = vmul.f32 %v735, %v735
  %v793 = vadd.f32 %v777, %v778
  %v794 = vadd.f32 %v793, %v779
  %v795 = vadd.f32 %v794, %v780
  %v796 = vadd.f32 %v795, %v781
  %v797 = vadd.f32 %v796, %v782
  %v798 = vadd.f32 %v797, %v783
  %v799 = vadd.f32 %v798, %v784
  %v800 = vadd.f32 %v799, %v785
  %v801 = vadd.f32 %v800, %v786
  %v802 = vadd.f32 %v801, %v787
  %v803 = vadd.f32 %v802, %v788
  %v804 = vadd.f32 %v803, %v789
  %v805 = vadd.f32 %v804, %v790
  %v806 = vadd.f32 %v805, %v791
  %v807 = vadd.f32 %v806, %v792
  %v808 = vrot.slane %v807, 4
  %v809 = vadd.f32 %v807, %v808
  %v810 = vrot.slane %v809, 2
  %v811 = vadd.f32 %v809, %v810
  %v812 = vrot.slane %v811, 1
  %v813 = vadd.f32 %v811, %v812
  %v814 = vadd.f32 %v414, %v813
  %s815 = scalar_lea.vmem %s0, 256
  %v816 = vld [vmem:[%s815] sm:$0xff]
  %v817 = vld [vmem:[%s815 + $0x8] sm:$0xff]
  %v818 = vld [vmem:[%s815 + $0x10] sm:$0xff]
  %v819 = vld [vmem:[%s815 + $0x18] sm:$0xff]
  %v820 = vld [vmem:[%s815 + $0x20] sm:$0xff]
  %v821 = vld [vmem:[%s815 + $0x28] sm:$0xff]
  %v822 = vld [vmem:[%s815 + $0x30] sm:$0xff]
  %v823 = vld [vmem:[%s815 + $0x38] sm:$0xff]
  %v824 = vld [vmem:[%s815 + $0x40] sm:$0xff]
  %v825 = vld [vmem:[%s815 + $0x48] sm:$0xff]
  %v826 = vld [vmem:[%s815 + $0x50] sm:$0xff]
  %v827 = vld [vmem:[%s815 + $0x58] sm:$0xff]
  %v828 = vld [vmem:[%s815 + $0x60] sm:$0xff]
  %v829 = vld [vmem:[%s815 + $0x68] sm:$0xff]
  %v830 = vld [vmem:[%s815 + $0x70] sm:$0xff]
  %v831 = vld [vmem:[%s815 + $0x78] sm:$0xff]
  %s832 = scalar_lea.vmem %s1, 256
  %v833 = vld [vmem:[%s832] sm:$0xf]
  %v834 = vld [vmem:[%s832 + $0x4] sm:$0xf]
  %v835 = vld [vmem:[%s832 + $0x8] sm:$0xf]
  %v836 = vld [vmem:[%s832 + $0xc] sm:$0xf]
  %v837 = vld [vmem:[%s832 + $0x10] sm:$0xf]
  %v838 = vld [vmem:[%s832 + $0x14] sm:$0xf]
  %v839 = vld [vmem:[%s832 + $0x18] sm:$0xf]
  %v840 = vld [vmem:[%s832 + $0x1c] sm:$0xf]
  %v841 = vld [vmem:[%s832 + $0x20] sm:$0xf]
  %v842 = vld [vmem:[%s832 + $0x24] sm:$0xf]
  %v843 = vld [vmem:[%s832 + $0x28] sm:$0xf]
  %v844 = vld [vmem:[%s832 + $0x2c] sm:$0xf]
  %v845 = vld [vmem:[%s832 + $0x30] sm:$0xf]
  %v846 = vld [vmem:[%s832 + $0x34] sm:$0xf]
  %v847 = vld [vmem:[%s832 + $0x38] sm:$0xf]
  %v848 = vld [vmem:[%s832 + $0x3c] sm:$0xf]
  %v849 = vld [vmem:[%s832 + $0x40] sm:$0xf]
  %v850 = vld [vmem:[%s832 + $0x44] sm:$0xf]
  %v851 = vld [vmem:[%s832 + $0x48] sm:$0xf]
  %v852 = vld [vmem:[%s832 + $0x4c] sm:$0xf]
  %v853 = vld [vmem:[%s832 + $0x50] sm:$0xf]
  %v854 = vld [vmem:[%s832 + $0x54] sm:$0xf]
  %v855 = vld [vmem:[%s832 + $0x58] sm:$0xf]
  %v856 = vld [vmem:[%s832 + $0x5c] sm:$0xf]
  %v857 = vld [vmem:[%s832 + $0x60] sm:$0xf]
  %v858 = vld [vmem:[%s832 + $0x64] sm:$0xf]
  %v859 = vld [vmem:[%s832 + $0x68] sm:$0xf]
  %v860 = vld [vmem:[%s832 + $0x6c] sm:$0xf]
  %v861 = vld [vmem:[%s832 + $0x70] sm:$0xf]
  %v862 = vld [vmem:[%s832 + $0x74] sm:$0xf]
  %v863 = vld [vmem:[%s832 + $0x78] sm:$0xf]
  %v864 = vld [vmem:[%s832 + $0x7c] sm:$0xf]
  %v881 = vunpack.c.l.b16 %v816
  %v882 = vunpack.c.h.b16 %v816
  %v883 = vunpack.c.l.b16 %v817
  %v884 = vunpack.c.h.b16 %v817
  %v885 = vunpack.c.l.b16 %v818
  %v886 = vunpack.c.h.b16 %v818
  %v887 = vunpack.c.l.b16 %v819
  %v888 = vunpack.c.h.b16 %v819
  %v889 = vunpack.c.l.b16 %v820
  %v890 = vunpack.c.h.b16 %v820
  %v891 = vunpack.c.l.b16 %v821
  %v892 = vunpack.c.h.b16 %v821
  %v893 = vunpack.c.l.b16 %v822
  %v894 = vunpack.c.h.b16 %v822
  %v895 = vunpack.c.l.b16 %v823
  %v896 = vunpack.c.h.b16 %v823
  %v897 = vunpack.c.l.b16 %v824
  %v898 = vunpack.c.h.b16 %v824
  %v899 = vunpack.c.l.b16 %v825
  %v900 = vunpack.c.h.b16 %v825
  %v901 = vunpack.c.l.b16 %v826
  %v902 = vunpack.c.h.b16 %v826
  %v903 = vunpack.c.l.b16 %v827
  %v904 = vunpack.c.h.b16 %v827
  %v905 = vunpack.c.l.b16 %v828
  %v906 = vunpack.c.h.b16 %v828
  %v907 = vunpack.c.l.b16 %v829
  %v908 = vunpack.c.h.b16 %v829
  %v909 = vunpack.c.l.b16 %v830
  %v910 = vunpack.c.h.b16 %v830
  %v911 = vunpack.c.l.b16 %v831
  %v912 = vunpack.c.h.b16 %v831
  %v913 = vpack.c.b16 %v883, %v881
  %v914 = vpack.c.b16 %v884, %v882
  %v915 = vpack.c.b16 %v887, %v885
  %v916 = vpack.c.b16 %v888, %v886
  %v917 = vpack.c.b16 %v891, %v889
  %v918 = vpack.c.b16 %v892, %v890
  %v919 = vpack.c.b16 %v895, %v893
  %v920 = vpack.c.b16 %v896, %v894
  %v921 = vpack.c.b16 %v899, %v897
  %v922 = vpack.c.b16 %v900, %v898
  %v923 = vpack.c.b16 %v903, %v901
  %v924 = vpack.c.b16 %v904, %v902
  %v925 = vpack.c.b16 %v907, %v905
  %v926 = vpack.c.b16 %v908, %v906
  %v927 = vpack.c.b16 %v911, %v909
  %v928 = vpack.c.b16 %v912, %v910
  %v977 = vunpack.c.l.b16 %v833
  %v978 = vunpack.c.l.b16 %v834
  %v979 = vunpack.c.l.b16 %v835
  %v980 = vunpack.c.l.b16 %v836
  %v981 = vunpack.c.l.b16 %v837
  %v982 = vunpack.c.l.b16 %v838
  %v983 = vunpack.c.l.b16 %v839
  %v984 = vunpack.c.l.b16 %v840
  %v985 = vunpack.c.l.b16 %v841
  %v986 = vunpack.c.l.b16 %v842
  %v987 = vunpack.c.l.b16 %v843
  %v988 = vunpack.c.l.b16 %v844
  %v989 = vunpack.c.l.b16 %v845
  %v990 = vunpack.c.l.b16 %v846
  %v991 = vunpack.c.l.b16 %v847
  %v992 = vunpack.c.l.b16 %v848
  %v993 = vunpack.c.l.b16 %v849
  %v994 = vunpack.c.l.b16 %v850
  %v995 = vunpack.c.l.b16 %v851
  %v996 = vunpack.c.l.b16 %v852
  %v997 = vunpack.c.l.b16 %v853
  %v998 = vunpack.c.l.b16 %v854
  %v999 = vunpack.c.l.b16 %v855
  %v1000 = vunpack.c.l.b16 %v856
  %v1001 = vunpack.c.l.b16 %v857
  %v1002 = vunpack.c.l.b16 %v858
  %v1003 = vunpack.c.l.b16 %v859
  %v1004 = vunpack.c.l.b16 %v860
  %v1005 = vunpack.c.l.b16 %v861
  %v1006 = vunpack.c.l.b16 %v862
  %v1007 = vunpack.c.l.b16 %v863
  %v1008 = vunpack.c.l.b16 %v864
  %v1009 = vpack.c.b16 %v978, %v977
  %v1010 = vpack.c.b16 %v980, %v979
  %v1011 = vpack.c.b16 %v982, %v981
  %v1012 = vpack.c.b16 %v984, %v983
  %v1013 = vpack.c.b16 %v986, %v985
  %v1014 = vpack.c.b16 %v988, %v987
  %v1015 = vpack.c.b16 %v990, %v989
  %v1016 = vpack.c.b16 %v992, %v991
  %v1017 = vpack.c.b16 %v994, %v993
  %v1018 = vpack.c.b16 %v996, %v995
  %v1019 = vpack.c.b16 %v998, %v997
  %v1020 = vpack.c.b16 %v1000, %v999
  %v1021 = vpack.c.b16 %v1002, %v1001
  %v1022 = vpack.c.b16 %v1004, %v1003
  %v1023 = vpack.c.b16 %v1006, %v1005
  %v1024 = vpack.c.b16 %v1008, %v1007
  %1041 = vmatprep.subr.bf16.mxu0 0
  %1042 = vmatpush1.bf16.msra.mxu0 %v1009
  %1043 = vmatprep.subr.bf16.mxu0 0
  %1044 = vmatpush1.bf16.msra.mxu0 %v1010
  %1045 = vmatprep.subr.bf16.mxu0 0
  %1046 = vmatpush1.bf16.msra.mxu0 %v1011
  %1047 = vmatprep.subr.bf16.mxu0 0
  %1048 = vmatpush1.bf16.msra.mxu0 %v1012
  %1049 = vmatprep.subr.bf16.mxu0 0
  %1050 = vmatpush1.bf16.msra.mxu0 %v1013
  %1051 = vmatprep.subr.bf16.mxu0 0
  %1052 = vmatpush1.bf16.msra.mxu0 %v1014
  %1053 = vmatprep.subr.bf16.mxu0 0
  %1054 = vmatpush1.bf16.msra.mxu0 %v1015
  %1055 = vmatprep.subr.bf16.mxu0 0
  %1056 = vmatpush1.bf16.msra.mxu0 %v1016
  %1057 = vmatprep.subr.bf16.mxu0 0
  %1058 = vmatpush1.bf16.msra.mxu0 %v1017
  %1059 = vmatprep.subr.bf16.mxu0 0
  %1060 = vmatpush1.bf16.msra.mxu0 %v1018
  %1061 = vmatprep.subr.bf16.mxu0 0
  %1062 = vmatpush1.bf16.msra.mxu0 %v1019
  %1063 = vmatprep.subr.bf16.mxu0 0
  %1064 = vmatpush1.bf16.msra.mxu0 %v1020
  %1065 = vmatprep.subr.bf16.mxu0 0
  %1066 = vmatpush1.bf16.msra.mxu0 %v1021
  %1067 = vmatprep.subr.bf16.mxu0 0
  %1068 = vmatpush1.bf16.msra.mxu0 %v1022
  %1069 = vmatprep.subr.bf16.mxu0 0
  %1070 = vmatpush1.bf16.msra.mxu0 %v1023
  %1071 = vmatprep.subr.bf16.mxu0 0
  %1072 = vmatpush1.bf16.msra.mxu0 %v1024
  %1073 = vmatprep.mubr.bf16.mxu0 %v914
  %1074 = vmatmul.mubr.bf16.gmra.mrb[0].mxu0 %v913
  %v1075 = vpop.f32.mrb[0].mxu0
  %v1076 = vadd.f32 0.0, %v1075
  %v1077 = vpop.f32.mrb[0].mxu0
  %v1078 = vpop.f32.mrb[0].mxu0
  %v1079 = vadd.f32 0.0, %v1078
  %v1080 = vpop.f32.mrb[0].mxu0
  %1081 = vmatprep.mubr.bf16.mxu0 %v916
  %1082 = vmatmul.mubr.bf16.gmra.mrb[0].mxu0 %v915
  %v1083 = vpop.f32.mrb[0].mxu0
  %v1084 = vadd.f32 0.0, %v1083
  %v1085 = vpop.f32.mrb[0].mxu0
  %v1086 = vpop.f32.mrb[0].mxu0
  %v1087 = vadd.f32 0.0, %v1086
  %v1088 = vpop.f32.mrb[0].mxu0
  %1089 = vmatprep.mubr.bf16.mxu0 %v918
  %1090 = vmatmul.mubr.bf16.gmra.mrb[0].mxu0 %v917
  %v1091 = vpop.f32.mrb[0].mxu0
  %v1092 = vadd.f32 0.0, %v1091
  %v1093 = vpop.f32.mrb[0].mxu0
  %v1094 = vpop.f32.mrb[0].mxu0
  %v1095 = vadd.f32 0.0, %v1094
  %v1096 = vpop.f32.mrb[0].mxu0
  %1097 = vmatprep.mubr.bf16.mxu0 %v920
  %1098 = vmatmul.mubr.bf16.gmra.mrb[0].mxu0 %v919
  %v1099 = vpop.f32.mrb[0].mxu0
  %v1100 = vadd.f32 0.0, %v1099
  %v1101 = vpop.f32.mrb[0].mxu0
  %v1102 = vpop.f32.mrb[0].mxu0
  %v1103 = vadd.f32 0.0, %v1102
  %v1104 = vpop.f32.mrb[0].mxu0
  %1105 = vmatprep.mubr.bf16.mxu0 %v922
  %1106 = vmatmul.mubr.bf16.gmra.mrb[0].mxu0 %v921
  %v1107 = vpop.f32.mrb[0].mxu0
  %v1108 = vadd.f32 0.0, %v1107
  %v1109 = vpop.f32.mrb[0].mxu0
  %v1110 = vpop.f32.mrb[0].mxu0
  %v1111 = vadd.f32 0.0, %v1110
  %v1112 = vpop.f32.mrb[0].mxu0
  %1113 = vmatprep.mubr.bf16.mxu0 %v924
  %1114 = vmatmul.mubr.bf16.gmra.mrb[0].mxu0 %v923
  %v1115 = vpop.f32.mrb[0].mxu0
  %v1116 = vadd.f32 0.0, %v1115
  %v1117 = vpop.f32.mrb[0].mxu0
  %v1118 = vpop.f32.mrb[0].mxu0
  %v1119 = vadd.f32 0.0, %v1118
  %v1120 = vpop.f32.mrb[0].mxu0
  %1121 = vmatprep.mubr.bf16.mxu0 %v926
  %1122 = vmatmul.mubr.bf16.gmra.mrb[0].mxu0 %v925
  %v1123 = vpop.f32.mrb[0].mxu0
  %v1124 = vadd.f32 0.0, %v1123
  %v1125 = vpop.f32.mrb[0].mxu0
  %v1126 = vpop.f32.mrb[0].mxu0
  %v1127 = vadd.f32 0.0, %v1126
  %v1128 = vpop.f32.mrb[0].mxu0
  %1129 = vmatprep.mubr.bf16.mxu0 %v928
  %1130 = vmatmul.mubr.bf16.gmra.mrb[0].mxu0 %v927
  %v1131 = vpop.f32.mrb[0].mxu0
  %v1132 = vadd.f32 0.0, %v1131
  %v1133 = vpop.f32.mrb[0].mxu0
  %v1134 = vpop.f32.mrb[0].mxu0
  %v1135 = vadd.f32 0.0, %v1134
  %v1136 = vpop.f32.mrb[0].mxu0
  %1137 = vdwg.mxu0
  %s1138 = scalar_lea.vmem [#allocation2], 256
  %1139 = vst [vmem:[%s1138] sm:$0xff] %v1076
  %1140 = vst [vmem:[%s1138 + $0x8] sm:$0xff] %v1079
  %1141 = vst [vmem:[%s1138 + $0x10] sm:$0xff] %v1084
  %1142 = vst [vmem:[%s1138 + $0x18] sm:$0xff] %v1087
  %1143 = vst [vmem:[%s1138 + $0x20] sm:$0xff] %v1092
  %1144 = vst [vmem:[%s1138 + $0x28] sm:$0xff] %v1095
  %1145 = vst [vmem:[%s1138 + $0x30] sm:$0xff] %v1100
  %1146 = vst [vmem:[%s1138 + $0x38] sm:$0xff] %v1103
  %1147 = vst [vmem:[%s1138 + $0x40] sm:$0xff] %v1108
  %1148 = vst [vmem:[%s1138 + $0x48] sm:$0xff] %v1111
  %1149 = vst [vmem:[%s1138 + $0x50] sm:$0xff] %v1116
  %1150 = vst [vmem:[%s1138 + $0x58] sm:$0xff] %v1119
  %1151 = vst [vmem:[%s1138 + $0x60] sm:$0xff] %v1124
  %1152 = vst [vmem:[%s1138 + $0x68] sm:$0xff] %v1127
  %1153 = vst [vmem:[%s1138 + $0x70] sm:$0xff] %v1132
  %1154 = vst [vmem:[%s1138 + $0x78] sm:$0xff] %v1135
  %v1155 = vadd.f32 %v1076, %v1079
  %v1156 = vadd.f32 %v1155, %v1084
  %v1157 = vadd.f32 %v1156, %v1087
  %v1158 = vadd.f32 %v1157, %v1092
  %v1159 = vadd.f32 %v1158, %v1095
  %v1160 = vadd.f32 %v1159, %v1100
  %v1161 = vadd.f32 %v1160, %v1103
  %v1162 = vadd.f32 %v1161, %v1108
  %v1163 = vadd.f32 %v1162, %v1111
  %v1164 = vadd.f32 %v1163, %v1116
  %v1165 = vadd.f32 %v1164, %v1119
  %v1166 = vadd.f32 %v1165, %v1124
  %v1167 = vadd.f32 %v1166, %v1127
  %v1168 = vadd.f32 %v1167, %v1132
  %v1169 = vadd.f32 %v1168, %v1135
  %v1170 = vrot.slane %v1169, 4
  %v1171 = vadd.f32 %v1169, %v1170
  %v1172 = vrot.slane %v1171, 2
  %v1173 = vadd.f32 %v1171, %v1172
  %v1174 = vrot.slane %v1173, 1
  %v1175 = vadd.f32 %v1173, %v1174
  %v1176 = vadd.f32 %v776, %v1175
  %v1177 = vmul.f32 %v1076, %v1076
  %v1178 = vmul.f32 %v1079, %v1079
  %v1179 = vmul.f32 %v1084, %v1084
  %v1180 = vmul.f32 %v1087, %v1087
  %v1181 = vmul.f32 %v1092, %v1092
  %v1182 = vmul.f32 %v1095, %v1095
  %v1183 = vmul.f32 %v1100, %v1100
  %v1184 = vmul.f32 %v1103, %v1103
  %v1185 = vmul.f32 %v1108, %v1108
  %v1186 = vmul.f32 %v1111, %v1111
  %v1187 = vmul.f32 %v1116, %v1116
  %v1188 = vmul.f32 %v1119, %v1119
  %v1189 = vmul.f32 %v1124, %v1124
  %v1190 = vmul.f32 %v1127, %v1127
  %v1191 = vmul.f32 %v1132, %v1132
  %v1192 = vmul.f32 %v1135, %v1135
  %v1193 = vadd.f32 %v1177, %v1178
  %v1194 = vadd.f32 %v1193, %v1179
  %v1195 = vadd.f32 %v1194, %v1180
  %v1196 = vadd.f32 %v1195, %v1181
  %v1197 = vadd.f32 %v1196, %v1182
  %v1198 = vadd.f32 %v1197, %v1183
  %v1199 = vadd.f32 %v1198, %v1184
  %v1200 = vadd.f32 %v1199, %v1185
  %v1201 = vadd.f32 %v1200, %v1186
  %v1202 = vadd.f32 %v1201, %v1187
  %v1203 = vadd.f32 %v1202, %v1188
  %v1204 = vadd.f32 %v1203, %v1189
  %v1205 = vadd.f32 %v1204, %v1190
  %v1206 = vadd.f32 %v1205, %v1191
  %v1207 = vadd.f32 %v1206, %v1192
  %v1208 = vrot.slane %v1207, 4
  %v1209 = vadd.f32 %v1207, %v1208
  %v1210 = vrot.slane %v1209, 2
  %v1211 = vadd.f32 %v1209, %v1210
  %v1212 = vrot.slane %v1211, 1
  %v1213 = vadd.f32 %v1211, %v1212
  %v1214 = vadd.f32 %v814, %v1213
  %s1215 = scalar_lea.vmem %s0, 384
  %v1216 = vld [vmem:[%s1215] sm:$0xff]
  %v1217 = vld [vmem:[%s1215 + $0x8] sm:$0xff]
  %v1218 = vld [vmem:[%s1215 + $0x10] sm:$0xff]
  %v1219 = vld [vmem:[%s1215 + $0x18] sm:$0xff]
  %v1220 = vld [vmem:[%s1215 + $0x20] sm:$0xff]
  %v1221 = vld [vmem:[%s1215 + $0x28] sm:$0xff]
  %v1222 = vld [vmem:[%s1215 + $0x30] sm:$0xff]
  %v1223 = vld [vmem:[%s1215 + $0x38] sm:$0xff]
  %v1224 = vld [vmem:[%s1215 + $0x40] sm:$0xff]
  %v1225 = vld [vmem:[%s1215 + $0x48] sm:$0xff]
  %v1226 = vld [vmem:[%s1215 + $0x50] sm:$0xff]
  %v1227 = vld [vmem:[%s1215 + $0x58] sm:$0xff]
  %v1228 = vld [vmem:[%s1215 + $0x60] sm:$0xff]
  %v1229 = vld [vmem:[%s1215 + $0x68] sm:$0xff]
  %v1230 = vld [vmem:[%s1215 + $0x70] sm:$0xff]
  %v1231 = vld [vmem:[%s1215 + $0x78] sm:$0xff]
  %s1232 = scalar_lea.vmem %s1, 384
  %v1233 = vld [vmem:[%s1232] sm:$0xf]
  %v1234 = vld [vmem:[%s1232 + $0x4] sm:$0xf]
  %v1235 = vld [vmem:[%s1232 + $0x8] sm:$0xf]
  %v1236 = vld [vmem:[%s1232 + $0xc] sm:$0xf]
  %v1237 = vld [vmem:[%s1232 + $0x10] sm:$0xf]
  %v1238 = vld [vmem:[%s1232 + $0x14] sm:$0xf]
  %v1239 = vld [vmem:[%s1232 + $0x18] sm:$0xf]
  %v1240 = vld [vmem:[%s1232 + $0x1c] sm:$0xf]
  %v1241 = vld [vmem:[%s1232 + $0x20] sm:$0xf]
  %v1242 = vld [vmem:[%s1232 + $0x24] sm:$0xf]
  %v1243 = vld [vmem:[%s1232 + $0x28] sm:$0xf]
  %v1244 = vld [vmem:[%s1232 + $0x2c] sm:$0xf]
  %v1245 = vld [vmem:[%s1232 + $0x30] sm:$0xf]
  %v1246 = vld [vmem:[%s1232 + $0x34] sm:$0xf]
  %v1247 = vld [vmem:[%s1232 + $0x38] sm:$0xf]
  %v1248 = vld [vmem:[%s1232 + $0x3c] sm:$0xf]
  %v1249 = vld [vmem:[%s1232 + $0x40] sm:$0xf]
  %v1250 = vld [vmem:[%s1232 + $0x44] sm:$0xf]
  %v1251 = vld [vmem:[%s1232 + $0x48] sm:$0xf]
  %v1252 = vld [vmem:[%s1232 + $0x4c] sm:$0xf]
  %v1253 = vld [vmem:[%s1232 + $0x50] sm:$0xf]
  %v1254 = vld [vmem:[%s1232 + $0x54] sm:$0xf]
  %v1255 = vld [vmem:[%s1232 + $0x58] sm:$0xf]
  %v1256 = vld [vmem:[%s1232 + $0x5c] sm:$0xf]
  %v1257 = vld [vmem:[%s1232 + $0x60] sm:$0xf]
  %v1258 = vld [vmem:[%s1232 + $0x64] sm:$0xf]
  %v1259 = vld [vmem:[%s1232 + $0x68] sm:$0xf]
  %v1260 = vld [vmem:[%s1232 + $0x6c] sm:$0xf]
  %v1261 = vld [vmem:[%s1232 + $0x70] sm:$0xf]
  %v1262 = vld [vmem:[%s1232 + $0x74] sm:$0xf]
  %v1263 = vld [vmem:[%s1232 + $0x78] sm:$0xf]
  %v1264 = vld [vmem:[%s1232 + $0x7c] sm:$0xf]
  %v1281 = vunpack.c.l.b16 %v1216
  %v1282 = vunpack.c.h.b16 %v1216
  %v1283 = vunpack.c.l.b16 %v1217
  %v1284 = vunpack.c.h.b16 %v1217
  %v1285 = vunpack.c.l.b16 %v1218
  %v1286 = vunpack.c.h.b16 %v1218
  %v1287 = vunpack.c.l.b16 %v1219
  %v1288 = vunpack.c.h.b16 %v1219
  %v1289 = vunpack.c.l.b16 %v1220
  %v1290 = vunpack.c.h.b16 %v1220
  %v1291 = vunpack.c.l.b16 %v1221
  %v1292 = vunpack.c.h.b16 %v1221
  %v1293 = vunpack.c.l.b16 %v1222
  %v1294 = vunpack.c.h.b16 %v1222
  %v1295 = vunpack.c.l.b16 %v1223
  %v1296 = vunpack.c.h.b16 %v1223
  %v1297 = vunpack.c.l.b16 %v1224
  %v1298 = vunpack.c.h.b16 %v1224
  %v1299 = vunpack.c.l.b16 %v1225
  %v1300 = vunpack.c.h.b16 %v1225
  %v1301 = vunpack.c.l.b16 %v1226
  %v1302 = vunpack.c.h.b16 %v1226
  %v1303 = vunpack.c.l.b16 %v1227
  %v1304 = vunpack.c.h.b16 %v1227
  %v1305 = vunpack.c.l.b16 %v1228
  %v1306 = vunpack.c.h.b16 %v1228
  %v1307 = vunpack.c.l.b16 %v1229
  %v1308 = vunpack.c.h.b16 %v1229
  %v1309 = vunpack.c.l.b16 %v1230
  %v1310 = vunpack.c.h.b16 %v1230
  %v1311 = vunpack.c.l.b16 %v1231
  %v1312 = vunpack.c.h.b16 %v1231
  %v1313 = vpack.c.b16 %v1283, %v1281
  %v1314 = vpack.c.b16 %v1284, %v1282
  %v1315 = vpack.c.b16 %v1287, %v1285
  %v1316 = vpack.c.b16 %v1288, %v1286
  %v1317 = vpack.c.b16 %v1291, %v1289
  %v1318 = vpack.c.b16 %v1292, %v1290
  %v1319 = vpack.c.b16 %v1295, %v1293
  %v1320 = vpack.c.b16 %v1296, %v1294
  %v1321 = vpack.c.b16 %v1299, %v1297
  %v1322 = vpack.c.b16 %v1300, %v1298
  %v1323 = vpack.c.b16 %v1303, %v1301
  %v1324 = vpack.c.b16 %v1304, %v1302
  %v1325 = vpack.c.b16 %v1307, %v1305
  %v1326 = vpack.c.b16 %v1308, %v1306
  %v1327 = vpack.c.b16 %v1311, %v1309
  %v1328 = vpack.c.b16 %v1312, %v1310
  %v1377 = vunpack.c.l.b16 %v1233
  %v1378 = vunpack.c.l.b16 %v1234
  %v1379 = vunpack.c.l.b16 %v1235
  %v1380 = vunpack.c.l.b16 %v1236
  %v1381 = vunpack.c.l.b16 %v1237
  %v1382 = vunpack.c.l.b16 %v1238
  %v1383 = vunpack.c.l.b16 %v1239
  %v1384 = vunpack.c.l.b16 %v1240
  %v1385 = vunpack.c.l.b16 %v1241
  %v1386 = vunpack.c.l.b16 %v1242
  %v1387 = vunpack.c.l.b16 %v1243
  %v1388 = vunpack.c.l.b16 %v1244
  %v1389 = vunpack.c.l.b16 %v1245
  %v1390 = vunpack.c.l.b16 %v1246
  %v1391 = vunpack.c.l.b16 %v1247
  %v1392 = vunpack.c.l.b16 %v1248
  %v1393 = vunpack.c.l.b16 %v1249
  %v1394 = vunpack.c.l.b16 %v1250
  %v1395 = vunpack.c.l.b16 %v1251
  %v1396 = vunpack.c.l.b16 %v1252
  %v1397 = vunpack.c.l.b16 %v1253
  %v1398 = vunpack.c.l.b16 %v1254
  %v1399 = vunpack.c.l.b16 %v1255
  %v1400 = vunpack.c.l.b16 %v1256
  %v1401 = vunpack.c.l.b16 %v1257
  %v1402 = vunpack.c.l.b16 %v1258
  %v1403 = vunpack.c.l.b16 %v1259
  %v1404 = vunpack.c.l.b16 %v1260
  %v1405 = vunpack.c.l.b16 %v1261
  %v1406 = vunpack.c.l.b16 %v1262
  %v1407 = vunpack.c.l.b16 %v1263
  %v1408 = vunpack.c.l.b16 %v1264
  %v1409 = vpack.c.b16 %v1378, %v1377
  %v1410 = vpack.c.b16 %v1380, %v1379
  %v1411 = vpack.c.b16 %v1382, %v1381
  %v1412 = vpack.c.b16 %v1384, %v1383
  %v1413 = vpack.c.b16 %v1386, %v1385
  %v1414 = vpack.c.b16 %v1388, %v1387
  %v1415 = vpack.c.b16 %v1390, %v1389
  %v1416 = vpack.c.b16 %v1392, %v1391
  %v1417 = vpack.c.b16 %v1394, %v1393
  %v1418 = vpack.c.b16 %v1396, %v1395
  %v1419 = vpack.c.b16 %v1398, %v1397
  %v1420 = vpack.c.b16 %v1400, %v1399
  %v1421 = vpack.c.b16 %v1402, %v1401
  %v1422 = vpack.c.b16 %v1404, %v1403
  %v1423 = vpack.c.b16 %v1406, %v1405
  %v1424 = vpack.c.b16 %v1408, %v1407
  %1441 = vmatprep.subr.bf16.mxu0 0
  %1442 = vmatpush1.bf16.msra.mxu0 %v1409
  %1443 = vmatprep.subr.bf16.mxu0 0
  %1444 = vmatpush1.bf16.msra.mxu0 %v1410
  %1445 = vmatprep.subr.bf16.mxu0 0
  %1446 = vmatpush1.bf16.msra.mxu0 %v1411
  %1447 = vmatprep.subr.bf16.mxu0 0
  %1448 = vmatpush1.bf16.msra.mxu0 %v1412
  %1449 = vmatprep.subr.bf16.mxu0 0
  %1450 = vmatpush1.bf16.msra.mxu0 %v1413
  %1451 = vmatprep.subr.bf16.mxu0 0
  %1452 = vmatpush1.bf16.msra.mxu0 %v1414
  %1453 = vmatprep.subr.bf16.mxu0 0
  %1454 = vmatpush1.bf16.msra.mxu0 %v1415
  %1455 = vmatprep.subr.bf16.mxu0 0
  %1456 = vmatpush1.bf16.msra.mxu0 %v1416
  %1457 = vmatprep.subr.bf16.mxu0 0
  %1458 = vmatpush1.bf16.msra.mxu0 %v1417
  %1459 = vmatprep.subr.bf16.mxu0 0
  %1460 = vmatpush1.bf16.msra.mxu0 %v1418
  %1461 = vmatprep.subr.bf16.mxu0 0
  %1462 = vmatpush1.bf16.msra.mxu0 %v1419
  %1463 = vmatprep.subr.bf16.mxu0 0
  %1464 = vmatpush1.bf16.msra.mxu0 %v1420
  %1465 = vmatprep.subr.bf16.mxu0 0
  %1466 = vmatpush1.bf16.msra.mxu0 %v1421
  %1467 = vmatprep.subr.bf16.mxu0 0
  %1468 = vmatpush1.bf16.msra.mxu0 %v1422
  %1469 = vmatprep.subr.bf16.mxu0 0
  %1470 = vmatpush1.bf16.msra.mxu0 %v1423
  %1471 = vmatprep.subr.bf16.mxu0 0
  %1472 = vmatpush1.bf16.msra.mxu0 %v1424
  %1473 = vmatprep.mubr.bf16.mxu0 %v1314
  %1474 = vmatmul.mubr.bf16.gmra.mrb[0].mxu0 %v1313
  %v1475 = vpop.f32.mrb[0].mxu0
  %v1476 = vadd.f32 0.0, %v1475
  %v1477 = vpop.f32.mrb[0].mxu0
  %v1478 = vpop.f32.mrb[0].mxu0
  %v1479 = vadd.f32 0.0, %v1478
  %v1480 = vpop.f32.mrb[0].mxu0
  %1481 = vmatprep.mubr.bf16.mxu0 %v1316
  %1482 = vmatmul.mubr.bf16.gmra.mrb[0].mxu0 %v1315
  %v1483 = vpop.f32.mrb[0].mxu0
  %v1484 = vadd.f32 0.0, %v1483
  %v1485 = vpop.f32.mrb[0].mxu0
  %v1486 = vpop.f32.mrb[0].mxu0
  %v1487 = vadd.f32 0.0, %v1486
  %v1488 = vpop.f32.mrb[0].mxu0
  %1489 = vmatprep.mubr.bf16.mxu0 %v1318
  %1490 = vmatmul.mubr.bf16.gmra.mrb[0].mxu0 %v1317
  %v1491 = vpop.f32.mrb[0].mxu0
  %v1492 = vadd.f32 0.0, %v1491
  %v1493 = vpop.f32.mrb[0].mxu0
  %v1494 = vpop.f32.mrb[0].mxu0
  %v1495 = vadd.f32 0.0, %v1494
  %v1496 = vpop.f32.mrb[0].mxu0
  %1497 = vmatprep.mubr.bf16.mxu0 %v1320
  %1498 = vmatmul.mubr.bf16.gmra.mrb[0].mxu0 %v1319
  %v1499 = vpop.f32.mrb[0].mxu0
  %v1500 = vadd.f32 0.0, %v1499
  %v1501 = vpop.f32.mrb[0].mxu0
  %v1502 = vpop.f32.mrb[0].mxu0
  %v1503 = vadd.f32 0.0, %v1502
  %v1504 = vpop.f32.mrb[0].mxu0
  %1505 = vmatprep.mubr.bf16.mxu0 %v1322
  %1506 = vmatmul.mubr.bf16.gmra.mrb[0].mxu0 %v1321
  %v1507 = vpop.f32.mrb[0].mxu0
  %v1508 = vadd.f32 0.0, %v1507
  %v1509 = vpop.f32.mrb[0].mxu0
  %v1510 = vpop.f32.mrb[0].mxu0
  %v1511 = vadd.f32 0.0, %v1510
  %v1512 = vpop.f32.mrb[0].mxu0
  %1513 = vmatprep.mubr.bf16.mxu0 %v1324
  %1514 = vmatmul.mubr.bf16.gmra.mrb[0].mxu0 %v1323
  %v1515 = vpop.f32.mrb[0].mxu0
  %v1516 = vadd.f32 0.0, %v1515
  %v1517 = vpop.f32.mrb[0].mxu0
  %v1518 = vpop.f32.mrb[0].mxu0
  %v1519 = vadd.f32 0.0, %v1518
  %v1520 = vpop.f32.mrb[0].mxu0
  %1521 = vmatprep.mubr.bf16.mxu0 %v1326
  %1522 = vmatmul.mubr.bf16.gmra.mrb[0].mxu0 %v1325
  %v1523 = vpop.f32.mrb[0].mxu0
  %v1524 = vadd.f32 0.0, %v1523
  %v1525 = vpop.f32.mrb[0].mxu0
  %v1526 = vpop.f32.mrb[0].mxu0
  %v1527 = vadd.f32 0.0, %v1526
  %v1528 = vpop.f32.mrb[0].mxu0
  %1529 = vmatprep.mubr.bf16.mxu0 %v1328
  %1530 = vmatmul.mubr.bf16.gmra.mrb[0].mxu0 %v1327
  %v1531 = vpop.f32.mrb[0].mxu0
  %v1532 = vadd.f32 0.0, %v1531
  %v1533 = vpop.f32.mrb[0].mxu0
  %v1534 = vpop.f32.mrb[0].mxu0
  %v1535 = vadd.f32 0.0, %v1534
  %v1536 = vpop.f32.mrb[0].mxu0
  %1537 = vdwg.mxu0
  %s1538 = scalar_lea.vmem [#allocation2], 384
  %1539 = vst [vmem:[%s1538] sm:$0xff] %v1476
  %1540 = vst [vmem:[%s1538 + $0x8] sm:$0xff] %v1479
  %1541 = vst [vmem:[%s1538 + $0x10] sm:$0xff] %v1484
  %1542 = vst [vmem:[%s1538 + $0x18] sm:$0xff] %v1487
  %1543 = vst [vmem:[%s1538 + $0x20] sm:$0xff] %v1492
  %1544 = vst [vmem:[%s1538 + $0x28] sm:$0xff] %v1495
  %1545 = vst [vmem:[%s1538 + $0x30] sm:$0xff] %v1500
  %1546 = vst [vmem:[%s1538 + $0x38] sm:$0xff] %v1503
  %1547 = vst [vmem:[%s1538 + $0x40] sm:$0xff] %v1508
  %1548 = vst [vmem:[%s1538 + $0x48] sm:$0xff] %v1511
  %1549 = vst [vmem:[%s1538 + $0x50] sm:$0xff] %v1516
  %1550 = vst [vmem:[%s1538 + $0x58] sm:$0xff] %v1519
  %1551 = vst [vmem:[%s1538 + $0x60] sm:$0xff] %v1524
  %1552 = vst [vmem:[%s1538 + $0x68] sm:$0xff] %v1527
  %1553 = vst [vmem:[%s1538 + $0x70] sm:$0xff] %v1532
  %1554 = vst [vmem:[%s1538 + $0x78] sm:$0xff] %v1535
  %v1555 = vadd.f32 %v1476, %v1479
  %v1556 = vadd.f32 %v1555, %v1484
  %v1557 = vadd.f32 %v1556, %v1487
  %v1558 = vadd.f32 %v1557, %v1492
  %v1559 = vadd.f32 %v1558, %v1495
  %v1560 = vadd.f32 %v1559, %v1500
  %v1561 = vadd.f32 %v1560, %v1503
  %v1562 = vadd.f32 %v1561, %v1508
  %v1563 = vadd.f32 %v1562, %v1511
  %v1564 = vadd.f32 %v1563, %v1516
  %v1565 = vadd.f32 %v1564, %v1519
  %v1566 = vadd.f32 %v1565, %v1524
  %v1567 = vadd.f32 %v1566, %v1527
  %v1568 = vadd.f32 %v1567, %v1532
  %v1569 = vadd.f32 %v1568, %v1535
  %v1570 = vrot.slane %v1569, 4
  %v1571 = vadd.f32 %v1569, %v1570
  %v1572 = vrot.slane %v1571, 2
  %v1573 = vadd.f32 %v1571, %v1572
  %v1574 = vrot.slane %v1573, 1
  %v1575 = vadd.f32 %v1573, %v1574
  %v1576 = vadd.f32 %v1176, %v1575
  %v1577 = vmul.f32 %v1476, %v1476
  %v1578 = vmul.f32 %v1479, %v1479
  %v1579 = vmul.f32 %v1484, %v1484
  %v1580 = vmul.f32 %v1487, %v1487
  %v1581 = vmul.f32 %v1492, %v1492
  %v1582 = vmul.f32 %v1495, %v1495
  %v1583 = vmul.f32 %v1500, %v1500
  %v1584 = vmul.f32 %v1503, %v1503
  %v1585 = vmul.f32 %v1508, %v1508
  %v1586 = vmul.f32 %v1511, %v1511
  %v1587 = vmul.f32 %v1516, %v1516
  %v1588 = vmul.f32 %v1519, %v1519
  %v1589 = vmul.f32 %v1524, %v1524
  %v1590 = vmul.f32 %v1527, %v1527
  %v1591 = vmul.f32 %v1532, %v1532
  %v1592 = vmul.f32 %v1535, %v1535
  %v1593 = vadd.f32 %v1577, %v1578
  %v1594 = vadd.f32 %v1593, %v1579
  %v1595 = vadd.f32 %v1594, %v1580
  %v1596 = vadd.f32 %v1595, %v1581
  %v1597 = vadd.f32 %v1596, %v1582
  %v1598 = vadd.f32 %v1597, %v1583
  %v1599 = vadd.f32 %v1598, %v1584
  %v1600 = vadd.f32 %v1599, %v1585
  %v1601 = vadd.f32 %v1600, %v1586
  %v1602 = vadd.f32 %v1601, %v1587
  %v1603 = vadd.f32 %v1602, %v1588
  %v1604 = vadd.f32 %v1603, %v1589
  %v1605 = vadd.f32 %v1604, %v1590
  %v1606 = vadd.f32 %v1605, %v1591
  %v1607 = vadd.f32 %v1606, %v1592
  %v1608 = vrot.slane %v1607, 4
  %v1609 = vadd.f32 %v1607, %v1608
  %v1610 = vrot.slane %v1609, 2
  %v1611 = vadd.f32 %v1609, %v1610
  %v1612 = vrot.slane %v1611, 1
  %v1613 = vadd.f32 %v1611, %v1612
  %v1614 = vadd.f32 %v1214, %v1613
  %v1615 = vmul.f32 %v1576, 0.001953125
  %v1616 = vmul.f32 %v1614, 0.001953125
  %v1617 = vmul.f32 %v1615, %v1615
  %v1618 = vsub.f32 %v1616, %v1617
  %v1619 = vmax.f32 %v1618, 0.0
  %v1620 = vld [vmem:[%s2] sm:$0x1]
  %v1621 = vadd.f32 %v1619, 1e-05
  %v1622 = vrsqrt.pop %v1621
  %v1623 = vmul.f32 %v1620, %v1622
  %v1624 = vld [vmem:[%s3] sm:$0x1]
  %v1625 = vmul.f32 %v1615, %v1623
  %v1626 = vsub.f32 %v1624, %v1625
  %v1627 = vld [vmem:[#allocation2] sm:$0xff]
  %v1628 = vld [vmem:[#allocation2 + $0x8] sm:$0xff]
  %v1629 = vld [vmem:[#allocation2 + $0x10] sm:$0xff]
  %v1630 = vld [vmem:[#allocation2 + $0x18] sm:$0xff]
  %v1631 = vld [vmem:[#allocation2 + $0x20] sm:$0xff]
  %v1632 = vld [vmem:[#allocation2 + $0x28] sm:$0xff]
  %v1633 = vld [vmem:[#allocation2 + $0x30] sm:$0xff]
  %v1634 = vld [vmem:[#allocation2 + $0x38] sm:$0xff]
  %v1635 = vld [vmem:[#allocation2 + $0x40] sm:$0xff]
  %v1636 = vld [vmem:[#allocation2 + $0x48] sm:$0xff]
  %v1637 = vld [vmem:[#allocation2 + $0x50] sm:$0xff]
  %v1638 = vld [vmem:[#allocation2 + $0x58] sm:$0xff]
  %v1639 = vld [vmem:[#allocation2 + $0x60] sm:$0xff]
  %v1640 = vld [vmem:[#allocation2 + $0x68] sm:$0xff]
  %v1641 = vld [vmem:[#allocation2 + $0x70] sm:$0xff]
  %v1642 = vld [vmem:[#allocation2 + $0x78] sm:$0xff]
  %v1644 = vlaneseq
  %v1645 = vshrl.u32 %v1644, 7
  %v1646 = vsub.s32 0, %v1645
  %v1647 = vrot.slane %v1623, %v1646
  %v1649 = vmul.f32 %v1627, %v1647
  %v1650 = vmul.f32 %v1628, %v1647
  %v1651 = vmul.f32 %v1629, %v1647
  %v1652 = vmul.f32 %v1630, %v1647
  %v1653 = vmul.f32 %v1631, %v1647
  %v1654 = vmul.f32 %v1632, %v1647
  %v1655 = vmul.f32 %v1633, %v1647
  %v1656 = vmul.f32 %v1634, %v1647
  %v1657 = vmul.f32 %v1635, %v1647
  %v1658 = vmul.f32 %v1636, %v1647
  %v1659 = vmul.f32 %v1637, %v1647
  %v1660 = vmul.f32 %v1638, %v1647
  %v1661 = vmul.f32 %v1639, %v1647
  %v1662 = vmul.f32 %v1640, %v1647
  %v1663 = vmul.f32 %v1641, %v1647
  %v1664 = vmul.f32 %v1642, %v1647
  %v1666 = vlaneseq
  %v1667 = vshrl.u32 %v1666, 7
  %v1668 = vsub.s32 0, %v1667
  %v1669 = vrot.slane %v1626, %v1668
  %v1671 = vadd.f32 %v1649, %v1669
  %v1672 = vadd.f32 %v1650, %v1669
  %v1673 = vadd.f32 %v1651, %v1669
  %v1674 = vadd.f32 %v1652, %v1669
  %v1675 = vadd.f32 %v1653, %v1669
  %v1676 = vadd.f32 %v1654, %v1669
  %v1677 = vadd.f32 %v1655, %v1669
  %v1678 = vadd.f32 %v1656, %v1669
  %v1679 = vadd.f32 %v1657, %v1669
  %v1680 = vadd.f32 %v1658, %v1669
  %v1681 = vadd.f32 %v1659, %v1669
  %v1682 = vadd.f32 %v1660, %v1669
  %v1683 = vadd.f32 %v1661, %v1669
  %v1684 = vadd.f32 %v1662, %v1669
  %v1685 = vadd.f32 %v1663, %v1669
  %v1686 = vadd.f32 %v1664, %v1669
  %v1687 = vmax.f32 %v1671, 0.0
  %v1688 = vmax.f32 %v1672, 0.0
  %v1689 = vmax.f32 %v1673, 0.0
  %v1690 = vmax.f32 %v1674, 0.0
  %v1691 = vmax.f32 %v1675, 0.0
  %v1692 = vmax.f32 %v1676, 0.0
  %v1693 = vmax.f32 %v1677, 0.0
  %v1694 = vmax.f32 %v1678, 0.0
  %v1695 = vmax.f32 %v1679, 0.0
  %v1696 = vmax.f32 %v1680, 0.0
  %v1697 = vmax.f32 %v1681, 0.0
  %v1698 = vmax.f32 %v1682, 0.0
  %v1699 = vmax.f32 %v1683, 0.0
  %v1700 = vmax.f32 %v1684, 0.0
  %v1701 = vmax.f32 %v1685, 0.0
  %v1702 = vmax.f32 %v1686, 0.0
  %v1703 = vpack.c.bf16 %v1688, %v1687
  %v1704 = vpack.c.bf16 %v1690, %v1689
  %v1705 = vpack.c.bf16 %v1692, %v1691
  %v1706 = vpack.c.bf16 %v1694, %v1693
  %v1707 = vpack.c.bf16 %v1696, %v1695
  %v1708 = vpack.c.bf16 %v1698, %v1697
  %v1709 = vpack.c.bf16 %v1700, %v1699
  %v1710 = vpack.c.bf16 %v1702, %v1701
  %v1719 = vunpack.c.l.b16 %v1703
  %v1720 = vunpack.c.h.b16 %v1703
  %v1721 = vunpack.c.l.b16 %v1704
  %v1722 = vunpack.c.h.b16 %v1704
  %v1723 = vunpack.c.l.b16 %v1705
  %v1724 = vunpack.c.h.b16 %v1705
  %v1725 = vunpack.c.l.b16 %v1706
  %v1726 = vunpack.c.h.b16 %v1706
  %v1727 = vunpack.c.l.b16 %v1707
  %v1728 = vunpack.c.h.b16 %v1707
  %v1729 = vunpack.c.l.b16 %v1708
  %v1730 = vunpack.c.h.b16 %v1708
  %v1731 = vunpack.c.l.b16 %v1709
  %v1732 = vunpack.c.h.b16 %v1709
  %v1733 = vunpack.c.l.b16 %v1710
  %v1734 = vunpack.c.h.b16 %v1710
  %v1735 = vpack.c.b16 %v1719, %v1719
  %v1736 = vpack.c.b16 %v1720, %v1720
  %v1737 = vpack.c.b16 %v1721, %v1721
  %v1738 = vpack.c.b16 %v1722, %v1722
  %v1739 = vpack.c.b16 %v1723, %v1723
  %v1740 = vpack.c.b16 %v1724, %v1724
  %v1741 = vpack.c.b16 %v1725, %v1725
  %v1742 = vpack.c.b16 %v1726, %v1726
  %v1743 = vpack.c.b16 %v1727, %v1727
  %v1744 = vpack.c.b16 %v1728, %v1728
  %v1745 = vpack.c.b16 %v1729, %v1729
  %v1746 = vpack.c.b16 %v1730, %v1730
  %v1747 = vpack.c.b16 %v1731, %v1731
  %v1748 = vpack.c.b16 %v1732, %v1732
  %v1749 = vpack.c.b16 %v1733, %v1733
  %v1750 = vpack.c.b16 %v1734, %v1734
  %1767 = vst [vmem:[%s4] sm:$0xf] %v1735
  %1768 = vst [vmem:[%s4 + $0x4] sm:$0xf] %v1736
  %1769 = vst [vmem:[%s4 + $0x8] sm:$0xf] %v1737
  %1770 = vst [vmem:[%s4 + $0xc] sm:$0xf] %v1738
  %1771 = vst [vmem:[%s4 + $0x10] sm:$0xf] %v1739
  %1772 = vst [vmem:[%s4 + $0x14] sm:$0xf] %v1740
  %1773 = vst [vmem:[%s4 + $0x18] sm:$0xf] %v1741
  %1774 = vst [vmem:[%s4 + $0x1c] sm:$0xf] %v1742
  %1775 = vst [vmem:[%s4 + $0x20] sm:$0xf] %v1743
  %1776 = vst [vmem:[%s4 + $0x24] sm:$0xf] %v1744
  %1777 = vst [vmem:[%s4 + $0x28] sm:$0xf] %v1745
  %1778 = vst [vmem:[%s4 + $0x2c] sm:$0xf] %v1746
  %1779 = vst [vmem:[%s4 + $0x30] sm:$0xf] %v1747
  %1780 = vst [vmem:[%s4 + $0x34] sm:$0xf] %v1748
  %1781 = vst [vmem:[%s4 + $0x38] sm:$0xf] %v1749
  %1782 = vst [vmem:[%s4 + $0x3c] sm:$0xf] %v1750
  %v1783 = vld [vmem:[%s738] sm:$0xff]
  %v1784 = vld [vmem:[%s738 + $0x8] sm:$0xff]
  %v1785 = vld [vmem:[%s738 + $0x10] sm:$0xff]
  %v1786 = vld [vmem:[%s738 + $0x18] sm:$0xff]
  %v1787 = vld [vmem:[%s738 + $0x20] sm:$0xff]
  %v1788 = vld [vmem:[%s738 + $0x28] sm:$0xff]
  %v1789 = vld [vmem:[%s738 + $0x30] sm:$0xff]
  %v1790 = vld [vmem:[%s738 + $0x38] sm:$0xff]
  %v1791 = vld [vmem:[%s738 + $0x40] sm:$0xff]
  %v1792 = vld [vmem:[%s738 + $0x48] sm:$0xff]
  %v1793 = vld [vmem:[%s738 + $0x50] sm:$0xff]
  %v1794 = vld [vmem:[%s738 + $0x58] sm:$0xff]
  %v1795 = vld [vmem:[%s738 + $0x60] sm:$0xff]
  %v1796 = vld [vmem:[%s738 + $0x68] sm:$0xff]
  %v1797 = vld [vmem:[%s738 + $0x70] sm:$0xff]
  %v1798 = vld [vmem:[%s738 + $0x78] sm:$0xff]
  %v1799 = vmul.f32 %v1783, %v1647
  %v1800 = vmul.f32 %v1784, %v1647
  %v1801 = vmul.f32 %v1785, %v1647
  %v1802 = vmul.f32 %v1786, %v1647
  %v1803 = vmul.f32 %v1787, %v1647
  %v1804 = vmul.f32 %v1788, %v1647
  %v1805 = vmul.f32 %v1789, %v1647
  %v1806 = vmul.f32 %v1790, %v1647
  %v1807 = vmul.f32 %v1791, %v1647
  %v1808 = vmul.f32 %v1792, %v1647
  %v1809 = vmul.f32 %v1793, %v1647
  %v1810 = vmul.f32 %v1794, %v1647
  %v1811 = vmul.f32 %v1795, %v1647
  %v1812 = vmul.f32 %v1796, %v1647
  %v1813 = vmul.f32 %v1797, %v1647
  %v1814 = vmul.f32 %v1798, %v1647
  %v1815 = vadd.f32 %v1799, %v1669
  %v1816 = vadd.f32 %v1800, %v1669
  %v1817 = vadd.f32 %v1801, %v1669
  %v1818 = vadd.f32 %v1802, %v1669
  %v1819 = vadd.f32 %v1803, %v1669
  %v1820 = vadd.f32 %v1804, %v1669
  %v1821 = vadd.f32 %v1805, %v1669
  %v1822 = vadd.f32 %v1806, %v1669
  %v1823 = vadd.f32 %v1807, %v1669
  %v1824 = vadd.f32 %v1808, %v1669
  %v1825 = vadd.f32 %v1809, %v1669
  %v1826 = vadd.f32 %v1810, %v1669
  %v1827 = vadd.f32 %v1811, %v1669
  %v1828 = vadd.f32 %v1812, %v1669
  %v1829 = vadd.f32 %v1813, %v1669
  %v1830 = vadd.f32 %v1814, %v1669
  %v1831 = vmax.f32 %v1815, 0.0
  %v1832 = vmax.f32 %v1816, 0.0
  %v1833 = vmax.f32 %v1817, 0.0
  %v1834 = vmax.f32 %v1818, 0.0
  %v1835 = vmax.f32 %v1819, 0.0
  %v1836 = vmax.f32 %v1820, 0.0
  %v1837 = vmax.f32 %v1821, 0.0
  %v1838 = vmax.f32 %v1822, 0.0
  %v1839 = vmax.f32 %v1823, 0.0
  %v1840 = vmax.f32 %v1824, 0.0
  %v1841 = vmax.f32 %v1825, 0.0
  %v1842 = vmax.f32 %v1826, 0.0
  %v1843 = vmax.f32 %v1827, 0.0
  %v1844 = vmax.f32 %v1828, 0.0
  %v1845 = vmax.f32 %v1829, 0.0
  %v1846 = vmax.f32 %v1830, 0.0
  %v1847 = vpack.c.bf16 %v1832, %v1831
  %v1848 = vpack.c.bf16 %v1834, %v1833
  %v1849 = vpack.c.bf16 %v1836, %v1835
  %v1850 = vpack.c.bf16 %v1838, %v1837
  %v1851 = vpack.c.bf16 %v1840, %v1839
  %v1852 = vpack.c.bf16 %v1842, %v1841
  %v1853 = vpack.c.bf16 %v1844, %v1843
  %v1854 = vpack.c.bf16 %v1846, %v1845
  %v1863 = vunpack.c.l.b16 %v1847
  %v1864 = vunpack.c.h.b16 %v1847
  %v1865 = vunpack.c.l.b16 %v1848
  %v1866 = vunpack.c.h.b16 %v1848
  %v1867 = vunpack.c.l.b16 %v1849
  %v1868 = vunpack.c.h.b16 %v1849
  %v1869 = vunpack.c.l.b16 %v1850
  %v1870 = vunpack.c.h.b16 %v1850
  %v1871 = vunpack.c.l.b16 %v1851
  %v1872 = vunpack.c.h.b16 %v1851
  %v1873 = vunpack.c.l.b16 %v1852
  %v1874 = vunpack.c.h.b16 %v1852
  %v1875 = vunpack.c.l.b16 %v1853
  %v1876 = vunpack.c.h.b16 %v1853
  %v1877 = vunpack.c.l.b16 %v1854
  %v1878 = vunpack.c.h.b16 %v1854
  %v1879 = vpack.c.b16 %v1863, %v1863
  %v1880 = vpack.c.b16 %v1864, %v1864
  %v1881 = vpack.c.b16 %v1865, %v1865
  %v1882 = vpack.c.b16 %v1866, %v1866
  %v1883 = vpack.c.b16 %v1867, %v1867
  %v1884 = vpack.c.b16 %v1868, %v1868
  %v1885 = vpack.c.b16 %v1869, %v1869
  %v1886 = vpack.c.b16 %v1870, %v1870
  %v1887 = vpack.c.b16 %v1871, %v1871
  %v1888 = vpack.c.b16 %v1872, %v1872
  %v1889 = vpack.c.b16 %v1873, %v1873
  %v1890 = vpack.c.b16 %v1874, %v1874
  %v1891 = vpack.c.b16 %v1875, %v1875
  %v1892 = vpack.c.b16 %v1876, %v1876
  %v1893 = vpack.c.b16 %v1877, %v1877
  %v1894 = vpack.c.b16 %v1878, %v1878
  %s1911 = scalar_lea.vmem %s4, 64
  %1912 = vst [vmem:[%s1911] sm:$0xf] %v1879
  %1913 = vst [vmem:[%s1911 + $0x4] sm:$0xf] %v1880
  %1914 = vst [vmem:[%s1911 + $0x8] sm:$0xf] %v1881
  %1915 = vst [vmem:[%s1911 + $0xc] sm:$0xf] %v1882
  %1916 = vst [vmem:[%s1911 + $0x10] sm:$0xf] %v1883
  %1917 = vst [vmem:[%s1911 + $0x14] sm:$0xf] %v1884
  %1918 = vst [vmem:[%s1911 + $0x18] sm:$0xf] %v1885
  %1919 = vst [vmem:[%s1911 + $0x1c] sm:$0xf] %v1886
  %1920 = vst [vmem:[%s1911 + $0x20] sm:$0xf] %v1887
  %1921 = vst [vmem:[%s1911 + $0x24] sm:$0xf] %v1888
  %1922 = vst [vmem:[%s1911 + $0x28] sm:$0xf] %v1889
  %1923 = vst [vmem:[%s1911 + $0x2c] sm:$0xf] %v1890
  %1924 = vst [vmem:[%s1911 + $0x30] sm:$0xf] %v1891
  %1925 = vst [vmem:[%s1911 + $0x34] sm:$0xf] %v1892
  %1926 = vst [vmem:[%s1911 + $0x38] sm:$0xf] %v1893
  %1927 = vst [vmem:[%s1911 + $0x3c] sm:$0xf] %v1894
  %v1928 = vld [vmem:[%s1138] sm:$0xff]
  %v1929 = vld [vmem:[%s1138 + $0x8] sm:$0xff]
  %v1930 = vld [vmem:[%s1138 + $0x10] sm:$0xff]
  %v1931 = vld [vmem:[%s1138 + $0x18] sm:$0xff]
  %v1932 = vld [vmem:[%s1138 + $0x20] sm:$0xff]
  %v1933 = vld [vmem:[%s1138 + $0x28] sm:$0xff]
  %v1934 = vld [vmem:[%s1138 + $0x30] sm:$0xff]
  %v1935 = vld [vmem:[%s1138 + $0x38] sm:$0xff]
  %v1936 = vld [vmem:[%s1138 + $0x40] sm:$0xff]
  %v1937 = vld [vmem:[%s1138 + $0x48] sm:$0xff]
  %v1938 = vld [vmem:[%s1138 + $0x50] sm:$0xff]
  %v1939 = vld [vmem:[%s1138 + $0x58] sm:$0xff]
  %v1940 = vld [vmem:[%s1138 + $0x60] sm:$0xff]
  %v1941 = vld [vmem:[%s1138 + $0x68] sm:$0xff]
  %v1942 = vld [vmem:[%s1138 + $0x70] sm:$0xff]
  %v1943 = vld [vmem:[%s1138 + $0x78] sm:$0xff]
  %v1944 = vmul.f32 %v1928, %v1647
  %v1945 = vmul.f32 %v1929, %v1647
  %v1946 = vmul.f32 %v1930, %v1647
  %v1947 = vmul.f32 %v1931, %v1647
  %v1948 = vmul.f32 %v1932, %v1647
  %v1949 = vmul.f32 %v1933, %v1647
  %v1950 = vmul.f32 %v1934, %v1647
  %v1951 = vmul.f32 %v1935, %v1647
  %v1952 = vmul.f32 %v1936, %v1647
  %v1953 = vmul.f32 %v1937, %v1647
  %v1954 = vmul.f32 %v1938, %v1647
  %v1955 = vmul.f32 %v1939, %v1647
  %v1956 = vmul.f32 %v1940, %v1647
  %v1957 = vmul.f32 %v1941, %v1647
  %v1958 = vmul.f32 %v1942, %v1647
  %v1959 = vmul.f32 %v1943, %v1647
  %v1960 = vadd.f32 %v1944, %v1669
  %v1961 = vadd.f32 %v1945, %v1669
  %v1962 = vadd.f32 %v1946, %v1669
  %v1963 = vadd.f32 %v1947, %v1669
  %v1964 = vadd.f32 %v1948, %v1669
  %v1965 = vadd.f32 %v1949, %v1669
  %v1966 = vadd.f32 %v1950, %v1669
  %v1967 = vadd.f32 %v1951, %v1669
  %v1968 = vadd.f32 %v1952, %v1669
  %v1969 = vadd.f32 %v1953, %v1669
  %v1970 = vadd.f32 %v1954, %v1669
  %v1971 = vadd.f32 %v1955, %v1669
  %v1972 = vadd.f32 %v1956, %v1669
  %v1973 = vadd.f32 %v1957, %v1669
  %v1974 = vadd.f32 %v1958, %v1669
  %v1975 = vadd.f32 %v1959, %v1669
  %v1976 = vmax.f32 %v1960, 0.0
  %v1977 = vmax.f32 %v1961, 0.0
  %v1978 = vmax.f32 %v1962, 0.0
  %v1979 = vmax.f32 %v1963, 0.0
  %v1980 = vmax.f32 %v1964, 0.0
  %v1981 = vmax.f32 %v1965, 0.0
  %v1982 = vmax.f32 %v1966, 0.0
  %v1983 = vmax.f32 %v1967, 0.0
  %v1984 = vmax.f32 %v1968, 0.0
  %v1985 = vmax.f32 %v1969, 0.0
  %v1986 = vmax.f32 %v1970, 0.0
  %v1987 = vmax.f32 %v1971, 0.0
  %v1988 = vmax.f32 %v1972, 0.0
  %v1989 = vmax.f32 %v1973, 0.0
  %v1990 = vmax.f32 %v1974, 0.0
  %v1991 = vmax.f32 %v1975, 0.0
  %v1992 = vpack.c.bf16 %v1977, %v1976
  %v1993 = vpack.c.bf16 %v1979, %v1978
  %v1994 = vpack.c.bf16 %v1981, %v1980
  %v1995 = vpack.c.bf16 %v1983, %v1982
  %v1996 = vpack.c.bf16 %v1985, %v1984
  %v1997 = vpack.c.bf16 %v1987, %v1986
  %v1998 = vpack.c.bf16 %v1989, %v1988
  %v1999 = vpack.c.bf16 %v1991, %v1990
  %v2008 = vunpack.c.l.b16 %v1992
  %v2009 = vunpack.c.h.b16 %v1992
  %v2010 = vunpack.c.l.b16 %v1993
  %v2011 = vunpack.c.h.b16 %v1993
  %v2012 = vunpack.c.l.b16 %v1994
  %v2013 = vunpack.c.h.b16 %v1994
  %v2014 = vunpack.c.l.b16 %v1995
  %v2015 = vunpack.c.h.b16 %v1995
  %v2016 = vunpack.c.l.b16 %v1996
  %v2017 = vunpack.c.h.b16 %v1996
  %v2018 = vunpack.c.l.b16 %v1997
  %v2019 = vunpack.c.h.b16 %v1997
  %v2020 = vunpack.c.l.b16 %v1998
  %v2021 = vunpack.c.h.b16 %v1998
  %v2022 = vunpack.c.l.b16 %v1999
  %v2023 = vunpack.c.h.b16 %v1999
  %v2024 = vpack.c.b16 %v2008, %v2008
  %v2025 = vpack.c.b16 %v2009, %v2009
  %v2026 = vpack.c.b16 %v2010, %v2010
  %v2027 = vpack.c.b16 %v2011, %v2011
  %v2028 = vpack.c.b16 %v2012, %v2012
  %v2029 = vpack.c.b16 %v2013, %v2013
  %v2030 = vpack.c.b16 %v2014, %v2014
  %v2031 = vpack.c.b16 %v2015, %v2015
  %v2032 = vpack.c.b16 %v2016, %v2016
  %v2033 = vpack.c.b16 %v2017, %v2017
  %v2034 = vpack.c.b16 %v2018, %v2018
  %v2035 = vpack.c.b16 %v2019, %v2019
  %v2036 = vpack.c.b16 %v2020, %v2020
  %v2037 = vpack.c.b16 %v2021, %v2021
  %v2038 = vpack.c.b16 %v2022, %v2022
  %v2039 = vpack.c.b16 %v2023, %v2023
  %s2056 = scalar_lea.vmem %s4, 128
  %2057 = vst [vmem:[%s2056] sm:$0xf] %v2024
  %2058 = vst [vmem:[%s2056 + $0x4] sm:$0xf] %v2025
  %2059 = vst [vmem:[%s2056 + $0x8] sm:$0xf] %v2026
  %2060 = vst [vmem:[%s2056 + $0xc] sm:$0xf] %v2027
  %2061 = vst [vmem:[%s2056 + $0x10] sm:$0xf] %v2028
  %2062 = vst [vmem:[%s2056 + $0x14] sm:$0xf] %v2029
  %2063 = vst [vmem:[%s2056 + $0x18] sm:$0xf] %v2030
  %2064 = vst [vmem:[%s2056 + $0x1c] sm:$0xf] %v2031
  %2065 = vst [vmem:[%s2056 + $0x20] sm:$0xf] %v2032
  %2066 = vst [vmem:[%s2056 + $0x24] sm:$0xf] %v2033
  %2067 = vst [vmem:[%s2056 + $0x28] sm:$0xf] %v2034
  %2068 = vst [vmem:[%s2056 + $0x2c] sm:$0xf] %v2035
  %2069 = vst [vmem:[%s2056 + $0x30] sm:$0xf] %v2036
  %2070 = vst [vmem:[%s2056 + $0x34] sm:$0xf] %v2037
  %2071 = vst [vmem:[%s2056 + $0x38] sm:$0xf] %v2038
  %2072 = vst [vmem:[%s2056 + $0x3c] sm:$0xf] %v2039
  %v2073 = vld [vmem:[%s1538] sm:$0xff]
  %v2074 = vld [vmem:[%s1538 + $0x8] sm:$0xff]
  %v2075 = vld [vmem:[%s1538 + $0x10] sm:$0xff]
  %v2076 = vld [vmem:[%s1538 + $0x18] sm:$0xff]
  %v2077 = vld [vmem:[%s1538 + $0x20] sm:$0xff]
  %v2078 = vld [vmem:[%s1538 + $0x28] sm:$0xff]
  %v2079 = vld [vmem:[%s1538 + $0x30] sm:$0xff]
  %v2080 = vld [vmem:[%s1538 + $0x38] sm:$0xff]
  %v2081 = vld [vmem:[%s1538 + $0x40] sm:$0xff]
  %v2082 = vld [vmem:[%s1538 + $0x48] sm:$0xff]
  %v2083 = vld [vmem:[%s1538 + $0x50] sm:$0xff]
  %v2084 = vld [vmem:[%s1538 + $0x58] sm:$0xff]
  %v2085 = vld [vmem:[%s1538 + $0x60] sm:$0xff]
  %v2086 = vld [vmem:[%s1538 + $0x68] sm:$0xff]
  %v2087 = vld [vmem:[%s1538 + $0x70] sm:$0xff]
  %v2088 = vld [vmem:[%s1538 + $0x78] sm:$0xff]
  %v2089 = vmul.f32 %v2073, %v1647
  %v2090 = vmul.f32 %v2074, %v1647
  %v2091 = vmul.f32 %v2075, %v1647
  %v2092 = vmul.f32 %v2076, %v1647
  %v2093 = vmul.f32 %v2077, %v1647
  %v2094 = vmul.f32 %v2078, %v1647
  %v2095 = vmul.f32 %v2079, %v1647
  %v2096 = vmul.f32 %v2080, %v1647
  %v2097 = vmul.f32 %v2081, %v1647
  %v2098 = vmul.f32 %v2082, %v1647
  %v2099 = vmul.f32 %v2083, %v1647
  %v2100 = vmul.f32 %v2084, %v1647
  %v2101 = vmul.f32 %v2085, %v1647
  %v2102 = vmul.f32 %v2086, %v1647
  %v2103 = vmul.f32 %v2087, %v1647
  %v2104 = vmul.f32 %v2088, %v1647
  %v2105 = vadd.f32 %v2089, %v1669
  %v2106 = vadd.f32 %v2090, %v1669
  %v2107 = vadd.f32 %v2091, %v1669
  %v2108 = vadd.f32 %v2092, %v1669
  %v2109 = vadd.f32 %v2093, %v1669
  %v2110 = vadd.f32 %v2094, %v1669
  %v2111 = vadd.f32 %v2095, %v1669
  %v2112 = vadd.f32 %v2096, %v1669
  %v2113 = vadd.f32 %v2097, %v1669
  %v2114 = vadd.f32 %v2098, %v1669
  %v2115 = vadd.f32 %v2099, %v1669
  %v2116 = vadd.f32 %v2100, %v1669
  %v2117 = vadd.f32 %v2101, %v1669
  %v2118 = vadd.f32 %v2102, %v1669
  %v2119 = vadd.f32 %v2103, %v1669
  %v2120 = vadd.f32 %v2104, %v1669
  %v2121 = vmax.f32 %v2105, 0.0
  %v2122 = vmax.f32 %v2106, 0.0
  %v2123 = vmax.f32 %v2107, 0.0
  %v2124 = vmax.f32 %v2108, 0.0
  %v2125 = vmax.f32 %v2109, 0.0
  %v2126 = vmax.f32 %v2110, 0.0
  %v2127 = vmax.f32 %v2111, 0.0
  %v2128 = vmax.f32 %v2112, 0.0
  %v2129 = vmax.f32 %v2113, 0.0
  %v2130 = vmax.f32 %v2114, 0.0
  %v2131 = vmax.f32 %v2115, 0.0
  %v2132 = vmax.f32 %v2116, 0.0
  %v2133 = vmax.f32 %v2117, 0.0
  %v2134 = vmax.f32 %v2118, 0.0
  %v2135 = vmax.f32 %v2119, 0.0
  %v2136 = vmax.f32 %v2120, 0.0
  %v2137 = vpack.c.bf16 %v2122, %v2121
  %v2138 = vpack.c.bf16 %v2124, %v2123
  %v2139 = vpack.c.bf16 %v2126, %v2125
  %v2140 = vpack.c.bf16 %v2128, %v2127
  %v2141 = vpack.c.bf16 %v2130, %v2129
  %v2142 = vpack.c.bf16 %v2132, %v2131
  %v2143 = vpack.c.bf16 %v2134, %v2133
  %v2144 = vpack.c.bf16 %v2136, %v2135
  %v2153 = vunpack.c.l.b16 %v2137
  %v2154 = vunpack.c.h.b16 %v2137
  %v2155 = vunpack.c.l.b16 %v2138
  %v2156 = vunpack.c.h.b16 %v2138
  %v2157 = vunpack.c.l.b16 %v2139
  %v2158 = vunpack.c.h.b16 %v2139
  %v2159 = vunpack.c.l.b16 %v2140
  %v2160 = vunpack.c.h.b16 %v2140
  %v2161 = vunpack.c.l.b16 %v2141
  %v2162 = vunpack.c.h.b16 %v2141
  %v2163 = vunpack.c.l.b16 %v2142
  %v2164 = vunpack.c.h.b16 %v2142
  %v2165 = vunpack.c.l.b16 %v2143
  %v2166 = vunpack.c.h.b16 %v2143
  %v2167 = vunpack.c.l.b16 %v2144
  %v2168 = vunpack.c.h.b16 %v2144
  %v2169 = vpack.c.b16 %v2153, %v2153
  %v2170 = vpack.c.b16 %v2154, %v2154
  %v2171 = vpack.c.b16 %v2155, %v2155
  %v2172 = vpack.c.b16 %v2156, %v2156
  %v2173 = vpack.c.b16 %v2157, %v2157
  %v2174 = vpack.c.b16 %v2158, %v2158
  %v2175 = vpack.c.b16 %v2159, %v2159
  %v2176 = vpack.c.b16 %v2160, %v2160
  %v2177 = vpack.c.b16 %v2161, %v2161
  %v2178 = vpack.c.b16 %v2162, %v2162
  %v2179 = vpack.c.b16 %v2163, %v2163
  %v2180 = vpack.c.b16 %v2164, %v2164
  %v2181 = vpack.c.b16 %v2165, %v2165
  %v2182 = vpack.c.b16 %v2166, %v2166
  %v2183 = vpack.c.b16 %v2167, %v2167
  %v2184 = vpack.c.b16 %v2168, %v2168
  %s2201 = scalar_lea.vmem %s4, 192
  %2202 = vst [vmem:[%s2201] sm:$0xf] %v2169
  %2203 = vst [vmem:[%s2201 + $0x4] sm:$0xf] %v2170
  %2204 = vst [vmem:[%s2201 + $0x8] sm:$0xf] %v2171
  %2205 = vst [vmem:[%s2201 + $0xc] sm:$0xf] %v2172
  %2206 = vst [vmem:[%s2201 + $0x10] sm:$0xf] %v2173
  %2207 = vst [vmem:[%s2201 + $0x14] sm:$0xf] %v2174
  %2208 = vst [vmem:[%s2201 + $0x18] sm:$0xf] %v2175
  %2209 = vst [vmem:[%s2201 + $0x1c] sm:$0xf] %v2176
  %2210 = vst [vmem:[%s2201 + $0x20] sm:$0xf] %v2177
  %2211 = vst [vmem:[%s2201 + $0x24] sm:$0xf] %v2178
  %2212 = vst [vmem:[%s2201 + $0x28] sm:$0xf] %v2179
  %2213 = vst [vmem:[%s2201 + $0x2c] sm:$0xf] %v2180
  %2214 = vst [vmem:[%s2201 + $0x30] sm:$0xf] %v2181
  %2215 = vst [vmem:[%s2201 + $0x34] sm:$0xf] %v2182
  %2216 = vst [vmem:[%s2201 + $0x38] sm:$0xf] %v2183
  %2217 = vst [vmem:[%s2201 + $0x3c] sm:$0xf] %v2184
  // Predicated region
  $region18: #{generator_forward.6} parent=0 // pred_check
    _
  $region19: #{generator_forward.6} parent=0 // pred_check_branch
    %2219 = sbr.rel (0) target = $region21
  $region20: #{generator_forward.6} parent=0 // pred_region
    _
  $region21: #{generator_forward.6} parent=0 // pred_fallthru
    _
  // Predicated region
  $region22: #{generator_forward.6} parent=0 // pred_check
    _
  $region23: #{generator_forward.6} parent=0 // pred_check_branch
    %2221 = sbr.rel (0) target = $region25
  $region24: #{generator_forward.6} parent=0 // pred_region
    _
  $region25: #{generator_forward.6} parent=0 // pred_fallthru
    _

// kernel: generator_forward.7
$region0: #{generator_forward.7}
  #allocation0 [shape = 'u32[]', space=smem, size = 0x4, offset = 0x4, fixed_abs, tag = 'smem constant byte address 0x4 - core index']
  #allocation1 [shape = 'u32[144,128]{1,0:T(1,128)}', space=vmem, size = 0x12000, scoped, tag = 'internal scratch']
  %s0 = inlined_call_operand.vmem [shape: bf16[4,8,128], index: 0, kind: input, shape index: {}]
  %s1 = inlined_call_operand.vmem [shape: bf16[4,128,512], index: 1, kind: input, shape index: {}]
  %s2 = inlined_call_operand.vmem [shape: f32[4,8,512], index: 2, kind: output, shape index: {}]
  %s3 = sld [smem:[#allocation0]]
  $region18: #{generator_forward.7} parent=0
    _
  %s5 = ssub.s32 1, %s3
  %s6 = scalar_select 0, %s5, %s3
  // Predicated region
  $region2: #{generator_forward.7} parent=0 // pred_check
    _
  $region3: #{generator_forward.7} parent=0 // pred_check_branch
    %8 = sbr.rel (0) target = $region5
  $region4: #{generator_forward.7} parent=0 // pred_region
    _
  $region5: #{generator_forward.7} parent=0 // pred_fallthru
    _
  // Predicated region
  $region6: #{generator_forward.7} parent=0 // pred_check
    _
  $region7: #{generator_forward.7} parent=0 // pred_check_branch
    %10 = sbr.rel (0) target = $region9
  $region8: #{generator_forward.7} parent=0 // pred_region
    _
  $region9: #{generator_forward.7} parent=0 // pred_fallthru
    _
  %v12 = vld [vmem:[%s0] sm:$0xf]
  %v13 = vld [vmem:[%s1] sm:$0xff]
  %v14 = vld [vmem:[%s1 + $0x8] sm:$0xff]
  %v15 = vld [vmem:[%s1 + $0x10] sm:$0xff]
  %v16 = vld [vmem:[%s1 + $0x18] sm:$0xff]
  %v17 = vld [vmem:[%s1 + $0x20] sm:$0xff]
  %v18 = vld [vmem:[%s1 + $0x28] sm:$0xff]
  %v19 = vld [vmem:[%s1 + $0x30] sm:$0xff]
  %v20 = vld [vmem:[%s1 + $0x38] sm:$0xff]
  %v21 = vld [vmem:[%s1 + $0x40] sm:$0xff]
  %v22 = vld [vmem:[%s1 + $0x48] sm:$0xff]
  %v23 = vld [vmem:[%s1 + $0x50] sm:$0xff]
  %v24 = vld [vmem:[%s1 + $0x58] sm:$0xff]
  %v25 = vld [vmem:[%s1 + $0x60] sm:$0xff]
  %v26 = vld [vmem:[%s1 + $0x68] sm:$0xff]
  %v27 = vld [vmem:[%s1 + $0x70] sm:$0xff]
  %v28 = vld [vmem:[%s1 + $0x78] sm:$0xff]
  %v29 = vld [vmem:[%s1 + $0x80] sm:$0xff]
  %v30 = vld [vmem:[%s1 + $0x88] sm:$0xff]
  %v31 = vld [vmem:[%s1 + $0x90] sm:$0xff]
  %v32 = vld [vmem:[%s1 + $0x98] sm:$0xff]
  %v33 = vld [vmem:[%s1 + $0xa0] sm:$0xff]
  %v34 = vld [vmem:[%s1 + $0xa8] sm:$0xff]
  %v35 = vld [vmem:[%s1 + $0xb0] sm:$0xff]
  %v36 = vld [vmem:[%s1 + $0xb8] sm:$0xff]
  %v37 = vld [vmem:[%s1 + $0xc0] sm:$0xff]
  %v38 = vld [vmem:[%s1 + $0xc8] sm:$0xff]
  %v39 = vld [vmem:[%s1 + $0xd0] sm:$0xff]
  %v40 = vld [vmem:[%s1 + $0xd8] sm:$0xff]
  %v41 = vld [vmem:[%s1 + $0xe0] sm:$0xff]
  %v42 = vld [vmem:[%s1 + $0xe8] sm:$0xff]
  %v43 = vld [vmem:[%s1 + $0xf0] sm:$0xff]
  %v44 = vld [vmem:[%s1 + $0xf8] sm:$0xff]
  %v77 = vunpack.c.l.b16 %v13
  %v78 = vunpack.c.h.b16 %v13
  %v79 = vunpack.c.l.b16 %v14
  %v80 = vunpack.c.h.b16 %v14
  %v81 = vunpack.c.l.b16 %v15
  %v82 = vunpack.c.h.b16 %v15
  %v83 = vunpack.c.l.b16 %v16
  %v84 = vunpack.c.h.b16 %v16
  %v85 = vunpack.c.l.b16 %v17
  %v86 = vunpack.c.h.b16 %v17
  %v87 = vunpack.c.l.b16 %v18
  %v88 = vunpack.c.h.b16 %v18
  %v89 = vunpack.c.l.b16 %v19
  %v90 = vunpack.c.h.b16 %v19
  %v91 = vunpack.c.l.b16 %v20
  %v92 = vunpack.c.h.b16 %v20
  %v93 = vunpack.c.l.b16 %v21
  %v94 = vunpack.c.h.b16 %v21
  %v95 = vunpack.c.l.b16 %v22
  %v96 = vunpack.c.h.b16 %v22
  %v97 = vunpack.c.l.b16 %v23
  %v98 = vunpack.c.h.b16 %v23
  %v99 = vunpack.c.l.b16 %v24
  %v100 = vunpack.c.h.b16 %v24
  %v101 = vunpack.c.l.b16 %v25
  %v102 = vunpack.c.h.b16 %v25
  %v103 = vunpack.c.l.b16 %v26
  %v104 = vunpack.c.h.b16 %v26
  %v105 = vunpack.c.l.b16 %v27
  %v106 = vunpack.c.h.b16 %v27
  %v107 = vunpack.c.l.b16 %v28
  %v108 = vunpack.c.h.b16 %v28
  %v109 = vunpack.c.l.b16 %v29
  %v110 = vunpack.c.h.b16 %v29
  %v111 = vunpack.c.l.b16 %v30
  %v112 = vunpack.c.h.b16 %v30
  %v113 = vunpack.c.l.b16 %v31
  %v114 = vunpack.c.h.b16 %v31
  %v115 = vunpack.c.l.b16 %v32
  %v116 = vunpack.c.h.b16 %v32
  %v117 = vunpack.c.l.b16 %v33
  %v118 = vunpack.c.h.b16 %v33
  %v119 = vunpack.c.l.b16 %v34
  %v120 = vunpack.c.h.b16 %v34
  %v121 = vunpack.c.l.b16 %v35
  %v122 = vunpack.c.h.b16 %v35
  %v123 = vunpack.c.l.b16 %v36
  %v124 = vunpack.c.h.b16 %v36
  %v125 = vunpack.c.l.b16 %v37
  %v126 = vunpack.c.h.b16 %v37
  %v127 = vunpack.c.l.b16 %v38
  %v128 = vunpack.c.h.b16 %v38
  %v129 = vunpack.c.l.b16 %v39
  %v130 = vunpack.c.h.b16 %v39
  %v131 = vunpack.c.l.b16 %v40
  %v132 = vunpack.c.h.b16 %v40
  %v133 = vunpack.c.l.b16 %v41
  %v134 = vunpack.c.h.b16 %v41
  %v135 = vunpack.c.l.b16 %v42
  %v136 = vunpack.c.h.b16 %v42
  %v137 = vunpack.c.l.b16 %v43
  %v138 = vunpack.c.h.b16 %v43
  %v139 = vunpack.c.l.b16 %v44
  %v140 = vunpack.c.h.b16 %v44
  %v141 = vpack.c.b16 %v81, %v77
  %v142 = vpack.c.b16 %v82, %v78
  %v143 = vpack.c.b16 %v83, %v79
  %v144 = vpack.c.b16 %v84, %v80
  %v145 = vpack.c.b16 %v89, %v85
  %v146 = vpack.c.b16 %v90, %v86
  %v147 = vpack.c.b16 %v91, %v87
  %v148 = vpack.c.b16 %v92, %v88
  %v149 = vpack.c.b16 %v97, %v93
  %v150 = vpack.c.b16 %v98, %v94
  %v151 = vpack.c.b16 %v99, %v95
  %v152 = vpack.c.b16 %v100, %v96
  %v153 = vpack.c.b16 %v105, %v101
  %v154 = vpack.c.b16 %v106, %v102
  %v155 = vpack.c.b16 %v107, %v103
  %v156 = vpack.c.b16 %v108, %v104
  %v157 = vpack.c.b16 %v113, %v109
  %v158 = vpack.c.b16 %v114, %v110
  %v159 = vpack.c.b16 %v115, %v111
  %v160 = vpack.c.b16 %v116, %v112
  %v161 = vpack.c.b16 %v121, %v117
  %v162 = vpack.c.b16 %v122, %v118
  %v163 = vpack.c.b16 %v123, %v119
  %v164 = vpack.c.b16 %v124, %v120
  %v165 = vpack.c.b16 %v129, %v125
  %v166 = vpack.c.b16 %v130, %v126
  %v167 = vpack.c.b16 %v131, %v127
  %v168 = vpack.c.b16 %v132, %v128
  %v169 = vpack.c.b16 %v137, %v133
  %v170 = vpack.c.b16 %v138, %v134
  %v171 = vpack.c.b16 %v139, %v135
  %v172 = vpack.c.b16 %v140, %v136
  %205 = vmatprep.subr.bf16.mxu0 %v142
  %206 = vmatpush1.bf16.msra.mxu0 %v141
  %207 = vmatprep.subr.bf16.mxu0 %v146
  %208 = vmatpush1.bf16.msra.mxu0 %v145
  %209 = vmatprep.subr.bf16.mxu0 %v150
  %210 = vmatpush1.bf16.msra.mxu0 %v149
  %211 = vmatprep.subr.bf16.mxu0 %v154
  %212 = vmatpush1.bf16.msra.mxu0 %v153
  %213 = vmatprep.subr.bf16.mxu0 %v158
  %214 = vmatpush1.bf16.msra.mxu0 %v157
  %215 = vmatprep.subr.bf16.mxu0 %v162
  %216 = vmatpush1.bf16.msra.mxu0 %v161
  %217 = vmatprep.subr.bf16.mxu0 %v166
  %218 = vmatpush1.bf16.msra.mxu0 %v165
  %219 = vmatprep.subr.bf16.mxu0 %v170
  %220 = vmatpush1.bf16.msra.mxu0 %v169
  %221 = vmatprep.subr.bf16.mxu0 0
  %222 = vmatpush1.bf16.msra.mxu0 0
  %223 = vmatprep.subr.bf16.mxu0 0
  %224 = vmatpush1.bf16.msra.mxu0 0
  %225 = vmatprep.subr.bf16.mxu0 0
  %226 = vmatpush1.bf16.msra.mxu0 0
  %227 = vmatprep.subr.bf16.mxu0 0
  %228 = vmatpush1.bf16.msra.mxu0 0
  %229 = vmatprep.subr.bf16.mxu0 0
  %230 = vmatpush1.bf16.msra.mxu0 0
  %231 = vmatprep.subr.bf16.mxu0 0
  %232 = vmatpush1.bf16.msra.mxu0 0
  %233 = vmatprep.subr.bf16.mxu0 0
  %234 = vmatpush1.bf16.msra.mxu0 0
  %235 = vmatprep.subr.bf16.mxu0 0
  %236 = vmatpush1.bf16.msra.mxu0 0
  %237 = vmatprep.mubr.bf16.mxu0 0
  %238 = vmatmul.mubr.bf16.gmra.mrb[0].mxu0 %v12
  %v239 = vpop.f32.mrb[0].mxu0
  %v240 = vadd.f32 0.0, %v239
  %v241 = vpop.f32.mrb[0].mxu0
  %v242 = vadd.f32 0.0, %v241
  %v243 = vpop.f32.mrb[0].mxu0
  %v244 = vpop.f32.mrb[0].mxu0
  %245 = vdwg.mxu0
  %246 = vmatprep.subr.bf16.mxu0 %v144
  %247 = vmatpush1.bf16.msra.mxu0 %v143
  %248 = vmatprep.subr.bf16.mxu0 %v148
  %249 = vmatpush1.bf16.msra.mxu0 %v147
  %250 = vmatprep.subr.bf16.mxu0 %v152
  %251 = vmatpush1.bf16.msra.mxu0 %v151
  %252 = vmatprep.subr.bf16.mxu0 %v156
  %253 = vmatpush1.bf16.msra.mxu0 %v155
  %254 = vmatprep.subr.bf16.mxu0 %v160
  %255 = vmatpush1.bf16.msra.mxu0 %v159
  %256 = vmatprep.subr.bf16.mxu0 %v164
  %257 = vmatpush1.bf16.msra.mxu0 %v163
  %258 = vmatprep.subr.bf16.mxu0 %v168
  %259 = vmatpush1.bf16.msra.mxu0 %v167
  %260 = vmatprep.subr.bf16.mxu0 %v172
  %261 = vmatpush1.bf16.msra.mxu0 %v171
  %262 = vmatprep.subr.bf16.mxu0 0
  %263 = vmatpush1.bf16.msra.mxu0 0
  %264 = vmatprep.subr.bf16.mxu0 0
  %265 = vmatpush1.bf16.msra.mxu0 0
  %266 = vmatprep.subr.bf16.mxu0 0
  %267 = vmatpush1.bf16.msra.mxu0 0
  %268 = vmatprep.subr.bf16.mxu0 0
  %269 = vmatpush1.bf16.msra.mxu0 0
  %270 = vmatprep.subr.bf16.mxu0 0
  %271 = vmatpush1.bf16.msra.mxu0 0
  %272 = vmatprep.subr.bf16.mxu0 0
  %273 = vmatpush1.bf16.msra.mxu0 0
  %274 = vmatprep.subr.bf16.mxu0 0
  %275 = vmatpush1.bf16.msra.mxu0 0
  %276 = vmatprep.subr.bf16.mxu0 0
  %277 = vmatpush1.bf16.msra.mxu0 0
  %278 = vmatprep.mubr.bf16.mxu0 0
  %279 = vmatmul.mubr.bf16.gmra.mrb[0].mxu0 %v12
  %v280 = vpop.f32.mrb[0].mxu0
  %v281 = vadd.f32 0.0, %v280
  %v282 = vpop.f32.mrb[0].mxu0
  %v283 = vadd.f32 0.0, %v282
  %v284 = vpop.f32.mrb[0].mxu0
  %v285 = vpop.f32.mrb[0].mxu0
  %286 = vdwg.mxu0
  %v287 = vtanh.pop %v240
  %v288 = vtanh.pop %v242
  %v289 = vtanh.pop %v281
  %v290 = vtanh.pop %v283
  %291 = vst [vmem:[%s2] sm:$0xff] %v287
  %292 = vst [vmem:[%s2 + $0x8] sm:$0xff] %v288
  %293 = vst [vmem:[%s2 + $0x10] sm:$0xff] %v289
  %294 = vst [vmem:[%s2 + $0x18] sm:$0xff] %v290
  %s295 = scalar_lea.vmem %s0, 4
  %v296 = vld [vmem:[%s295] sm:$0xf]
  %s297 = scalar_lea.vmem %s1, 256
  %v298 = vld [vmem:[%s297] sm:$0xff]
  %v299 = vld [vmem:[%s297 + $0x8] sm:$0xff]
  %v300 = vld [vmem:[%s297 + $0x10] sm:$0xff]
  %v301 = vld [vmem:[%s297 + $0x18] sm:$0xff]
  %v302 = vld [vmem:[%s297 + $0x20] sm:$0xff]
  %v303 = vld [vmem:[%s297 + $0x28] sm:$0xff]
  %v304 = vld [vmem:[%s297 + $0x30] sm:$0xff]
  %v305 = vld [vmem:[%s297 + $0x38] sm:$0xff]
  %v306 = vld [vmem:[%s297 + $0x40] sm:$0xff]
  %v307 = vld [vmem:[%s297 + $0x48] sm:$0xff]
  %v308 = vld [vmem:[%s297 + $0x50] sm:$0xff]
  %v309 = vld [vmem:[%s297 + $0x58] sm:$0xff]
  %v310 = vld [vmem:[%s297 + $0x60] sm:$0xff]
  %v311 = vld [vmem:[%s297 + $0x68] sm:$0xff]
  %v312 = vld [vmem:[%s297 + $0x70] sm:$0xff]
  %v313 = vld [vmem:[%s297 + $0x78] sm:$0xff]
  %v314 = vld [vmem:[%s297 + $0x80] sm:$0xff]
  %v315 = vld [vmem:[%s297 + $0x88] sm:$0xff]
  %v316 = vld [vmem:[%s297 + $0x90] sm:$0xff]
  %v317 = vld [vmem:[%s297 + $0x98] sm:$0xff]
  %v318 = vld [vmem:[%s297 + $0xa0] sm:$0xff]
  %v319 = vld [vmem:[%s297 + $0xa8] sm:$0xff]
  %v320 = vld [vmem:[%s297 + $0xb0] sm:$0xff]
  %v321 = vld [vmem:[%s297 + $0xb8] sm:$0xff]
  %v322 = vld [vmem:[%s297 + $0xc0] sm:$0xff]
  %v323 = vld [vmem:[%s297 + $0xc8] sm:$0xff]
  %v324 = vld [vmem:[%s297 + $0xd0] sm:$0xff]
  %v325 = vld [vmem:[%s297 + $0xd8] sm:$0xff]
  %v326 = vld [vmem:[%s297 + $0xe0] sm:$0xff]
  %v327 = vld [vmem:[%s297 + $0xe8] sm:$0xff]
  %v328 = vld [vmem:[%s297 + $0xf0] sm:$0xff]
  %v329 = vld [vmem:[%s297 + $0xf8] sm:$0xff]
  %v362 = vunpack.c.l.b16 %v298
  %v363 = vunpack.c.h.b16 %v298
  %v364 = vunpack.c.l.b16 %v299
  %v365 = vunpack.c.h.b16 %v299
  %v366 = vunpack.c.l.b16 %v300
  %v367 = vunpack.c.h.b16 %v300
  %v368 = vunpack.c.l.b16 %v301
  %v369 = vunpack.c.h.b16 %v301
  %v370 = vunpack.c.l.b16 %v302
  %v371 = vunpack.c.h.b16 %v302
  %v372 = vunpack.c.l.b16 %v303
  %v373 = vunpack.c.h.b16 %v303
  %v374 = vunpack.c.l.b16 %v304
  %v375 = vunpack.c.h.b16 %v304
  %v376 = vunpack.c.l.b16 %v305
  %v377 = vunpack.c.h.b16 %v305
  %v378 = vunpack.c.l.b16 %v306
  %v379 = vunpack.c.h.b16 %v306
  %v380 = vunpack.c.l.b16 %v307
  %v381 = vunpack.c.h.b16 %v307
  %v382 = vunpack.c.l.b16 %v308
  %v383 = vunpack.c.h.b16 %v308
  %v384 = vunpack.c.l.b16 %v309
  %v385 = vunpack.c.h.b16 %v309
  %v386 = vunpack.c.l.b16 %v310
  %v387 = vunpack.c.h.b16 %v310
  %v388 = vunpack.c.l.b16 %v311
  %v389 = vunpack.c.h.b16 %v311
  %v390 = vunpack.c.l.b16 %v312
  %v391 = vunpack.c.h.b16 %v312
  %v392 = vunpack.c.l.b16 %v313
  %v393 = vunpack.c.h.b16 %v313
  %v394 = vunpack.c.l.b16 %v314
  %v395 = vunpack.c.h.b16 %v314
  %v396 = vunpack.c.l.b16 %v315
  %v397 = vunpack.c.h.b16 %v315
  %v398 = vunpack.c.l.b16 %v316
  %v399 = vunpack.c.h.b16 %v316
  %v400 = vunpack.c.l.b16 %v317
  %v401 = vunpack.c.h.b16 %v317
  %v402 = vunpack.c.l.b16 %v318
  %v403 = vunpack.c.h.b16 %v318
  %v404 = vunpack.c.l.b16 %v319
  %v405 = vunpack.c.h.b16 %v319
  %v406 = vunpack.c.l.b16 %v320
  %v407 = vunpack.c.h.b16 %v320
  %v408 = vunpack.c.l.b16 %v321
  %v409 = vunpack.c.h.b16 %v321
  %v410 = vunpack.c.l.b16 %v322
  %v411 = vunpack.c.h.b16 %v322
  %v412 = vunpack.c.l.b16 %v323
  %v413 = vunpack.c.h.b16 %v323
  %v414 = vunpack.c.l.b16 %v324
  %v415 = vunpack.c.h.b16 %v324
  %v416 = vunpack.c.l.b16 %v325
  %v417 = vunpack.c.h.b16 %v325
  %v418 = vunpack.c.l.b16 %v326
  %v419 = vunpack.c.h.b16 %v326
  %v420 = vunpack.c.l.b16 %v327
  %v421 = vunpack.c.h.b16 %v327
  %v422 = vunpack.c.l.b16 %v328
  %v423 = vunpack.c.h.b16 %v328
  %v424 = vunpack.c.l.b16 %v329
  %v425 = vunpack.c.h.b16 %v329
  %v426 = vpack.c.b16 %v366, %v362
  %v427 = vpack.c.b16 %v367, %v363
  %v428 = vpack.c.b16 %v368, %v364
  %v429 = vpack.c.b16 %v369, %v365
  %v430 = vpack.c.b16 %v374, %v370
  %v431 = vpack.c.b16 %v375, %v371
  %v432 = vpack.c.b16 %v376, %v372
  %v433 = vpack.c.b16 %v377, %v373
  %v434 = vpack.c.b16 %v382, %v378
  %v435 = vpack.c.b16 %v383, %v379
  %v436 = vpack.c.b16 %v384, %v380
  %v437 = vpack.c.b16 %v385, %v381
  %v438 = vpack.c.b16 %v390, %v386
  %v439 = vpack.c.b16 %v391, %v387
  %v440 = vpack.c.b16 %v392, %v388
  %v441 = vpack.c.b16 %v393, %v389
  %v442 = vpack.c.b16 %v398, %v394
  %v443 = vpack.c.b16 %v399, %v395
  %v444 = vpack.c.b16 %v400, %v396
  %v445 = vpack.c.b16 %v401, %v397
  %v446 = vpack.c.b16 %v406, %v402
  %v447 = vpack.c.b16 %v407, %v403
  %v448 = vpack.c.b16 %v408, %v404
  %v449 = vpack.c.b16 %v409, %v405
  %v450 = vpack.c.b16 %v414, %v410
  %v451 = vpack.c.b16 %v415, %v411
  %v452 = vpack.c.b16 %v416, %v412
  %v453 = vpack.c.b16 %v417, %v413
  %v454 = vpack.c.b16 %v422, %v418
  %v455 = vpack.c.b16 %v423, %v419
  %v456 = vpack.c.b16 %v424, %v420
  %v457 = vpack.c.b16 %v425, %v421
  %490 = vmatprep.subr.bf16.mxu0 %v427
  %491 = vmatpush1.bf16.msra.mxu0 %v426
  %492 = vmatprep.subr.bf16.mxu0 %v431
  %493 = vmatpush1.bf16.msra.mxu0 %v430
  %494 = vmatprep.subr.bf16.mxu0 %v435
  %495 = vmatpush1.bf16.msra.mxu0 %v434
  %496 = vmatprep.subr.bf16.mxu0 %v439
  %497 = vmatpush1.bf16.msra.mxu0 %v438
  %498 = vmatprep.subr.bf16.mxu0 %v443
  %499 = vmatpush1.bf16.msra.mxu0 %v442
  %500 = vmatprep.subr.bf16.mxu0 %v447
  %501 = vmatpush1.bf16.msra.mxu0 %v446
  %502 = vmatprep.subr.bf16.mxu0 %v451
  %503 = vmatpush1.bf16.msra.mxu0 %v450
  %504 = vmatprep.subr.bf16.mxu0 %v455
  %505 = vmatpush1.bf16.msra.mxu0 %v454
  %506 = vmatprep.subr.bf16.mxu0 0
  %507 = vmatpush1.bf16.msra.mxu0 0
  %508 = vmatprep.subr.bf16.mxu0 0
  %509 = vmatpush1.bf16.msra.mxu0 0
  %510 = vmatprep.subr.bf16.mxu0 0
  %511 = vmatpush1.bf16.msra.mxu0 0
  %512 = vmatprep.subr.bf16.mxu0 0
  %513 = vmatpush1.bf16.msra.mxu0 0
  %514 = vmatprep.subr.bf16.mxu0 0
  %515 = vmatpush1.bf16.msra.mxu0 0
  %516 = vmatprep.subr.bf16.mxu0 0
  %517 = vmatpush1.bf16.msra.mxu0 0
  %518 = vmatprep.subr.bf16.mxu0 0
  %519 = vmatpush1.bf16.msra.mxu0 0
  %520 = vmatprep.subr.bf16.mxu0 0
  %521 = vmatpush1.bf16.msra.mxu0 0
  %522 = vmatprep.mubr.bf16.mxu0 0
  %523 = vmatmul.mubr.bf16.gmra.mrb[0].mxu0 %v296
  %v524 = vpop.f32.mrb[0].mxu0
  %v525 = vadd.f32 0.0, %v524
  %v526 = vpop.f32.mrb[0].mxu0
  %v527 = vadd.f32 0.0, %v526
  %v528 = vpop.f32.mrb[0].mxu0
  %v529 = vpop.f32.mrb[0].mxu0
  %530 = vdwg.mxu0
  %531 = vmatprep.subr.bf16.mxu0 %v429
  %532 = vmatpush1.bf16.msra.mxu0 %v428
  %533 = vmatprep.subr.bf16.mxu0 %v433
  %534 = vmatpush1.bf16.msra.mxu0 %v432
  %535 = vmatprep.subr.bf16.mxu0 %v437
  %536 = vmatpush1.bf16.msra.mxu0 %v436
  %537 = vmatprep.subr.bf16.mxu0 %v441
  %538 = vmatpush1.bf16.msra.mxu0 %v440
  %539 = vmatprep.subr.bf16.mxu0 %v445
  %540 = vmatpush1.bf16.msra.mxu0 %v444
  %541 = vmatprep.subr.bf16.mxu0 %v449
  %542 = vmatpush1.bf16.msra.mxu0 %v448
  %543 = vmatprep.subr.bf16.mxu0 %v453
  %544 = vmatpush1.bf16.msra.mxu0 %v452
  %545 = vmatprep.subr.bf16.mxu0 %v457
  %546 = vmatpush1.bf16.msra.mxu0 %v456
  %547 = vmatprep.subr.bf16.mxu0 0
  %548 = vmatpush1.bf16.msra.mxu0 0
  %549 = vmatprep.subr.bf16.mxu0 0
  %550 = vmatpush1.bf16.msra.mxu0 0
  %551 = vmatprep.subr.bf16.mxu0 0
  %552 = vmatpush1.bf16.msra.mxu0 0
  %553 = vmatprep.subr.bf16.mxu0 0
  %554 = vmatpush1.bf16.msra.mxu0 0
  %555 = vmatprep.subr.bf16.mxu0 0
  %556 = vmatpush1.bf16.msra.mxu0 0
  %557 = vmatprep.subr.bf16.mxu0 0
  %558 = vmatpush1.bf16.msra.mxu0 0
  %559 = vmatprep.subr.bf16.mxu0 0
  %560 = vmatpush1.bf16.msra.mxu0 0
  %561 = vmatprep.subr.bf16.mxu0 0
  %562 = vmatpush1.bf16.msra.mxu0 0
  %563 = vmatprep.mubr.bf16.mxu0 0
  %564 = vmatmul.mubr.bf16.gmra.mrb[0].mxu0 %v296
  %v565 = vpop.f32.mrb[0].mxu0
  %v566 = vadd.f32 0.0, %v565
  %v567 = vpop.f32.mrb[0].mxu0
  %v568 = vadd.f32 0.0, %v567
  %v569 = vpop.f32.mrb[0].mxu0
  %v570 = vpop.f32.mrb[0].mxu0
  %571 = vdwg.mxu0
  %v572 = vtanh.pop %v525
  %v573 = vtanh.pop %v527
  %v574 = vtanh.pop %v566
  %v575 = vtanh.pop %v568
  %s576 = scalar_lea.vmem %s2, 32
  %577 = vst [vmem:[%s576] sm:$0xff] %v572
  %578 = vst [vmem:[%s576 + $0x8] sm:$0xff] %v573
  %579 = vst [vmem:[%s576 + $0x10] sm:$0xff] %v574
  %580 = vst [vmem:[%s576 + $0x18] sm:$0xff] %v575
  %s581 = scalar_lea.vmem %s0, 8
  %v582 = vld [vmem:[%s581] sm:$0xf]
  %s583 = scalar_lea.vmem %s1, 512
  %v584 = vld [vmem:[%s583] sm:$0xff]
  %v585 = vld [vmem:[%s583 + $0x8] sm:$0xff]
  %v586 = vld [vmem:[%s583 + $0x10] sm:$0xff]
  %v587 = vld [vmem:[%s583 + $0x18] sm:$0xff]
  %v588 = vld [vmem:[%s583 + $0x20] sm:$0xff]
  %v589 = vld [vmem:[%s583 + $0x28] sm:$0xff]
  %v590 = vld [vmem:[%s583 + $0x30] sm:$0xff]
  %v591 = vld [vmem:[%s583 + $0x38] sm:$0xff]
  %v592 = vld [vmem:[%s583 + $0x40] sm:$0xff]
  %v593 = vld [vmem:[%s583 + $0x48] sm:$0xff]
  %v594 = vld [vmem:[%s583 + $0x50] sm:$0xff]
  %v595 = vld [vmem:[%s583 + $0x58] sm:$0xff]
  %v596 = vld [vmem:[%s583 + $0x60] sm:$0xff]
  %v597 = vld [vmem:[%s583 + $0x68] sm:$0xff]
  %v598 = vld [vmem:[%s583 + $0x70] sm:$0xff]
  %v599 = vld [vmem:[%s583 + $0x78] sm:$0xff]
  %v600 = vld [vmem:[%s583 + $0x80] sm:$0xff]
  %v601 = vld [vmem:[%s583 + $0x88] sm:$0xff]
  %v602 = vld [vmem:[%s583 + $0x90] sm:$0xff]
  %v603 = vld [vmem:[%s583 + $0x98] sm:$0xff]
  %v604 = vld [vmem:[%s583 + $0xa0] sm:$0xff]
  %v605 = vld [vmem:[%s583 + $0xa8] sm:$0xff]
  %v606 = vld [vmem:[%s583 + $0xb0] sm:$0xff]
  %v607 = vld [vmem:[%s583 + $0xb8] sm:$0xff]
  %v608 = vld [vmem:[%s583 + $0xc0] sm:$0xff]
  %v609 = vld [vmem:[%s583 + $0xc8] sm:$0xff]
  %v610 = vld [vmem:[%s583 + $0xd0] sm:$0xff]
  %v611 = vld [vmem:[%s583 + $0xd8] sm:$0xff]
  %v612 = vld [vmem:[%s583 + $0xe0] sm:$0xff]
  %v613 = vld [vmem:[%s583 + $0xe8] sm:$0xff]
  %v614 = vld [vmem:[%s583 + $0xf0] sm:$0xff]
  %v615 = vld [vmem:[%s583 + $0xf8] sm:$0xff]
  %v648 = vunpack.c.l.b16 %v584
  %v649 = vunpack.c.h.b16 %v584
  %v650 = vunpack.c.l.b16 %v585
  %v651 = vunpack.c.h.b16 %v585
  %v652 = vunpack.c.l.b16 %v586
  %v653 = vunpack.c.h.b16 %v586
  %v654 = vunpack.c.l.b16 %v587
  %v655 = vunpack.c.h.b16 %v587
  %v656 = vunpack.c.l.b16 %v588
  %v657 = vunpack.c.h.b16 %v588
  %v658 = vunpack.c.l.b16 %v589
  %v659 = vunpack.c.h.b16 %v589
  %v660 = vunpack.c.l.b16 %v590
  %v661 = vunpack.c.h.b16 %v590
  %v662 = vunpack.c.l.b16 %v591
  %v663 = vunpack.c.h.b16 %v591
  %v664 = vunpack.c.l.b16 %v592
  %v665 = vunpack.c.h.b16 %v592
  %v666 = vunpack.c.l.b16 %v593
  %v667 = vunpack.c.h.b16 %v593
  %v668 = vunpack.c.l.b16 %v594
  %v669 = vunpack.c.h.b16 %v594
  %v670 = vunpack.c.l.b16 %v595
  %v671 = vunpack.c.h.b16 %v595
  %v672 = vunpack.c.l.b16 %v596
  %v673 = vunpack.c.h.b16 %v596
  %v674 = vunpack.c.l.b16 %v597
  %v675 = vunpack.c.h.b16 %v597
  %v676 = vunpack.c.l.b16 %v598
  %v677 = vunpack.c.h.b16 %v598
  %v678 = vunpack.c.l.b16 %v599
  %v679 = vunpack.c.h.b16 %v599
  %v680 = vunpack.c.l.b16 %v600
  %v681 = vunpack.c.h.b16 %v600
  %v682 = vunpack.c.l.b16 %v601
  %v683 = vunpack.c.h.b16 %v601
  %v684 = vunpack.c.l.b16 %v602
  %v685 = vunpack.c.h.b16 %v602
  %v686 = vunpack.c.l.b16 %v603
  %v687 = vunpack.c.h.b16 %v603
  %v688 = vunpack.c.l.b16 %v604
  %v689 = vunpack.c.h.b16 %v604
  %v690 = vunpack.c.l.b16 %v605
  %v691 = vunpack.c.h.b16 %v605
  %v692 = vunpack.c.l.b16 %v606
  %v693 = vunpack.c.h.b16 %v606
  %v694 = vunpack.c.l.b16 %v607
  %v695 = vunpack.c.h.b16 %v607
  %v696 = vunpack.c.l.b16 %v608
  %v697 = vunpack.c.h.b16 %v608
  %v698 = vunpack.c.l.b16 %v609
  %v699 = vunpack.c.h.b16 %v609
  %v700 = vunpack.c.l.b16 %v610
  %v701 = vunpack.c.h.b16 %v610
  %v702 = vunpack.c.l.b16 %v611
  %v703 = vunpack.c.h.b16 %v611
  %v704 = vunpack.c.l.b16 %v612
  %v705 = vunpack.c.h.b16 %v612
  %v706 = vunpack.c.l.b16 %v613
  %v707 = vunpack.c.h.b16 %v613
  %v708 = vunpack.c.l.b16 %v614
  %v709 = vunpack.c.h.b16 %v614
  %v710 = vunpack.c.l.b16 %v615
  %v711 = vunpack.c.h.b16 %v615
  %v712 = vpack.c.b16 %v652, %v648
  %v713 = vpack.c.b16 %v653, %v649
  %v714 = vpack.c.b16 %v654, %v650
  %v715 = vpack.c.b16 %v655, %v651
  %v716 = vpack.c.b16 %v660, %v656
  %v717 = vpack.c.b16 %v661, %v657
  %v718 = vpack.c.b16 %v662, %v658
  %v719 = vpack.c.b16 %v663, %v659
  %v720 = vpack.c.b16 %v668, %v664
  %v721 = vpack.c.b16 %v669, %v665
  %v722 = vpack.c.b16 %v670, %v666
  %v723 = vpack.c.b16 %v671, %v667
  %v724 = vpack.c.b16 %v676, %v672
  %v725 = vpack.c.b16 %v677, %v673
  %v726 = vpack.c.b16 %v678, %v674
  %v727 = vpack.c.b16 %v679, %v675
  %v728 = vpack.c.b16 %v684, %v680
  %v729 = vpack.c.b16 %v685, %v681
  %v730 = vpack.c.b16 %v686, %v682
  %v731 = vpack.c.b16 %v687, %v683
  %v732 = vpack.c.b16 %v692, %v688
  %v733 = vpack.c.b16 %v693, %v689
  %v734 = vpack.c.b16 %v694, %v690
  %v735 = vpack.c.b16 %v695, %v691
  %v736 = vpack.c.b16 %v700, %v696
  %v737 = vpack.c.b16 %v701, %v697
  %v738 = vpack.c.b16 %v702, %v698
  %v739 = vpack.c.b16 %v703, %v699
  %v740 = vpack.c.b16 %v708, %v704
  %v741 = vpack.c.b16 %v709, %v705
  %v742 = vpack.c.b16 %v710, %v706
  %v743 = vpack.c.b16 %v711, %v707
  %776 = vmatprep.subr.bf16.mxu0 %v713
  %777 = vmatpush1.bf16.msra.mxu0 %v712
  %778 = vmatprep.subr.bf16.mxu0 %v717
  %779 = vmatpush1.bf16.msra.mxu0 %v716
  %780 = vmatprep.subr.bf16.mxu0 %v721
  %781 = vmatpush1.bf16.msra.mxu0 %v720
  %782 = vmatprep.subr.bf16.mxu0 %v725
  %783 = vmatpush1.bf16.msra.mxu0 %v724
  %784 = vmatprep.subr.bf16.mxu0 %v729
  %785 = vmatpush1.bf16.msra.mxu0 %v728
  %786 = vmatprep.subr.bf16.mxu0 %v733
  %787 = vmatpush1.bf16.msra.mxu0 %v732
  %788 = vmatprep.subr.bf16.mxu0 %v737
  %789 = vmatpush1.bf16.msra.mxu0 %v736
  %790 = vmatprep.subr.bf16.mxu0 %v741
  %791 = vmatpush1.bf16.msra.mxu0 %v740
  %792 = vmatprep.subr.bf16.mxu0 0
  %793 = vmatpush1.bf16.msra.mxu0 0
  %794 = vmatprep.subr.bf16.mxu0 0
  %795 = vmatpush1.bf16.msra.mxu0 0
  %796 = vmatprep.subr.bf16.mxu0 0
  %797 = vmatpush1.bf16.msra.mxu0 0
  %798 = vmatprep.subr.bf16.mxu0 0
  %799 = vmatpush1.bf16.msra.mxu0 0
  %800 = vmatprep.subr.bf16.mxu0 0
  %801 = vmatpush1.bf16.msra.mxu0 0
  %802 = vmatprep.subr.bf16.mxu0 0
  %803 = vmatpush1.bf16.msra.mxu0 0
  %804 = vmatprep.subr.bf16.mxu0 0
  %805 = vmatpush1.bf16.msra.mxu0 0
  %806 = vmatprep.subr.bf16.mxu0 0
  %807 = vmatpush1.bf16.msra.mxu0 0
  %808 = vmatprep.mubr.bf16.mxu0 0
  %809 = vmatmul.mubr.bf16.gmra.mrb[0].mxu0 %v582
  %v810 = vpop.f32.mrb[0].mxu0
  %v811 = vadd.f32 0.0, %v810
  %v812 = vpop.f32.mrb[0].mxu0
  %v813 = vadd.f32 0.0, %v812
  %v814 = vpop.f32.mrb[0].mxu0
  %v815 = vpop.f32.mrb[0].mxu0
  %816 = vdwg.mxu0
  %817 = vmatprep.subr.bf16.mxu0 %v715
  %818 = vmatpush1.bf16.msra.mxu0 %v714
  %819 = vmatprep.subr.bf16.mxu0 %v719
  %820 = vmatpush1.bf16.msra.mxu0 %v718
  %821 = vmatprep.subr.bf16.mxu0 %v723
  %822 = vmatpush1.bf16.msra.mxu0 %v722
  %823 = vmatprep.subr.bf16.mxu0 %v727
  %824 = vmatpush1.bf16.msra.mxu0 %v726
  %825 = vmatprep.subr.bf16.mxu0 %v731
  %826 = vmatpush1.bf16.msra.mxu0 %v730
  %827 = vmatprep.subr.bf16.mxu0 %v735
  %828 = vmatpush1.bf16.msra.mxu0 %v734
  %829 = vmatprep.subr.bf16.mxu0 %v739
  %830 = vmatpush1.bf16.msra.mxu0 %v738
  %831 = vmatprep.subr.bf16.mxu0 %v743
  %832 = vmatpush1.bf16.msra.mxu0 %v742
  %833 = vmatprep.subr.bf16.mxu0 0
  %834 = vmatpush1.bf16.msra.mxu0 0
  %835 = vmatprep.subr.bf16.mxu0 0
  %836 = vmatpush1.bf16.msra.mxu0 0
  %837 = vmatprep.subr.bf16.mxu0 0
  %838 = vmatpush1.bf16.msra.mxu0 0
  %839 = vmatprep.subr.bf16.mxu0 0
  %840 = vmatpush1.bf16.msra.mxu0 0
  %841 = vmatprep.subr.bf16.mxu0 0
  %842 = vmatpush1.bf16.msra.mxu0 0
  %843 = vmatprep.subr.bf16.mxu0 0
  %844 = vmatpush1.bf16.msra.mxu0 0
  %845 = vmatprep.subr.bf16.mxu0 0
  %846 = vmatpush1.bf16.msra.mxu0 0
  %847 = vmatprep.subr.bf16.mxu0 0
  %848 = vmatpush1.bf16.msra.mxu0 0
  %849 = vmatprep.mubr.bf16.mxu0 0
  %850 = vmatmul.mubr.bf16.gmra.mrb[0].mxu0 %v582
  %v851 = vpop.f32.mrb[0].mxu0
  %v852 = vadd.f32 0.0, %v851
  %v853 = vpop.f32.mrb[0].mxu0
  %v854 = vadd.f32 0.0, %v853
  %v855 = vpop.f32.mrb[0].mxu0
  %v856 = vpop.f32.mrb[0].mxu0
  %857 = vdwg.mxu0
  %v858 = vtanh.pop %v811
  %v859 = vtanh.pop %v813
  %v860 = vtanh.pop %v852
  %v861 = vtanh.pop %v854
  %s862 = scalar_lea.vmem %s2, 64
  %863 = vst [vmem:[%s862] sm:$0xff] %v858
  %864 = vst [vmem:[%s862 + $0x8] sm:$0xff] %v859
  %865 = vst [vmem:[%s862 + $0x10] sm:$0xff] %v860
  %866 = vst [vmem:[%s862 + $0x18] sm:$0xff] %v861
  %s867 = scalar_lea.vmem %s0, 12
  %v868 = vld [vmem:[%s867] sm:$0xf]
  %s869 = scalar_lea.vmem %s1, 768
  %v870 = vld [vmem:[%s869] sm:$0xff]
  %v871 = vld [vmem:[%s869 + $0x8] sm:$0xff]
  %v872 = vld [vmem:[%s869 + $0x10] sm:$0xff]
  %v873 = vld [vmem:[%s869 + $0x18] sm:$0xff]
  %v874 = vld [vmem:[%s869 + $0x20] sm:$0xff]
  %v875 = vld [vmem:[%s869 + $0x28] sm:$0xff]
  %v876 = vld [vmem:[%s869 + $0x30] sm:$0xff]
  %v877 = vld [vmem:[%s869 + $0x38] sm:$0xff]
  %v878 = vld [vmem:[%s869 + $0x40] sm:$0xff]
  %v879 = vld [vmem:[%s869 + $0x48] sm:$0xff]
  %v880 = vld [vmem:[%s869 + $0x50] sm:$0xff]
  %v881 = vld [vmem:[%s869 + $0x58] sm:$0xff]
  %v882 = vld [vmem:[%s869 + $0x60] sm:$0xff]
  %v883 = vld [vmem:[%s869 + $0x68] sm:$0xff]
  %v884 = vld [vmem:[%s869 + $0x70] sm:$0xff]
  %v885 = vld [vmem:[%s869 + $0x78] sm:$0xff]
  %v886 = vld [vmem:[%s869 + $0x80] sm:$0xff]
  %v887 = vld [vmem:[%s869 + $0x88] sm:$0xff]
  %v888 = vld [vmem:[%s869 + $0x90] sm:$0xff]
  %v889 = vld [vmem:[%s869 + $0x98] sm:$0xff]
  %v890 = vld [vmem:[%s869 + $0xa0] sm:$0xff]
  %v891 = vld [vmem:[%s869 + $0xa8] sm:$0xff]
  %v892 = vld [vmem:[%s869 + $0xb0] sm:$0xff]
  %v893 = vld [vmem:[%s869 + $0xb8] sm:$0xff]
  %v894 = vld [vmem:[%s869 + $0xc0] sm:$0xff]
  %v895 = vld [vmem:[%s869 + $0xc8] sm:$0xff]
  %v896 = vld [vmem:[%s869 + $0xd0] sm:$0xff]
  %v897 = vld [vmem:[%s869 + $0xd8] sm:$0xff]
  %v898 = vld [vmem:[%s869 + $0xe0] sm:$0xff]
  %v899 = vld [vmem:[%s869 + $0xe8] sm:$0xff]
  %v900 = vld [vmem:[%s869 + $0xf0] sm:$0xff]
  %v901 = vld [vmem:[%s869 + $0xf8] sm:$0xff]
  %v934 = vunpack.c.l.b16 %v870
  %v935 = vunpack.c.h.b16 %v870
  %v936 = vunpack.c.l.b16 %v871
  %v937 = vunpack.c.h.b16 %v871
  %v938 = vunpack.c.l.b16 %v872
  %v939 = vunpack.c.h.b16 %v872
  %v940 = vunpack.c.l.b16 %v873
  %v941 = vunpack.c.h.b16 %v873
  %v942 = vunpack.c.l.b16 %v874
  %v943 = vunpack.c.h.b16 %v874
  %v944 = vunpack.c.l.b16 %v875
  %v945 = vunpack.c.h.b16 %v875
  %v946 = vunpack.c.l.b16 %v876
  %v947 = vunpack.c.h.b16 %v876
  %v948 = vunpack.c.l.b16 %v877
  %v949 = vunpack.c.h.b16 %v877
  %v950 = vunpack.c.l.b16 %v878
  %v951 = vunpack.c.h.b16 %v878
  %v952 = vunpack.c.l.b16 %v879
  %v953 = vunpack.c.h.b16 %v879
  %v954 = vunpack.c.l.b16 %v880
  %v955 = vunpack.c.h.b16 %v880
  %v956 = vunpack.c.l.b16 %v881
  %v957 = vunpack.c.h.b16 %v881
  %v958 = vunpack.c.l.b16 %v882
  %v959 = vunpack.c.h.b16 %v882
  %v960 = vunpack.c.l.b16 %v883
  %v961 = vunpack.c.h.b16 %v883
  %v962 = vunpack.c.l.b16 %v884
  %v963 = vunpack.c.h.b16 %v884
  %v964 = vunpack.c.l.b16 %v885
  %v965 = vunpack.c.h.b16 %v885
  %v966 = vunpack.c.l.b16 %v886
  %v967 = vunpack.c.h.b16 %v886
  %v968 = vunpack.c.l.b16 %v887
  %v969 = vunpack.c.h.b16 %v887
  %v970 = vunpack.c.l.b16 %v888
  %v971 = vunpack.c.h.b16 %v888
  %v972 = vunpack.c.l.b16 %v889
  %v973 = vunpack.c.h.b16 %v889
  %v974 = vunpack.c.l.b16 %v890
  %v975 = vunpack.c.h.b16 %v890
  %v976 = vunpack.c.l.b16 %v891
  %v977 = vunpack.c.h.b16 %v891
  %v978 = vunpack.c.l.b16 %v892
  %v979 = vunpack.c.h.b16 %v892
  %v980 = vunpack.c.l.b16 %v893
  %v981 = vunpack.c.h.b16 %v893
  %v982 = vunpack.c.l.b16 %v894
  %v983 = vunpack.c.h.b16 %v894
  %v984 = vunpack.c.l.b16 %v895
  %v985 = vunpack.c.h.b16 %v895
  %v986 = vunpack.c.l.b16 %v896
  %v987 = vunpack.c.h.b16 %v896
  %v988 = vunpack.c.l.b16 %v897
  %v989 = vunpack.c.h.b16 %v897
  %v990 = vunpack.c.l.b16 %v898
  %v991 = vunpack.c.h.b16 %v898
  %v992 = vunpack.c.l.b16 %v899
  %v993 = vunpack.c.h.b16 %v899
  %v994 = vunpack.c.l.b16 %v900
  %v995 = vunpack.c.h.b16 %v900
  %v996 = vunpack.c.l.b16 %v901
  %v997 = vunpack.c.h.b16 %v901
  %v998 = vpack.c.b16 %v938, %v934
  %v999 = vpack.c.b16 %v939, %v935
  %v1000 = vpack.c.b16 %v940, %v936
  %v1001 = vpack.c.b16 %v941, %v937
  %v1002 = vpack.c.b16 %v946, %v942
  %v1003 = vpack.c.b16 %v947, %v943
  %v1004 = vpack.c.b16 %v948, %v944
  %v1005 = vpack.c.b16 %v949, %v945
  %v1006 = vpack.c.b16 %v954, %v950
  %v1007 = vpack.c.b16 %v955, %v951
  %v1008 = vpack.c.b16 %v956, %v952
  %v1009 = vpack.c.b16 %v957, %v953
  %v1010 = vpack.c.b16 %v962, %v958
  %v1011 = vpack.c.b16 %v963, %v959
  %v1012 = vpack.c.b16 %v964, %v960
  %v1013 = vpack.c.b16 %v965, %v961
  %v1014 = vpack.c.b16 %v970, %v966
  %v1015 = vpack.c.b16 %v971, %v967
  %v1016 = vpack.c.b16 %v972, %v968
  %v1017 = vpack.c.b16 %v973, %v969
  %v1018 = vpack.c.b16 %v978, %v974
  %v1019 = vpack.c.b16 %v979, %v975
  %v1020 = vpack.c.b16 %v980, %v976
  %v1021 = vpack.c.b16 %v981, %v977
  %v1022 = vpack.c.b16 %v986, %v982
  %v1023 = vpack.c.b16 %v987, %v983
  %v1024 = vpack.c.b16 %v988, %v984
  %v1025 = vpack.c.b16 %v989, %v985
  %v1026 = vpack.c.b16 %v994, %v990
  %v1027 = vpack.c.b16 %v995, %v991
  %v1028 = vpack.c.b16 %v996, %v992
  %v1029 = vpack.c.b16 %v997, %v993
  %1062 = vmatprep.subr.bf16.mxu0 %v999
  %1063 = vmatpush1.bf16.msra.mxu0 %v998
  %1064 = vmatprep.subr.bf16.mxu0 %v1003
  %1065 = vmatpush1.bf16.msra.mxu0 %v1002
  %1066 = vmatprep.subr.bf16.mxu0 %v1007
  %1067 = vmatpush1.bf16.msra.mxu0 %v1006
  %1068 = vmatprep.subr.bf16.mxu0 %v1011
  %1069 = vmatpush1.bf16.msra.mxu0 %v1010
  %1070 = vmatprep.subr.bf16.mxu0 %v1015
  %1071 = vmatpush1.bf16.msra.mxu0 %v1014
  %1072 = vmatprep.subr.bf16.mxu0 %v1019
  %1073 = vmatpush1.bf16.msra.mxu0 %v1018
  %1074 = vmatprep.subr.bf16.mxu0 %v1023
  %1075 = vmatpush1.bf16.msra.mxu0 %v1022
  %1076 = vmatprep.subr.bf16.mxu0 %v1027
  %1077 = vmatpush1.bf16.msra.mxu0 %v1026
  %1078 = vmatprep.subr.bf16.mxu0 0
  %1079 = vmatpush1.bf16.msra.mxu0 0
  %1080 = vmatprep.subr.bf16.mxu0 0
  %1081 = vmatpush1.bf16.msra.mxu0 0
  %1082 = vmatprep.subr.bf16.mxu0 0
  %1083 = vmatpush1.bf16.msra.mxu0 0
  %1084 = vmatprep.subr.bf16.mxu0 0
  %1085 = vmatpush1.bf16.msra.mxu0 0
  %1086 = vmatprep.subr.bf16.mxu0 0
  %1087 = vmatpush1.bf16.msra.mxu0 0
  %1088 = vmatprep.subr.bf16.mxu0 0
  %1089 = vmatpush1.bf16.msra.mxu0 0
  %1090 = vmatprep.subr.bf16.mxu0 0
  %1091 = vmatpush1.bf16.msra.mxu0 0
  %1092 = vmatprep.subr.bf16.mxu0 0
  %1093 = vmatpush1.bf16.msra.mxu0 0
  %1094 = vmatprep.mubr.bf16.mxu0 0
  %1095 = vmatmul.mubr.bf16.gmra.mrb[0].mxu0 %v868
  %v1096 = vpop.f32.mrb[0].mxu0
  %v1097 = vadd.f32 0.0, %v1096
  %v1098 = vpop.f32.mrb[0].mxu0
  %v1099 = vadd.f32 0.0, %v1098
  %v1100 = vpop.f32.mrb[0].mxu0
  %v1101 = vpop.f32.mrb[0].mxu0
  %1102 = vdwg.mxu0
  %1103 = vmatprep.subr.bf16.mxu0 %v1001
  %1104 = vmatpush1.bf16.msra.mxu0 %v1000
  %1105 = vmatprep.subr.bf16.mxu0 %v1005
  %1106 = vmatpush1.bf16.msra.mxu0 %v1004
  %1107 = vmatprep.subr.bf16.mxu0 %v1009
  %1108 = vmatpush1.bf16.msra.mxu0 %v1008
  %1109 = vmatprep.subr.bf16.mxu0 %v1013
  %1110 = vmatpush1.bf16.msra.mxu0 %v1012
  %1111 = vmatprep.subr.bf16.mxu0 %v1017
  %1112 = vmatpush1.bf16.msra.mxu0 %v1016
  %1113 = vmatprep.subr.bf16.mxu0 %v1021
  %1114 = vmatpush1.bf16.msra.mxu0 %v1020
  %1115 = vmatprep.subr.bf16.mxu0 %v1025
  %1116 = vmatpush1.bf16.msra.mxu0 %v1024
  %1117 = vmatprep.subr.bf16.mxu0 %v1029
  %1118 = vmatpush1.bf16.msra.mxu0 %v1028
  %1119 = vmatprep.subr.bf16.mxu0 0
  %1120 = vmatpush1.bf16.msra.mxu0 0
  %1121 = vmatprep.subr.bf16.mxu0 0
  %1122 = vmatpush1.bf16.msra.mxu0 0
  %1123 = vmatprep.subr.bf16.mxu0 0
  %1124 = vmatpush1.bf16.msra.mxu0 0
  %1125 = vmatprep.subr.bf16.mxu0 0
  %1126 = vmatpush1.bf16.msra.mxu0 0
  %1127 = vmatprep.subr.bf16.mxu0 0
  %1128 = vmatpush1.bf16.msra.mxu0 0
  %1129 = vmatprep.subr.bf16.mxu0 0
  %1130 = vmatpush1.bf16.msra.mxu0 0
  %1131 = vmatprep.subr.bf16.mxu0 0
  %1132 = vmatpush1.bf16.msra.mxu0 0
  %1133 = vmatprep.subr.bf16.mxu0 0
  %1134 = vmatpush1.bf16.msra.mxu0 0
  %1135 = vmatprep.mubr.bf16.mxu0 0
  %1136 = vmatmul.mubr.bf16.gmra.mrb[0].mxu0 %v868
  %v1137 = vpop.f32.mrb[0].mxu0
  %v1138 = vadd.f32 0.0, %v1137
  %v1139 = vpop.f32.mrb[0].mxu0
  %v1140 = vadd.f32 0.0, %v1139
  %v1141 = vpop.f32.mrb[0].mxu0
  %v1142 = vpop.f32.mrb[0].mxu0
  %1143 = vdwg.mxu0
  %v1144 = vtanh.pop %v1097
  %v1145 = vtanh.pop %v1099
  %v1146 = vtanh.pop %v1138
  %v1147 = vtanh.pop %v1140
  %s1148 = scalar_lea.vmem %s2, 96
  %1149 = vst [vmem:[%s1148] sm:$0xff] %v1144
  %1150 = vst [vmem:[%s1148 + $0x8] sm:$0xff] %v1145
  %1151 = vst [vmem:[%s1148 + $0x10] sm:$0xff] %v1146
  %1152 = vst [vmem:[%s1148 + $0x18] sm:$0xff] %v1147
  // Predicated region
  $region10: #{generator_forward.7} parent=0 // pred_check
    _
  $region11: #{generator_forward.7} parent=0 // pred_check_branch
    %1154 = sbr.rel (0) target = $region13
  $region12: #{generator_forward.7} parent=0 // pred_region
    _
  $region13: #{generator_forward.7} parent=0 // pred_fallthru
    _
  // Predicated region
  $region14: #{generator_forward.7} parent=0 // pred_check
    _
  $region15: #{generator_forward.7} parent=0 // pred_check_branch
    %1156 = sbr.rel (0) target = $region17
  $region16: #{generator_forward.7} parent=0 // pred_region
    _
  $region17: #{generator_forward.7} parent=0 // pred_fallthru
    _

</llo_original>
